<compile_context>
chip_gen: v7x
topology: tpu7x:2x2x1
jax: 0.10.0
libtpu: 0.0.40
codegen_flags: <defaults>
</compile_context>

<pallas_src>
import jax
import jax.numpy as jnp
from jax.experimental import pallas as pl
from jax.experimental.pallas import tpu as pltpu

# ---------------- model dimensions (implied by the module) ----------------
IN_DIM = 768           # backbone fusion feature width
HIDDEN = 512           # transformer.d_model / input_proj output
HID2 = 2 * HIDDEN      # 1024, bbox MLP inner width
FUSED1 = 2 * HID2      # 2048 = bbox layer-0 || conf layer-0 (fused GEMM)
NUM_ROLE_TOKENS = 13
NUM_VERB_TOKENS = 8
MAX_ROLES = 3
OUT_LANES = 128        # lane-dense packed output width (bbox 0:4, conf 4)


def _round_up(x, m):
    return ((x + m - 1) // m) * m


def _choose_tb(B):
    """Batch tile. Small B: one tile. B > 64: >=2 tiles (v7x 2-TC sharding), cap 256."""
    if B <= 64:
        return _round_up(B, 8)
    return min(256, _round_up((B + 1) // 2, 8))


# =========================== Pallas kernel ===========================

def coformer_kernel(pooled_ref, add_ref,
                    wp_ref, bp_ref, w1c_ref, b1c_ref, w2_ref, b2_ref,
                    w3p_ref, wc2p_ref, btail_ref,
                    out_ref):
    """One batch tile: input_proj on pooled feature -> fused bbox / conf MLP heads."""
    tb = pooled_ref.shape[0]                                   # batch-tile size (mult of 8)

    # input_proj: Linear(768, 512) on the mean-pooled fusion feature.
    # (pooling hoisted to the wrapper; exact by linearity of the projection)
    proj = jnp.dot(pooled_ref[...], wp_ref[...],
                   preferred_element_type=jnp.float32) + bp_ref[...]        # (TB, 512)

    # TODO(synk): real CoFormer runs its GSR transformer decoder here; stand-in
    # rhs is pooled projected feature + (role_token + verb_token) embed.
    # One broadcast add, role-major free reshape -> head matmul M = 3*TB.
    rhs = (proj[None, :, :] + add_ref[...].astype(jnp.float32)
           ).reshape(MAX_ROLES * tb, HIDDEN)
    rhs_bf = rhs.astype(jnp.bfloat16)

    # Fused first layers: [bbox_predictor[0] || bbox_conf_predictor[0]] -> ReLU.
    h_all = jnp.dot(rhs_bf, w1c_ref[...],
                    preferred_element_type=jnp.float32) + b1c_ref[...]      # (3TB, 2048)
    h_all = jnp.maximum(h_all, 0.0)
    h, hc = h_all[:, :HID2], h_all[:, HID2:]

    # bbox_predictor middle layer: Linear(1024,1024) -> ReLU.
    h = jnp.dot(h.astype(jnp.bfloat16), w2_ref[...],
                preferred_element_type=jnp.float32) + b2_ref[...]
    h = jnp.maximum(h, 0.0)

    # Fused tails, packed into one 128-lane output:
    #   bbox_predictor[6]      -> lanes 0:4   (sigmoid)
    #   bbox_conf_predictor[3] -> lane  4     (linear)
    tail = (jnp.dot(h.astype(jnp.bfloat16), w3p_ref[...],
                    preferred_element_type=jnp.float32)
            + jnp.dot(hc.astype(jnp.bfloat16), wc2p_ref[...],
                      preferred_element_type=jnp.float32)
            + btail_ref[...])                                               # (3TB, 128)
    lane = jax.lax.broadcasted_iota(jnp.int32, tail.shape, 1)
    packed = jnp.where(lane < 4, jax.nn.sigmoid(tail), tail)

    # Lane-dense, unmasked store. F.pad zero-masking of unused roles happens
    # in the wrapper (multiplies only B*3*5 floats).
    out_ref[...] = packed.reshape(MAX_ROLES, tb, OUT_LANES)


# =========================== host-side wrappers ===========================

def _const_spec(arr):
    """Resident (grid-invariant) weight block: single-buffered, constant index_map."""
    nd = arr.ndim
    idx = lambda i, _nd=nd: (0,) * _nd
    try:
        return pl.BlockSpec(arr.shape, idx, pipeline_mode=pl.Buffered(1))
    except TypeError:  # older BlockSpec signature without pipeline_mode
        return pl.BlockSpec(arr.shape, idx)


def prepare_weights(params):
    """One-time weight prep (call once, reuse every forward): bf16 casts,
    layer-0 fusion, and tail packing into 128 lanes (bbox 0:4, conf 4)."""
    (wp, bp, w1, b1, w2, b2, w3, b3, wc1, bc1, wc2, bc2) = params
    bf16 = jnp.bfloat16
    wp_b = wp.astype(bf16)                                           # (768, 512)
    w1c = jnp.concatenate([w1, wc1], axis=1).astype(bf16)            # (512, 2048)
    b1c = jnp.concatenate([b1, bc1], axis=1)                         # (1, 2048) f32
    w2_b = w2.astype(bf16)                                           # (1024, 1024)
    w3p = jnp.zeros((HID2, OUT_LANES), jnp.float32
                    ).at[:, :4].set(w3).astype(bf16)                 # (1024, 128)
    wc2p = jnp.zeros((HID2, OUT_LANES), jnp.float32
                     ).at[:, 4:5].set(wc2).astype(bf16)              # (1024, 128)
    btail = (jnp.zeros((1, OUT_LANES), jnp.float32)
             .at[:, :4].set(b3).at[:, 4:5].set(bc2))                 # (1, 128) f32
    prepped = (wp_b, bp, w1c, b1c, w2_b, b2, w3p, wc2p, btail)
    return jax.tree_util.tree_map(jnp.asarray, prepped)


def coformer_forward(feat, role_verb_add, role_mask, prepped_weights):
    """feat: [B, S, 768]; role_verb_add: [B, 3, 512]; role_mask: [B, 3, 1]."""
    B, S, _ = feat.shape

    # Pool BEFORE project: mean(feat) @ Wp + bp == mean(feat @ Wp + bp).
    pooled = feat.mean(axis=1)                                       # (B, 768) f32

    TB = _choose_tb(B)
    B_pad = _round_up(B, TB)
    num_tiles = B_pad // TB
    pad = B_pad - B

    pooled_p = jnp.pad(pooled, ((0, pad), (0, 0))).astype(jnp.bfloat16)        # (B_pad, 768)
    add_rm = jnp.pad(role_verb_add, ((0, pad), (0, 0), (0, 0))
                     ).transpose(1, 0, 2).astype(jnp.bfloat16)                 # (3, B_pad, 512)

    weight_args = prepped_weights

    # Advisory cost estimate (flops of the 4 GEMM stages, sigmoid transcendentals).
    per_sample_flops = 2 * (IN_DIM * HIDDEN
                            + MAX_ROLES * (HIDDEN * FUSED1
                                           + HID2 * HID2
                                           + 2 * HID2 * OUT_LANES))
    weight_bytes = sum(int(w.size) * int(w.dtype.itemsize) for w in weight_args)
    bytes_accessed = (int(pooled_p.size) * 2 + int(add_rm.size) * 2
                      + weight_bytes + MAX_ROLES * B_pad * OUT_LANES * 4)
    cost = pl.CostEstimate(flops=per_sample_flops * B_pad,
                           transcendentals=MAX_ROLES * B_pad * OUT_LANES,
                           bytes_accessed=bytes_accessed)

    grid_spec = pltpu.PrefetchScalarGridSpec(
        num_scalar_prefetch=0,
        grid=(num_tiles,),
        in_specs=[
            pl.BlockSpec((TB, IN_DIM), lambda i: (i, 0)),                 # pooled feature
            pl.BlockSpec((MAX_ROLES, TB, HIDDEN), lambda i: (0, i, 0)),   # role+verb embed
        ] + [_const_spec(w) for w in weight_args],                        # resident weights
        out_specs=pl.BlockSpec((MAX_ROLES, TB, OUT_LANES), lambda i: (0, i, 0)),
    )

    packed_p = pl.pallas_call(
        coformer_kernel,
        out_shape=jax.ShapeDtypeStruct((MAX_ROLES, B_pad, OUT_LANES), jnp.float32),
        grid_spec=grid_spec,
        compiler_params=pltpu.CompilerParams(
            dimension_semantics=("parallel",),          # independent batch tiles
            vmem_limit_bytes=56 * 1024 * 1024,          # <= v7x's 64 MiB physical VMEM
        ),
        cost_estimate=cost,
    )(pooled_p, add_rm, *weight_args)

    packed = packed_p[:, :B, :]                         # (3, B, 128)
    # F.pad(..., value=0) over the role axis => zero the padded roles here.
    bbox = packed[:, :, :4].transpose(1, 0, 2) * role_mask    # (B, 3, 4)
    conf = packed[:, :, 4:5].transpose(1, 0, 2) * role_mask   # (B, 3, 1)
    return {"pred_bbox": bbox, "pred_bbox_conf": conf}


# =========================== reference & setup ===========================

def reference_forward(feat, role_verb_add, role_mask, params):
    """Pure-JAX reference mirroring the kernel's bf16/f32 mixed precision."""
    (wp, bp, w1, b1, w2, b2, w3, b3, wc1, bc1, wc2, bc2) = params
    bf = lambda x: x.astype(jnp.bfloat16)
    pooled = feat.mean(axis=1)                                            # (B, 768)
    proj = jnp.dot(bf(pooled), bf(wp), preferred_element_type=jnp.float32) + bp
    rhs = proj[:, None, :] + bf(role_verb_add).astype(jnp.float32)        # (B, 3, 512)
    rhs_b = bf(rhs)
    h = jax.nn.relu(jnp.dot(rhs_b, bf(w1), preferred_element_type=jnp.float32) + b1)
    hc = jax.nn.relu(jnp.dot(rhs_b, bf(wc1), preferred_element_type=jnp.float32) + bc1)
    h = jax.nn.relu(jnp.dot(bf(h), bf(w2), preferred_element_type=jnp.float32) + b2)
    bbox = jax.nn.sigmoid(
        jnp.dot(bf(h), bf(w3), preferred_element_type=jnp.float32) + b3) * role_mask
    conf = (jnp.dot(bf(hc), bf(wc2), preferred_element_type=jnp.float32) + bc2) * role_mask
    return bbox, conf


def init_params(key):
    ks = jax.random.split(key, 12)

    def lin(k, fan_in, fan_out):
        scale = 1.0 / jnp.sqrt(jnp.float32(fan_in))
        w = jax.random.uniform(k, (fan_in, fan_out), jnp.float32, -scale, scale)
        b = jnp.full((1, fan_out), 0.01, jnp.float32)
        return w, b

    wp, bp = lin(ks[0], IN_DIM, HIDDEN)          # input_proj
    w1, b1 = lin(ks[1], HIDDEN, HID2)            # bbox_predictor[0]
    w2, b2 = lin(ks[2], HID2, HID2)              # bbox_predictor[3]
    w3, b3 = lin(ks[3], HID2, 4)                 # bbox_predictor[6]
    wc1, bc1 = lin(ks[4], HIDDEN, HID2)          # bbox_conf_predictor[0]
    wc2, bc2 = lin(ks[5], HID2, 1)               # bbox_conf_predictor[3]
    role_embed = 0.02 * jax.random.normal(ks[6], (NUM_ROLE_TOKENS, HIDDEN), jnp.float32)
    verb_embed = 0.02 * jax.random.normal(ks[7], (NUM_VERB_TOKENS, HIDDEN), jnp.float32)
    mlp_params = (wp, bp, w1, b1, w2, b2, w3, b3, wc1, bc1, wc2, bc2)
    return mlp_params, role_embed, verb_embed


if __name__ == "__main__":
    key = jax.random.PRNGKey(0)
    kp, kf = jax.random.split(key)

    B, S = 2, 8
    mlp_params, role_embed, verb_embed = init_params(kp)
    prepped = prepare_weights(mlp_params)        # one-time weight prep (cached)

    # Stand-in for backbone.get_fusion_feature(images, sentences): [B, S, 768].
    # TODO(synk): real backbone is an external BERT/CLIP fusion model.
    feat = jax.random.normal(kf, (B, S, IN_DIM), jnp.float32)

    # Per-sample "targets": verb index + selected role indices (padded to 3).
    verb_idx = jnp.array([1, 5], dtype=jnp.int32)                          # [B]
    selected_roles = jnp.array([[2, 7, 11], [0, 4, 0]], dtype=jnp.int32)   # [B, 3]
    num_selected = jnp.array([3, 2], dtype=jnp.int32)                      # roles per sample

    # Glue: gather role / verb token embeddings, build pad mask (plain JAX).
    role_mask = (jnp.arange(MAX_ROLES)[None, :] < num_selected[:, None]
                 ).astype(jnp.float32)[..., None]                          # [B, 3, 1]
    role_sel = jnp.take(role_embed, selected_roles, axis=0)                # [B, 3, 512]
    verb_sel = jnp.take(verb_embed, verb_idx, axis=0)[:, None, :]          # [B, 1, 512]
    role_verb_add = (role_sel + verb_sel) * role_mask                      # [B, 3, 512]

    fwd = jax.jit(coformer_forward)
    out = fwd(feat, role_verb_add, role_mask, prepped)
    jax.block_until_ready(out)

    ref_bbox, ref_conf = reference_forward(feat, role_verb_add, role_mask, mlp_params)
    assert out["pred_bbox"].shape == (B, MAX_ROLES, 4)
    assert out["pred_bbox_conf"].shape == (B, MAX_ROLES, 1)
    assert jnp.allclose(out["pred_bbox"], ref_bbox, atol=2e-3, rtol=2e-3)
    assert jnp.allclose(out["pred_bbox_conf"], ref_conf, atol=2e-3, rtol=2e-3)

    print("KERNEL_OK")
</pallas_src>

<mosaic_0001>
module attributes {stable_mosaic.version = 11 : i64} {
  func.func @coformer_kernel(%arg0: i32, %arg1: memref<8x768xbf16, #tpu.memory_space<vmem>>, %arg2: memref<3x8x512xbf16, #tpu.memory_space<vmem>>, %arg3: memref<768x512xbf16, #tpu.memory_space<vmem>>, %arg4: memref<1x512xf32, #tpu.memory_space<vmem>>, %arg5: memref<512x2048xbf16, #tpu.memory_space<vmem>>, %arg6: memref<1x2048xf32, #tpu.memory_space<vmem>>, %arg7: memref<1024x1024xbf16, #tpu.memory_space<vmem>>, %arg8: memref<1x1024xf32, #tpu.memory_space<vmem>>, %arg9: memref<1024x128xbf16, #tpu.memory_space<vmem>>, %arg10: memref<1024x128xbf16, #tpu.memory_space<vmem>>, %arg11: memref<1x128xf32, #tpu.memory_space<vmem>>, %arg12: memref<3x8x128xf32, #tpu.memory_space<vmem>>) attributes {dimension_semantics = [#tpu.dimension_semantics<parallel>], iteration_bounds = array<i64: 1>, scalar_prefetch = 0 : i64, scratch_operands = 0 : i64, tpu.core_type = #tpu.core_type<tc>, window_params = [{transform_indices = @transform_0, window_bounds = array<i64: 8, 768>}, {transform_indices = @transform_1, window_bounds = array<i64: 3, 8, 512>}, {pipeline_mode = #tpu.pipeline_mode<synchronous>, transform_indices = @transform_2, window_bounds = array<i64: 768, 512>}, {pipeline_mode = #tpu.pipeline_mode<synchronous>, transform_indices = @transform_3, window_bounds = array<i64: 1, 512>}, {pipeline_mode = #tpu.pipeline_mode<synchronous>, transform_indices = @transform_4, window_bounds = array<i64: 512, 2048>}, {pipeline_mode = #tpu.pipeline_mode<synchronous>, transform_indices = @transform_5, window_bounds = array<i64: 1, 2048>}, {pipeline_mode = #tpu.pipeline_mode<synchronous>, transform_indices = @transform_6, window_bounds = array<i64: 1024, 1024>}, {pipeline_mode = #tpu.pipeline_mode<synchronous>, transform_indices = @transform_7, window_bounds = array<i64: 1, 1024>}, {pipeline_mode = #tpu.pipeline_mode<synchronous>, transform_indices = @transform_8, window_bounds = array<i64: 1024, 128>}, {pipeline_mode = #tpu.pipeline_mode<synchronous>, transform_indices = @transform_9, window_bounds = array<i64: 1024, 128>}, {pipeline_mode = #tpu.pipeline_mode<synchronous>, transform_indices = @transform_10, window_bounds = array<i64: 1, 128>}, {transform_indices = @transform_11, window_bounds = array<i64: 3, 8, 128>}]} {
    %c0 = arith.constant 0 : index
    %c0_0 = arith.constant 0 : index
    %0 = vector.load %arg1[%c0, %c0_0] : memref<8x768xbf16, #tpu.memory_space<vmem>>, vector<8x768xbf16>
    %c0_1 = arith.constant 0 : index
    %c0_2 = arith.constant 0 : index
    %1 = vector.load %arg3[%c0_1, %c0_2] : memref<768x512xbf16, #tpu.memory_space<vmem>>, vector<768x512xbf16>
    %cst = arith.constant dense<0.000000e+00> : vector<8x512xf32>
    %2 = tpu.matmul %0, %1, %cst {dimension_numbers = #tpu.dot_dimension_numbers<[1], [0], [0], [1], [0, 0, 1, 1], [], []>} : vector<8x768xbf16>, vector<768x512xbf16>, vector<8x512xf32> -> vector<8x512xf32>
    %c0_3 = arith.constant 0 : index
    %c0_4 = arith.constant 0 : index
    %3 = vector.load %arg4[%c0_3, %c0_4] : memref<1x512xf32, #tpu.memory_space<vmem>>, vector<1x512xf32>
    %4 = vector.broadcast %3 : vector<1x512xf32> to vector<8x512xf32>
    %5 = arith.addf %2, %4 : vector<8x512xf32>
    %6 = vector.shape_cast %5 : vector<8x512xf32> to vector<1x8x512xf32>
    %c0_5 = arith.constant 0 : index
    %c0_6 = arith.constant 0 : index
    %c0_7 = arith.constant 0 : index
    %7 = vector.load %arg2[%c0_5, %c0_6, %c0_7] : memref<3x8x512xbf16, #tpu.memory_space<vmem>>, vector<3x8x512xbf16>
    %8 = arith.extf %7 : vector<3x8x512xbf16> to vector<3x8x512xf32>
    %9 = vector.broadcast %6 : vector<1x8x512xf32> to vector<3x8x512xf32>
    %10 = arith.addf %9, %8 : vector<3x8x512xf32>
    %11 = vector.shape_cast %10 : vector<3x8x512xf32> to vector<24x512xf32>
    %12 = arith.truncf %11 : vector<24x512xf32> to vector<24x512xbf16>
    %c0_8 = arith.constant 0 : index
    %c0_9 = arith.constant 0 : index
    %13 = vector.load %arg5[%c0_8, %c0_9] : memref<512x2048xbf16, #tpu.memory_space<vmem>>, vector<512x2048xbf16>
    %cst_10 = arith.constant dense<0.000000e+00> : vector<24x2048xf32>
    %14 = tpu.matmul %12, %13, %cst_10 {dimension_numbers = #tpu.dot_dimension_numbers<[1], [0], [0], [1], [0, 0, 1, 1], [], []>} : vector<24x512xbf16>, vector<512x2048xbf16>, vector<24x2048xf32> -> vector<24x2048xf32>
    %c0_11 = arith.constant 0 : index
    %c0_12 = arith.constant 0 : index
    %15 = vector.load %arg6[%c0_11, %c0_12] : memref<1x2048xf32, #tpu.memory_space<vmem>>, vector<1x2048xf32>
    %16 = vector.broadcast %15 : vector<1x2048xf32> to vector<24x2048xf32>
    %17 = arith.addf %14, %16 : vector<24x2048xf32>
    %cst_13 = arith.constant 0.000000e+00 : f32
    %18 = vector.broadcast %cst_13 : f32 to vector<24x2048xf32>
    %19 = arith.maximumf %17, %18 : vector<24x2048xf32>
    %20 = vector.extract_strided_slice %19 {offsets = [0, 0], sizes = [24, 1024], strides = [1, 1]} : vector<24x2048xf32> to vector<24x1024xf32>
    %21 = vector.extract_strided_slice %19 {offsets = [0, 1024], sizes = [24, 1024], strides = [1, 1]} : vector<24x2048xf32> to vector<24x1024xf32>
    %22 = arith.truncf %20 : vector<24x1024xf32> to vector<24x1024xbf16>
    %c0_14 = arith.constant 0 : index
    %c0_15 = arith.constant 0 : index
    %23 = vector.load %arg7[%c0_14, %c0_15] : memref<1024x1024xbf16, #tpu.memory_space<vmem>>, vector<1024x1024xbf16>
    %cst_16 = arith.constant dense<0.000000e+00> : vector<24x1024xf32>
    %24 = tpu.matmul %22, %23, %cst_16 {dimension_numbers = #tpu.dot_dimension_numbers<[1], [0], [0], [1], [0, 0, 1, 1], [], []>} : vector<24x1024xbf16>, vector<1024x1024xbf16>, vector<24x1024xf32> -> vector<24x1024xf32>
    %c0_17 = arith.constant 0 : index
    %c0_18 = arith.constant 0 : index
    %25 = vector.load %arg8[%c0_17, %c0_18] : memref<1x1024xf32, #tpu.memory_space<vmem>>, vector<1x1024xf32>
    %26 = vector.broadcast %25 : vector<1x1024xf32> to vector<24x1024xf32>
    %27 = arith.addf %24, %26 : vector<24x1024xf32>
    %cst_19 = arith.constant 0.000000e+00 : f32
    %28 = vector.broadcast %cst_19 : f32 to vector<24x1024xf32>
    %29 = arith.maximumf %27, %28 : vector<24x1024xf32>
    %30 = arith.truncf %29 : vector<24x1024xf32> to vector<24x1024xbf16>
    %c0_20 = arith.constant 0 : index
    %c0_21 = arith.constant 0 : index
    %31 = vector.load %arg9[%c0_20, %c0_21] : memref<1024x128xbf16, #tpu.memory_space<vmem>>, vector<1024x128xbf16>
    %cst_22 = arith.constant dense<0.000000e+00> : vector<24x128xf32>
    %32 = tpu.matmul %30, %31, %cst_22 {dimension_numbers = #tpu.dot_dimension_numbers<[1], [0], [0], [1], [0, 0, 1, 1], [], []>} : vector<24x1024xbf16>, vector<1024x128xbf16>, vector<24x128xf32> -> vector<24x128xf32>
    %33 = arith.truncf %21 : vector<24x1024xf32> to vector<24x1024xbf16>
    %c0_23 = arith.constant 0 : index
    %c0_24 = arith.constant 0 : index
    %34 = vector.load %arg10[%c0_23, %c0_24] : memref<1024x128xbf16, #tpu.memory_space<vmem>>, vector<1024x128xbf16>
    %cst_25 = arith.constant dense<0.000000e+00> : vector<24x128xf32>
    %35 = tpu.matmul %33, %34, %cst_25 {dimension_numbers = #tpu.dot_dimension_numbers<[1], [0], [0], [1], [0, 0, 1, 1], [], []>} : vector<24x1024xbf16>, vector<1024x128xbf16>, vector<24x128xf32> -> vector<24x128xf32>
    %36 = arith.addf %32, %35 : vector<24x128xf32>
    %c0_26 = arith.constant 0 : index
    %c0_27 = arith.constant 0 : index
    %37 = vector.load %arg11[%c0_26, %c0_27] : memref<1x128xf32, #tpu.memory_space<vmem>>, vector<1x128xf32>
    %38 = vector.broadcast %37 : vector<1x128xf32> to vector<24x128xf32>
    %39 = arith.addf %36, %38 : vector<24x128xf32>
    %40 = tpu.iota {dimensions = array<i32: 1>} : vector<24x128xi32>
    %c4_i32 = arith.constant 4 : i32
    %41 = vector.broadcast %c4_i32 : i32 to vector<24x128xi32>
    %42 = arith.cmpi slt, %40, %41 : vector<24x128xi32>
    %43 = arith.negf %39 : vector<24x128xf32>
    %44 = math.exp %43 : vector<24x128xf32>
    %cst_28 = arith.constant 1.000000e+00 : f32
    %45 = vector.broadcast %cst_28 : f32 to vector<24x128xf32>
    %46 = arith.addf %45, %44 : vector<24x128xf32>
    %47 = arith.divf %45, %46 : vector<24x128xf32>
    %48 = arith.select %42, %47, %39 : vector<24x128xi1>, vector<24x128xf32>
    %49 = vector.shape_cast %48 : vector<24x128xf32> to vector<3x8x128xf32>
    %c0_29 = arith.constant 0 : index
    %c0_30 = arith.constant 0 : index
    %c0_31 = arith.constant 0 : index
    %50 = vector.load %arg12[%c0_29, %c0_30, %c0_31] : memref<3x8x128xf32, #tpu.memory_space<vmem>>, vector<3x8x128xf32>
    tpu.vector_store %arg12[%c0_29, %c0_30, %c0_31], %49 {strides = array<i32>} : memref<3x8x128xf32, #tpu.memory_space<vmem>>, vector<3x8x128xf32>,
    return
  }
  func.func @transform_0(%arg0: i32) -> (i32, i32) {
    %c0_i32 = arith.constant 0 : i32
    %c0_i32_0 = arith.constant 0 : i32
    return %arg0, %c0_i32 : i32, i32
  }
  func.func @transform_1(%arg0: i32) -> (i32, i32, i32) {
    %c0_i32 = arith.constant 0 : i32
    %c0_i32_0 = arith.constant 0 : i32
    %c0_i32_1 = arith.constant 0 : i32
    return %c0_i32, %arg0, %c0_i32_0 : i32, i32, i32
  }
  func.func @transform_2(%arg0: i32) -> (i32, i32) {
    %c0_i32 = arith.constant 0 : i32
    %c0_i32_0 = arith.constant 0 : i32
    %c0_i32_1 = arith.constant 0 : i32
    return %c0_i32, %c0_i32_0 : i32, i32
  }
  func.func @transform_3(%arg0: i32) -> (i32, i32) {
    %c0_i32 = arith.constant 0 : i32
    %c0_i32_0 = arith.constant 0 : i32
    %c0_i32_1 = arith.constant 0 : i32
    return %c0_i32, %c0_i32_0 : i32, i32
  }
  func.func @transform_4(%arg0: i32) -> (i32, i32) {
    %c0_i32 = arith.constant 0 : i32
    %c0_i32_0 = arith.constant 0 : i32
    %c0_i32_1 = arith.constant 0 : i32
    return %c0_i32, %c0_i32_0 : i32, i32
  }
  func.func @transform_5(%arg0: i32) -> (i32, i32) {
    %c0_i32 = arith.constant 0 : i32
    %c0_i32_0 = arith.constant 0 : i32
    %c0_i32_1 = arith.constant 0 : i32
    return %c0_i32, %c0_i32_0 : i32, i32
  }
  func.func @transform_6(%arg0: i32) -> (i32, i32) {
    %c0_i32 = arith.constant 0 : i32
    %c0_i32_0 = arith.constant 0 : i32
    %c0_i32_1 = arith.constant 0 : i32
    return %c0_i32, %c0_i32_0 : i32, i32
  }
  func.func @transform_7(%arg0: i32) -> (i32, i32) {
    %c0_i32 = arith.constant 0 : i32
    %c0_i32_0 = arith.constant 0 : i32
    %c0_i32_1 = arith.constant 0 : i32
    return %c0_i32, %c0_i32_0 : i32, i32
  }
  func.func @transform_8(%arg0: i32) -> (i32, i32) {
    %c0_i32 = arith.constant 0 : i32
    %c0_i32_0 = arith.constant 0 : i32
    %c0_i32_1 = arith.constant 0 : i32
    return %c0_i32, %c0_i32_0 : i32, i32
  }
  func.func @transform_9(%arg0: i32) -> (i32, i32) {
    %c0_i32 = arith.constant 0 : i32
    %c0_i32_0 = arith.constant 0 : i32
    %c0_i32_1 = arith.constant 0 : i32
    return %c0_i32, %c0_i32_0 : i32, i32
  }
  func.func @transform_10(%arg0: i32) -> (i32, i32) {
    %c0_i32 = arith.constant 0 : i32
    %c0_i32_0 = arith.constant 0 : i32
    %c0_i32_1 = arith.constant 0 : i32
    return %c0_i32, %c0_i32_0 : i32, i32
  }
  func.func @transform_11(%arg0: i32) -> (i32, i32, i32) {
    %c0_i32 = arith.constant 0 : i32
    %c0_i32_0 = arith.constant 0 : i32
    %c0_i32_1 = arith.constant 0 : i32
    return %c0_i32, %arg0, %c0_i32_0 : i32, i32, i32
  }
}

</mosaic_0001>

<llo_original>
// kernel: coformer_forward.1
$region0: #{coformer_forward.1}
  #allocation0 [shape = 'u32[]', space=smem, size = 0x4, offset = 0x4, fixed_abs, tag = 'smem constant byte address 0x4 - core index']
  #allocation1 [shape = 'u32[144,128]{1,0:T(1,128)}', space=vmem, size = 0x12000, scoped, tag = 'internal scratch']
  %s0 = inlined_call_operand.vmem [shape: bf16[8,768], index: 0, kind: input, shape index: {}]
  %s1 = inlined_call_operand.vmem [shape: bf16[3,8,512], index: 1, kind: input, shape index: {}]
  %s2 = inlined_call_operand.hbm [shape: bf16[768,512], index: 2, kind: input, shape index: {}]
  %s3 = inlined_call_operand.hbm [shape: f32[1,512], index: 3, kind: input, shape index: {}]
  %s4 = inlined_call_operand.hbm [shape: bf16[512,2048], index: 4, kind: input, shape index: {}]
  %s5 = inlined_call_operand.hbm [shape: f32[1,2048], index: 5, kind: input, shape index: {}]
  %s6 = inlined_call_operand.hbm [shape: bf16[1024,1024], index: 6, kind: input, shape index: {}]
  %s7 = inlined_call_operand.hbm [shape: f32[1,1024], index: 7, kind: input, shape index: {}]
  %s8 = inlined_call_operand.hbm [shape: bf16[1024,128], index: 8, kind: input, shape index: {}]
  %s9 = inlined_call_operand.hbm [shape: bf16[1024,128], index: 9, kind: input, shape index: {}]
  %s10 = inlined_call_operand.hbm [shape: f32[1,128], index: 10, kind: input, shape index: {}]
  %s11 = inlined_call_operand.vmem [shape: f32[3,8,128], index: 11, kind: output, shape index: {}]
  %s12 = sld [smem:[#allocation0]]
  $region90: #{coformer_forward.1} parent=0
    _
  %s14 = ssub.s32 1, %s12
  %s15 = scalar_select 0, %s14, %s12
  $region1: #{coformer_forward.1} parent=0
    #allocation2 [shape = 'u8[786432]{0}', space=vmem, size = 0xc0000, scoped, tag = 'input window, operand 2, single buffered']
    #allocation3 [shape = 's32[1]{0}', space=sflag, size = 0x4, scoped, tag = 'scoped memory for coformer_forward.1']
    #allocation4 [shape = 'u8[2048]{0}', space=vmem, size = 0x800, scoped, tag = 'input window, operand 3, single buffered']
    #allocation5 [shape = 's32[1]{0}', space=sflag, size = 0x4, scoped, tag = 'scoped memory for coformer_forward.1']
    #allocation6 [shape = 'u8[2097152]{0}', space=vmem, size = 0x200000, scoped, tag = 'input window, operand 4, single buffered']
    #allocation7 [shape = 'u8[8192]{0}', space=vmem, size = 0x2000, scoped, tag = 'input window, operand 5, single buffered']
    #allocation8 [shape = 's32[1]{0}', space=sflag, size = 0x4, scoped, tag = 'scoped memory for coformer_forward.1']
    #allocation9 [shape = 'u8[2097152]{0}', space=vmem, size = 0x200000, scoped, tag = 'input window, operand 6, single buffered']
    #allocation10 [shape = 'u8[4096]{0}', space=vmem, size = 0x1000, scoped, tag = 'input window, operand 7, single buffered']
    #allocation11 [shape = 's32[1]{0}', space=sflag, size = 0x4, scoped, tag = 'scoped memory for coformer_forward.1']
    #allocation12 [shape = 'u8[262144]{0}', space=vmem, size = 0x40000, scoped, tag = 'input window, operand 8, single buffered']
    #allocation13 [shape = 'u8[262144]{0}', space=vmem, size = 0x40000, scoped, tag = 'input window, operand 9, single buffered']
    #allocation14 [shape = 's32[1]{0}', space=sflag, size = 0x4, scoped, tag = 'scoped memory for coformer_forward.1']
    #allocation15 [shape = 'u8[512]{0}', space=vmem, size = 0x400, scoped, tag = 'input window, operand 10, single buffered']
    %16 = vsyncpa [#allocation3], 0
    %17 = vsyncpa [#allocation5], 0
    %18 = vsyncpa [#allocation8], 0
    %19 = vsyncpa [#allocation11], 0
    %20 = vsyncpa [#allocation14], 0
    // Predicated region
    $region2: #{coformer_forward.1} parent=1 // pred_check
      _
    $region3: #{coformer_forward.1} parent=1 // pred_check_branch
      %22 = sbr.rel (0) target = $region5
    $region4: #{coformer_forward.1} parent=1 // pred_region
      _
    $region5: #{coformer_forward.1} parent=1 // pred_fallthru
      _
    // Predicated region
    $region6: #{coformer_forward.1} parent=1 // pred_check
      _
    $region7: #{coformer_forward.1} parent=1 // pred_check_branch
      %24 = sbr.rel (0) target = $region9
    $region8: #{coformer_forward.1} parent=1 // pred_region
      _
    $region9: #{coformer_forward.1} parent=1 // pred_fallthru
      _
    // Predicated region
    $region10: #{coformer_forward.1} parent=1 // pred_check
      _
    $region11: #{coformer_forward.1} parent=1 // pred_check_branch
      %26 = sbr.rel (0) target = $region13
    $region12: #{coformer_forward.1} parent=1 // pred_region
      %s28 = ssub.s32 24576, 24576
      %29 = vsyncadd [#allocation3], %s28
      %s30 = sshll.u32 [#allocation2], 4
      %s31 = int_to_ptr.vmem [resolvable:$true] %s30
      %36 = dma.hbm_to_vmem [thread:$0]  %s2, 24576, %s31, [#allocation3], 256, 256, 16
    $region13: #{coformer_forward.1} parent=1 // pred_fallthru
      _
    // Predicated region
    $region14: #{coformer_forward.1} parent=1 // pred_check
      _
    $region15: #{coformer_forward.1} parent=1 // pred_check_branch
      %38 = sbr.rel (0) target = $region17
    $region16: #{coformer_forward.1} parent=1 // pred_region
      %s40 = ssub.s32 64, 64
      %41 = vsyncadd [#allocation5], %s40
      %s43 = sshll.u32 [#allocation4], 4
      %s44 = int_to_ptr.vmem [resolvable:$true] %s43
      %46 = dma.hbm_to_vmem [thread:$0]  %s3, 64, %s44, [#allocation5]
    $region17: #{coformer_forward.1} parent=1 // pred_fallthru
      _
    // Predicated region
    $region18: #{coformer_forward.1} parent=1 // pred_check
      _
    $region19: #{coformer_forward.1} parent=1 // pred_check_branch
      %48 = sbr.rel (0) target = $region21
    $region20: #{coformer_forward.1} parent=1 // pred_region
      %s50 = ssub.s32 65536, 65536
      %51 = vsyncadd [#allocation5], %s50
      %s52 = sshll.u32 [#allocation6], 4
      %s53 = int_to_ptr.vmem [resolvable:$true] %s52
      %58 = dma.hbm_to_vmem [thread:$0]  %s4, 65536, %s53, [#allocation5], 1024, 1024, 64
    $region21: #{coformer_forward.1} parent=1 // pred_fallthru
      _
    // Predicated region
    $region22: #{coformer_forward.1} parent=1 // pred_check
      _
    $region23: #{coformer_forward.1} parent=1 // pred_check_branch
      %60 = sbr.rel (0) target = $region25
    $region24: #{coformer_forward.1} parent=1 // pred_region
      %s62 = ssub.s32 256, 256
      %63 = vsyncadd [#allocation8], %s62
      %s65 = sshll.u32 [#allocation7], 4
      %s66 = int_to_ptr.vmem [resolvable:$true] %s65
      %68 = dma.hbm_to_vmem [thread:$0]  %s5, 256, %s66, [#allocation8]
    $region25: #{coformer_forward.1} parent=1 // pred_fallthru
      _
    // Predicated region
    $region26: #{coformer_forward.1} parent=1 // pred_check
      _
    $region27: #{coformer_forward.1} parent=1 // pred_check_branch
      %70 = sbr.rel (0) target = $region29
    $region28: #{coformer_forward.1} parent=1 // pred_region
      %s72 = ssub.s32 65536, 65536
      %73 = vsyncadd [#allocation8], %s72
      %s74 = sshll.u32 [#allocation9], 4
      %s75 = int_to_ptr.vmem [resolvable:$true] %s74
      %80 = dma.hbm_to_vmem [thread:$0]  %s6, 65536, %s75, [#allocation8], 512, 512, 32
    $region29: #{coformer_forward.1} parent=1 // pred_fallthru
      _
    // Predicated region
    $region30: #{coformer_forward.1} parent=1 // pred_check
      _
    $region31: #{coformer_forward.1} parent=1 // pred_check_branch
      %82 = sbr.rel (0) target = $region33
    $region32: #{coformer_forward.1} parent=1 // pred_region
      %s84 = ssub.s32 128, 128
      %85 = vsyncadd [#allocation11], %s84
      %s87 = sshll.u32 [#allocation10], 4
      %s88 = int_to_ptr.vmem [resolvable:$true] %s87
      %90 = dma.hbm_to_vmem [thread:$0]  %s7, 128, %s88, [#allocation11]
    $region33: #{coformer_forward.1} parent=1 // pred_fallthru
      _
    // Predicated region
    $region34: #{coformer_forward.1} parent=1 // pred_check
      _
    $region35: #{coformer_forward.1} parent=1 // pred_check_branch
      %92 = sbr.rel (0) target = $region37
    $region36: #{coformer_forward.1} parent=1 // pred_region
      %s94 = ssub.s32 8192, 8192
      %95 = vsyncadd [#allocation11], %s94
      %s96 = sshll.u32 [#allocation12], 4
      %s97 = int_to_ptr.vmem [resolvable:$true] %s96
      %102 = dma.hbm_to_vmem [thread:$0]  %s8, 8192, %s97, [#allocation11], 64, 64, 4
    $region37: #{coformer_forward.1} parent=1 // pred_fallthru
      _
    // Predicated region
    $region38: #{coformer_forward.1} parent=1 // pred_check
      _
    $region39: #{coformer_forward.1} parent=1 // pred_check_branch
      %104 = sbr.rel (0) target = $region41
    $region40: #{coformer_forward.1} parent=1 // pred_region
      %s106 = ssub.s32 8192, 8192
      %107 = vsyncadd [#allocation14], %s106
      %s108 = sshll.u32 [#allocation13], 4
      %s109 = int_to_ptr.vmem [resolvable:$true] %s108
      %114 = dma.hbm_to_vmem [thread:$0]  %s9, 8192, %s109, [#allocation14], 64, 64, 4
    $region41: #{coformer_forward.1} parent=1 // pred_fallthru
      _
    // Predicated region
    $region42: #{coformer_forward.1} parent=1 // pred_check
      _
    $region43: #{coformer_forward.1} parent=1 // pred_check_branch
      %116 = sbr.rel (0) target = $region45
    $region44: #{coformer_forward.1} parent=1 // pred_region
      %s118 = ssub.s32 16, 16
      %119 = vsyncadd [#allocation14], %s118
      %s121 = sshll.u32 [#allocation15], 4
      %s122 = int_to_ptr.vmem [resolvable:$true] %s121
      %124 = dma.hbm_to_vmem [thread:$0]  %s10, 16, %s122, [#allocation14]
    $region45: #{coformer_forward.1} parent=1 // pred_fallthru
      _
    // Predicated region
    $region46: #{coformer_forward.1} parent=1 // pred_check
      _
    $region47: #{coformer_forward.1} parent=1 // pred_check_branch
      %126 = sbr.rel (0) target = $region49
    $region48: #{coformer_forward.1} parent=1 // pred_region
      %127 = dma.done [#allocation3], 24576
    $region49: #{coformer_forward.1} parent=1 // pred_fallthru
      _
    // Predicated region
    $region50: #{coformer_forward.1} parent=1 // pred_check
      _
    $region51: #{coformer_forward.1} parent=1 // pred_check_branch
      %129 = sbr.rel (0) target = $region53
    $region52: #{coformer_forward.1} parent=1 // pred_region
      %130 = dma.done [#allocation5], 64
    $region53: #{coformer_forward.1} parent=1 // pred_fallthru
      _
    // Predicated region
    $region54: #{coformer_forward.1} parent=1 // pred_check
      _
    $region55: #{coformer_forward.1} parent=1 // pred_check_branch
      %132 = sbr.rel (0) target = $region57
    $region56: #{coformer_forward.1} parent=1 // pred_region
      %133 = dma.done [#allocation5], 65536
    $region57: #{coformer_forward.1} parent=1 // pred_fallthru
      _
    // Predicated region
    $region58: #{coformer_forward.1} parent=1 // pred_check
      _
    $region59: #{coformer_forward.1} parent=1 // pred_check_branch
      %135 = sbr.rel (0) target = $region61
    $region60: #{coformer_forward.1} parent=1 // pred_region
      %136 = dma.done [#allocation8], 256
    $region61: #{coformer_forward.1} parent=1 // pred_fallthru
      _
    // Predicated region
    $region62: #{coformer_forward.1} parent=1 // pred_check
      _
    $region63: #{coformer_forward.1} parent=1 // pred_check_branch
      %138 = sbr.rel (0) target = $region65
    $region64: #{coformer_forward.1} parent=1 // pred_region
      %139 = dma.done [#allocation8], 65536
    $region65: #{coformer_forward.1} parent=1 // pred_fallthru
      _
    // Predicated region
    $region66: #{coformer_forward.1} parent=1 // pred_check
      _
    $region67: #{coformer_forward.1} parent=1 // pred_check_branch
      %141 = sbr.rel (0) target = $region69
    $region68: #{coformer_forward.1} parent=1 // pred_region
      %142 = dma.done [#allocation11], 128
    $region69: #{coformer_forward.1} parent=1 // pred_fallthru
      _
    // Predicated region
    $region70: #{coformer_forward.1} parent=1 // pred_check
      _
    $region71: #{coformer_forward.1} parent=1 // pred_check_branch
      %144 = sbr.rel (0) target = $region73
    $region72: #{coformer_forward.1} parent=1 // pred_region
      %145 = dma.done [#allocation11], 8192
    $region73: #{coformer_forward.1} parent=1 // pred_fallthru
      _
    // Predicated region
    $region74: #{coformer_forward.1} parent=1 // pred_check
      _
    $region75: #{coformer_forward.1} parent=1 // pred_check_branch
      %147 = sbr.rel (0) target = $region77
    $region76: #{coformer_forward.1} parent=1 // pred_region
      %148 = dma.done [#allocation14], 8192
    $region77: #{coformer_forward.1} parent=1 // pred_fallthru
      _
    // Predicated region
    $region78: #{coformer_forward.1} parent=1 // pred_check
      _
    $region79: #{coformer_forward.1} parent=1 // pred_check_branch
      %150 = sbr.rel (0) target = $region81
    $region80: #{coformer_forward.1} parent=1 // pred_region
      %151 = dma.done [#allocation14], 16
    $region81: #{coformer_forward.1} parent=1 // pred_fallthru
      _
    %v153 = vld [vmem:[%s0] sm:$0xff]
    %v154 = vld [vmem:[%s0 + $0x8] sm:$0xff]
    %v155 = vld [vmem:[%s0 + $0x10] sm:$0xff]
    %v156 = vld [vmem:[#allocation2] sm:$0xff]
    %v157 = vld [vmem:[#allocation2 + $0x8] sm:$0xff]
    %v158 = vld [vmem:[#allocation2 + $0x10] sm:$0xff]
    %v159 = vld [vmem:[#allocation2 + $0x18] sm:$0xff]
    %v160 = vld [vmem:[#allocation2 + $0x20] sm:$0xff]
    %v161 = vld [vmem:[#allocation2 + $0x28] sm:$0xff]
    %v162 = vld [vmem:[#allocation2 + $0x30] sm:$0xff]
    %v163 = vld [vmem:[#allocation2 + $0x38] sm:$0xff]
    %v164 = vld [vmem:[#allocation2 + $0x40] sm:$0xff]
    %v165 = vld [vmem:[#allocation2 + $0x48] sm:$0xff]
    %v166 = vld [vmem:[#allocation2 + $0x50] sm:$0xff]
    %v167 = vld [vmem:[#allocation2 + $0x58] sm:$0xff]
    %v168 = vld [vmem:[#allocation2 + $0x60] sm:$0xff]
    %v169 = vld [vmem:[#allocation2 + $0x68] sm:$0xff]
    %v170 = vld [vmem:[#allocation2 + $0x70] sm:$0xff]
    %v171 = vld [vmem:[#allocation2 + $0x78] sm:$0xff]
    %v172 = vld [vmem:[#allocation2 + $0x80] sm:$0xff]
    %v173 = vld [vmem:[#allocation2 + $0x88] sm:$0xff]
    %v174 = vld [vmem:[#allocation2 + $0x90] sm:$0xff]
    %v175 = vld [vmem:[#allocation2 + $0x98] sm:$0xff]
    %v176 = vld [vmem:[#allocation2 + $0xa0] sm:$0xff]
    %v177 = vld [vmem:[#allocation2 + $0xa8] sm:$0xff]
    %v178 = vld [vmem:[#allocation2 + $0xb0] sm:$0xff]
    %v179 = vld [vmem:[#allocation2 + $0xb8] sm:$0xff]
    %v180 = vld [vmem:[#allocation2 + $0xc0] sm:$0xff]
    %v181 = vld [vmem:[#allocation2 + $0xc8] sm:$0xff]
    %v182 = vld [vmem:[#allocation2 + $0xd0] sm:$0xff]
    %v183 = vld [vmem:[#allocation2 + $0xd8] sm:$0xff]
    %v184 = vld [vmem:[#allocation2 + $0xe0] sm:$0xff]
    %v185 = vld [vmem:[#allocation2 + $0xe8] sm:$0xff]
    %v186 = vld [vmem:[#allocation2 + $0xf0] sm:$0xff]
    %v187 = vld [vmem:[#allocation2 + $0xf8] sm:$0xff]
    %v188 = vld [vmem:[#allocation2 + $0x100] sm:$0xff]
    %v189 = vld [vmem:[#allocation2 + $0x108] sm:$0xff]
    %v190 = vld [vmem:[#allocation2 + $0x110] sm:$0xff]
    %v191 = vld [vmem:[#allocation2 + $0x118] sm:$0xff]
    %v192 = vld [vmem:[#allocation2 + $0x120] sm:$0xff]
    %v193 = vld [vmem:[#allocation2 + $0x128] sm:$0xff]
    %v194 = vld [vmem:[#allocation2 + $0x130] sm:$0xff]
    %v195 = vld [vmem:[#allocation2 + $0x138] sm:$0xff]
    %v196 = vld [vmem:[#allocation2 + $0x140] sm:$0xff]
    %v197 = vld [vmem:[#allocation2 + $0x148] sm:$0xff]
    %v198 = vld [vmem:[#allocation2 + $0x150] sm:$0xff]
    %v199 = vld [vmem:[#allocation2 + $0x158] sm:$0xff]
    %v200 = vld [vmem:[#allocation2 + $0x160] sm:$0xff]
    %v201 = vld [vmem:[#allocation2 + $0x168] sm:$0xff]
    %v202 = vld [vmem:[#allocation2 + $0x170] sm:$0xff]
    %v203 = vld [vmem:[#allocation2 + $0x178] sm:$0xff]
    %v204 = vld [vmem:[#allocation2 + $0x180] sm:$0xff]
    %v205 = vld [vmem:[#allocation2 + $0x188] sm:$0xff]
    %v206 = vld [vmem:[#allocation2 + $0x190] sm:$0xff]
    %v207 = vld [vmem:[#allocation2 + $0x198] sm:$0xff]
    %v208 = vld [vmem:[#allocation2 + $0x1a0] sm:$0xff]
    %v209 = vld [vmem:[#allocation2 + $0x1a8] sm:$0xff]
    %v210 = vld [vmem:[#allocation2 + $0x1b0] sm:$0xff]
    %v211 = vld [vmem:[#allocation2 + $0x1b8] sm:$0xff]
    %v212 = vld [vmem:[#allocation2 + $0x1c0] sm:$0xff]
    %v213 = vld [vmem:[#allocation2 + $0x1c8] sm:$0xff]
    %v214 = vld [vmem:[#allocation2 + $0x1d0] sm:$0xff]
    %v215 = vld [vmem:[#allocation2 + $0x1d8] sm:$0xff]
    %v216 = vld [vmem:[#allocation2 + $0x1e0] sm:$0xff]
    %v217 = vld [vmem:[#allocation2 + $0x1e8] sm:$0xff]
    %v218 = vld [vmem:[#allocation2 + $0x1f0] sm:$0xff]
    %v219 = vld [vmem:[#allocation2 + $0x1f8] sm:$0xff]
    %v220 = vld [vmem:[#allocation2 + $0x200] sm:$0xff]
    %v221 = vld [vmem:[#allocation2 + $0x208] sm:$0xff]
    %v222 = vld [vmem:[#allocation2 + $0x210] sm:$0xff]
    %v223 = vld [vmem:[#allocation2 + $0x218] sm:$0xff]
    %v224 = vld [vmem:[#allocation2 + $0x220] sm:$0xff]
    %v225 = vld [vmem:[#allocation2 + $0x228] sm:$0xff]
    %v226 = vld [vmem:[#allocation2 + $0x230] sm:$0xff]
    %v227 = vld [vmem:[#allocation2 + $0x238] sm:$0xff]
    %v228 = vld [vmem:[#allocation2 + $0x240] sm:$0xff]
    %v229 = vld [vmem:[#allocation2 + $0x248] sm:$0xff]
    %v230 = vld [vmem:[#allocation2 + $0x250] sm:$0xff]
    %v231 = vld [vmem:[#allocation2 + $0x258] sm:$0xff]
    %v232 = vld [vmem:[#allocation2 + $0x260] sm:$0xff]
    %v233 = vld [vmem:[#allocation2 + $0x268] sm:$0xff]
    %v234 = vld [vmem:[#allocation2 + $0x270] sm:$0xff]
    %v235 = vld [vmem:[#allocation2 + $0x278] sm:$0xff]
    %v236 = vld [vmem:[#allocation2 + $0x280] sm:$0xff]
    %v237 = vld [vmem:[#allocation2 + $0x288] sm:$0xff]
    %v238 = vld [vmem:[#allocation2 + $0x290] sm:$0xff]
    %v239 = vld [vmem:[#allocation2 + $0x298] sm:$0xff]
    %v240 = vld [vmem:[#allocation2 + $0x2a0] sm:$0xff]
    %v241 = vld [vmem:[#allocation2 + $0x2a8] sm:$0xff]
    %v242 = vld [vmem:[#allocation2 + $0x2b0] sm:$0xff]
    %v243 = vld [vmem:[#allocation2 + $0x2b8] sm:$0xff]
    %v244 = vld [vmem:[#allocation2 + $0x2c0] sm:$0xff]
    %v245 = vld [vmem:[#allocation2 + $0x2c8] sm:$0xff]
    %v246 = vld [vmem:[#allocation2 + $0x2d0] sm:$0xff]
    %v247 = vld [vmem:[#allocation2 + $0x2d8] sm:$0xff]
    %v248 = vld [vmem:[#allocation2 + $0x2e0] sm:$0xff]
    %v249 = vld [vmem:[#allocation2 + $0x2e8] sm:$0xff]
    %v250 = vld [vmem:[#allocation2 + $0x2f0] sm:$0xff]
    %v251 = vld [vmem:[#allocation2 + $0x2f8] sm:$0xff]
    %v252 = vld [vmem:[#allocation2 + $0x300] sm:$0xff]
    %v253 = vld [vmem:[#allocation2 + $0x308] sm:$0xff]
    %v254 = vld [vmem:[#allocation2 + $0x310] sm:$0xff]
    %v255 = vld [vmem:[#allocation2 + $0x318] sm:$0xff]
    %v256 = vld [vmem:[#allocation2 + $0x320] sm:$0xff]
    %v257 = vld [vmem:[#allocation2 + $0x328] sm:$0xff]
    %v258 = vld [vmem:[#allocation2 + $0x330] sm:$0xff]
    %v259 = vld [vmem:[#allocation2 + $0x338] sm:$0xff]
    %v260 = vld [vmem:[#allocation2 + $0x340] sm:$0xff]
    %v261 = vld [vmem:[#allocation2 + $0x348] sm:$0xff]
    %v262 = vld [vmem:[#allocation2 + $0x350] sm:$0xff]
    %v263 = vld [vmem:[#allocation2 + $0x358] sm:$0xff]
    %v264 = vld [vmem:[#allocation2 + $0x360] sm:$0xff]
    %v265 = vld [vmem:[#allocation2 + $0x368] sm:$0xff]
    %v266 = vld [vmem:[#allocation2 + $0x370] sm:$0xff]
    %v267 = vld [vmem:[#allocation2 + $0x378] sm:$0xff]
    %v268 = vld [vmem:[#allocation2 + $0x380] sm:$0xff]
    %v269 = vld [vmem:[#allocation2 + $0x388] sm:$0xff]
    %v270 = vld [vmem:[#allocation2 + $0x390] sm:$0xff]
    %v271 = vld [vmem:[#allocation2 + $0x398] sm:$0xff]
    %v272 = vld [vmem:[#allocation2 + $0x3a0] sm:$0xff]
    %v273 = vld [vmem:[#allocation2 + $0x3a8] sm:$0xff]
    %v274 = vld [vmem:[#allocation2 + $0x3b0] sm:$0xff]
    %v275 = vld [vmem:[#allocation2 + $0x3b8] sm:$0xff]
    %v276 = vld [vmem:[#allocation2 + $0x3c0] sm:$0xff]
    %v277 = vld [vmem:[#allocation2 + $0x3c8] sm:$0xff]
    %v278 = vld [vmem:[#allocation2 + $0x3d0] sm:$0xff]
    %v279 = vld [vmem:[#allocation2 + $0x3d8] sm:$0xff]
    %v280 = vld [vmem:[#allocation2 + $0x3e0] sm:$0xff]
    %v281 = vld [vmem:[#allocation2 + $0x3e8] sm:$0xff]
    %v282 = vld [vmem:[#allocation2 + $0x3f0] sm:$0xff]
    %v283 = vld [vmem:[#allocation2 + $0x3f8] sm:$0xff]
    %v284 = vld [vmem:[#allocation2 + $0x400] sm:$0xff]
    %v285 = vld [vmem:[#allocation2 + $0x408] sm:$0xff]
    %v286 = vld [vmem:[#allocation2 + $0x410] sm:$0xff]
    %v287 = vld [vmem:[#allocation2 + $0x418] sm:$0xff]
    %v288 = vld [vmem:[#allocation2 + $0x420] sm:$0xff]
    %v289 = vld [vmem:[#allocation2 + $0x428] sm:$0xff]
    %v290 = vld [vmem:[#allocation2 + $0x430] sm:$0xff]
    %v291 = vld [vmem:[#allocation2 + $0x438] sm:$0xff]
    %v292 = vld [vmem:[#allocation2 + $0x440] sm:$0xff]
    %v293 = vld [vmem:[#allocation2 + $0x448] sm:$0xff]
    %v294 = vld [vmem:[#allocation2 + $0x450] sm:$0xff]
    %v295 = vld [vmem:[#allocation2 + $0x458] sm:$0xff]
    %v296 = vld [vmem:[#allocation2 + $0x460] sm:$0xff]
    %v297 = vld [vmem:[#allocation2 + $0x468] sm:$0xff]
    %v298 = vld [vmem:[#allocation2 + $0x470] sm:$0xff]
    %v299 = vld [vmem:[#allocation2 + $0x478] sm:$0xff]
    %v300 = vld [vmem:[#allocation2 + $0x480] sm:$0xff]
    %v301 = vld [vmem:[#allocation2 + $0x488] sm:$0xff]
    %v302 = vld [vmem:[#allocation2 + $0x490] sm:$0xff]
    %v303 = vld [vmem:[#allocation2 + $0x498] sm:$0xff]
    %v304 = vld [vmem:[#allocation2 + $0x4a0] sm:$0xff]
    %v305 = vld [vmem:[#allocation2 + $0x4a8] sm:$0xff]
    %v306 = vld [vmem:[#allocation2 + $0x4b0] sm:$0xff]
    %v307 = vld [vmem:[#allocation2 + $0x4b8] sm:$0xff]
    %v308 = vld [vmem:[#allocation2 + $0x4c0] sm:$0xff]
    %v309 = vld [vmem:[#allocation2 + $0x4c8] sm:$0xff]
    %v310 = vld [vmem:[#allocation2 + $0x4d0] sm:$0xff]
    %v311 = vld [vmem:[#allocation2 + $0x4d8] sm:$0xff]
    %v312 = vld [vmem:[#allocation2 + $0x4e0] sm:$0xff]
    %v313 = vld [vmem:[#allocation2 + $0x4e8] sm:$0xff]
    %v314 = vld [vmem:[#allocation2 + $0x4f0] sm:$0xff]
    %v315 = vld [vmem:[#allocation2 + $0x4f8] sm:$0xff]
    %v316 = vld [vmem:[#allocation2 + $0x500] sm:$0xff]
    %v317 = vld [vmem:[#allocation2 + $0x508] sm:$0xff]
    %v318 = vld [vmem:[#allocation2 + $0x510] sm:$0xff]
    %v319 = vld [vmem:[#allocation2 + $0x518] sm:$0xff]
    %v320 = vld [vmem:[#allocation2 + $0x520] sm:$0xff]
    %v321 = vld [vmem:[#allocation2 + $0x528] sm:$0xff]
    %v322 = vld [vmem:[#allocation2 + $0x530] sm:$0xff]
    %v323 = vld [vmem:[#allocation2 + $0x538] sm:$0xff]
    %v324 = vld [vmem:[#allocation2 + $0x540] sm:$0xff]
    %v325 = vld [vmem:[#allocation2 + $0x548] sm:$0xff]
    %v326 = vld [vmem:[#allocation2 + $0x550] sm:$0xff]
    %v327 = vld [vmem:[#allocation2 + $0x558] sm:$0xff]
    %v328 = vld [vmem:[#allocation2 + $0x560] sm:$0xff]
    %v329 = vld [vmem:[#allocation2 + $0x568] sm:$0xff]
    %v330 = vld [vmem:[#allocation2 + $0x570] sm:$0xff]
    %v331 = vld [vmem:[#allocation2 + $0x578] sm:$0xff]
    %v332 = vld [vmem:[#allocation2 + $0x580] sm:$0xff]
    %v333 = vld [vmem:[#allocation2 + $0x588] sm:$0xff]
    %v334 = vld [vmem:[#allocation2 + $0x590] sm:$0xff]
    %v335 = vld [vmem:[#allocation2 + $0x598] sm:$0xff]
    %v336 = vld [vmem:[#allocation2 + $0x5a0] sm:$0xff]
    %v337 = vld [vmem:[#allocation2 + $0x5a8] sm:$0xff]
    %v338 = vld [vmem:[#allocation2 + $0x5b0] sm:$0xff]
    %v339 = vld [vmem:[#allocation2 + $0x5b8] sm:$0xff]
    %v340 = vld [vmem:[#allocation2 + $0x5c0] sm:$0xff]
    %v341 = vld [vmem:[#allocation2 + $0x5c8] sm:$0xff]
    %v342 = vld [vmem:[#allocation2 + $0x5d0] sm:$0xff]
    %v343 = vld [vmem:[#allocation2 + $0x5d8] sm:$0xff]
    %v344 = vld [vmem:[#allocation2 + $0x5e0] sm:$0xff]
    %v345 = vld [vmem:[#allocation2 + $0x5e8] sm:$0xff]
    %v346 = vld [vmem:[#allocation2 + $0x5f0] sm:$0xff]
    %v347 = vld [vmem:[#allocation2 + $0x5f8] sm:$0xff]
    %v348 = vld [vmem:[#allocation4] sm:$0xf]
    %v350 = vlaneseq
    %v351 = vshrl.u32 %v350, 7
    %v352 = vsub.s32 0, %v351
    %v353 = vrot.slane %v348, %v352
    %v354 = vlaneseq
    %v355 = vshrl.u32 %v354, 7
    %v356 = vsub.s32 1, %v355
    %v357 = vrot.slane %v348, %v356
    %v358 = vlaneseq
    %v359 = vshrl.u32 %v358, 7
    %v360 = vsub.s32 2, %v359
    %v361 = vrot.slane %v348, %v360
    %v362 = vlaneseq
    %v363 = vshrl.u32 %v362, 7
    %v364 = vsub.s32 3, %v363
    %v365 = vrot.slane %v348, %v364
    %v373 = vunpack.c.l.b16 %v153
    %v374 = vunpack.c.h.b16 %v153
    %v375 = vunpack.c.l.b16 %v154
    %v376 = vunpack.c.h.b16 %v154
    %v377 = vunpack.c.l.b16 %v155
    %v378 = vunpack.c.h.b16 %v155
    %v379 = vpack.c.b16 %v373, %v373
    %v380 = vpack.c.b16 %v374, %v374
    %v381 = vpack.c.b16 %v375, %v375
    %v382 = vpack.c.b16 %v376, %v376
    %v383 = vpack.c.b16 %v377, %v377
    %v384 = vpack.c.b16 %v378, %v378
    %v583 = vunpack.c.l.b16 %v156
    %v584 = vunpack.c.h.b16 %v156
    %v585 = vunpack.c.l.b16 %v157
    %v586 = vunpack.c.h.b16 %v157
    %v587 = vunpack.c.l.b16 %v158
    %v588 = vunpack.c.h.b16 %v158
    %v589 = vunpack.c.l.b16 %v159
    %v590 = vunpack.c.h.b16 %v159
    %v591 = vunpack.c.l.b16 %v160
    %v592 = vunpack.c.h.b16 %v160
    %v593 = vunpack.c.l.b16 %v161
    %v594 = vunpack.c.h.b16 %v161
    %v595 = vunpack.c.l.b16 %v162
    %v596 = vunpack.c.h.b16 %v162
    %v597 = vunpack.c.l.b16 %v163
    %v598 = vunpack.c.h.b16 %v163
    %v599 = vunpack.c.l.b16 %v164
    %v600 = vunpack.c.h.b16 %v164
    %v601 = vunpack.c.l.b16 %v165
    %v602 = vunpack.c.h.b16 %v165
    %v603 = vunpack.c.l.b16 %v166
    %v604 = vunpack.c.h.b16 %v166
    %v605 = vunpack.c.l.b16 %v167
    %v606 = vunpack.c.h.b16 %v167
    %v607 = vunpack.c.l.b16 %v168
    %v608 = vunpack.c.h.b16 %v168
    %v609 = vunpack.c.l.b16 %v169
    %v610 = vunpack.c.h.b16 %v169
    %v611 = vunpack.c.l.b16 %v170
    %v612 = vunpack.c.h.b16 %v170
    %v613 = vunpack.c.l.b16 %v171
    %v614 = vunpack.c.h.b16 %v171
    %v615 = vunpack.c.l.b16 %v172
    %v616 = vunpack.c.h.b16 %v172
    %v617 = vunpack.c.l.b16 %v173
    %v618 = vunpack.c.h.b16 %v173
    %v619 = vunpack.c.l.b16 %v174
    %v620 = vunpack.c.h.b16 %v174
    %v621 = vunpack.c.l.b16 %v175
    %v622 = vunpack.c.h.b16 %v175
    %v623 = vunpack.c.l.b16 %v176
    %v624 = vunpack.c.h.b16 %v176
    %v625 = vunpack.c.l.b16 %v177
    %v626 = vunpack.c.h.b16 %v177
    %v627 = vunpack.c.l.b16 %v178
    %v628 = vunpack.c.h.b16 %v178
    %v629 = vunpack.c.l.b16 %v179
    %v630 = vunpack.c.h.b16 %v179
    %v631 = vunpack.c.l.b16 %v180
    %v632 = vunpack.c.h.b16 %v180
    %v633 = vunpack.c.l.b16 %v181
    %v634 = vunpack.c.h.b16 %v181
    %v635 = vunpack.c.l.b16 %v182
    %v636 = vunpack.c.h.b16 %v182
    %v637 = vunpack.c.l.b16 %v183
    %v638 = vunpack.c.h.b16 %v183
    %v639 = vunpack.c.l.b16 %v184
    %v640 = vunpack.c.h.b16 %v184
    %v641 = vunpack.c.l.b16 %v185
    %v642 = vunpack.c.h.b16 %v185
    %v643 = vunpack.c.l.b16 %v186
    %v644 = vunpack.c.h.b16 %v186
    %v645 = vunpack.c.l.b16 %v187
    %v646 = vunpack.c.h.b16 %v187
    %v647 = vunpack.c.l.b16 %v188
    %v648 = vunpack.c.h.b16 %v188
    %v649 = vunpack.c.l.b16 %v189
    %v650 = vunpack.c.h.b16 %v189
    %v651 = vunpack.c.l.b16 %v190
    %v652 = vunpack.c.h.b16 %v190
    %v653 = vunpack.c.l.b16 %v191
    %v654 = vunpack.c.h.b16 %v191
    %v655 = vunpack.c.l.b16 %v192
    %v656 = vunpack.c.h.b16 %v192
    %v657 = vunpack.c.l.b16 %v193
    %v658 = vunpack.c.h.b16 %v193
    %v659 = vunpack.c.l.b16 %v194
    %v660 = vunpack.c.h.b16 %v194
    %v661 = vunpack.c.l.b16 %v195
    %v662 = vunpack.c.h.b16 %v195
    %v663 = vunpack.c.l.b16 %v196
    %v664 = vunpack.c.h.b16 %v196
    %v665 = vunpack.c.l.b16 %v197
    %v666 = vunpack.c.h.b16 %v197
    %v667 = vunpack.c.l.b16 %v198
    %v668 = vunpack.c.h.b16 %v198
    %v669 = vunpack.c.l.b16 %v199
    %v670 = vunpack.c.h.b16 %v199
    %v671 = vunpack.c.l.b16 %v200
    %v672 = vunpack.c.h.b16 %v200
    %v673 = vunpack.c.l.b16 %v201
    %v674 = vunpack.c.h.b16 %v201
    %v675 = vunpack.c.l.b16 %v202
    %v676 = vunpack.c.h.b16 %v202
    %v677 = vunpack.c.l.b16 %v203
    %v678 = vunpack.c.h.b16 %v203
    %v679 = vunpack.c.l.b16 %v204
    %v680 = vunpack.c.h.b16 %v204
    %v681 = vunpack.c.l.b16 %v205
    %v682 = vunpack.c.h.b16 %v205
    %v683 = vunpack.c.l.b16 %v206
    %v684 = vunpack.c.h.b16 %v206
    %v685 = vunpack.c.l.b16 %v207
    %v686 = vunpack.c.h.b16 %v207
    %v687 = vunpack.c.l.b16 %v208
    %v688 = vunpack.c.h.b16 %v208
    %v689 = vunpack.c.l.b16 %v209
    %v690 = vunpack.c.h.b16 %v209
    %v691 = vunpack.c.l.b16 %v210
    %v692 = vunpack.c.h.b16 %v210
    %v693 = vunpack.c.l.b16 %v211
    %v694 = vunpack.c.h.b16 %v211
    %v695 = vunpack.c.l.b16 %v212
    %v696 = vunpack.c.h.b16 %v212
    %v697 = vunpack.c.l.b16 %v213
    %v698 = vunpack.c.h.b16 %v213
    %v699 = vunpack.c.l.b16 %v214
    %v700 = vunpack.c.h.b16 %v214
    %v701 = vunpack.c.l.b16 %v215
    %v702 = vunpack.c.h.b16 %v215
    %v703 = vunpack.c.l.b16 %v216
    %v704 = vunpack.c.h.b16 %v216
    %v705 = vunpack.c.l.b16 %v217
    %v706 = vunpack.c.h.b16 %v217
    %v707 = vunpack.c.l.b16 %v218
    %v708 = vunpack.c.h.b16 %v218
    %v709 = vunpack.c.l.b16 %v219
    %v710 = vunpack.c.h.b16 %v219
    %v711 = vunpack.c.l.b16 %v220
    %v712 = vunpack.c.h.b16 %v220
    %v713 = vunpack.c.l.b16 %v221
    %v714 = vunpack.c.h.b16 %v221
    %v715 = vunpack.c.l.b16 %v222
    %v716 = vunpack.c.h.b16 %v222
    %v717 = vunpack.c.l.b16 %v223
    %v718 = vunpack.c.h.b16 %v223
    %v719 = vunpack.c.l.b16 %v224
    %v720 = vunpack.c.h.b16 %v224
    %v721 = vunpack.c.l.b16 %v225
    %v722 = vunpack.c.h.b16 %v225
    %v723 = vunpack.c.l.b16 %v226
    %v724 = vunpack.c.h.b16 %v226
    %v725 = vunpack.c.l.b16 %v227
    %v726 = vunpack.c.h.b16 %v227
    %v727 = vunpack.c.l.b16 %v228
    %v728 = vunpack.c.h.b16 %v228
    %v729 = vunpack.c.l.b16 %v229
    %v730 = vunpack.c.h.b16 %v229
    %v731 = vunpack.c.l.b16 %v230
    %v732 = vunpack.c.h.b16 %v230
    %v733 = vunpack.c.l.b16 %v231
    %v734 = vunpack.c.h.b16 %v231
    %v735 = vunpack.c.l.b16 %v232
    %v736 = vunpack.c.h.b16 %v232
    %v737 = vunpack.c.l.b16 %v233
    %v738 = vunpack.c.h.b16 %v233
    %v739 = vunpack.c.l.b16 %v234
    %v740 = vunpack.c.h.b16 %v234
    %v741 = vunpack.c.l.b16 %v235
    %v742 = vunpack.c.h.b16 %v235
    %v743 = vunpack.c.l.b16 %v236
    %v744 = vunpack.c.h.b16 %v236
    %v745 = vunpack.c.l.b16 %v237
    %v746 = vunpack.c.h.b16 %v237
    %v747 = vunpack.c.l.b16 %v238
    %v748 = vunpack.c.h.b16 %v238
    %v749 = vunpack.c.l.b16 %v239
    %v750 = vunpack.c.h.b16 %v239
    %v751 = vunpack.c.l.b16 %v240
    %v752 = vunpack.c.h.b16 %v240
    %v753 = vunpack.c.l.b16 %v241
    %v754 = vunpack.c.h.b16 %v241
    %v755 = vunpack.c.l.b16 %v242
    %v756 = vunpack.c.h.b16 %v242
    %v757 = vunpack.c.l.b16 %v243
    %v758 = vunpack.c.h.b16 %v243
    %v759 = vunpack.c.l.b16 %v244
    %v760 = vunpack.c.h.b16 %v244
    %v761 = vunpack.c.l.b16 %v245
    %v762 = vunpack.c.h.b16 %v245
    %v763 = vunpack.c.l.b16 %v246
    %v764 = vunpack.c.h.b16 %v246
    %v765 = vunpack.c.l.b16 %v247
    %v766 = vunpack.c.h.b16 %v247
    %v767 = vunpack.c.l.b16 %v248
    %v768 = vunpack.c.h.b16 %v248
    %v769 = vunpack.c.l.b16 %v249
    %v770 = vunpack.c.h.b16 %v249
    %v771 = vunpack.c.l.b16 %v250
    %v772 = vunpack.c.h.b16 %v250
    %v773 = vunpack.c.l.b16 %v251
    %v774 = vunpack.c.h.b16 %v251
    %v775 = vunpack.c.l.b16 %v252
    %v776 = vunpack.c.h.b16 %v252
    %v777 = vunpack.c.l.b16 %v253
    %v778 = vunpack.c.h.b16 %v253
    %v779 = vunpack.c.l.b16 %v254
    %v780 = vunpack.c.h.b16 %v254
    %v781 = vunpack.c.l.b16 %v255
    %v782 = vunpack.c.h.b16 %v255
    %v783 = vunpack.c.l.b16 %v256
    %v784 = vunpack.c.h.b16 %v256
    %v785 = vunpack.c.l.b16 %v257
    %v786 = vunpack.c.h.b16 %v257
    %v787 = vunpack.c.l.b16 %v258
    %v788 = vunpack.c.h.b16 %v258
    %v789 = vunpack.c.l.b16 %v259
    %v790 = vunpack.c.h.b16 %v259
    %v791 = vunpack.c.l.b16 %v260
    %v792 = vunpack.c.h.b16 %v260
    %v793 = vunpack.c.l.b16 %v261
    %v794 = vunpack.c.h.b16 %v261
    %v795 = vunpack.c.l.b16 %v262
    %v796 = vunpack.c.h.b16 %v262
    %v797 = vunpack.c.l.b16 %v263
    %v798 = vunpack.c.h.b16 %v263
    %v799 = vunpack.c.l.b16 %v264
    %v800 = vunpack.c.h.b16 %v264
    %v801 = vunpack.c.l.b16 %v265
    %v802 = vunpack.c.h.b16 %v265
    %v803 = vunpack.c.l.b16 %v266
    %v804 = vunpack.c.h.b16 %v266
    %v805 = vunpack.c.l.b16 %v267
    %v806 = vunpack.c.h.b16 %v267
    %v807 = vunpack.c.l.b16 %v268
    %v808 = vunpack.c.h.b16 %v268
    %v809 = vunpack.c.l.b16 %v269
    %v810 = vunpack.c.h.b16 %v269
    %v811 = vunpack.c.l.b16 %v270
    %v812 = vunpack.c.h.b16 %v270
    %v813 = vunpack.c.l.b16 %v271
    %v814 = vunpack.c.h.b16 %v271
    %v815 = vunpack.c.l.b16 %v272
    %v816 = vunpack.c.h.b16 %v272
    %v817 = vunpack.c.l.b16 %v273
    %v818 = vunpack.c.h.b16 %v273
    %v819 = vunpack.c.l.b16 %v274
    %v820 = vunpack.c.h.b16 %v274
    %v821 = vunpack.c.l.b16 %v275
    %v822 = vunpack.c.h.b16 %v275
    %v823 = vunpack.c.l.b16 %v276
    %v824 = vunpack.c.h.b16 %v276
    %v825 = vunpack.c.l.b16 %v277
    %v826 = vunpack.c.h.b16 %v277
    %v827 = vunpack.c.l.b16 %v278
    %v828 = vunpack.c.h.b16 %v278
    %v829 = vunpack.c.l.b16 %v279
    %v830 = vunpack.c.h.b16 %v279
    %v831 = vunpack.c.l.b16 %v280
    %v832 = vunpack.c.h.b16 %v280
    %v833 = vunpack.c.l.b16 %v281
    %v834 = vunpack.c.h.b16 %v281
    %v835 = vunpack.c.l.b16 %v282
    %v836 = vunpack.c.h.b16 %v282
    %v837 = vunpack.c.l.b16 %v283
    %v838 = vunpack.c.h.b16 %v283
    %v839 = vunpack.c.l.b16 %v284
    %v840 = vunpack.c.h.b16 %v284
    %v841 = vunpack.c.l.b16 %v285
    %v842 = vunpack.c.h.b16 %v285
    %v843 = vunpack.c.l.b16 %v286
    %v844 = vunpack.c.h.b16 %v286
    %v845 = vunpack.c.l.b16 %v287
    %v846 = vunpack.c.h.b16 %v287
    %v847 = vunpack.c.l.b16 %v288
    %v848 = vunpack.c.h.b16 %v288
    %v849 = vunpack.c.l.b16 %v289
    %v850 = vunpack.c.h.b16 %v289
    %v851 = vunpack.c.l.b16 %v290
    %v852 = vunpack.c.h.b16 %v290
    %v853 = vunpack.c.l.b16 %v291
    %v854 = vunpack.c.h.b16 %v291
    %v855 = vunpack.c.l.b16 %v292
    %v856 = vunpack.c.h.b16 %v292
    %v857 = vunpack.c.l.b16 %v293
    %v858 = vunpack.c.h.b16 %v293
    %v859 = vunpack.c.l.b16 %v294
    %v860 = vunpack.c.h.b16 %v294
    %v861 = vunpack.c.l.b16 %v295
    %v862 = vunpack.c.h.b16 %v295
    %v863 = vunpack.c.l.b16 %v296
    %v864 = vunpack.c.h.b16 %v296
    %v865 = vunpack.c.l.b16 %v297
    %v866 = vunpack.c.h.b16 %v297
    %v867 = vunpack.c.l.b16 %v298
    %v868 = vunpack.c.h.b16 %v298
    %v869 = vunpack.c.l.b16 %v299
    %v870 = vunpack.c.h.b16 %v299
    %v871 = vunpack.c.l.b16 %v300
    %v872 = vunpack.c.h.b16 %v300
    %v873 = vunpack.c.l.b16 %v301
    %v874 = vunpack.c.h.b16 %v301
    %v875 = vunpack.c.l.b16 %v302
    %v876 = vunpack.c.h.b16 %v302
    %v877 = vunpack.c.l.b16 %v303
    %v878 = vunpack.c.h.b16 %v303
    %v879 = vunpack.c.l.b16 %v304
    %v880 = vunpack.c.h.b16 %v304
    %v881 = vunpack.c.l.b16 %v305
    %v882 = vunpack.c.h.b16 %v305
    %v883 = vunpack.c.l.b16 %v306
    %v884 = vunpack.c.h.b16 %v306
    %v885 = vunpack.c.l.b16 %v307
    %v886 = vunpack.c.h.b16 %v307
    %v887 = vunpack.c.l.b16 %v308
    %v888 = vunpack.c.h.b16 %v308
    %v889 = vunpack.c.l.b16 %v309
    %v890 = vunpack.c.h.b16 %v309
    %v891 = vunpack.c.l.b16 %v310
    %v892 = vunpack.c.h.b16 %v310
    %v893 = vunpack.c.l.b16 %v311
    %v894 = vunpack.c.h.b16 %v311
    %v895 = vunpack.c.l.b16 %v312
    %v896 = vunpack.c.h.b16 %v312
    %v897 = vunpack.c.l.b16 %v313
    %v898 = vunpack.c.h.b16 %v313
    %v899 = vunpack.c.l.b16 %v314
    %v900 = vunpack.c.h.b16 %v314
    %v901 = vunpack.c.l.b16 %v315
    %v902 = vunpack.c.h.b16 %v315
    %v903 = vunpack.c.l.b16 %v316
    %v904 = vunpack.c.h.b16 %v316
    %v905 = vunpack.c.l.b16 %v317
    %v906 = vunpack.c.h.b16 %v317
    %v907 = vunpack.c.l.b16 %v318
    %v908 = vunpack.c.h.b16 %v318
    %v909 = vunpack.c.l.b16 %v319
    %v910 = vunpack.c.h.b16 %v319
    %v911 = vunpack.c.l.b16 %v320
    %v912 = vunpack.c.h.b16 %v320
    %v913 = vunpack.c.l.b16 %v321
    %v914 = vunpack.c.h.b16 %v321
    %v915 = vunpack.c.l.b16 %v322
    %v916 = vunpack.c.h.b16 %v322
    %v917 = vunpack.c.l.b16 %v323
    %v918 = vunpack.c.h.b16 %v323
    %v919 = vunpack.c.l.b16 %v324
    %v920 = vunpack.c.h.b16 %v324
    %v921 = vunpack.c.l.b16 %v325
    %v922 = vunpack.c.h.b16 %v325
    %v923 = vunpack.c.l.b16 %v326
    %v924 = vunpack.c.h.b16 %v326
    %v925 = vunpack.c.l.b16 %v327
    %v926 = vunpack.c.h.b16 %v327
    %v927 = vunpack.c.l.b16 %v328
    %v928 = vunpack.c.h.b16 %v328
    %v929 = vunpack.c.l.b16 %v329
    %v930 = vunpack.c.h.b16 %v329
    %v931 = vunpack.c.l.b16 %v330
    %v932 = vunpack.c.h.b16 %v330
    %v933 = vunpack.c.l.b16 %v331
    %v934 = vunpack.c.h.b16 %v331
    %v935 = vunpack.c.l.b16 %v332
    %v936 = vunpack.c.h.b16 %v332
    %v937 = vunpack.c.l.b16 %v333
    %v938 = vunpack.c.h.b16 %v333
    %v939 = vunpack.c.l.b16 %v334
    %v940 = vunpack.c.h.b16 %v334
    %v941 = vunpack.c.l.b16 %v335
    %v942 = vunpack.c.h.b16 %v335
    %v943 = vunpack.c.l.b16 %v336
    %v944 = vunpack.c.h.b16 %v336
    %v945 = vunpack.c.l.b16 %v337
    %v946 = vunpack.c.h.b16 %v337
    %v947 = vunpack.c.l.b16 %v338
    %v948 = vunpack.c.h.b16 %v338
    %v949 = vunpack.c.l.b16 %v339
    %v950 = vunpack.c.h.b16 %v339
    %v951 = vunpack.c.l.b16 %v340
    %v952 = vunpack.c.h.b16 %v340
    %v953 = vunpack.c.l.b16 %v341
    %v954 = vunpack.c.h.b16 %v341
    %v955 = vunpack.c.l.b16 %v342
    %v956 = vunpack.c.h.b16 %v342
    %v957 = vunpack.c.l.b16 %v343
    %v958 = vunpack.c.h.b16 %v343
    %v959 = vunpack.c.l.b16 %v344
    %v960 = vunpack.c.h.b16 %v344
    %v961 = vunpack.c.l.b16 %v345
    %v962 = vunpack.c.h.b16 %v345
    %v963 = vunpack.c.l.b16 %v346
    %v964 = vunpack.c.h.b16 %v346
    %v965 = vunpack.c.l.b16 %v347
    %v966 = vunpack.c.h.b16 %v347
    %v967 = vpack.c.b16 %v587, %v583
    %v968 = vpack.c.b16 %v588, %v584
    %v969 = vpack.c.b16 %v589, %v585
    %v970 = vpack.c.b16 %v590, %v586
    %v971 = vpack.c.b16 %v595, %v591
    %v972 = vpack.c.b16 %v596, %v592
    %v973 = vpack.c.b16 %v597, %v593
    %v974 = vpack.c.b16 %v598, %v594
    %v975 = vpack.c.b16 %v603, %v599
    %v976 = vpack.c.b16 %v604, %v600
    %v977 = vpack.c.b16 %v605, %v601
    %v978 = vpack.c.b16 %v606, %v602
    %v979 = vpack.c.b16 %v611, %v607
    %v980 = vpack.c.b16 %v612, %v608
    %v981 = vpack.c.b16 %v613, %v609
    %v982 = vpack.c.b16 %v614, %v610
    %v983 = vpack.c.b16 %v619, %v615
    %v984 = vpack.c.b16 %v620, %v616
    %v985 = vpack.c.b16 %v621, %v617
    %v986 = vpack.c.b16 %v622, %v618
    %v987 = vpack.c.b16 %v627, %v623
    %v988 = vpack.c.b16 %v628, %v624
    %v989 = vpack.c.b16 %v629, %v625
    %v990 = vpack.c.b16 %v630, %v626
    %v991 = vpack.c.b16 %v635, %v631
    %v992 = vpack.c.b16 %v636, %v632
    %v993 = vpack.c.b16 %v637, %v633
    %v994 = vpack.c.b16 %v638, %v634
    %v995 = vpack.c.b16 %v643, %v639
    %v996 = vpack.c.b16 %v644, %v640
    %v997 = vpack.c.b16 %v645, %v641
    %v998 = vpack.c.b16 %v646, %v642
    %v999 = vpack.c.b16 %v651, %v647
    %v1000 = vpack.c.b16 %v652, %v648
    %v1001 = vpack.c.b16 %v653, %v649
    %v1002 = vpack.c.b16 %v654, %v650
    %v1003 = vpack.c.b16 %v659, %v655
    %v1004 = vpack.c.b16 %v660, %v656
    %v1005 = vpack.c.b16 %v661, %v657
    %v1006 = vpack.c.b16 %v662, %v658
    %v1007 = vpack.c.b16 %v667, %v663
    %v1008 = vpack.c.b16 %v668, %v664
    %v1009 = vpack.c.b16 %v669, %v665
    %v1010 = vpack.c.b16 %v670, %v666
    %v1011 = vpack.c.b16 %v675, %v671
    %v1012 = vpack.c.b16 %v676, %v672
    %v1013 = vpack.c.b16 %v677, %v673
    %v1014 = vpack.c.b16 %v678, %v674
    %v1015 = vpack.c.b16 %v683, %v679
    %v1016 = vpack.c.b16 %v684, %v680
    %v1017 = vpack.c.b16 %v685, %v681
    %v1018 = vpack.c.b16 %v686, %v682
    %v1019 = vpack.c.b16 %v691, %v687
    %v1020 = vpack.c.b16 %v692, %v688
    %v1021 = vpack.c.b16 %v693, %v689
    %v1022 = vpack.c.b16 %v694, %v690
    %v1023 = vpack.c.b16 %v699, %v695
    %v1024 = vpack.c.b16 %v700, %v696
    %v1025 = vpack.c.b16 %v701, %v697
    %v1026 = vpack.c.b16 %v702, %v698
    %v1027 = vpack.c.b16 %v707, %v703
    %v1028 = vpack.c.b16 %v708, %v704
    %v1029 = vpack.c.b16 %v709, %v705
    %v1030 = vpack.c.b16 %v710, %v706
    %v1031 = vpack.c.b16 %v715, %v711
    %v1032 = vpack.c.b16 %v716, %v712
    %v1033 = vpack.c.b16 %v717, %v713
    %v1034 = vpack.c.b16 %v718, %v714
    %v1035 = vpack.c.b16 %v723, %v719
    %v1036 = vpack.c.b16 %v724, %v720
    %v1037 = vpack.c.b16 %v725, %v721
    %v1038 = vpack.c.b16 %v726, %v722
    %v1039 = vpack.c.b16 %v731, %v727
    %v1040 = vpack.c.b16 %v732, %v728
    %v1041 = vpack.c.b16 %v733, %v729
    %v1042 = vpack.c.b16 %v734, %v730
    %v1043 = vpack.c.b16 %v739, %v735
    %v1044 = vpack.c.b16 %v740, %v736
    %v1045 = vpack.c.b16 %v741, %v737
    %v1046 = vpack.c.b16 %v742, %v738
    %v1047 = vpack.c.b16 %v747, %v743
    %v1048 = vpack.c.b16 %v748, %v744
    %v1049 = vpack.c.b16 %v749, %v745
    %v1050 = vpack.c.b16 %v750, %v746
    %v1051 = vpack.c.b16 %v755, %v751
    %v1052 = vpack.c.b16 %v756, %v752
    %v1053 = vpack.c.b16 %v757, %v753
    %v1054 = vpack.c.b16 %v758, %v754
    %v1055 = vpack.c.b16 %v763, %v759
    %v1056 = vpack.c.b16 %v764, %v760
    %v1057 = vpack.c.b16 %v765, %v761
    %v1058 = vpack.c.b16 %v766, %v762
    %v1059 = vpack.c.b16 %v771, %v767
    %v1060 = vpack.c.b16 %v772, %v768
    %v1061 = vpack.c.b16 %v773, %v769
    %v1062 = vpack.c.b16 %v774, %v770
    %v1063 = vpack.c.b16 %v779, %v775
    %v1064 = vpack.c.b16 %v780, %v776
    %v1065 = vpack.c.b16 %v781, %v777
    %v1066 = vpack.c.b16 %v782, %v778
    %v1067 = vpack.c.b16 %v787, %v783
    %v1068 = vpack.c.b16 %v788, %v784
    %v1069 = vpack.c.b16 %v789, %v785
    %v1070 = vpack.c.b16 %v790, %v786
    %v1071 = vpack.c.b16 %v795, %v791
    %v1072 = vpack.c.b16 %v796, %v792
    %v1073 = vpack.c.b16 %v797, %v793
    %v1074 = vpack.c.b16 %v798, %v794
    %v1075 = vpack.c.b16 %v803, %v799
    %v1076 = vpack.c.b16 %v804, %v800
    %v1077 = vpack.c.b16 %v805, %v801
    %v1078 = vpack.c.b16 %v806, %v802
    %v1079 = vpack.c.b16 %v811, %v807
    %v1080 = vpack.c.b16 %v812, %v808
    %v1081 = vpack.c.b16 %v813, %v809
    %v1082 = vpack.c.b16 %v814, %v810
    %v1083 = vpack.c.b16 %v819, %v815
    %v1084 = vpack.c.b16 %v820, %v816
    %v1085 = vpack.c.b16 %v821, %v817
    %v1086 = vpack.c.b16 %v822, %v818
    %v1087 = vpack.c.b16 %v827, %v823
    %v1088 = vpack.c.b16 %v828, %v824
    %v1089 = vpack.c.b16 %v829, %v825
    %v1090 = vpack.c.b16 %v830, %v826
    %v1091 = vpack.c.b16 %v835, %v831
    %v1092 = vpack.c.b16 %v836, %v832
    %v1093 = vpack.c.b16 %v837, %v833
    %v1094 = vpack.c.b16 %v838, %v834
    %v1095 = vpack.c.b16 %v843, %v839
    %v1096 = vpack.c.b16 %v844, %v840
    %v1097 = vpack.c.b16 %v845, %v841
    %v1098 = vpack.c.b16 %v846, %v842
    %v1099 = vpack.c.b16 %v851, %v847
    %v1100 = vpack.c.b16 %v852, %v848
    %v1101 = vpack.c.b16 %v853, %v849
    %v1102 = vpack.c.b16 %v854, %v850
    %v1103 = vpack.c.b16 %v859, %v855
    %v1104 = vpack.c.b16 %v860, %v856
    %v1105 = vpack.c.b16 %v861, %v857
    %v1106 = vpack.c.b16 %v862, %v858
    %v1107 = vpack.c.b16 %v867, %v863
    %v1108 = vpack.c.b16 %v868, %v864
    %v1109 = vpack.c.b16 %v869, %v865
    %v1110 = vpack.c.b16 %v870, %v866
    %v1111 = vpack.c.b16 %v875, %v871
    %v1112 = vpack.c.b16 %v876, %v872
    %v1113 = vpack.c.b16 %v877, %v873
    %v1114 = vpack.c.b16 %v878, %v874
    %v1115 = vpack.c.b16 %v883, %v879
    %v1116 = vpack.c.b16 %v884, %v880
    %v1117 = vpack.c.b16 %v885, %v881
    %v1118 = vpack.c.b16 %v886, %v882
    %v1119 = vpack.c.b16 %v891, %v887
    %v1120 = vpack.c.b16 %v892, %v888
    %v1121 = vpack.c.b16 %v893, %v889
    %v1122 = vpack.c.b16 %v894, %v890
    %v1123 = vpack.c.b16 %v899, %v895
    %v1124 = vpack.c.b16 %v900, %v896
    %v1125 = vpack.c.b16 %v901, %v897
    %v1126 = vpack.c.b16 %v902, %v898
    %v1127 = vpack.c.b16 %v907, %v903
    %v1128 = vpack.c.b16 %v908, %v904
    %v1129 = vpack.c.b16 %v909, %v905
    %v1130 = vpack.c.b16 %v910, %v906
    %v1131 = vpack.c.b16 %v915, %v911
    %v1132 = vpack.c.b16 %v916, %v912
    %v1133 = vpack.c.b16 %v917, %v913
    %v1134 = vpack.c.b16 %v918, %v914
    %v1135 = vpack.c.b16 %v923, %v919
    %v1136 = vpack.c.b16 %v924, %v920
    %v1137 = vpack.c.b16 %v925, %v921
    %v1138 = vpack.c.b16 %v926, %v922
    %v1139 = vpack.c.b16 %v931, %v927
    %v1140 = vpack.c.b16 %v932, %v928
    %v1141 = vpack.c.b16 %v933, %v929
    %v1142 = vpack.c.b16 %v934, %v930
    %v1143 = vpack.c.b16 %v939, %v935
    %v1144 = vpack.c.b16 %v940, %v936
    %v1145 = vpack.c.b16 %v941, %v937
    %v1146 = vpack.c.b16 %v942, %v938
    %v1147 = vpack.c.b16 %v947, %v943
    %v1148 = vpack.c.b16 %v948, %v944
    %v1149 = vpack.c.b16 %v949, %v945
    %v1150 = vpack.c.b16 %v950, %v946
    %v1151 = vpack.c.b16 %v955, %v951
    %v1152 = vpack.c.b16 %v956, %v952
    %v1153 = vpack.c.b16 %v957, %v953
    %v1154 = vpack.c.b16 %v958, %v954
    %v1155 = vpack.c.b16 %v963, %v959
    %v1156 = vpack.c.b16 %v964, %v960
    %v1157 = vpack.c.b16 %v965, %v961
    %v1158 = vpack.c.b16 %v966, %v962
    %1351 = vmatprep.subr.bf16.mxu0 %v968
    %1352 = vmatpush1.bf16.msra.mxu0 %v967
    %1353 = vmatprep.subr.bf16.mxu0 %v972
    %1354 = vmatpush1.bf16.msra.mxu0 %v971
    %1355 = vmatprep.subr.bf16.mxu0 %v976
    %1356 = vmatpush1.bf16.msra.mxu0 %v975
    %1357 = vmatprep.subr.bf16.mxu0 %v980
    %1358 = vmatpush1.bf16.msra.mxu0 %v979
    %1359 = vmatprep.subr.bf16.mxu0 %v984
    %1360 = vmatpush1.bf16.msra.mxu0 %v983
    %1361 = vmatprep.subr.bf16.mxu0 %v988
    %1362 = vmatpush1.bf16.msra.mxu0 %v987
    %1363 = vmatprep.subr.bf16.mxu0 %v992
    %1364 = vmatpush1.bf16.msra.mxu0 %v991
    %1365 = vmatprep.subr.bf16.mxu0 %v996
    %1366 = vmatpush1.bf16.msra.mxu0 %v995
    %1367 = vmatprep.subr.bf16.mxu0 %v1000
    %1368 = vmatpush1.bf16.msra.mxu0 %v999
    %1369 = vmatprep.subr.bf16.mxu0 %v1004
    %1370 = vmatpush1.bf16.msra.mxu0 %v1003
    %1371 = vmatprep.subr.bf16.mxu0 %v1008
    %1372 = vmatpush1.bf16.msra.mxu0 %v1007
    %1373 = vmatprep.subr.bf16.mxu0 %v1012
    %1374 = vmatpush1.bf16.msra.mxu0 %v1011
    %1375 = vmatprep.subr.bf16.mxu0 %v1016
    %1376 = vmatpush1.bf16.msra.mxu0 %v1015
    %1377 = vmatprep.subr.bf16.mxu0 %v1020
    %1378 = vmatpush1.bf16.msra.mxu0 %v1019
    %1379 = vmatprep.subr.bf16.mxu0 %v1024
    %1380 = vmatpush1.bf16.msra.mxu0 %v1023
    %1381 = vmatprep.subr.bf16.mxu0 %v1028
    %1382 = vmatpush1.bf16.msra.mxu0 %v1027
    %1383 = vmatprep.mubr.bf16.mxu0 %v380
    %1384 = vmatmul.mubr.bf16.gmra.mrb[0].mxu0 %v379
    %v1385 = vpop.f32.mrb[0].mxu0
    %v1386 = vadd.f32 %v353, %v1385
    %v1387 = vpop.f32.mrb[0].mxu0
    %v1388 = vadd.f32 %v357, %v1387
    %v1389 = vpop.f32.mrb[0].mxu0
    %v1390 = vpop.f32.mrb[0].mxu0
    %1391 = vdwg.mxu0
    %1392 = vmatprep.subr.bf16.mxu0 %v1032
    %1393 = vmatpush1.bf16.msra.mxu0 %v1031
    %1394 = vmatprep.subr.bf16.mxu0 %v1036
    %1395 = vmatpush1.bf16.msra.mxu0 %v1035
    %1396 = vmatprep.subr.bf16.mxu0 %v1040
    %1397 = vmatpush1.bf16.msra.mxu0 %v1039
    %1398 = vmatprep.subr.bf16.mxu0 %v1044
    %1399 = vmatpush1.bf16.msra.mxu0 %v1043
    %1400 = vmatprep.subr.bf16.mxu0 %v1048
    %1401 = vmatpush1.bf16.msra.mxu0 %v1047
    %1402 = vmatprep.subr.bf16.mxu0 %v1052
    %1403 = vmatpush1.bf16.msra.mxu0 %v1051
    %1404 = vmatprep.subr.bf16.mxu0 %v1056
    %1405 = vmatpush1.bf16.msra.mxu0 %v1055
    %1406 = vmatprep.subr.bf16.mxu0 %v1060
    %1407 = vmatpush1.bf16.msra.mxu0 %v1059
    %1408 = vmatprep.subr.bf16.mxu0 %v1064
    %1409 = vmatpush1.bf16.msra.mxu0 %v1063
    %1410 = vmatprep.subr.bf16.mxu0 %v1068
    %1411 = vmatpush1.bf16.msra.mxu0 %v1067
    %1412 = vmatprep.subr.bf16.mxu0 %v1072
    %1413 = vmatpush1.bf16.msra.mxu0 %v1071
    %1414 = vmatprep.subr.bf16.mxu0 %v1076
    %1415 = vmatpush1.bf16.msra.mxu0 %v1075
    %1416 = vmatprep.subr.bf16.mxu0 %v1080
    %1417 = vmatpush1.bf16.msra.mxu0 %v1079
    %1418 = vmatprep.subr.bf16.mxu0 %v1084
    %1419 = vmatpush1.bf16.msra.mxu0 %v1083
    %1420 = vmatprep.subr.bf16.mxu0 %v1088
    %1421 = vmatpush1.bf16.msra.mxu0 %v1087
    %1422 = vmatprep.subr.bf16.mxu0 %v1092
    %1423 = vmatpush1.bf16.msra.mxu0 %v1091
    %1424 = vmatprep.mubr.bf16.mxu0 %v382
    %1425 = vmatmul.mubr.bf16.gmra.mrb[0].mxu0 %v381
    %v1426 = vpop.f32.mrb[0].mxu0
    %v1427 = vadd.f32 %v1386, %v1426
    %v1428 = vpop.f32.mrb[0].mxu0
    %v1429 = vadd.f32 %v1388, %v1428
    %v1430 = vpop.f32.mrb[0].mxu0
    %v1431 = vpop.f32.mrb[0].mxu0
    %1432 = vdwg.mxu0
    %1433 = vmatprep.subr.bf16.mxu0 %v1096
    %1434 = vmatpush1.bf16.msra.mxu0 %v1095
    %1435 = vmatprep.subr.bf16.mxu0 %v1100
    %1436 = vmatpush1.bf16.msra.mxu0 %v1099
    %1437 = vmatprep.subr.bf16.mxu0 %v1104
    %1438 = vmatpush1.bf16.msra.mxu0 %v1103
    %1439 = vmatprep.subr.bf16.mxu0 %v1108
    %1440 = vmatpush1.bf16.msra.mxu0 %v1107
    %1441 = vmatprep.subr.bf16.mxu0 %v1112
    %1442 = vmatpush1.bf16.msra.mxu0 %v1111
    %1443 = vmatprep.subr.bf16.mxu0 %v1116
    %1444 = vmatpush1.bf16.msra.mxu0 %v1115
    %1445 = vmatprep.subr.bf16.mxu0 %v1120
    %1446 = vmatpush1.bf16.msra.mxu0 %v1119
    %1447 = vmatprep.subr.bf16.mxu0 %v1124
    %1448 = vmatpush1.bf16.msra.mxu0 %v1123
    %1449 = vmatprep.subr.bf16.mxu0 %v1128
    %1450 = vmatpush1.bf16.msra.mxu0 %v1127
    %1451 = vmatprep.subr.bf16.mxu0 %v1132
    %1452 = vmatpush1.bf16.msra.mxu0 %v1131
    %1453 = vmatprep.subr.bf16.mxu0 %v1136
    %1454 = vmatpush1.bf16.msra.mxu0 %v1135
    %1455 = vmatprep.subr.bf16.mxu0 %v1140
    %1456 = vmatpush1.bf16.msra.mxu0 %v1139
    %1457 = vmatprep.subr.bf16.mxu0 %v1144
    %1458 = vmatpush1.bf16.msra.mxu0 %v1143
    %1459 = vmatprep.subr.bf16.mxu0 %v1148
    %1460 = vmatpush1.bf16.msra.mxu0 %v1147
    %1461 = vmatprep.subr.bf16.mxu0 %v1152
    %1462 = vmatpush1.bf16.msra.mxu0 %v1151
    %1463 = vmatprep.subr.bf16.mxu0 %v1156
    %1464 = vmatpush1.bf16.msra.mxu0 %v1155
    %1465 = vmatprep.mubr.bf16.mxu0 %v384
    %1466 = vmatmul.mubr.bf16.gmra.mrb[0].mxu0 %v383
    %v1467 = vpop.f32.mrb[0].mxu0
    %v1468 = vadd.f32 %v1427, %v1467
    %v1469 = vpop.f32.mrb[0].mxu0
    %v1470 = vadd.f32 %v1429, %v1469
    %v1471 = vpop.f32.mrb[0].mxu0
    %v1472 = vpop.f32.mrb[0].mxu0
    %1473 = vdwg.mxu0
    %1474 = vmatprep.subr.bf16.mxu0 %v970
    %1475 = vmatpush1.bf16.msra.mxu0 %v969
    %1476 = vmatprep.subr.bf16.mxu0 %v974
    %1477 = vmatpush1.bf16.msra.mxu0 %v973
    %1478 = vmatprep.subr.bf16.mxu0 %v978
    %1479 = vmatpush1.bf16.msra.mxu0 %v977
    %1480 = vmatprep.subr.bf16.mxu0 %v982
    %1481 = vmatpush1.bf16.msra.mxu0 %v981
    %1482 = vmatprep.subr.bf16.mxu0 %v986
    %1483 = vmatpush1.bf16.msra.mxu0 %v985
    %1484 = vmatprep.subr.bf16.mxu0 %v990
    %1485 = vmatpush1.bf16.msra.mxu0 %v989
    %1486 = vmatprep.subr.bf16.mxu0 %v994
    %1487 = vmatpush1.bf16.msra.mxu0 %v993
    %1488 = vmatprep.subr.bf16.mxu0 %v998
    %1489 = vmatpush1.bf16.msra.mxu0 %v997
    %1490 = vmatprep.subr.bf16.mxu0 %v1002
    %1491 = vmatpush1.bf16.msra.mxu0 %v1001
    %1492 = vmatprep.subr.bf16.mxu0 %v1006
    %1493 = vmatpush1.bf16.msra.mxu0 %v1005
    %1494 = vmatprep.subr.bf16.mxu0 %v1010
    %1495 = vmatpush1.bf16.msra.mxu0 %v1009
    %1496 = vmatprep.subr.bf16.mxu0 %v1014
    %1497 = vmatpush1.bf16.msra.mxu0 %v1013
    %1498 = vmatprep.subr.bf16.mxu0 %v1018
    %1499 = vmatpush1.bf16.msra.mxu0 %v1017
    %1500 = vmatprep.subr.bf16.mxu0 %v1022
    %1501 = vmatpush1.bf16.msra.mxu0 %v1021
    %1502 = vmatprep.subr.bf16.mxu0 %v1026
    %1503 = vmatpush1.bf16.msra.mxu0 %v1025
    %1504 = vmatprep.subr.bf16.mxu0 %v1030
    %1505 = vmatpush1.bf16.msra.mxu0 %v1029
    %1506 = vmatprep.mubr.bf16.mxu0 %v380
    %1507 = vmatmul.mubr.bf16.gmra.mrb[0].mxu0 %v379
    %v1508 = vpop.f32.mrb[0].mxu0
    %v1509 = vadd.f32 %v361, %v1508
    %v1510 = vpop.f32.mrb[0].mxu0
    %v1511 = vadd.f32 %v365, %v1510
    %v1512 = vpop.f32.mrb[0].mxu0
    %v1513 = vpop.f32.mrb[0].mxu0
    %1514 = vdwg.mxu0
    %1515 = vmatprep.subr.bf16.mxu0 %v1034
    %1516 = vmatpush1.bf16.msra.mxu0 %v1033
    %1517 = vmatprep.subr.bf16.mxu0 %v1038
    %1518 = vmatpush1.bf16.msra.mxu0 %v1037
    %1519 = vmatprep.subr.bf16.mxu0 %v1042
    %1520 = vmatpush1.bf16.msra.mxu0 %v1041
    %1521 = vmatprep.subr.bf16.mxu0 %v1046
    %1522 = vmatpush1.bf16.msra.mxu0 %v1045
    %1523 = vmatprep.subr.bf16.mxu0 %v1050
    %1524 = vmatpush1.bf16.msra.mxu0 %v1049
    %1525 = vmatprep.subr.bf16.mxu0 %v1054
    %1526 = vmatpush1.bf16.msra.mxu0 %v1053
    %1527 = vmatprep.subr.bf16.mxu0 %v1058
    %1528 = vmatpush1.bf16.msra.mxu0 %v1057
    %1529 = vmatprep.subr.bf16.mxu0 %v1062
    %1530 = vmatpush1.bf16.msra.mxu0 %v1061
    %1531 = vmatprep.subr.bf16.mxu0 %v1066
    %1532 = vmatpush1.bf16.msra.mxu0 %v1065
    %1533 = vmatprep.subr.bf16.mxu0 %v1070
    %1534 = vmatpush1.bf16.msra.mxu0 %v1069
    %1535 = vmatprep.subr.bf16.mxu0 %v1074
    %1536 = vmatpush1.bf16.msra.mxu0 %v1073
    %1537 = vmatprep.subr.bf16.mxu0 %v1078
    %1538 = vmatpush1.bf16.msra.mxu0 %v1077
    %1539 = vmatprep.subr.bf16.mxu0 %v1082
    %1540 = vmatpush1.bf16.msra.mxu0 %v1081
    %1541 = vmatprep.subr.bf16.mxu0 %v1086
    %1542 = vmatpush1.bf16.msra.mxu0 %v1085
    %1543 = vmatprep.subr.bf16.mxu0 %v1090
    %1544 = vmatpush1.bf16.msra.mxu0 %v1089
    %1545 = vmatprep.subr.bf16.mxu0 %v1094
    %1546 = vmatpush1.bf16.msra.mxu0 %v1093
    %1547 = vmatprep.mubr.bf16.mxu0 %v382
    %1548 = vmatmul.mubr.bf16.gmra.mrb[0].mxu0 %v381
    %v1549 = vpop.f32.mrb[0].mxu0
    %v1550 = vadd.f32 %v1509, %v1549
    %v1551 = vpop.f32.mrb[0].mxu0
    %v1552 = vadd.f32 %v1511, %v1551
    %v1553 = vpop.f32.mrb[0].mxu0
    %v1554 = vpop.f32.mrb[0].mxu0
    %1555 = vdwg.mxu0
    %1556 = vmatprep.subr.bf16.mxu0 %v1098
    %1557 = vmatpush1.bf16.msra.mxu0 %v1097
    %1558 = vmatprep.subr.bf16.mxu0 %v1102
    %1559 = vmatpush1.bf16.msra.mxu0 %v1101
    %1560 = vmatprep.subr.bf16.mxu0 %v1106
    %1561 = vmatpush1.bf16.msra.mxu0 %v1105
    %1562 = vmatprep.subr.bf16.mxu0 %v1110
    %1563 = vmatpush1.bf16.msra.mxu0 %v1109
    %1564 = vmatprep.subr.bf16.mxu0 %v1114
    %1565 = vmatpush1.bf16.msra.mxu0 %v1113
    %1566 = vmatprep.subr.bf16.mxu0 %v1118
    %1567 = vmatpush1.bf16.msra.mxu0 %v1117
    %1568 = vmatprep.subr.bf16.mxu0 %v1122
    %1569 = vmatpush1.bf16.msra.mxu0 %v1121
    %1570 = vmatprep.subr.bf16.mxu0 %v1126
    %1571 = vmatpush1.bf16.msra.mxu0 %v1125
    %1572 = vmatprep.subr.bf16.mxu0 %v1130
    %1573 = vmatpush1.bf16.msra.mxu0 %v1129
    %1574 = vmatprep.subr.bf16.mxu0 %v1134
    %1575 = vmatpush1.bf16.msra.mxu0 %v1133
    %1576 = vmatprep.subr.bf16.mxu0 %v1138
    %1577 = vmatpush1.bf16.msra.mxu0 %v1137
    %1578 = vmatprep.subr.bf16.mxu0 %v1142
    %1579 = vmatpush1.bf16.msra.mxu0 %v1141
    %1580 = vmatprep.subr.bf16.mxu0 %v1146
    %1581 = vmatpush1.bf16.msra.mxu0 %v1145
    %1582 = vmatprep.subr.bf16.mxu0 %v1150
    %1583 = vmatpush1.bf16.msra.mxu0 %v1149
    %1584 = vmatprep.subr.bf16.mxu0 %v1154
    %1585 = vmatpush1.bf16.msra.mxu0 %v1153
    %1586 = vmatprep.subr.bf16.mxu0 %v1158
    %1587 = vmatpush1.bf16.msra.mxu0 %v1157
    %1588 = vmatprep.mubr.bf16.mxu0 %v384
    %1589 = vmatmul.mubr.bf16.gmra.mrb[0].mxu0 %v383
    %v1590 = vpop.f32.mrb[0].mxu0
    %v1591 = vadd.f32 %v1550, %v1590
    %v1592 = vpop.f32.mrb[0].mxu0
    %v1593 = vadd.f32 %v1552, %v1592
    %v1594 = vpop.f32.mrb[0].mxu0
    %v1595 = vpop.f32.mrb[0].mxu0
    %1596 = vdwg.mxu0
    %v1597 = vld [vmem:[%s1] sm:$0xff]
    %v1598 = vld [vmem:[%s1 + $0x8] sm:$0xff]
    %v1599 = vld [vmem:[%s1 + $0x10] sm:$0xff]
    %v1600 = vld [vmem:[%s1 + $0x18] sm:$0xff]
    %v1601 = vld [vmem:[%s1 + $0x20] sm:$0xff]
    %v1602 = vld [vmem:[%s1 + $0x28] sm:$0xff]
    %v1603 = vunpack.c.l.bf16 %v1597
    %v1604 = vunpack.c.h.bf16 %v1597
    %v1605 = vunpack.c.l.bf16 %v1598
    %v1606 = vunpack.c.h.bf16 %v1598
    %v1607 = vunpack.c.l.bf16 %v1599
    %v1608 = vunpack.c.h.bf16 %v1599
    %v1609 = vunpack.c.l.bf16 %v1600
    %v1610 = vunpack.c.h.bf16 %v1600
    %v1611 = vunpack.c.l.bf16 %v1601
    %v1612 = vunpack.c.h.bf16 %v1601
    %v1613 = vunpack.c.l.bf16 %v1602
    %v1614 = vunpack.c.h.bf16 %v1602
    %v1615 = vadd.f32 %v1468, %v1603
    %v1616 = vadd.f32 %v1470, %v1604
    %v1617 = vadd.f32 %v1591, %v1605
    %v1618 = vadd.f32 %v1593, %v1606
    %v1619 = vadd.f32 %v1468, %v1607
    %v1620 = vadd.f32 %v1470, %v1608
    %v1621 = vadd.f32 %v1591, %v1609
    %v1622 = vadd.f32 %v1593, %v1610
    %v1623 = vadd.f32 %v1468, %v1611
    %v1624 = vadd.f32 %v1470, %v1612
    %v1625 = vadd.f32 %v1591, %v1613
    %v1626 = vadd.f32 %v1593, %v1614
    %v1627 = vpack.c.bf16 %v1619, %v1615
    %v1628 = vpack.c.bf16 %v1620, %v1616
    %v1629 = vpack.c.bf16 %v1621, %v1617
    %v1630 = vpack.c.bf16 %v1622, %v1618
    %v1631 = vpack.c.bf16 %v1623, %v1623
    %v1632 = vpack.c.bf16 %v1624, %v1624
    %v1633 = vpack.c.bf16 %v1625, %v1625
    %v1634 = vpack.c.bf16 %v1626, %v1626
    %v1635 = vld [vmem:[#allocation6] sm:$0xff]
    %v1636 = vld [vmem:[#allocation6 + $0x8] sm:$0xff]
    %v1637 = vld [vmem:[#allocation6 + $0x10] sm:$0xff]
    %v1638 = vld [vmem:[#allocation6 + $0x18] sm:$0xff]
    %v1639 = vld [vmem:[#allocation6 + $0x20] sm:$0xff]
    %v1640 = vld [vmem:[#allocation6 + $0x28] sm:$0xff]
    %v1641 = vld [vmem:[#allocation6 + $0x30] sm:$0xff]
    %v1642 = vld [vmem:[#allocation6 + $0x38] sm:$0xff]
    %v1643 = vld [vmem:[#allocation6 + $0x40] sm:$0xff]
    %v1644 = vld [vmem:[#allocation6 + $0x48] sm:$0xff]
    %v1645 = vld [vmem:[#allocation6 + $0x50] sm:$0xff]
    %v1646 = vld [vmem:[#allocation6 + $0x58] sm:$0xff]
    %v1647 = vld [vmem:[#allocation6 + $0x60] sm:$0xff]
    %v1648 = vld [vmem:[#allocation6 + $0x68] sm:$0xff]
    %v1649 = vld [vmem:[#allocation6 + $0x70] sm:$0xff]
    %v1650 = vld [vmem:[#allocation6 + $0x78] sm:$0xff]
    %v1651 = vld [vmem:[#allocation6 + $0x80] sm:$0xff]
    %v1652 = vld [vmem:[#allocation6 + $0x88] sm:$0xff]
    %v1653 = vld [vmem:[#allocation6 + $0x90] sm:$0xff]
    %v1654 = vld [vmem:[#allocation6 + $0x98] sm:$0xff]
    %v1655 = vld [vmem:[#allocation6 + $0xa0] sm:$0xff]
    %v1656 = vld [vmem:[#allocation6 + $0xa8] sm:$0xff]
    %v1657 = vld [vmem:[#allocation6 + $0xb0] sm:$0xff]
    %v1658 = vld [vmem:[#allocation6 + $0xb8] sm:$0xff]
    %v1659 = vld [vmem:[#allocation6 + $0xc0] sm:$0xff]
    %v1660 = vld [vmem:[#allocation6 + $0xc8] sm:$0xff]
    %v1661 = vld [vmem:[#allocation6 + $0xd0] sm:$0xff]
    %v1662 = vld [vmem:[#allocation6 + $0xd8] sm:$0xff]
    %v1663 = vld [vmem:[#allocation6 + $0xe0] sm:$0xff]
    %v1664 = vld [vmem:[#allocation6 + $0xe8] sm:$0xff]
    %v1665 = vld [vmem:[#allocation6 + $0xf0] sm:$0xff]
    %v1666 = vld [vmem:[#allocation6 + $0xf8] sm:$0xff]
    %v1667 = vld [vmem:[#allocation6 + $0x100] sm:$0xff]
    %v1668 = vld [vmem:[#allocation6 + $0x108] sm:$0xff]
    %v1669 = vld [vmem:[#allocation6 + $0x110] sm:$0xff]
    %v1670 = vld [vmem:[#allocation6 + $0x118] sm:$0xff]
    %v1671 = vld [vmem:[#allocation6 + $0x120] sm:$0xff]
    %v1672 = vld [vmem:[#allocation6 + $0x128] sm:$0xff]
    %v1673 = vld [vmem:[#allocation6 + $0x130] sm:$0xff]
    %v1674 = vld [vmem:[#allocation6 + $0x138] sm:$0xff]
    %v1675 = vld [vmem:[#allocation6 + $0x140] sm:$0xff]
    %v1676 = vld [vmem:[#allocation6 + $0x148] sm:$0xff]
    %v1677 = vld [vmem:[#allocation6 + $0x150] sm:$0xff]
    %v1678 = vld [vmem:[#allocation6 + $0x158] sm:$0xff]
    %v1679 = vld [vmem:[#allocation6 + $0x160] sm:$0xff]
    %v1680 = vld [vmem:[#allocation6 + $0x168] sm:$0xff]
    %v1681 = vld [vmem:[#allocation6 + $0x170] sm:$0xff]
    %v1682 = vld [vmem:[#allocation6 + $0x178] sm:$0xff]
    %v1683 = vld [vmem:[#allocation6 + $0x180] sm:$0xff]
    %v1684 = vld [vmem:[#allocation6 + $0x188] sm:$0xff]
    %v1685 = vld [vmem:[#allocation6 + $0x190] sm:$0xff]
    %v1686 = vld [vmem:[#allocation6 + $0x198] sm:$0xff]
    %v1687 = vld [vmem:[#allocation6 + $0x1a0] sm:$0xff]
    %v1688 = vld [vmem:[#allocation6 + $0x1a8] sm:$0xff]
    %v1689 = vld [vmem:[#allocation6 + $0x1b0] sm:$0xff]
    %v1690 = vld [vmem:[#allocation6 + $0x1b8] sm:$0xff]
    %v1691 = vld [vmem:[#allocation6 + $0x1c0] sm:$0xff]
    %v1692 = vld [vmem:[#allocation6 + $0x1c8] sm:$0xff]
    %v1693 = vld [vmem:[#allocation6 + $0x1d0] sm:$0xff]
    %v1694 = vld [vmem:[#allocation6 + $0x1d8] sm:$0xff]
    %v1695 = vld [vmem:[#allocation6 + $0x1e0] sm:$0xff]
    %v1696 = vld [vmem:[#allocation6 + $0x1e8] sm:$0xff]
    %v1697 = vld [vmem:[#allocation6 + $0x1f0] sm:$0xff]
    %v1698 = vld [vmem:[#allocation6 + $0x1f8] sm:$0xff]
    %v1699 = vld [vmem:[#allocation6 + $0x200] sm:$0xff]
    %v1700 = vld [vmem:[#allocation6 + $0x208] sm:$0xff]
    %v1701 = vld [vmem:[#allocation6 + $0x210] sm:$0xff]
    %v1702 = vld [vmem:[#allocation6 + $0x218] sm:$0xff]
    %v1703 = vld [vmem:[#allocation6 + $0x220] sm:$0xff]
    %v1704 = vld [vmem:[#allocation6 + $0x228] sm:$0xff]
    %v1705 = vld [vmem:[#allocation6 + $0x230] sm:$0xff]
    %v1706 = vld [vmem:[#allocation6 + $0x238] sm:$0xff]
    %v1707 = vld [vmem:[#allocation6 + $0x240] sm:$0xff]
    %v1708 = vld [vmem:[#allocation6 + $0x248] sm:$0xff]
    %v1709 = vld [vmem:[#allocation6 + $0x250] sm:$0xff]
    %v1710 = vld [vmem:[#allocation6 + $0x258] sm:$0xff]
    %v1711 = vld [vmem:[#allocation6 + $0x260] sm:$0xff]
    %v1712 = vld [vmem:[#allocation6 + $0x268] sm:$0xff]
    %v1713 = vld [vmem:[#allocation6 + $0x270] sm:$0xff]
    %v1714 = vld [vmem:[#allocation6 + $0x278] sm:$0xff]
    %v1715 = vld [vmem:[#allocation6 + $0x280] sm:$0xff]
    %v1716 = vld [vmem:[#allocation6 + $0x288] sm:$0xff]
    %v1717 = vld [vmem:[#allocation6 + $0x290] sm:$0xff]
    %v1718 = vld [vmem:[#allocation6 + $0x298] sm:$0xff]
    %v1719 = vld [vmem:[#allocation6 + $0x2a0] sm:$0xff]
    %v1720 = vld [vmem:[#allocation6 + $0x2a8] sm:$0xff]
    %v1721 = vld [vmem:[#allocation6 + $0x2b0] sm:$0xff]
    %v1722 = vld [vmem:[#allocation6 + $0x2b8] sm:$0xff]
    %v1723 = vld [vmem:[#allocation6 + $0x2c0] sm:$0xff]
    %v1724 = vld [vmem:[#allocation6 + $0x2c8] sm:$0xff]
    %v1725 = vld [vmem:[#allocation6 + $0x2d0] sm:$0xff]
    %v1726 = vld [vmem:[#allocation6 + $0x2d8] sm:$0xff]
    %v1727 = vld [vmem:[#allocation6 + $0x2e0] sm:$0xff]
    %v1728 = vld [vmem:[#allocation6 + $0x2e8] sm:$0xff]
    %v1729 = vld [vmem:[#allocation6 + $0x2f0] sm:$0xff]
    %v1730 = vld [vmem:[#allocation6 + $0x2f8] sm:$0xff]
    %v1731 = vld [vmem:[#allocation6 + $0x300] sm:$0xff]
    %v1732 = vld [vmem:[#allocation6 + $0x308] sm:$0xff]
    %v1733 = vld [vmem:[#allocation6 + $0x310] sm:$0xff]
    %v1734 = vld [vmem:[#allocation6 + $0x318] sm:$0xff]
    %v1735 = vld [vmem:[#allocation6 + $0x320] sm:$0xff]
    %v1736 = vld [vmem:[#allocation6 + $0x328] sm:$0xff]
    %v1737 = vld [vmem:[#allocation6 + $0x330] sm:$0xff]
    %v1738 = vld [vmem:[#allocation6 + $0x338] sm:$0xff]
    %v1739 = vld [vmem:[#allocation6 + $0x340] sm:$0xff]
    %v1740 = vld [vmem:[#allocation6 + $0x348] sm:$0xff]
    %v1741 = vld [vmem:[#allocation6 + $0x350] sm:$0xff]
    %v1742 = vld [vmem:[#allocation6 + $0x358] sm:$0xff]
    %v1743 = vld [vmem:[#allocation6 + $0x360] sm:$0xff]
    %v1744 = vld [vmem:[#allocation6 + $0x368] sm:$0xff]
    %v1745 = vld [vmem:[#allocation6 + $0x370] sm:$0xff]
    %v1746 = vld [vmem:[#allocation6 + $0x378] sm:$0xff]
    %v1747 = vld [vmem:[#allocation6 + $0x380] sm:$0xff]
    %v1748 = vld [vmem:[#allocation6 + $0x388] sm:$0xff]
    %v1749 = vld [vmem:[#allocation6 + $0x390] sm:$0xff]
    %v1750 = vld [vmem:[#allocation6 + $0x398] sm:$0xff]
    %v1751 = vld [vmem:[#allocation6 + $0x3a0] sm:$0xff]
    %v1752 = vld [vmem:[#allocation6 + $0x3a8] sm:$0xff]
    %v1753 = vld [vmem:[#allocation6 + $0x3b0] sm:$0xff]
    %v1754 = vld [vmem:[#allocation6 + $0x3b8] sm:$0xff]
    %v1755 = vld [vmem:[#allocation6 + $0x3c0] sm:$0xff]
    %v1756 = vld [vmem:[#allocation6 + $0x3c8] sm:$0xff]
    %v1757 = vld [vmem:[#allocation6 + $0x3d0] sm:$0xff]
    %v1758 = vld [vmem:[#allocation6 + $0x3d8] sm:$0xff]
    %v1759 = vld [vmem:[#allocation6 + $0x3e0] sm:$0xff]
    %v1760 = vld [vmem:[#allocation6 + $0x3e8] sm:$0xff]
    %v1761 = vld [vmem:[#allocation6 + $0x3f0] sm:$0xff]
    %v1762 = vld [vmem:[#allocation6 + $0x3f8] sm:$0xff]
    %v1763 = vld [vmem:[#allocation6 + $0x400] sm:$0xff]
    %v1764 = vld [vmem:[#allocation6 + $0x408] sm:$0xff]
    %v1765 = vld [vmem:[#allocation6 + $0x410] sm:$0xff]
    %v1766 = vld [vmem:[#allocation6 + $0x418] sm:$0xff]
    %v1767 = vld [vmem:[#allocation6 + $0x420] sm:$0xff]
    %v1768 = vld [vmem:[#allocation6 + $0x428] sm:$0xff]
    %v1769 = vld [vmem:[#allocation6 + $0x430] sm:$0xff]
    %v1770 = vld [vmem:[#allocation6 + $0x438] sm:$0xff]
    %v1771 = vld [vmem:[#allocation6 + $0x440] sm:$0xff]
    %v1772 = vld [vmem:[#allocation6 + $0x448] sm:$0xff]
    %v1773 = vld [vmem:[#allocation6 + $0x450] sm:$0xff]
    %v1774 = vld [vmem:[#allocation6 + $0x458] sm:$0xff]
    %v1775 = vld [vmem:[#allocation6 + $0x460] sm:$0xff]
    %v1776 = vld [vmem:[#allocation6 + $0x468] sm:$0xff]
    %v1777 = vld [vmem:[#allocation6 + $0x470] sm:$0xff]
    %v1778 = vld [vmem:[#allocation6 + $0x478] sm:$0xff]
    %v1779 = vld [vmem:[#allocation6 + $0x480] sm:$0xff]
    %v1780 = vld [vmem:[#allocation6 + $0x488] sm:$0xff]
    %v1781 = vld [vmem:[#allocation6 + $0x490] sm:$0xff]
    %v1782 = vld [vmem:[#allocation6 + $0x498] sm:$0xff]
    %v1783 = vld [vmem:[#allocation6 + $0x4a0] sm:$0xff]
    %v1784 = vld [vmem:[#allocation6 + $0x4a8] sm:$0xff]
    %v1785 = vld [vmem:[#allocation6 + $0x4b0] sm:$0xff]
    %v1786 = vld [vmem:[#allocation6 + $0x4b8] sm:$0xff]
    %v1787 = vld [vmem:[#allocation6 + $0x4c0] sm:$0xff]
    %v1788 = vld [vmem:[#allocation6 + $0x4c8] sm:$0xff]
    %v1789 = vld [vmem:[#allocation6 + $0x4d0] sm:$0xff]
    %v1790 = vld [vmem:[#allocation6 + $0x4d8] sm:$0xff]
    %v1791 = vld [vmem:[#allocation6 + $0x4e0] sm:$0xff]
    %v1792 = vld [vmem:[#allocation6 + $0x4e8] sm:$0xff]
    %v1793 = vld [vmem:[#allocation6 + $0x4f0] sm:$0xff]
    %v1794 = vld [vmem:[#allocation6 + $0x4f8] sm:$0xff]
    %v1795 = vld [vmem:[#allocation6 + $0x500] sm:$0xff]
    %v1796 = vld [vmem:[#allocation6 + $0x508] sm:$0xff]
    %v1797 = vld [vmem:[#allocation6 + $0x510] sm:$0xff]
    %v1798 = vld [vmem:[#allocation6 + $0x518] sm:$0xff]
    %v1799 = vld [vmem:[#allocation6 + $0x520] sm:$0xff]
    %v1800 = vld [vmem:[#allocation6 + $0x528] sm:$0xff]
    %v1801 = vld [vmem:[#allocation6 + $0x530] sm:$0xff]
    %v1802 = vld [vmem:[#allocation6 + $0x538] sm:$0xff]
    %v1803 = vld [vmem:[#allocation6 + $0x540] sm:$0xff]
    %v1804 = vld [vmem:[#allocation6 + $0x548] sm:$0xff]
    %v1805 = vld [vmem:[#allocation6 + $0x550] sm:$0xff]
    %v1806 = vld [vmem:[#allocation6 + $0x558] sm:$0xff]
    %v1807 = vld [vmem:[#allocation6 + $0x560] sm:$0xff]
    %v1808 = vld [vmem:[#allocation6 + $0x568] sm:$0xff]
    %v1809 = vld [vmem:[#allocation6 + $0x570] sm:$0xff]
    %v1810 = vld [vmem:[#allocation6 + $0x578] sm:$0xff]
    %v1811 = vld [vmem:[#allocation6 + $0x580] sm:$0xff]
    %v1812 = vld [vmem:[#allocation6 + $0x588] sm:$0xff]
    %v1813 = vld [vmem:[#allocation6 + $0x590] sm:$0xff]
    %v1814 = vld [vmem:[#allocation6 + $0x598] sm:$0xff]
    %v1815 = vld [vmem:[#allocation6 + $0x5a0] sm:$0xff]
    %v1816 = vld [vmem:[#allocation6 + $0x5a8] sm:$0xff]
    %v1817 = vld [vmem:[#allocation6 + $0x5b0] sm:$0xff]
    %v1818 = vld [vmem:[#allocation6 + $0x5b8] sm:$0xff]
    %v1819 = vld [vmem:[#allocation6 + $0x5c0] sm:$0xff]
    %v1820 = vld [vmem:[#allocation6 + $0x5c8] sm:$0xff]
    %v1821 = vld [vmem:[#allocation6 + $0x5d0] sm:$0xff]
    %v1822 = vld [vmem:[#allocation6 + $0x5d8] sm:$0xff]
    %v1823 = vld [vmem:[#allocation6 + $0x5e0] sm:$0xff]
    %v1824 = vld [vmem:[#allocation6 + $0x5e8] sm:$0xff]
    %v1825 = vld [vmem:[#allocation6 + $0x5f0] sm:$0xff]
    %v1826 = vld [vmem:[#allocation6 + $0x5f8] sm:$0xff]
    %v1827 = vld [vmem:[#allocation6 + $0x600] sm:$0xff]
    %v1828 = vld [vmem:[#allocation6 + $0x608] sm:$0xff]
    %v1829 = vld [vmem:[#allocation6 + $0x610] sm:$0xff]
    %v1830 = vld [vmem:[#allocation6 + $0x618] sm:$0xff]
    %v1831 = vld [vmem:[#allocation6 + $0x620] sm:$0xff]
    %v1832 = vld [vmem:[#allocation6 + $0x628] sm:$0xff]
    %v1833 = vld [vmem:[#allocation6 + $0x630] sm:$0xff]
    %v1834 = vld [vmem:[#allocation6 + $0x638] sm:$0xff]
    %v1835 = vld [vmem:[#allocation6 + $0x640] sm:$0xff]
    %v1836 = vld [vmem:[#allocation6 + $0x648] sm:$0xff]
    %v1837 = vld [vmem:[#allocation6 + $0x650] sm:$0xff]
    %v1838 = vld [vmem:[#allocation6 + $0x658] sm:$0xff]
    %v1839 = vld [vmem:[#allocation6 + $0x660] sm:$0xff]
    %v1840 = vld [vmem:[#allocation6 + $0x668] sm:$0xff]
    %v1841 = vld [vmem:[#allocation6 + $0x670] sm:$0xff]
    %v1842 = vld [vmem:[#allocation6 + $0x678] sm:$0xff]
    %v1843 = vld [vmem:[#allocation6 + $0x680] sm:$0xff]
    %v1844 = vld [vmem:[#allocation6 + $0x688] sm:$0xff]
    %v1845 = vld [vmem:[#allocation6 + $0x690] sm:$0xff]
    %v1846 = vld [vmem:[#allocation6 + $0x698] sm:$0xff]
    %v1847 = vld [vmem:[#allocation6 + $0x6a0] sm:$0xff]
    %v1848 = vld [vmem:[#allocation6 + $0x6a8] sm:$0xff]
    %v1849 = vld [vmem:[#allocation6 + $0x6b0] sm:$0xff]
    %v1850 = vld [vmem:[#allocation6 + $0x6b8] sm:$0xff]
    %v1851 = vld [vmem:[#allocation6 + $0x6c0] sm:$0xff]
    %v1852 = vld [vmem:[#allocation6 + $0x6c8] sm:$0xff]
    %v1853 = vld [vmem:[#allocation6 + $0x6d0] sm:$0xff]
    %v1854 = vld [vmem:[#allocation6 + $0x6d8] sm:$0xff]
    %v1855 = vld [vmem:[#allocation6 + $0x6e0] sm:$0xff]
    %v1856 = vld [vmem:[#allocation6 + $0x6e8] sm:$0xff]
    %v1857 = vld [vmem:[#allocation6 + $0x6f0] sm:$0xff]
    %v1858 = vld [vmem:[#allocation6 + $0x6f8] sm:$0xff]
    %v1859 = vld [vmem:[#allocation6 + $0x700] sm:$0xff]
    %v1860 = vld [vmem:[#allocation6 + $0x708] sm:$0xff]
    %v1861 = vld [vmem:[#allocation6 + $0x710] sm:$0xff]
    %v1862 = vld [vmem:[#allocation6 + $0x718] sm:$0xff]
    %v1863 = vld [vmem:[#allocation6 + $0x720] sm:$0xff]
    %v1864 = vld [vmem:[#allocation6 + $0x728] sm:$0xff]
    %v1865 = vld [vmem:[#allocation6 + $0x730] sm:$0xff]
    %v1866 = vld [vmem:[#allocation6 + $0x738] sm:$0xff]
    %v1867 = vld [vmem:[#allocation6 + $0x740] sm:$0xff]
    %v1868 = vld [vmem:[#allocation6 + $0x748] sm:$0xff]
    %v1869 = vld [vmem:[#allocation6 + $0x750] sm:$0xff]
    %v1870 = vld [vmem:[#allocation6 + $0x758] sm:$0xff]
    %v1871 = vld [vmem:[#allocation6 + $0x760] sm:$0xff]
    %v1872 = vld [vmem:[#allocation6 + $0x768] sm:$0xff]
    %v1873 = vld [vmem:[#allocation6 + $0x770] sm:$0xff]
    %v1874 = vld [vmem:[#allocation6 + $0x778] sm:$0xff]
    %v1875 = vld [vmem:[#allocation6 + $0x780] sm:$0xff]
    %v1876 = vld [vmem:[#allocation6 + $0x788] sm:$0xff]
    %v1877 = vld [vmem:[#allocation6 + $0x790] sm:$0xff]
    %v1878 = vld [vmem:[#allocation6 + $0x798] sm:$0xff]
    %v1879 = vld [vmem:[#allocation6 + $0x7a0] sm:$0xff]
    %v1880 = vld [vmem:[#allocation6 + $0x7a8] sm:$0xff]
    %v1881 = vld [vmem:[#allocation6 + $0x7b0] sm:$0xff]
    %v1882 = vld [vmem:[#allocation6 + $0x7b8] sm:$0xff]
    %v1883 = vld [vmem:[#allocation6 + $0x7c0] sm:$0xff]
    %v1884 = vld [vmem:[#allocation6 + $0x7c8] sm:$0xff]
    %v1885 = vld [vmem:[#allocation6 + $0x7d0] sm:$0xff]
    %v1886 = vld [vmem:[#allocation6 + $0x7d8] sm:$0xff]
    %v1887 = vld [vmem:[#allocation6 + $0x7e0] sm:$0xff]
    %v1888 = vld [vmem:[#allocation6 + $0x7e8] sm:$0xff]
    %v1889 = vld [vmem:[#allocation6 + $0x7f0] sm:$0xff]
    %v1890 = vld [vmem:[#allocation6 + $0x7f8] sm:$0xff]
    %v1891 = vld [vmem:[#allocation6 + $0x800] sm:$0xff]
    %v1892 = vld [vmem:[#allocation6 + $0x808] sm:$0xff]
    %v1893 = vld [vmem:[#allocation6 + $0x810] sm:$0xff]
    %v1894 = vld [vmem:[#allocation6 + $0x818] sm:$0xff]
    %v1895 = vld [vmem:[#allocation6 + $0x820] sm:$0xff]
    %v1896 = vld [vmem:[#allocation6 + $0x828] sm:$0xff]
    %v1897 = vld [vmem:[#allocation6 + $0x830] sm:$0xff]
    %v1898 = vld [vmem:[#allocation6 + $0x838] sm:$0xff]
    %v1899 = vld [vmem:[#allocation6 + $0x840] sm:$0xff]
    %v1900 = vld [vmem:[#allocation6 + $0x848] sm:$0xff]
    %v1901 = vld [vmem:[#allocation6 + $0x850] sm:$0xff]
    %v1902 = vld [vmem:[#allocation6 + $0x858] sm:$0xff]
    %v1903 = vld [vmem:[#allocation6 + $0x860] sm:$0xff]
    %v1904 = vld [vmem:[#allocation6 + $0x868] sm:$0xff]
    %v1905 = vld [vmem:[#allocation6 + $0x870] sm:$0xff]
    %v1906 = vld [vmem:[#allocation6 + $0x878] sm:$0xff]
    %v1907 = vld [vmem:[#allocation6 + $0x880] sm:$0xff]
    %v1908 = vld [vmem:[#allocation6 + $0x888] sm:$0xff]
    %v1909 = vld [vmem:[#allocation6 + $0x890] sm:$0xff]
    %v1910 = vld [vmem:[#allocation6 + $0x898] sm:$0xff]
    %v1911 = vld [vmem:[#allocation6 + $0x8a0] sm:$0xff]
    %v1912 = vld [vmem:[#allocation6 + $0x8a8] sm:$0xff]
    %v1913 = vld [vmem:[#allocation6 + $0x8b0] sm:$0xff]
    %v1914 = vld [vmem:[#allocation6 + $0x8b8] sm:$0xff]
    %v1915 = vld [vmem:[#allocation6 + $0x8c0] sm:$0xff]
    %v1916 = vld [vmem:[#allocation6 + $0x8c8] sm:$0xff]
    %v1917 = vld [vmem:[#allocation6 + $0x8d0] sm:$0xff]
    %v1918 = vld [vmem:[#allocation6 + $0x8d8] sm:$0xff]
    %v1919 = vld [vmem:[#allocation6 + $0x8e0] sm:$0xff]
    %v1920 = vld [vmem:[#allocation6 + $0x8e8] sm:$0xff]
    %v1921 = vld [vmem:[#allocation6 + $0x8f0] sm:$0xff]
    %v1922 = vld [vmem:[#allocation6 + $0x8f8] sm:$0xff]
    %v1923 = vld [vmem:[#allocation6 + $0x900] sm:$0xff]
    %v1924 = vld [vmem:[#allocation6 + $0x908] sm:$0xff]
    %v1925 = vld [vmem:[#allocation6 + $0x910] sm:$0xff]
    %v1926 = vld [vmem:[#allocation6 + $0x918] sm:$0xff]
    %v1927 = vld [vmem:[#allocation6 + $0x920] sm:$0xff]
    %v1928 = vld [vmem:[#allocation6 + $0x928] sm:$0xff]
    %v1929 = vld [vmem:[#allocation6 + $0x930] sm:$0xff]
    %v1930 = vld [vmem:[#allocation6 + $0x938] sm:$0xff]
    %v1931 = vld [vmem:[#allocation6 + $0x940] sm:$0xff]
    %v1932 = vld [vmem:[#allocation6 + $0x948] sm:$0xff]
    %v1933 = vld [vmem:[#allocation6 + $0x950] sm:$0xff]
    %v1934 = vld [vmem:[#allocation6 + $0x958] sm:$0xff]
    %v1935 = vld [vmem:[#allocation6 + $0x960] sm:$0xff]
    %v1936 = vld [vmem:[#allocation6 + $0x968] sm:$0xff]
    %v1937 = vld [vmem:[#allocation6 + $0x970] sm:$0xff]
    %v1938 = vld [vmem:[#allocation6 + $0x978] sm:$0xff]
    %v1939 = vld [vmem:[#allocation6 + $0x980] sm:$0xff]
    %v1940 = vld [vmem:[#allocation6 + $0x988] sm:$0xff]
    %v1941 = vld [vmem:[#allocation6 + $0x990] sm:$0xff]
    %v1942 = vld [vmem:[#allocation6 + $0x998] sm:$0xff]
    %v1943 = vld [vmem:[#allocation6 + $0x9a0] sm:$0xff]
    %v1944 = vld [vmem:[#allocation6 + $0x9a8] sm:$0xff]
    %v1945 = vld [vmem:[#allocation6 + $0x9b0] sm:$0xff]
    %v1946 = vld [vmem:[#allocation6 + $0x9b8] sm:$0xff]
    %v1947 = vld [vmem:[#allocation6 + $0x9c0] sm:$0xff]
    %v1948 = vld [vmem:[#allocation6 + $0x9c8] sm:$0xff]
    %v1949 = vld [vmem:[#allocation6 + $0x9d0] sm:$0xff]
    %v1950 = vld [vmem:[#allocation6 + $0x9d8] sm:$0xff]
    %v1951 = vld [vmem:[#allocation6 + $0x9e0] sm:$0xff]
    %v1952 = vld [vmem:[#allocation6 + $0x9e8] sm:$0xff]
    %v1953 = vld [vmem:[#allocation6 + $0x9f0] sm:$0xff]
    %v1954 = vld [vmem:[#allocation6 + $0x9f8] sm:$0xff]
    %v1955 = vld [vmem:[#allocation6 + $0xa00] sm:$0xff]
    %v1956 = vld [vmem:[#allocation6 + $0xa08] sm:$0xff]
    %v1957 = vld [vmem:[#allocation6 + $0xa10] sm:$0xff]
    %v1958 = vld [vmem:[#allocation6 + $0xa18] sm:$0xff]
    %v1959 = vld [vmem:[#allocation6 + $0xa20] sm:$0xff]
    %v1960 = vld [vmem:[#allocation6 + $0xa28] sm:$0xff]
    %v1961 = vld [vmem:[#allocation6 + $0xa30] sm:$0xff]
    %v1962 = vld [vmem:[#allocation6 + $0xa38] sm:$0xff]
    %v1963 = vld [vmem:[#allocation6 + $0xa40] sm:$0xff]
    %v1964 = vld [vmem:[#allocation6 + $0xa48] sm:$0xff]
    %v1965 = vld [vmem:[#allocation6 + $0xa50] sm:$0xff]
    %v1966 = vld [vmem:[#allocation6 + $0xa58] sm:$0xff]
    %v1967 = vld [vmem:[#allocation6 + $0xa60] sm:$0xff]
    %v1968 = vld [vmem:[#allocation6 + $0xa68] sm:$0xff]
    %v1969 = vld [vmem:[#allocation6 + $0xa70] sm:$0xff]
    %v1970 = vld [vmem:[#allocation6 + $0xa78] sm:$0xff]
    %v1971 = vld [vmem:[#allocation6 + $0xa80] sm:$0xff]
    %v1972 = vld [vmem:[#allocation6 + $0xa88] sm:$0xff]
    %v1973 = vld [vmem:[#allocation6 + $0xa90] sm:$0xff]
    %v1974 = vld [vmem:[#allocation6 + $0xa98] sm:$0xff]
    %v1975 = vld [vmem:[#allocation6 + $0xaa0] sm:$0xff]
    %v1976 = vld [vmem:[#allocation6 + $0xaa8] sm:$0xff]
    %v1977 = vld [vmem:[#allocation6 + $0xab0] sm:$0xff]
    %v1978 = vld [vmem:[#allocation6 + $0xab8] sm:$0xff]
    %v1979 = vld [vmem:[#allocation6 + $0xac0] sm:$0xff]
    %v1980 = vld [vmem:[#allocation6 + $0xac8] sm:$0xff]
    %v1981 = vld [vmem:[#allocation6 + $0xad0] sm:$0xff]
    %v1982 = vld [vmem:[#allocation6 + $0xad8] sm:$0xff]
    %v1983 = vld [vmem:[#allocation6 + $0xae0] sm:$0xff]
    %v1984 = vld [vmem:[#allocation6 + $0xae8] sm:$0xff]
    %v1985 = vld [vmem:[#allocation6 + $0xaf0] sm:$0xff]
    %v1986 = vld [vmem:[#allocation6 + $0xaf8] sm:$0xff]
    %v1987 = vld [vmem:[#allocation6 + $0xb00] sm:$0xff]
    %v1988 = vld [vmem:[#allocation6 + $0xb08] sm:$0xff]
    %v1989 = vld [vmem:[#allocation6 + $0xb10] sm:$0xff]
    %v1990 = vld [vmem:[#allocation6 + $0xb18] sm:$0xff]
    %v1991 = vld [vmem:[#allocation6 + $0xb20] sm:$0xff]
    %v1992 = vld [vmem:[#allocation6 + $0xb28] sm:$0xff]
    %v1993 = vld [vmem:[#allocation6 + $0xb30] sm:$0xff]
    %v1994 = vld [vmem:[#allocation6 + $0xb38] sm:$0xff]
    %v1995 = vld [vmem:[#allocation6 + $0xb40] sm:$0xff]
    %v1996 = vld [vmem:[#allocation6 + $0xb48] sm:$0xff]
    %v1997 = vld [vmem:[#allocation6 + $0xb50] sm:$0xff]
    %v1998 = vld [vmem:[#allocation6 + $0xb58] sm:$0xff]
    %v1999 = vld [vmem:[#allocation6 + $0xb60] sm:$0xff]
    %v2000 = vld [vmem:[#allocation6 + $0xb68] sm:$0xff]
    %v2001 = vld [vmem:[#allocation6 + $0xb70] sm:$0xff]
    %v2002 = vld [vmem:[#allocation6 + $0xb78] sm:$0xff]
    %v2003 = vld [vmem:[#allocation6 + $0xb80] sm:$0xff]
    %v2004 = vld [vmem:[#allocation6 + $0xb88] sm:$0xff]
    %v2005 = vld [vmem:[#allocation6 + $0xb90] sm:$0xff]
    %v2006 = vld [vmem:[#allocation6 + $0xb98] sm:$0xff]
    %v2007 = vld [vmem:[#allocation6 + $0xba0] sm:$0xff]
    %v2008 = vld [vmem:[#allocation6 + $0xba8] sm:$0xff]
    %v2009 = vld [vmem:[#allocation6 + $0xbb0] sm:$0xff]
    %v2010 = vld [vmem:[#allocation6 + $0xbb8] sm:$0xff]
    %v2011 = vld [vmem:[#allocation6 + $0xbc0] sm:$0xff]
    %v2012 = vld [vmem:[#allocation6 + $0xbc8] sm:$0xff]
    %v2013 = vld [vmem:[#allocation6 + $0xbd0] sm:$0xff]
    %v2014 = vld [vmem:[#allocation6 + $0xbd8] sm:$0xff]
    %v2015 = vld [vmem:[#allocation6 + $0xbe0] sm:$0xff]
    %v2016 = vld [vmem:[#allocation6 + $0xbe8] sm:$0xff]
    %v2017 = vld [vmem:[#allocation6 + $0xbf0] sm:$0xff]
    %v2018 = vld [vmem:[#allocation6 + $0xbf8] sm:$0xff]
    %v2019 = vld [vmem:[#allocation6 + $0xc00] sm:$0xff]
    %v2020 = vld [vmem:[#allocation6 + $0xc08] sm:$0xff]
    %v2021 = vld [vmem:[#allocation6 + $0xc10] sm:$0xff]
    %v2022 = vld [vmem:[#allocation6 + $0xc18] sm:$0xff]
    %v2023 = vld [vmem:[#allocation6 + $0xc20] sm:$0xff]
    %v2024 = vld [vmem:[#allocation6 + $0xc28] sm:$0xff]
    %v2025 = vld [vmem:[#allocation6 + $0xc30] sm:$0xff]
    %v2026 = vld [vmem:[#allocation6 + $0xc38] sm:$0xff]
    %v2027 = vld [vmem:[#allocation6 + $0xc40] sm:$0xff]
    %v2028 = vld [vmem:[#allocation6 + $0xc48] sm:$0xff]
    %v2029 = vld [vmem:[#allocation6 + $0xc50] sm:$0xff]
    %v2030 = vld [vmem:[#allocation6 + $0xc58] sm:$0xff]
    %v2031 = vld [vmem:[#allocation6 + $0xc60] sm:$0xff]
    %v2032 = vld [vmem:[#allocation6 + $0xc68] sm:$0xff]
    %v2033 = vld [vmem:[#allocation6 + $0xc70] sm:$0xff]
    %v2034 = vld [vmem:[#allocation6 + $0xc78] sm:$0xff]
    %v2035 = vld [vmem:[#allocation6 + $0xc80] sm:$0xff]
    %v2036 = vld [vmem:[#allocation6 + $0xc88] sm:$0xff]
    %v2037 = vld [vmem:[#allocation6 + $0xc90] sm:$0xff]
    %v2038 = vld [vmem:[#allocation6 + $0xc98] sm:$0xff]
    %v2039 = vld [vmem:[#allocation6 + $0xca0] sm:$0xff]
    %v2040 = vld [vmem:[#allocation6 + $0xca8] sm:$0xff]
    %v2041 = vld [vmem:[#allocation6 + $0xcb0] sm:$0xff]
    %v2042 = vld [vmem:[#allocation6 + $0xcb8] sm:$0xff]
    %v2043 = vld [vmem:[#allocation6 + $0xcc0] sm:$0xff]
    %v2044 = vld [vmem:[#allocation6 + $0xcc8] sm:$0xff]
    %v2045 = vld [vmem:[#allocation6 + $0xcd0] sm:$0xff]
    %v2046 = vld [vmem:[#allocation6 + $0xcd8] sm:$0xff]
    %v2047 = vld [vmem:[#allocation6 + $0xce0] sm:$0xff]
    %v2048 = vld [vmem:[#allocation6 + $0xce8] sm:$0xff]
    %v2049 = vld [vmem:[#allocation6 + $0xcf0] sm:$0xff]
    %v2050 = vld [vmem:[#allocation6 + $0xcf8] sm:$0xff]
    %v2051 = vld [vmem:[#allocation6 + $0xd00] sm:$0xff]
    %v2052 = vld [vmem:[#allocation6 + $0xd08] sm:$0xff]
    %v2053 = vld [vmem:[#allocation6 + $0xd10] sm:$0xff]
    %v2054 = vld [vmem:[#allocation6 + $0xd18] sm:$0xff]
    %v2055 = vld [vmem:[#allocation6 + $0xd20] sm:$0xff]
    %v2056 = vld [vmem:[#allocation6 + $0xd28] sm:$0xff]
    %v2057 = vld [vmem:[#allocation6 + $0xd30] sm:$0xff]
    %v2058 = vld [vmem:[#allocation6 + $0xd38] sm:$0xff]
    %v2059 = vld [vmem:[#allocation6 + $0xd40] sm:$0xff]
    %v2060 = vld [vmem:[#allocation6 + $0xd48] sm:$0xff]
    %v2061 = vld [vmem:[#allocation6 + $0xd50] sm:$0xff]
    %v2062 = vld [vmem:[#allocation6 + $0xd58] sm:$0xff]
    %v2063 = vld [vmem:[#allocation6 + $0xd60] sm:$0xff]
    %v2064 = vld [vmem:[#allocation6 + $0xd68] sm:$0xff]
    %v2065 = vld [vmem:[#allocation6 + $0xd70] sm:$0xff]
    %v2066 = vld [vmem:[#allocation6 + $0xd78] sm:$0xff]
    %v2067 = vld [vmem:[#allocation6 + $0xd80] sm:$0xff]
    %v2068 = vld [vmem:[#allocation6 + $0xd88] sm:$0xff]
    %v2069 = vld [vmem:[#allocation6 + $0xd90] sm:$0xff]
    %v2070 = vld [vmem:[#allocation6 + $0xd98] sm:$0xff]
    %v2071 = vld [vmem:[#allocation6 + $0xda0] sm:$0xff]
    %v2072 = vld [vmem:[#allocation6 + $0xda8] sm:$0xff]
    %v2073 = vld [vmem:[#allocation6 + $0xdb0] sm:$0xff]
    %v2074 = vld [vmem:[#allocation6 + $0xdb8] sm:$0xff]
    %v2075 = vld [vmem:[#allocation6 + $0xdc0] sm:$0xff]
    %v2076 = vld [vmem:[#allocation6 + $0xdc8] sm:$0xff]
    %v2077 = vld [vmem:[#allocation6 + $0xdd0] sm:$0xff]
    %v2078 = vld [vmem:[#allocation6 + $0xdd8] sm:$0xff]
    %v2079 = vld [vmem:[#allocation6 + $0xde0] sm:$0xff]
    %v2080 = vld [vmem:[#allocation6 + $0xde8] sm:$0xff]
    %v2081 = vld [vmem:[#allocation6 + $0xdf0] sm:$0xff]
    %v2082 = vld [vmem:[#allocation6 + $0xdf8] sm:$0xff]
    %v2083 = vld [vmem:[#allocation6 + $0xe00] sm:$0xff]
    %v2084 = vld [vmem:[#allocation6 + $0xe08] sm:$0xff]
    %v2085 = vld [vmem:[#allocation6 + $0xe10] sm:$0xff]
    %v2086 = vld [vmem:[#allocation6 + $0xe18] sm:$0xff]
    %v2087 = vld [vmem:[#allocation6 + $0xe20] sm:$0xff]
    %v2088 = vld [vmem:[#allocation6 + $0xe28] sm:$0xff]
    %v2089 = vld [vmem:[#allocation6 + $0xe30] sm:$0xff]
    %v2090 = vld [vmem:[#allocation6 + $0xe38] sm:$0xff]
    %v2091 = vld [vmem:[#allocation6 + $0xe40] sm:$0xff]
    %v2092 = vld [vmem:[#allocation6 + $0xe48] sm:$0xff]
    %v2093 = vld [vmem:[#allocation6 + $0xe50] sm:$0xff]
    %v2094 = vld [vmem:[#allocation6 + $0xe58] sm:$0xff]
    %v2095 = vld [vmem:[#allocation6 + $0xe60] sm:$0xff]
    %v2096 = vld [vmem:[#allocation6 + $0xe68] sm:$0xff]
    %v2097 = vld [vmem:[#allocation6 + $0xe70] sm:$0xff]
    %v2098 = vld [vmem:[#allocation6 + $0xe78] sm:$0xff]
    %v2099 = vld [vmem:[#allocation6 + $0xe80] sm:$0xff]
    %v2100 = vld [vmem:[#allocation6 + $0xe88] sm:$0xff]
    %v2101 = vld [vmem:[#allocation6 + $0xe90] sm:$0xff]
    %v2102 = vld [vmem:[#allocation6 + $0xe98] sm:$0xff]
    %v2103 = vld [vmem:[#allocation6 + $0xea0] sm:$0xff]
    %v2104 = vld [vmem:[#allocation6 + $0xea8] sm:$0xff]
    %v2105 = vld [vmem:[#allocation6 + $0xeb0] sm:$0xff]
    %v2106 = vld [vmem:[#allocation6 + $0xeb8] sm:$0xff]
    %v2107 = vld [vmem:[#allocation6 + $0xec0] sm:$0xff]
    %v2108 = vld [vmem:[#allocation6 + $0xec8] sm:$0xff]
    %v2109 = vld [vmem:[#allocation6 + $0xed0] sm:$0xff]
    %v2110 = vld [vmem:[#allocation6 + $0xed8] sm:$0xff]
    %v2111 = vld [vmem:[#allocation6 + $0xee0] sm:$0xff]
    %v2112 = vld [vmem:[#allocation6 + $0xee8] sm:$0xff]
    %v2113 = vld [vmem:[#allocation6 + $0xef0] sm:$0xff]
    %v2114 = vld [vmem:[#allocation6 + $0xef8] sm:$0xff]
    %v2115 = vld [vmem:[#allocation6 + $0xf00] sm:$0xff]
    %v2116 = vld [vmem:[#allocation6 + $0xf08] sm:$0xff]
    %v2117 = vld [vmem:[#allocation6 + $0xf10] sm:$0xff]
    %v2118 = vld [vmem:[#allocation6 + $0xf18] sm:$0xff]
    %v2119 = vld [vmem:[#allocation6 + $0xf20] sm:$0xff]
    %v2120 = vld [vmem:[#allocation6 + $0xf28] sm:$0xff]
    %v2121 = vld [vmem:[#allocation6 + $0xf30] sm:$0xff]
    %v2122 = vld [vmem:[#allocation6 + $0xf38] sm:$0xff]
    %v2123 = vld [vmem:[#allocation6 + $0xf40] sm:$0xff]
    %v2124 = vld [vmem:[#allocation6 + $0xf48] sm:$0xff]
    %v2125 = vld [vmem:[#allocation6 + $0xf50] sm:$0xff]
    %v2126 = vld [vmem:[#allocation6 + $0xf58] sm:$0xff]
    %v2127 = vld [vmem:[#allocation6 + $0xf60] sm:$0xff]
    %v2128 = vld [vmem:[#allocation6 + $0xf68] sm:$0xff]
    %v2129 = vld [vmem:[#allocation6 + $0xf70] sm:$0xff]
    %v2130 = vld [vmem:[#allocation6 + $0xf78] sm:$0xff]
    %v2131 = vld [vmem:[#allocation6 + $0xf80] sm:$0xff]
    %v2132 = vld [vmem:[#allocation6 + $0xf88] sm:$0xff]
    %v2133 = vld [vmem:[#allocation6 + $0xf90] sm:$0xff]
    %v2134 = vld [vmem:[#allocation6 + $0xf98] sm:$0xff]
    %v2135 = vld [vmem:[#allocation6 + $0xfa0] sm:$0xff]
    %v2136 = vld [vmem:[#allocation6 + $0xfa8] sm:$0xff]
    %v2137 = vld [vmem:[#allocation6 + $0xfb0] sm:$0xff]
    %v2138 = vld [vmem:[#allocation6 + $0xfb8] sm:$0xff]
    %v2139 = vld [vmem:[#allocation6 + $0xfc0] sm:$0xff]
    %v2140 = vld [vmem:[#allocation6 + $0xfc8] sm:$0xff]
    %v2141 = vld [vmem:[#allocation6 + $0xfd0] sm:$0xff]
    %v2142 = vld [vmem:[#allocation6 + $0xfd8] sm:$0xff]
    %v2143 = vld [vmem:[#allocation6 + $0xfe0] sm:$0xff]
    %v2144 = vld [vmem:[#allocation6 + $0xfe8] sm:$0xff]
    %v2145 = vld [vmem:[#allocation6 + $0xff0] sm:$0xff]
    %v2146 = vld [vmem:[#allocation6 + $0xff8] sm:$0xff]
    %v2147 = vld [vmem:[#allocation7] sm:$0xff]
    %v2148 = vld [vmem:[#allocation7 + $0x8] sm:$0xff]
    %v2151 = vlaneseq
    %v2152 = vshrl.u32 %v2151, 7
    %v2153 = vsub.s32 0, %v2152
    %v2154 = vrot.slane %v2147, %v2153
    %v2155 = vlaneseq
    %v2156 = vshrl.u32 %v2155, 7
    %v2157 = vsub.s32 1, %v2156
    %v2158 = vrot.slane %v2147, %v2157
    %v2159 = vlaneseq
    %v2160 = vshrl.u32 %v2159, 7
    %v2161 = vsub.s32 2, %v2160
    %v2162 = vrot.slane %v2147, %v2161
    %v2163 = vlaneseq
    %v2164 = vshrl.u32 %v2163, 7
    %v2165 = vsub.s32 3, %v2164
    %v2166 = vrot.slane %v2147, %v2165
    %v2167 = vlaneseq
    %v2168 = vshrl.u32 %v2167, 7
    %v2169 = vsub.s32 4, %v2168
    %v2170 = vrot.slane %v2147, %v2169
    %v2171 = vlaneseq
    %v2172 = vshrl.u32 %v2171, 7
    %v2173 = vsub.s32 5, %v2172
    %v2174 = vrot.slane %v2147, %v2173
    %v2175 = vlaneseq
    %v2176 = vshrl.u32 %v2175, 7
    %v2177 = vsub.s32 6, %v2176
    %v2178 = vrot.slane %v2147, %v2177
    %v2179 = vlaneseq
    %v2180 = vshrl.u32 %v2179, 7
    %v2181 = vsub.s32 7, %v2180
    %v2182 = vrot.slane %v2147, %v2181
    %v2183 = vlaneseq
    %v2184 = vshrl.u32 %v2183, 7
    %v2185 = vsub.s32 0, %v2184
    %v2186 = vrot.slane %v2148, %v2185
    %v2187 = vlaneseq
    %v2188 = vshrl.u32 %v2187, 7
    %v2189 = vsub.s32 1, %v2188
    %v2190 = vrot.slane %v2148, %v2189
    %v2191 = vlaneseq
    %v2192 = vshrl.u32 %v2191, 7
    %v2193 = vsub.s32 2, %v2192
    %v2194 = vrot.slane %v2148, %v2193
    %v2195 = vlaneseq
    %v2196 = vshrl.u32 %v2195, 7
    %v2197 = vsub.s32 3, %v2196
    %v2198 = vrot.slane %v2148, %v2197
    %v2199 = vlaneseq
    %v2200 = vshrl.u32 %v2199, 7
    %v2201 = vsub.s32 4, %v2200
    %v2202 = vrot.slane %v2148, %v2201
    %v2203 = vlaneseq
    %v2204 = vshrl.u32 %v2203, 7
    %v2205 = vsub.s32 5, %v2204
    %v2206 = vrot.slane %v2148, %v2205
    %v2207 = vlaneseq
    %v2208 = vshrl.u32 %v2207, 7
    %v2209 = vsub.s32 6, %v2208
    %v2210 = vrot.slane %v2148, %v2209
    %v2211 = vlaneseq
    %v2212 = vshrl.u32 %v2211, 7
    %v2213 = vsub.s32 7, %v2212
    %v2214 = vrot.slane %v2148, %v2213
    %v2743 = vunpack.c.l.b16 %v1635
    %v2744 = vunpack.c.h.b16 %v1635
    %v2745 = vunpack.c.l.b16 %v1636
    %v2746 = vunpack.c.h.b16 %v1636
    %v2747 = vunpack.c.l.b16 %v1637
    %v2748 = vunpack.c.h.b16 %v1637
    %v2749 = vunpack.c.l.b16 %v1638
    %v2750 = vunpack.c.h.b16 %v1638
    %v2751 = vunpack.c.l.b16 %v1639
    %v2752 = vunpack.c.h.b16 %v1639
    %v2753 = vunpack.c.l.b16 %v1640
    %v2754 = vunpack.c.h.b16 %v1640
    %v2755 = vunpack.c.l.b16 %v1641
    %v2756 = vunpack.c.h.b16 %v1641
    %v2757 = vunpack.c.l.b16 %v1642
    %v2758 = vunpack.c.h.b16 %v1642
    %v2759 = vunpack.c.l.b16 %v1643
    %v2760 = vunpack.c.h.b16 %v1643
    %v2761 = vunpack.c.l.b16 %v1644
    %v2762 = vunpack.c.h.b16 %v1644
    %v2763 = vunpack.c.l.b16 %v1645
    %v2764 = vunpack.c.h.b16 %v1645
    %v2765 = vunpack.c.l.b16 %v1646
    %v2766 = vunpack.c.h.b16 %v1646
    %v2767 = vunpack.c.l.b16 %v1647
    %v2768 = vunpack.c.h.b16 %v1647
    %v2769 = vunpack.c.l.b16 %v1648
    %v2770 = vunpack.c.h.b16 %v1648
    %v2771 = vunpack.c.l.b16 %v1649
    %v2772 = vunpack.c.h.b16 %v1649
    %v2773 = vunpack.c.l.b16 %v1650
    %v2774 = vunpack.c.h.b16 %v1650
    %v2775 = vunpack.c.l.b16 %v1651
    %v2776 = vunpack.c.h.b16 %v1651
    %v2777 = vunpack.c.l.b16 %v1652
    %v2778 = vunpack.c.h.b16 %v1652
    %v2779 = vunpack.c.l.b16 %v1653
    %v2780 = vunpack.c.h.b16 %v1653
    %v2781 = vunpack.c.l.b16 %v1654
    %v2782 = vunpack.c.h.b16 %v1654
    %v2783 = vunpack.c.l.b16 %v1655
    %v2784 = vunpack.c.h.b16 %v1655
    %v2785 = vunpack.c.l.b16 %v1656
    %v2786 = vunpack.c.h.b16 %v1656
    %v2787 = vunpack.c.l.b16 %v1657
    %v2788 = vunpack.c.h.b16 %v1657
    %v2789 = vunpack.c.l.b16 %v1658
    %v2790 = vunpack.c.h.b16 %v1658
    %v2791 = vunpack.c.l.b16 %v1659
    %v2792 = vunpack.c.h.b16 %v1659
    %v2793 = vunpack.c.l.b16 %v1660
    %v2794 = vunpack.c.h.b16 %v1660
    %v2795 = vunpack.c.l.b16 %v1661
    %v2796 = vunpack.c.h.b16 %v1661
    %v2797 = vunpack.c.l.b16 %v1662
    %v2798 = vunpack.c.h.b16 %v1662
    %v2799 = vunpack.c.l.b16 %v1663
    %v2800 = vunpack.c.h.b16 %v1663
    %v2801 = vunpack.c.l.b16 %v1664
    %v2802 = vunpack.c.h.b16 %v1664
    %v2803 = vunpack.c.l.b16 %v1665
    %v2804 = vunpack.c.h.b16 %v1665
    %v2805 = vunpack.c.l.b16 %v1666
    %v2806 = vunpack.c.h.b16 %v1666
    %v2807 = vunpack.c.l.b16 %v1667
    %v2808 = vunpack.c.h.b16 %v1667
    %v2809 = vunpack.c.l.b16 %v1668
    %v2810 = vunpack.c.h.b16 %v1668
    %v2811 = vunpack.c.l.b16 %v1669
    %v2812 = vunpack.c.h.b16 %v1669
    %v2813 = vunpack.c.l.b16 %v1670
    %v2814 = vunpack.c.h.b16 %v1670
    %v2815 = vunpack.c.l.b16 %v1671
    %v2816 = vunpack.c.h.b16 %v1671
    %v2817 = vunpack.c.l.b16 %v1672
    %v2818 = vunpack.c.h.b16 %v1672
    %v2819 = vunpack.c.l.b16 %v1673
    %v2820 = vunpack.c.h.b16 %v1673
    %v2821 = vunpack.c.l.b16 %v1674
    %v2822 = vunpack.c.h.b16 %v1674
    %v2823 = vunpack.c.l.b16 %v1675
    %v2824 = vunpack.c.h.b16 %v1675
    %v2825 = vunpack.c.l.b16 %v1676
    %v2826 = vunpack.c.h.b16 %v1676
    %v2827 = vunpack.c.l.b16 %v1677
    %v2828 = vunpack.c.h.b16 %v1677
    %v2829 = vunpack.c.l.b16 %v1678
    %v2830 = vunpack.c.h.b16 %v1678
    %v2831 = vunpack.c.l.b16 %v1679
    %v2832 = vunpack.c.h.b16 %v1679
    %v2833 = vunpack.c.l.b16 %v1680
    %v2834 = vunpack.c.h.b16 %v1680
    %v2835 = vunpack.c.l.b16 %v1681
    %v2836 = vunpack.c.h.b16 %v1681
    %v2837 = vunpack.c.l.b16 %v1682
    %v2838 = vunpack.c.h.b16 %v1682
    %v2839 = vunpack.c.l.b16 %v1683
    %v2840 = vunpack.c.h.b16 %v1683
    %v2841 = vunpack.c.l.b16 %v1684
    %v2842 = vunpack.c.h.b16 %v1684
    %v2843 = vunpack.c.l.b16 %v1685
    %v2844 = vunpack.c.h.b16 %v1685
    %v2845 = vunpack.c.l.b16 %v1686
    %v2846 = vunpack.c.h.b16 %v1686
    %v2847 = vunpack.c.l.b16 %v1687
    %v2848 = vunpack.c.h.b16 %v1687
    %v2849 = vunpack.c.l.b16 %v1688
    %v2850 = vunpack.c.h.b16 %v1688
    %v2851 = vunpack.c.l.b16 %v1689
    %v2852 = vunpack.c.h.b16 %v1689
    %v2853 = vunpack.c.l.b16 %v1690
    %v2854 = vunpack.c.h.b16 %v1690
    %v2855 = vunpack.c.l.b16 %v1691
    %v2856 = vunpack.c.h.b16 %v1691
    %v2857 = vunpack.c.l.b16 %v1692
    %v2858 = vunpack.c.h.b16 %v1692
    %v2859 = vunpack.c.l.b16 %v1693
    %v2860 = vunpack.c.h.b16 %v1693
    %v2861 = vunpack.c.l.b16 %v1694
    %v2862 = vunpack.c.h.b16 %v1694
    %v2863 = vunpack.c.l.b16 %v1695
    %v2864 = vunpack.c.h.b16 %v1695
    %v2865 = vunpack.c.l.b16 %v1696
    %v2866 = vunpack.c.h.b16 %v1696
    %v2867 = vunpack.c.l.b16 %v1697
    %v2868 = vunpack.c.h.b16 %v1697
    %v2869 = vunpack.c.l.b16 %v1698
    %v2870 = vunpack.c.h.b16 %v1698
    %v2871 = vunpack.c.l.b16 %v1699
    %v2872 = vunpack.c.h.b16 %v1699
    %v2873 = vunpack.c.l.b16 %v1700
    %v2874 = vunpack.c.h.b16 %v1700
    %v2875 = vunpack.c.l.b16 %v1701
    %v2876 = vunpack.c.h.b16 %v1701
    %v2877 = vunpack.c.l.b16 %v1702
    %v2878 = vunpack.c.h.b16 %v1702
    %v2879 = vunpack.c.l.b16 %v1703
    %v2880 = vunpack.c.h.b16 %v1703
    %v2881 = vunpack.c.l.b16 %v1704
    %v2882 = vunpack.c.h.b16 %v1704
    %v2883 = vunpack.c.l.b16 %v1705
    %v2884 = vunpack.c.h.b16 %v1705
    %v2885 = vunpack.c.l.b16 %v1706
    %v2886 = vunpack.c.h.b16 %v1706
    %v2887 = vunpack.c.l.b16 %v1707
    %v2888 = vunpack.c.h.b16 %v1707
    %v2889 = vunpack.c.l.b16 %v1708
    %v2890 = vunpack.c.h.b16 %v1708
    %v2891 = vunpack.c.l.b16 %v1709
    %v2892 = vunpack.c.h.b16 %v1709
    %v2893 = vunpack.c.l.b16 %v1710
    %v2894 = vunpack.c.h.b16 %v1710
    %v2895 = vunpack.c.l.b16 %v1711
    %v2896 = vunpack.c.h.b16 %v1711
    %v2897 = vunpack.c.l.b16 %v1712
    %v2898 = vunpack.c.h.b16 %v1712
    %v2899 = vunpack.c.l.b16 %v1713
    %v2900 = vunpack.c.h.b16 %v1713
    %v2901 = vunpack.c.l.b16 %v1714
    %v2902 = vunpack.c.h.b16 %v1714
    %v2903 = vunpack.c.l.b16 %v1715
    %v2904 = vunpack.c.h.b16 %v1715
    %v2905 = vunpack.c.l.b16 %v1716
    %v2906 = vunpack.c.h.b16 %v1716
    %v2907 = vunpack.c.l.b16 %v1717
    %v2908 = vunpack.c.h.b16 %v1717
    %v2909 = vunpack.c.l.b16 %v1718
    %v2910 = vunpack.c.h.b16 %v1718
    %v2911 = vunpack.c.l.b16 %v1719
    %v2912 = vunpack.c.h.b16 %v1719
    %v2913 = vunpack.c.l.b16 %v1720
    %v2914 = vunpack.c.h.b16 %v1720
    %v2915 = vunpack.c.l.b16 %v1721
    %v2916 = vunpack.c.h.b16 %v1721
    %v2917 = vunpack.c.l.b16 %v1722
    %v2918 = vunpack.c.h.b16 %v1722
    %v2919 = vunpack.c.l.b16 %v1723
    %v2920 = vunpack.c.h.b16 %v1723
    %v2921 = vunpack.c.l.b16 %v1724
    %v2922 = vunpack.c.h.b16 %v1724
    %v2923 = vunpack.c.l.b16 %v1725
    %v2924 = vunpack.c.h.b16 %v1725
    %v2925 = vunpack.c.l.b16 %v1726
    %v2926 = vunpack.c.h.b16 %v1726
    %v2927 = vunpack.c.l.b16 %v1727
    %v2928 = vunpack.c.h.b16 %v1727
    %v2929 = vunpack.c.l.b16 %v1728
    %v2930 = vunpack.c.h.b16 %v1728
    %v2931 = vunpack.c.l.b16 %v1729
    %v2932 = vunpack.c.h.b16 %v1729
    %v2933 = vunpack.c.l.b16 %v1730
    %v2934 = vunpack.c.h.b16 %v1730
    %v2935 = vunpack.c.l.b16 %v1731
    %v2936 = vunpack.c.h.b16 %v1731
    %v2937 = vunpack.c.l.b16 %v1732
    %v2938 = vunpack.c.h.b16 %v1732
    %v2939 = vunpack.c.l.b16 %v1733
    %v2940 = vunpack.c.h.b16 %v1733
    %v2941 = vunpack.c.l.b16 %v1734
    %v2942 = vunpack.c.h.b16 %v1734
    %v2943 = vunpack.c.l.b16 %v1735
    %v2944 = vunpack.c.h.b16 %v1735
    %v2945 = vunpack.c.l.b16 %v1736
    %v2946 = vunpack.c.h.b16 %v1736
    %v2947 = vunpack.c.l.b16 %v1737
    %v2948 = vunpack.c.h.b16 %v1737
    %v2949 = vunpack.c.l.b16 %v1738
    %v2950 = vunpack.c.h.b16 %v1738
    %v2951 = vunpack.c.l.b16 %v1739
    %v2952 = vunpack.c.h.b16 %v1739
    %v2953 = vunpack.c.l.b16 %v1740
    %v2954 = vunpack.c.h.b16 %v1740
    %v2955 = vunpack.c.l.b16 %v1741
    %v2956 = vunpack.c.h.b16 %v1741
    %v2957 = vunpack.c.l.b16 %v1742
    %v2958 = vunpack.c.h.b16 %v1742
    %v2959 = vunpack.c.l.b16 %v1743
    %v2960 = vunpack.c.h.b16 %v1743
    %v2961 = vunpack.c.l.b16 %v1744
    %v2962 = vunpack.c.h.b16 %v1744
    %v2963 = vunpack.c.l.b16 %v1745
    %v2964 = vunpack.c.h.b16 %v1745
    %v2965 = vunpack.c.l.b16 %v1746
    %v2966 = vunpack.c.h.b16 %v1746
    %v2967 = vunpack.c.l.b16 %v1747
    %v2968 = vunpack.c.h.b16 %v1747
    %v2969 = vunpack.c.l.b16 %v1748
    %v2970 = vunpack.c.h.b16 %v1748
    %v2971 = vunpack.c.l.b16 %v1749
    %v2972 = vunpack.c.h.b16 %v1749
    %v2973 = vunpack.c.l.b16 %v1750
    %v2974 = vunpack.c.h.b16 %v1750
    %v2975 = vunpack.c.l.b16 %v1751
    %v2976 = vunpack.c.h.b16 %v1751
    %v2977 = vunpack.c.l.b16 %v1752
    %v2978 = vunpack.c.h.b16 %v1752
    %v2979 = vunpack.c.l.b16 %v1753
    %v2980 = vunpack.c.h.b16 %v1753
    %v2981 = vunpack.c.l.b16 %v1754
    %v2982 = vunpack.c.h.b16 %v1754
    %v2983 = vunpack.c.l.b16 %v1755
    %v2984 = vunpack.c.h.b16 %v1755
    %v2985 = vunpack.c.l.b16 %v1756
    %v2986 = vunpack.c.h.b16 %v1756
    %v2987 = vunpack.c.l.b16 %v1757
    %v2988 = vunpack.c.h.b16 %v1757
    %v2989 = vunpack.c.l.b16 %v1758
    %v2990 = vunpack.c.h.b16 %v1758
    %v2991 = vunpack.c.l.b16 %v1759
    %v2992 = vunpack.c.h.b16 %v1759
    %v2993 = vunpack.c.l.b16 %v1760
    %v2994 = vunpack.c.h.b16 %v1760
    %v2995 = vunpack.c.l.b16 %v1761
    %v2996 = vunpack.c.h.b16 %v1761
    %v2997 = vunpack.c.l.b16 %v1762
    %v2998 = vunpack.c.h.b16 %v1762
    %v2999 = vunpack.c.l.b16 %v1763
    %v3000 = vunpack.c.h.b16 %v1763
    %v3001 = vunpack.c.l.b16 %v1764
    %v3002 = vunpack.c.h.b16 %v1764
    %v3003 = vunpack.c.l.b16 %v1765
    %v3004 = vunpack.c.h.b16 %v1765
    %v3005 = vunpack.c.l.b16 %v1766
    %v3006 = vunpack.c.h.b16 %v1766
    %v3007 = vunpack.c.l.b16 %v1767
    %v3008 = vunpack.c.h.b16 %v1767
    %v3009 = vunpack.c.l.b16 %v1768
    %v3010 = vunpack.c.h.b16 %v1768
    %v3011 = vunpack.c.l.b16 %v1769
    %v3012 = vunpack.c.h.b16 %v1769
    %v3013 = vunpack.c.l.b16 %v1770
    %v3014 = vunpack.c.h.b16 %v1770
    %v3015 = vunpack.c.l.b16 %v1771
    %v3016 = vunpack.c.h.b16 %v1771
    %v3017 = vunpack.c.l.b16 %v1772
    %v3018 = vunpack.c.h.b16 %v1772
    %v3019 = vunpack.c.l.b16 %v1773
    %v3020 = vunpack.c.h.b16 %v1773
    %v3021 = vunpack.c.l.b16 %v1774
    %v3022 = vunpack.c.h.b16 %v1774
    %v3023 = vunpack.c.l.b16 %v1775
    %v3024 = vunpack.c.h.b16 %v1775
    %v3025 = vunpack.c.l.b16 %v1776
    %v3026 = vunpack.c.h.b16 %v1776
    %v3027 = vunpack.c.l.b16 %v1777
    %v3028 = vunpack.c.h.b16 %v1777
    %v3029 = vunpack.c.l.b16 %v1778
    %v3030 = vunpack.c.h.b16 %v1778
    %v3031 = vunpack.c.l.b16 %v1779
    %v3032 = vunpack.c.h.b16 %v1779
    %v3033 = vunpack.c.l.b16 %v1780
    %v3034 = vunpack.c.h.b16 %v1780
    %v3035 = vunpack.c.l.b16 %v1781
    %v3036 = vunpack.c.h.b16 %v1781
    %v3037 = vunpack.c.l.b16 %v1782
    %v3038 = vunpack.c.h.b16 %v1782
    %v3039 = vunpack.c.l.b16 %v1783
    %v3040 = vunpack.c.h.b16 %v1783
    %v3041 = vunpack.c.l.b16 %v1784
    %v3042 = vunpack.c.h.b16 %v1784
    %v3043 = vunpack.c.l.b16 %v1785
    %v3044 = vunpack.c.h.b16 %v1785
    %v3045 = vunpack.c.l.b16 %v1786
    %v3046 = vunpack.c.h.b16 %v1786
    %v3047 = vunpack.c.l.b16 %v1787
    %v3048 = vunpack.c.h.b16 %v1787
    %v3049 = vunpack.c.l.b16 %v1788
    %v3050 = vunpack.c.h.b16 %v1788
    %v3051 = vunpack.c.l.b16 %v1789
    %v3052 = vunpack.c.h.b16 %v1789
    %v3053 = vunpack.c.l.b16 %v1790
    %v3054 = vunpack.c.h.b16 %v1790
    %v3055 = vunpack.c.l.b16 %v1791
    %v3056 = vunpack.c.h.b16 %v1791
    %v3057 = vunpack.c.l.b16 %v1792
    %v3058 = vunpack.c.h.b16 %v1792
    %v3059 = vunpack.c.l.b16 %v1793
    %v3060 = vunpack.c.h.b16 %v1793
    %v3061 = vunpack.c.l.b16 %v1794
    %v3062 = vunpack.c.h.b16 %v1794
    %v3063 = vunpack.c.l.b16 %v1795
    %v3064 = vunpack.c.h.b16 %v1795
    %v3065 = vunpack.c.l.b16 %v1796
    %v3066 = vunpack.c.h.b16 %v1796
    %v3067 = vunpack.c.l.b16 %v1797
    %v3068 = vunpack.c.h.b16 %v1797
    %v3069 = vunpack.c.l.b16 %v1798
    %v3070 = vunpack.c.h.b16 %v1798
    %v3071 = vunpack.c.l.b16 %v1799
    %v3072 = vunpack.c.h.b16 %v1799
    %v3073 = vunpack.c.l.b16 %v1800
    %v3074 = vunpack.c.h.b16 %v1800
    %v3075 = vunpack.c.l.b16 %v1801
    %v3076 = vunpack.c.h.b16 %v1801
    %v3077 = vunpack.c.l.b16 %v1802
    %v3078 = vunpack.c.h.b16 %v1802
    %v3079 = vunpack.c.l.b16 %v1803
    %v3080 = vunpack.c.h.b16 %v1803
    %v3081 = vunpack.c.l.b16 %v1804
    %v3082 = vunpack.c.h.b16 %v1804
    %v3083 = vunpack.c.l.b16 %v1805
    %v3084 = vunpack.c.h.b16 %v1805
    %v3085 = vunpack.c.l.b16 %v1806
    %v3086 = vunpack.c.h.b16 %v1806
    %v3087 = vunpack.c.l.b16 %v1807
    %v3088 = vunpack.c.h.b16 %v1807
    %v3089 = vunpack.c.l.b16 %v1808
    %v3090 = vunpack.c.h.b16 %v1808
    %v3091 = vunpack.c.l.b16 %v1809
    %v3092 = vunpack.c.h.b16 %v1809
    %v3093 = vunpack.c.l.b16 %v1810
    %v3094 = vunpack.c.h.b16 %v1810
    %v3095 = vunpack.c.l.b16 %v1811
    %v3096 = vunpack.c.h.b16 %v1811
    %v3097 = vunpack.c.l.b16 %v1812
    %v3098 = vunpack.c.h.b16 %v1812
    %v3099 = vunpack.c.l.b16 %v1813
    %v3100 = vunpack.c.h.b16 %v1813
    %v3101 = vunpack.c.l.b16 %v1814
    %v3102 = vunpack.c.h.b16 %v1814
    %v3103 = vunpack.c.l.b16 %v1815
    %v3104 = vunpack.c.h.b16 %v1815
    %v3105 = vunpack.c.l.b16 %v1816
    %v3106 = vunpack.c.h.b16 %v1816
    %v3107 = vunpack.c.l.b16 %v1817
    %v3108 = vunpack.c.h.b16 %v1817
    %v3109 = vunpack.c.l.b16 %v1818
    %v3110 = vunpack.c.h.b16 %v1818
    %v3111 = vunpack.c.l.b16 %v1819
    %v3112 = vunpack.c.h.b16 %v1819
    %v3113 = vunpack.c.l.b16 %v1820
    %v3114 = vunpack.c.h.b16 %v1820
    %v3115 = vunpack.c.l.b16 %v1821
    %v3116 = vunpack.c.h.b16 %v1821
    %v3117 = vunpack.c.l.b16 %v1822
    %v3118 = vunpack.c.h.b16 %v1822
    %v3119 = vunpack.c.l.b16 %v1823
    %v3120 = vunpack.c.h.b16 %v1823
    %v3121 = vunpack.c.l.b16 %v1824
    %v3122 = vunpack.c.h.b16 %v1824
    %v3123 = vunpack.c.l.b16 %v1825
    %v3124 = vunpack.c.h.b16 %v1825
    %v3125 = vunpack.c.l.b16 %v1826
    %v3126 = vunpack.c.h.b16 %v1826
    %v3127 = vunpack.c.l.b16 %v1827
    %v3128 = vunpack.c.h.b16 %v1827
    %v3129 = vunpack.c.l.b16 %v1828
    %v3130 = vunpack.c.h.b16 %v1828
    %v3131 = vunpack.c.l.b16 %v1829
    %v3132 = vunpack.c.h.b16 %v1829
    %v3133 = vunpack.c.l.b16 %v1830
    %v3134 = vunpack.c.h.b16 %v1830
    %v3135 = vunpack.c.l.b16 %v1831
    %v3136 = vunpack.c.h.b16 %v1831
    %v3137 = vunpack.c.l.b16 %v1832
    %v3138 = vunpack.c.h.b16 %v1832
    %v3139 = vunpack.c.l.b16 %v1833
    %v3140 = vunpack.c.h.b16 %v1833
    %v3141 = vunpack.c.l.b16 %v1834
    %v3142 = vunpack.c.h.b16 %v1834
    %v3143 = vunpack.c.l.b16 %v1835
    %v3144 = vunpack.c.h.b16 %v1835
    %v3145 = vunpack.c.l.b16 %v1836
    %v3146 = vunpack.c.h.b16 %v1836
    %v3147 = vunpack.c.l.b16 %v1837
    %v3148 = vunpack.c.h.b16 %v1837
    %v3149 = vunpack.c.l.b16 %v1838
    %v3150 = vunpack.c.h.b16 %v1838
    %v3151 = vunpack.c.l.b16 %v1839
    %v3152 = vunpack.c.h.b16 %v1839
    %v3153 = vunpack.c.l.b16 %v1840
    %v3154 = vunpack.c.h.b16 %v1840
    %v3155 = vunpack.c.l.b16 %v1841
    %v3156 = vunpack.c.h.b16 %v1841
    %v3157 = vunpack.c.l.b16 %v1842
    %v3158 = vunpack.c.h.b16 %v1842
    %v3159 = vunpack.c.l.b16 %v1843
    %v3160 = vunpack.c.h.b16 %v1843
    %v3161 = vunpack.c.l.b16 %v1844
    %v3162 = vunpack.c.h.b16 %v1844
    %v3163 = vunpack.c.l.b16 %v1845
    %v3164 = vunpack.c.h.b16 %v1845
    %v3165 = vunpack.c.l.b16 %v1846
    %v3166 = vunpack.c.h.b16 %v1846
    %v3167 = vunpack.c.l.b16 %v1847
    %v3168 = vunpack.c.h.b16 %v1847
    %v3169 = vunpack.c.l.b16 %v1848
    %v3170 = vunpack.c.h.b16 %v1848
    %v3171 = vunpack.c.l.b16 %v1849
    %v3172 = vunpack.c.h.b16 %v1849
    %v3173 = vunpack.c.l.b16 %v1850
    %v3174 = vunpack.c.h.b16 %v1850
    %v3175 = vunpack.c.l.b16 %v1851
    %v3176 = vunpack.c.h.b16 %v1851
    %v3177 = vunpack.c.l.b16 %v1852
    %v3178 = vunpack.c.h.b16 %v1852
    %v3179 = vunpack.c.l.b16 %v1853
    %v3180 = vunpack.c.h.b16 %v1853
    %v3181 = vunpack.c.l.b16 %v1854
    %v3182 = vunpack.c.h.b16 %v1854
    %v3183 = vunpack.c.l.b16 %v1855
    %v3184 = vunpack.c.h.b16 %v1855
    %v3185 = vunpack.c.l.b16 %v1856
    %v3186 = vunpack.c.h.b16 %v1856
    %v3187 = vunpack.c.l.b16 %v1857
    %v3188 = vunpack.c.h.b16 %v1857
    %v3189 = vunpack.c.l.b16 %v1858
    %v3190 = vunpack.c.h.b16 %v1858
    %v3191 = vunpack.c.l.b16 %v1859
    %v3192 = vunpack.c.h.b16 %v1859
    %v3193 = vunpack.c.l.b16 %v1860
    %v3194 = vunpack.c.h.b16 %v1860
    %v3195 = vunpack.c.l.b16 %v1861
    %v3196 = vunpack.c.h.b16 %v1861
    %v3197 = vunpack.c.l.b16 %v1862
    %v3198 = vunpack.c.h.b16 %v1862
    %v3199 = vunpack.c.l.b16 %v1863
    %v3200 = vunpack.c.h.b16 %v1863
    %v3201 = vunpack.c.l.b16 %v1864
    %v3202 = vunpack.c.h.b16 %v1864
    %v3203 = vunpack.c.l.b16 %v1865
    %v3204 = vunpack.c.h.b16 %v1865
    %v3205 = vunpack.c.l.b16 %v1866
    %v3206 = vunpack.c.h.b16 %v1866
    %v3207 = vunpack.c.l.b16 %v1867
    %v3208 = vunpack.c.h.b16 %v1867
    %v3209 = vunpack.c.l.b16 %v1868
    %v3210 = vunpack.c.h.b16 %v1868
    %v3211 = vunpack.c.l.b16 %v1869
    %v3212 = vunpack.c.h.b16 %v1869
    %v3213 = vunpack.c.l.b16 %v1870
    %v3214 = vunpack.c.h.b16 %v1870
    %v3215 = vunpack.c.l.b16 %v1871
    %v3216 = vunpack.c.h.b16 %v1871
    %v3217 = vunpack.c.l.b16 %v1872
    %v3218 = vunpack.c.h.b16 %v1872
    %v3219 = vunpack.c.l.b16 %v1873
    %v3220 = vunpack.c.h.b16 %v1873
    %v3221 = vunpack.c.l.b16 %v1874
    %v3222 = vunpack.c.h.b16 %v1874
    %v3223 = vunpack.c.l.b16 %v1875
    %v3224 = vunpack.c.h.b16 %v1875
    %v3225 = vunpack.c.l.b16 %v1876
    %v3226 = vunpack.c.h.b16 %v1876
    %v3227 = vunpack.c.l.b16 %v1877
    %v3228 = vunpack.c.h.b16 %v1877
    %v3229 = vunpack.c.l.b16 %v1878
    %v3230 = vunpack.c.h.b16 %v1878
    %v3231 = vunpack.c.l.b16 %v1879
    %v3232 = vunpack.c.h.b16 %v1879
    %v3233 = vunpack.c.l.b16 %v1880
    %v3234 = vunpack.c.h.b16 %v1880
    %v3235 = vunpack.c.l.b16 %v1881
    %v3236 = vunpack.c.h.b16 %v1881
    %v3237 = vunpack.c.l.b16 %v1882
    %v3238 = vunpack.c.h.b16 %v1882
    %v3239 = vunpack.c.l.b16 %v1883
    %v3240 = vunpack.c.h.b16 %v1883
    %v3241 = vunpack.c.l.b16 %v1884
    %v3242 = vunpack.c.h.b16 %v1884
    %v3243 = vunpack.c.l.b16 %v1885
    %v3244 = vunpack.c.h.b16 %v1885
    %v3245 = vunpack.c.l.b16 %v1886
    %v3246 = vunpack.c.h.b16 %v1886
    %v3247 = vunpack.c.l.b16 %v1887
    %v3248 = vunpack.c.h.b16 %v1887
    %v3249 = vunpack.c.l.b16 %v1888
    %v3250 = vunpack.c.h.b16 %v1888
    %v3251 = vunpack.c.l.b16 %v1889
    %v3252 = vunpack.c.h.b16 %v1889
    %v3253 = vunpack.c.l.b16 %v1890
    %v3254 = vunpack.c.h.b16 %v1890
    %v3255 = vunpack.c.l.b16 %v1891
    %v3256 = vunpack.c.h.b16 %v1891
    %v3257 = vunpack.c.l.b16 %v1892
    %v3258 = vunpack.c.h.b16 %v1892
    %v3259 = vunpack.c.l.b16 %v1893
    %v3260 = vunpack.c.h.b16 %v1893
    %v3261 = vunpack.c.l.b16 %v1894
    %v3262 = vunpack.c.h.b16 %v1894
    %v3263 = vunpack.c.l.b16 %v1895
    %v3264 = vunpack.c.h.b16 %v1895
    %v3265 = vunpack.c.l.b16 %v1896
    %v3266 = vunpack.c.h.b16 %v1896
    %v3267 = vunpack.c.l.b16 %v1897
    %v3268 = vunpack.c.h.b16 %v1897
    %v3269 = vunpack.c.l.b16 %v1898
    %v3270 = vunpack.c.h.b16 %v1898
    %v3271 = vunpack.c.l.b16 %v1899
    %v3272 = vunpack.c.h.b16 %v1899
    %v3273 = vunpack.c.l.b16 %v1900
    %v3274 = vunpack.c.h.b16 %v1900
    %v3275 = vunpack.c.l.b16 %v1901
    %v3276 = vunpack.c.h.b16 %v1901
    %v3277 = vunpack.c.l.b16 %v1902
    %v3278 = vunpack.c.h.b16 %v1902
    %v3279 = vunpack.c.l.b16 %v1903
    %v3280 = vunpack.c.h.b16 %v1903
    %v3281 = vunpack.c.l.b16 %v1904
    %v3282 = vunpack.c.h.b16 %v1904
    %v3283 = vunpack.c.l.b16 %v1905
    %v3284 = vunpack.c.h.b16 %v1905
    %v3285 = vunpack.c.l.b16 %v1906
    %v3286 = vunpack.c.h.b16 %v1906
    %v3287 = vunpack.c.l.b16 %v1907
    %v3288 = vunpack.c.h.b16 %v1907
    %v3289 = vunpack.c.l.b16 %v1908
    %v3290 = vunpack.c.h.b16 %v1908
    %v3291 = vunpack.c.l.b16 %v1909
    %v3292 = vunpack.c.h.b16 %v1909
    %v3293 = vunpack.c.l.b16 %v1910
    %v3294 = vunpack.c.h.b16 %v1910
    %v3295 = vunpack.c.l.b16 %v1911
    %v3296 = vunpack.c.h.b16 %v1911
    %v3297 = vunpack.c.l.b16 %v1912
    %v3298 = vunpack.c.h.b16 %v1912
    %v3299 = vunpack.c.l.b16 %v1913
    %v3300 = vunpack.c.h.b16 %v1913
    %v3301 = vunpack.c.l.b16 %v1914
    %v3302 = vunpack.c.h.b16 %v1914
    %v3303 = vunpack.c.l.b16 %v1915
    %v3304 = vunpack.c.h.b16 %v1915
    %v3305 = vunpack.c.l.b16 %v1916
    %v3306 = vunpack.c.h.b16 %v1916
    %v3307 = vunpack.c.l.b16 %v1917
    %v3308 = vunpack.c.h.b16 %v1917
    %v3309 = vunpack.c.l.b16 %v1918
    %v3310 = vunpack.c.h.b16 %v1918
    %v3311 = vunpack.c.l.b16 %v1919
    %v3312 = vunpack.c.h.b16 %v1919
    %v3313 = vunpack.c.l.b16 %v1920
    %v3314 = vunpack.c.h.b16 %v1920
    %v3315 = vunpack.c.l.b16 %v1921
    %v3316 = vunpack.c.h.b16 %v1921
    %v3317 = vunpack.c.l.b16 %v1922
    %v3318 = vunpack.c.h.b16 %v1922
    %v3319 = vunpack.c.l.b16 %v1923
    %v3320 = vunpack.c.h.b16 %v1923
    %v3321 = vunpack.c.l.b16 %v1924
    %v3322 = vunpack.c.h.b16 %v1924
    %v3323 = vunpack.c.l.b16 %v1925
    %v3324 = vunpack.c.h.b16 %v1925
    %v3325 = vunpack.c.l.b16 %v1926
    %v3326 = vunpack.c.h.b16 %v1926
    %v3327 = vunpack.c.l.b16 %v1927
    %v3328 = vunpack.c.h.b16 %v1927
    %v3329 = vunpack.c.l.b16 %v1928
    %v3330 = vunpack.c.h.b16 %v1928
    %v3331 = vunpack.c.l.b16 %v1929
    %v3332 = vunpack.c.h.b16 %v1929
    %v3333 = vunpack.c.l.b16 %v1930
    %v3334 = vunpack.c.h.b16 %v1930
    %v3335 = vunpack.c.l.b16 %v1931
    %v3336 = vunpack.c.h.b16 %v1931
    %v3337 = vunpack.c.l.b16 %v1932
    %v3338 = vunpack.c.h.b16 %v1932
    %v3339 = vunpack.c.l.b16 %v1933
    %v3340 = vunpack.c.h.b16 %v1933
    %v3341 = vunpack.c.l.b16 %v1934
    %v3342 = vunpack.c.h.b16 %v1934
    %v3343 = vunpack.c.l.b16 %v1935
    %v3344 = vunpack.c.h.b16 %v1935
    %v3345 = vunpack.c.l.b16 %v1936
    %v3346 = vunpack.c.h.b16 %v1936
    %v3347 = vunpack.c.l.b16 %v1937
    %v3348 = vunpack.c.h.b16 %v1937
    %v3349 = vunpack.c.l.b16 %v1938
    %v3350 = vunpack.c.h.b16 %v1938
    %v3351 = vunpack.c.l.b16 %v1939
    %v3352 = vunpack.c.h.b16 %v1939
    %v3353 = vunpack.c.l.b16 %v1940
    %v3354 = vunpack.c.h.b16 %v1940
    %v3355 = vunpack.c.l.b16 %v1941
    %v3356 = vunpack.c.h.b16 %v1941
    %v3357 = vunpack.c.l.b16 %v1942
    %v3358 = vunpack.c.h.b16 %v1942
    %v3359 = vunpack.c.l.b16 %v1943
    %v3360 = vunpack.c.h.b16 %v1943
    %v3361 = vunpack.c.l.b16 %v1944
    %v3362 = vunpack.c.h.b16 %v1944
    %v3363 = vunpack.c.l.b16 %v1945
    %v3364 = vunpack.c.h.b16 %v1945
    %v3365 = vunpack.c.l.b16 %v1946
    %v3366 = vunpack.c.h.b16 %v1946
    %v3367 = vunpack.c.l.b16 %v1947
    %v3368 = vunpack.c.h.b16 %v1947
    %v3369 = vunpack.c.l.b16 %v1948
    %v3370 = vunpack.c.h.b16 %v1948
    %v3371 = vunpack.c.l.b16 %v1949
    %v3372 = vunpack.c.h.b16 %v1949
    %v3373 = vunpack.c.l.b16 %v1950
    %v3374 = vunpack.c.h.b16 %v1950
    %v3375 = vunpack.c.l.b16 %v1951
    %v3376 = vunpack.c.h.b16 %v1951
    %v3377 = vunpack.c.l.b16 %v1952
    %v3378 = vunpack.c.h.b16 %v1952
    %v3379 = vunpack.c.l.b16 %v1953
    %v3380 = vunpack.c.h.b16 %v1953
    %v3381 = vunpack.c.l.b16 %v1954
    %v3382 = vunpack.c.h.b16 %v1954
    %v3383 = vunpack.c.l.b16 %v1955
    %v3384 = vunpack.c.h.b16 %v1955
    %v3385 = vunpack.c.l.b16 %v1956
    %v3386 = vunpack.c.h.b16 %v1956
    %v3387 = vunpack.c.l.b16 %v1957
    %v3388 = vunpack.c.h.b16 %v1957
    %v3389 = vunpack.c.l.b16 %v1958
    %v3390 = vunpack.c.h.b16 %v1958
    %v3391 = vunpack.c.l.b16 %v1959
    %v3392 = vunpack.c.h.b16 %v1959
    %v3393 = vunpack.c.l.b16 %v1960
    %v3394 = vunpack.c.h.b16 %v1960
    %v3395 = vunpack.c.l.b16 %v1961
    %v3396 = vunpack.c.h.b16 %v1961
    %v3397 = vunpack.c.l.b16 %v1962
    %v3398 = vunpack.c.h.b16 %v1962
    %v3399 = vunpack.c.l.b16 %v1963
    %v3400 = vunpack.c.h.b16 %v1963
    %v3401 = vunpack.c.l.b16 %v1964
    %v3402 = vunpack.c.h.b16 %v1964
    %v3403 = vunpack.c.l.b16 %v1965
    %v3404 = vunpack.c.h.b16 %v1965
    %v3405 = vunpack.c.l.b16 %v1966
    %v3406 = vunpack.c.h.b16 %v1966
    %v3407 = vunpack.c.l.b16 %v1967
    %v3408 = vunpack.c.h.b16 %v1967
    %v3409 = vunpack.c.l.b16 %v1968
    %v3410 = vunpack.c.h.b16 %v1968
    %v3411 = vunpack.c.l.b16 %v1969
    %v3412 = vunpack.c.h.b16 %v1969
    %v3413 = vunpack.c.l.b16 %v1970
    %v3414 = vunpack.c.h.b16 %v1970
    %v3415 = vunpack.c.l.b16 %v1971
    %v3416 = vunpack.c.h.b16 %v1971
    %v3417 = vunpack.c.l.b16 %v1972
    %v3418 = vunpack.c.h.b16 %v1972
    %v3419 = vunpack.c.l.b16 %v1973
    %v3420 = vunpack.c.h.b16 %v1973
    %v3421 = vunpack.c.l.b16 %v1974
    %v3422 = vunpack.c.h.b16 %v1974
    %v3423 = vunpack.c.l.b16 %v1975
    %v3424 = vunpack.c.h.b16 %v1975
    %v3425 = vunpack.c.l.b16 %v1976
    %v3426 = vunpack.c.h.b16 %v1976
    %v3427 = vunpack.c.l.b16 %v1977
    %v3428 = vunpack.c.h.b16 %v1977
    %v3429 = vunpack.c.l.b16 %v1978
    %v3430 = vunpack.c.h.b16 %v1978
    %v3431 = vunpack.c.l.b16 %v1979
    %v3432 = vunpack.c.h.b16 %v1979
    %v3433 = vunpack.c.l.b16 %v1980
    %v3434 = vunpack.c.h.b16 %v1980
    %v3435 = vunpack.c.l.b16 %v1981
    %v3436 = vunpack.c.h.b16 %v1981
    %v3437 = vunpack.c.l.b16 %v1982
    %v3438 = vunpack.c.h.b16 %v1982
    %v3439 = vunpack.c.l.b16 %v1983
    %v3440 = vunpack.c.h.b16 %v1983
    %v3441 = vunpack.c.l.b16 %v1984
    %v3442 = vunpack.c.h.b16 %v1984
    %v3443 = vunpack.c.l.b16 %v1985
    %v3444 = vunpack.c.h.b16 %v1985
    %v3445 = vunpack.c.l.b16 %v1986
    %v3446 = vunpack.c.h.b16 %v1986
    %v3447 = vunpack.c.l.b16 %v1987
    %v3448 = vunpack.c.h.b16 %v1987
    %v3449 = vunpack.c.l.b16 %v1988
    %v3450 = vunpack.c.h.b16 %v1988
    %v3451 = vunpack.c.l.b16 %v1989
    %v3452 = vunpack.c.h.b16 %v1989
    %v3453 = vunpack.c.l.b16 %v1990
    %v3454 = vunpack.c.h.b16 %v1990
    %v3455 = vunpack.c.l.b16 %v1991
    %v3456 = vunpack.c.h.b16 %v1991
    %v3457 = vunpack.c.l.b16 %v1992
    %v3458 = vunpack.c.h.b16 %v1992
    %v3459 = vunpack.c.l.b16 %v1993
    %v3460 = vunpack.c.h.b16 %v1993
    %v3461 = vunpack.c.l.b16 %v1994
    %v3462 = vunpack.c.h.b16 %v1994
    %v3463 = vunpack.c.l.b16 %v1995
    %v3464 = vunpack.c.h.b16 %v1995
    %v3465 = vunpack.c.l.b16 %v1996
    %v3466 = vunpack.c.h.b16 %v1996
    %v3467 = vunpack.c.l.b16 %v1997
    %v3468 = vunpack.c.h.b16 %v1997
    %v3469 = vunpack.c.l.b16 %v1998
    %v3470 = vunpack.c.h.b16 %v1998
    %v3471 = vunpack.c.l.b16 %v1999
    %v3472 = vunpack.c.h.b16 %v1999
    %v3473 = vunpack.c.l.b16 %v2000
    %v3474 = vunpack.c.h.b16 %v2000
    %v3475 = vunpack.c.l.b16 %v2001
    %v3476 = vunpack.c.h.b16 %v2001
    %v3477 = vunpack.c.l.b16 %v2002
    %v3478 = vunpack.c.h.b16 %v2002
    %v3479 = vunpack.c.l.b16 %v2003
    %v3480 = vunpack.c.h.b16 %v2003
    %v3481 = vunpack.c.l.b16 %v2004
    %v3482 = vunpack.c.h.b16 %v2004
    %v3483 = vunpack.c.l.b16 %v2005
    %v3484 = vunpack.c.h.b16 %v2005
    %v3485 = vunpack.c.l.b16 %v2006
    %v3486 = vunpack.c.h.b16 %v2006
    %v3487 = vunpack.c.l.b16 %v2007
    %v3488 = vunpack.c.h.b16 %v2007
    %v3489 = vunpack.c.l.b16 %v2008
    %v3490 = vunpack.c.h.b16 %v2008
    %v3491 = vunpack.c.l.b16 %v2009
    %v3492 = vunpack.c.h.b16 %v2009
    %v3493 = vunpack.c.l.b16 %v2010
    %v3494 = vunpack.c.h.b16 %v2010
    %v3495 = vunpack.c.l.b16 %v2011
    %v3496 = vunpack.c.h.b16 %v2011
    %v3497 = vunpack.c.l.b16 %v2012
    %v3498 = vunpack.c.h.b16 %v2012
    %v3499 = vunpack.c.l.b16 %v2013
    %v3500 = vunpack.c.h.b16 %v2013
    %v3501 = vunpack.c.l.b16 %v2014
    %v3502 = vunpack.c.h.b16 %v2014
    %v3503 = vunpack.c.l.b16 %v2015
    %v3504 = vunpack.c.h.b16 %v2015
    %v3505 = vunpack.c.l.b16 %v2016
    %v3506 = vunpack.c.h.b16 %v2016
    %v3507 = vunpack.c.l.b16 %v2017
    %v3508 = vunpack.c.h.b16 %v2017
    %v3509 = vunpack.c.l.b16 %v2018
    %v3510 = vunpack.c.h.b16 %v2018
    %v3511 = vunpack.c.l.b16 %v2019
    %v3512 = vunpack.c.h.b16 %v2019
    %v3513 = vunpack.c.l.b16 %v2020
    %v3514 = vunpack.c.h.b16 %v2020
    %v3515 = vunpack.c.l.b16 %v2021
    %v3516 = vunpack.c.h.b16 %v2021
    %v3517 = vunpack.c.l.b16 %v2022
    %v3518 = vunpack.c.h.b16 %v2022
    %v3519 = vunpack.c.l.b16 %v2023
    %v3520 = vunpack.c.h.b16 %v2023
    %v3521 = vunpack.c.l.b16 %v2024
    %v3522 = vunpack.c.h.b16 %v2024
    %v3523 = vunpack.c.l.b16 %v2025
    %v3524 = vunpack.c.h.b16 %v2025
    %v3525 = vunpack.c.l.b16 %v2026
    %v3526 = vunpack.c.h.b16 %v2026
    %v3527 = vunpack.c.l.b16 %v2027
    %v3528 = vunpack.c.h.b16 %v2027
    %v3529 = vunpack.c.l.b16 %v2028
    %v3530 = vunpack.c.h.b16 %v2028
    %v3531 = vunpack.c.l.b16 %v2029
    %v3532 = vunpack.c.h.b16 %v2029
    %v3533 = vunpack.c.l.b16 %v2030
    %v3534 = vunpack.c.h.b16 %v2030
    %v3535 = vunpack.c.l.b16 %v2031
    %v3536 = vunpack.c.h.b16 %v2031
    %v3537 = vunpack.c.l.b16 %v2032
    %v3538 = vunpack.c.h.b16 %v2032
    %v3539 = vunpack.c.l.b16 %v2033
    %v3540 = vunpack.c.h.b16 %v2033
    %v3541 = vunpack.c.l.b16 %v2034
    %v3542 = vunpack.c.h.b16 %v2034
    %v3543 = vunpack.c.l.b16 %v2035
    %v3544 = vunpack.c.h.b16 %v2035
    %v3545 = vunpack.c.l.b16 %v2036
    %v3546 = vunpack.c.h.b16 %v2036
    %v3547 = vunpack.c.l.b16 %v2037
    %v3548 = vunpack.c.h.b16 %v2037
    %v3549 = vunpack.c.l.b16 %v2038
    %v3550 = vunpack.c.h.b16 %v2038
    %v3551 = vunpack.c.l.b16 %v2039
    %v3552 = vunpack.c.h.b16 %v2039
    %v3553 = vunpack.c.l.b16 %v2040
    %v3554 = vunpack.c.h.b16 %v2040
    %v3555 = vunpack.c.l.b16 %v2041
    %v3556 = vunpack.c.h.b16 %v2041
    %v3557 = vunpack.c.l.b16 %v2042
    %v3558 = vunpack.c.h.b16 %v2042
    %v3559 = vunpack.c.l.b16 %v2043
    %v3560 = vunpack.c.h.b16 %v2043
    %v3561 = vunpack.c.l.b16 %v2044
    %v3562 = vunpack.c.h.b16 %v2044
    %v3563 = vunpack.c.l.b16 %v2045
    %v3564 = vunpack.c.h.b16 %v2045
    %v3565 = vunpack.c.l.b16 %v2046
    %v3566 = vunpack.c.h.b16 %v2046
    %v3567 = vunpack.c.l.b16 %v2047
    %v3568 = vunpack.c.h.b16 %v2047
    %v3569 = vunpack.c.l.b16 %v2048
    %v3570 = vunpack.c.h.b16 %v2048
    %v3571 = vunpack.c.l.b16 %v2049
    %v3572 = vunpack.c.h.b16 %v2049
    %v3573 = vunpack.c.l.b16 %v2050
    %v3574 = vunpack.c.h.b16 %v2050
    %v3575 = vunpack.c.l.b16 %v2051
    %v3576 = vunpack.c.h.b16 %v2051
    %v3577 = vunpack.c.l.b16 %v2052
    %v3578 = vunpack.c.h.b16 %v2052
    %v3579 = vunpack.c.l.b16 %v2053
    %v3580 = vunpack.c.h.b16 %v2053
    %v3581 = vunpack.c.l.b16 %v2054
    %v3582 = vunpack.c.h.b16 %v2054
    %v3583 = vunpack.c.l.b16 %v2055
    %v3584 = vunpack.c.h.b16 %v2055
    %v3585 = vunpack.c.l.b16 %v2056
    %v3586 = vunpack.c.h.b16 %v2056
    %v3587 = vunpack.c.l.b16 %v2057
    %v3588 = vunpack.c.h.b16 %v2057
    %v3589 = vunpack.c.l.b16 %v2058
    %v3590 = vunpack.c.h.b16 %v2058
    %v3591 = vunpack.c.l.b16 %v2059
    %v3592 = vunpack.c.h.b16 %v2059
    %v3593 = vunpack.c.l.b16 %v2060
    %v3594 = vunpack.c.h.b16 %v2060
    %v3595 = vunpack.c.l.b16 %v2061
    %v3596 = vunpack.c.h.b16 %v2061
    %v3597 = vunpack.c.l.b16 %v2062
    %v3598 = vunpack.c.h.b16 %v2062
    %v3599 = vunpack.c.l.b16 %v2063
    %v3600 = vunpack.c.h.b16 %v2063
    %v3601 = vunpack.c.l.b16 %v2064
    %v3602 = vunpack.c.h.b16 %v2064
    %v3603 = vunpack.c.l.b16 %v2065
    %v3604 = vunpack.c.h.b16 %v2065
    %v3605 = vunpack.c.l.b16 %v2066
    %v3606 = vunpack.c.h.b16 %v2066
    %v3607 = vunpack.c.l.b16 %v2067
    %v3608 = vunpack.c.h.b16 %v2067
    %v3609 = vunpack.c.l.b16 %v2068
    %v3610 = vunpack.c.h.b16 %v2068
    %v3611 = vunpack.c.l.b16 %v2069
    %v3612 = vunpack.c.h.b16 %v2069
    %v3613 = vunpack.c.l.b16 %v2070
    %v3614 = vunpack.c.h.b16 %v2070
    %v3615 = vunpack.c.l.b16 %v2071
    %v3616 = vunpack.c.h.b16 %v2071
    %v3617 = vunpack.c.l.b16 %v2072
    %v3618 = vunpack.c.h.b16 %v2072
    %v3619 = vunpack.c.l.b16 %v2073
    %v3620 = vunpack.c.h.b16 %v2073
    %v3621 = vunpack.c.l.b16 %v2074
    %v3622 = vunpack.c.h.b16 %v2074
    %v3623 = vunpack.c.l.b16 %v2075
    %v3624 = vunpack.c.h.b16 %v2075
    %v3625 = vunpack.c.l.b16 %v2076
    %v3626 = vunpack.c.h.b16 %v2076
    %v3627 = vunpack.c.l.b16 %v2077
    %v3628 = vunpack.c.h.b16 %v2077
    %v3629 = vunpack.c.l.b16 %v2078
    %v3630 = vunpack.c.h.b16 %v2078
    %v3631 = vunpack.c.l.b16 %v2079
    %v3632 = vunpack.c.h.b16 %v2079
    %v3633 = vunpack.c.l.b16 %v2080
    %v3634 = vunpack.c.h.b16 %v2080
    %v3635 = vunpack.c.l.b16 %v2081
    %v3636 = vunpack.c.h.b16 %v2081
    %v3637 = vunpack.c.l.b16 %v2082
    %v3638 = vunpack.c.h.b16 %v2082
    %v3639 = vunpack.c.l.b16 %v2083
    %v3640 = vunpack.c.h.b16 %v2083
    %v3641 = vunpack.c.l.b16 %v2084
    %v3642 = vunpack.c.h.b16 %v2084
    %v3643 = vunpack.c.l.b16 %v2085
    %v3644 = vunpack.c.h.b16 %v2085
    %v3645 = vunpack.c.l.b16 %v2086
    %v3646 = vunpack.c.h.b16 %v2086
    %v3647 = vunpack.c.l.b16 %v2087
    %v3648 = vunpack.c.h.b16 %v2087
    %v3649 = vunpack.c.l.b16 %v2088
    %v3650 = vunpack.c.h.b16 %v2088
    %v3651 = vunpack.c.l.b16 %v2089
    %v3652 = vunpack.c.h.b16 %v2089
    %v3653 = vunpack.c.l.b16 %v2090
    %v3654 = vunpack.c.h.b16 %v2090
    %v3655 = vunpack.c.l.b16 %v2091
    %v3656 = vunpack.c.h.b16 %v2091
    %v3657 = vunpack.c.l.b16 %v2092
    %v3658 = vunpack.c.h.b16 %v2092
    %v3659 = vunpack.c.l.b16 %v2093
    %v3660 = vunpack.c.h.b16 %v2093
    %v3661 = vunpack.c.l.b16 %v2094
    %v3662 = vunpack.c.h.b16 %v2094
    %v3663 = vunpack.c.l.b16 %v2095
    %v3664 = vunpack.c.h.b16 %v2095
    %v3665 = vunpack.c.l.b16 %v2096
    %v3666 = vunpack.c.h.b16 %v2096
    %v3667 = vunpack.c.l.b16 %v2097
    %v3668 = vunpack.c.h.b16 %v2097
    %v3669 = vunpack.c.l.b16 %v2098
    %v3670 = vunpack.c.h.b16 %v2098
    %v3671 = vunpack.c.l.b16 %v2099
    %v3672 = vunpack.c.h.b16 %v2099
    %v3673 = vunpack.c.l.b16 %v2100
    %v3674 = vunpack.c.h.b16 %v2100
    %v3675 = vunpack.c.l.b16 %v2101
    %v3676 = vunpack.c.h.b16 %v2101
    %v3677 = vunpack.c.l.b16 %v2102
    %v3678 = vunpack.c.h.b16 %v2102
    %v3679 = vunpack.c.l.b16 %v2103
    %v3680 = vunpack.c.h.b16 %v2103
    %v3681 = vunpack.c.l.b16 %v2104
    %v3682 = vunpack.c.h.b16 %v2104
    %v3683 = vunpack.c.l.b16 %v2105
    %v3684 = vunpack.c.h.b16 %v2105
    %v3685 = vunpack.c.l.b16 %v2106
    %v3686 = vunpack.c.h.b16 %v2106
    %v3687 = vunpack.c.l.b16 %v2107
    %v3688 = vunpack.c.h.b16 %v2107
    %v3689 = vunpack.c.l.b16 %v2108
    %v3690 = vunpack.c.h.b16 %v2108
    %v3691 = vunpack.c.l.b16 %v2109
    %v3692 = vunpack.c.h.b16 %v2109
    %v3693 = vunpack.c.l.b16 %v2110
    %v3694 = vunpack.c.h.b16 %v2110
    %v3695 = vunpack.c.l.b16 %v2111
    %v3696 = vunpack.c.h.b16 %v2111
    %v3697 = vunpack.c.l.b16 %v2112
    %v3698 = vunpack.c.h.b16 %v2112
    %v3699 = vunpack.c.l.b16 %v2113
    %v3700 = vunpack.c.h.b16 %v2113
    %v3701 = vunpack.c.l.b16 %v2114
    %v3702 = vunpack.c.h.b16 %v2114
    %v3703 = vunpack.c.l.b16 %v2115
    %v3704 = vunpack.c.h.b16 %v2115
    %v3705 = vunpack.c.l.b16 %v2116
    %v3706 = vunpack.c.h.b16 %v2116
    %v3707 = vunpack.c.l.b16 %v2117
    %v3708 = vunpack.c.h.b16 %v2117
    %v3709 = vunpack.c.l.b16 %v2118
    %v3710 = vunpack.c.h.b16 %v2118
    %v3711 = vunpack.c.l.b16 %v2119
    %v3712 = vunpack.c.h.b16 %v2119
    %v3713 = vunpack.c.l.b16 %v2120
    %v3714 = vunpack.c.h.b16 %v2120
    %v3715 = vunpack.c.l.b16 %v2121
    %v3716 = vunpack.c.h.b16 %v2121
    %v3717 = vunpack.c.l.b16 %v2122
    %v3718 = vunpack.c.h.b16 %v2122
    %v3719 = vunpack.c.l.b16 %v2123
    %v3720 = vunpack.c.h.b16 %v2123
    %v3721 = vunpack.c.l.b16 %v2124
    %v3722 = vunpack.c.h.b16 %v2124
    %v3723 = vunpack.c.l.b16 %v2125
    %v3724 = vunpack.c.h.b16 %v2125
    %v3725 = vunpack.c.l.b16 %v2126
    %v3726 = vunpack.c.h.b16 %v2126
    %v3727 = vunpack.c.l.b16 %v2127
    %v3728 = vunpack.c.h.b16 %v2127
    %v3729 = vunpack.c.l.b16 %v2128
    %v3730 = vunpack.c.h.b16 %v2128
    %v3731 = vunpack.c.l.b16 %v2129
    %v3732 = vunpack.c.h.b16 %v2129
    %v3733 = vunpack.c.l.b16 %v2130
    %v3734 = vunpack.c.h.b16 %v2130
    %v3735 = vunpack.c.l.b16 %v2131
    %v3736 = vunpack.c.h.b16 %v2131
    %v3737 = vunpack.c.l.b16 %v2132
    %v3738 = vunpack.c.h.b16 %v2132
    %v3739 = vunpack.c.l.b16 %v2133
    %v3740 = vunpack.c.h.b16 %v2133
    %v3741 = vunpack.c.l.b16 %v2134
    %v3742 = vunpack.c.h.b16 %v2134
    %v3743 = vunpack.c.l.b16 %v2135
    %v3744 = vunpack.c.h.b16 %v2135
    %v3745 = vunpack.c.l.b16 %v2136
    %v3746 = vunpack.c.h.b16 %v2136
    %v3747 = vunpack.c.l.b16 %v2137
    %v3748 = vunpack.c.h.b16 %v2137
    %v3749 = vunpack.c.l.b16 %v2138
    %v3750 = vunpack.c.h.b16 %v2138
    %v3751 = vunpack.c.l.b16 %v2139
    %v3752 = vunpack.c.h.b16 %v2139
    %v3753 = vunpack.c.l.b16 %v2140
    %v3754 = vunpack.c.h.b16 %v2140
    %v3755 = vunpack.c.l.b16 %v2141
    %v3756 = vunpack.c.h.b16 %v2141
    %v3757 = vunpack.c.l.b16 %v2142
    %v3758 = vunpack.c.h.b16 %v2142
    %v3759 = vunpack.c.l.b16 %v2143
    %v3760 = vunpack.c.h.b16 %v2143
    %v3761 = vunpack.c.l.b16 %v2144
    %v3762 = vunpack.c.h.b16 %v2144
    %v3763 = vunpack.c.l.b16 %v2145
    %v3764 = vunpack.c.h.b16 %v2145
    %v3765 = vunpack.c.l.b16 %v2146
    %v3766 = vunpack.c.h.b16 %v2146
    %v3767 = vpack.c.b16 %v2759, %v2743
    %v3768 = vpack.c.b16 %v2760, %v2744
    %v3769 = vpack.c.b16 %v2761, %v2745
    %v3770 = vpack.c.b16 %v2762, %v2746
    %v3771 = vpack.c.b16 %v2763, %v2747
    %v3772 = vpack.c.b16 %v2764, %v2748
    %v3773 = vpack.c.b16 %v2765, %v2749
    %v3774 = vpack.c.b16 %v2766, %v2750
    %v3775 = vpack.c.b16 %v2767, %v2751
    %v3776 = vpack.c.b16 %v2768, %v2752
    %v3777 = vpack.c.b16 %v2769, %v2753
    %v3778 = vpack.c.b16 %v2770, %v2754
    %v3779 = vpack.c.b16 %v2771, %v2755
    %v3780 = vpack.c.b16 %v2772, %v2756
    %v3781 = vpack.c.b16 %v2773, %v2757
    %v3782 = vpack.c.b16 %v2774, %v2758
    %v3783 = vpack.c.b16 %v2791, %v2775
    %v3784 = vpack.c.b16 %v2792, %v2776
    %v3785 = vpack.c.b16 %v2793, %v2777
    %v3786 = vpack.c.b16 %v2794, %v2778
    %v3787 = vpack.c.b16 %v2795, %v2779
    %v3788 = vpack.c.b16 %v2796, %v2780
    %v3789 = vpack.c.b16 %v2797, %v2781
    %v3790 = vpack.c.b16 %v2798, %v2782
    %v3791 = vpack.c.b16 %v2799, %v2783
    %v3792 = vpack.c.b16 %v2800, %v2784
    %v3793 = vpack.c.b16 %v2801, %v2785
    %v3794 = vpack.c.b16 %v2802, %v2786
    %v3795 = vpack.c.b16 %v2803, %v2787
    %v3796 = vpack.c.b16 %v2804, %v2788
    %v3797 = vpack.c.b16 %v2805, %v2789
    %v3798 = vpack.c.b16 %v2806, %v2790
    %v3799 = vpack.c.b16 %v2823, %v2807
    %v3800 = vpack.c.b16 %v2824, %v2808
    %v3801 = vpack.c.b16 %v2825, %v2809
    %v3802 = vpack.c.b16 %v2826, %v2810
    %v3803 = vpack.c.b16 %v2827, %v2811
    %v3804 = vpack.c.b16 %v2828, %v2812
    %v3805 = vpack.c.b16 %v2829, %v2813
    %v3806 = vpack.c.b16 %v2830, %v2814
    %v3807 = vpack.c.b16 %v2831, %v2815
    %v3808 = vpack.c.b16 %v2832, %v2816
    %v3809 = vpack.c.b16 %v2833, %v2817
    %v3810 = vpack.c.b16 %v2834, %v2818
    %v3811 = vpack.c.b16 %v2835, %v2819
    %v3812 = vpack.c.b16 %v2836, %v2820
    %v3813 = vpack.c.b16 %v2837, %v2821
    %v3814 = vpack.c.b16 %v2838, %v2822
    %v3815 = vpack.c.b16 %v2855, %v2839
    %v3816 = vpack.c.b16 %v2856, %v2840
    %v3817 = vpack.c.b16 %v2857, %v2841
    %v3818 = vpack.c.b16 %v2858, %v2842
    %v3819 = vpack.c.b16 %v2859, %v2843
    %v3820 = vpack.c.b16 %v2860, %v2844
    %v3821 = vpack.c.b16 %v2861, %v2845
    %v3822 = vpack.c.b16 %v2862, %v2846
    %v3823 = vpack.c.b16 %v2863, %v2847
    %v3824 = vpack.c.b16 %v2864, %v2848
    %v3825 = vpack.c.b16 %v2865, %v2849
    %v3826 = vpack.c.b16 %v2866, %v2850
    %v3827 = vpack.c.b16 %v2867, %v2851
    %v3828 = vpack.c.b16 %v2868, %v2852
    %v3829 = vpack.c.b16 %v2869, %v2853
    %v3830 = vpack.c.b16 %v2870, %v2854
    %v3831 = vpack.c.b16 %v2887, %v2871
    %v3832 = vpack.c.b16 %v2888, %v2872
    %v3833 = vpack.c.b16 %v2889, %v2873
    %v3834 = vpack.c.b16 %v2890, %v2874
    %v3835 = vpack.c.b16 %v2891, %v2875
    %v3836 = vpack.c.b16 %v2892, %v2876
    %v3837 = vpack.c.b16 %v2893, %v2877
    %v3838 = vpack.c.b16 %v2894, %v2878
    %v3839 = vpack.c.b16 %v2895, %v2879
    %v3840 = vpack.c.b16 %v2896, %v2880
    %v3841 = vpack.c.b16 %v2897, %v2881
    %v3842 = vpack.c.b16 %v2898, %v2882
    %v3843 = vpack.c.b16 %v2899, %v2883
    %v3844 = vpack.c.b16 %v2900, %v2884
    %v3845 = vpack.c.b16 %v2901, %v2885
    %v3846 = vpack.c.b16 %v2902, %v2886
    %v3847 = vpack.c.b16 %v2919, %v2903
    %v3848 = vpack.c.b16 %v2920, %v2904
    %v3849 = vpack.c.b16 %v2921, %v2905
    %v3850 = vpack.c.b16 %v2922, %v2906
    %v3851 = vpack.c.b16 %v2923, %v2907
    %v3852 = vpack.c.b16 %v2924, %v2908
    %v3853 = vpack.c.b16 %v2925, %v2909
    %v3854 = vpack.c.b16 %v2926, %v2910
    %v3855 = vpack.c.b16 %v2927, %v2911
    %v3856 = vpack.c.b16 %v2928, %v2912
    %v3857 = vpack.c.b16 %v2929, %v2913
    %v3858 = vpack.c.b16 %v2930, %v2914
    %v3859 = vpack.c.b16 %v2931, %v2915
    %v3860 = vpack.c.b16 %v2932, %v2916
    %v3861 = vpack.c.b16 %v2933, %v2917
    %v3862 = vpack.c.b16 %v2934, %v2918
    %v3863 = vpack.c.b16 %v2951, %v2935
    %v3864 = vpack.c.b16 %v2952, %v2936
    %v3865 = vpack.c.b16 %v2953, %v2937
    %v3866 = vpack.c.b16 %v2954, %v2938
    %v3867 = vpack.c.b16 %v2955, %v2939
    %v3868 = vpack.c.b16 %v2956, %v2940
    %v3869 = vpack.c.b16 %v2957, %v2941
    %v3870 = vpack.c.b16 %v2958, %v2942
    %v3871 = vpack.c.b16 %v2959, %v2943
    %v3872 = vpack.c.b16 %v2960, %v2944
    %v3873 = vpack.c.b16 %v2961, %v2945
    %v3874 = vpack.c.b16 %v2962, %v2946
    %v3875 = vpack.c.b16 %v2963, %v2947
    %v3876 = vpack.c.b16 %v2964, %v2948
    %v3877 = vpack.c.b16 %v2965, %v2949
    %v3878 = vpack.c.b16 %v2966, %v2950
    %v3879 = vpack.c.b16 %v2983, %v2967
    %v3880 = vpack.c.b16 %v2984, %v2968
    %v3881 = vpack.c.b16 %v2985, %v2969
    %v3882 = vpack.c.b16 %v2986, %v2970
    %v3883 = vpack.c.b16 %v2987, %v2971
    %v3884 = vpack.c.b16 %v2988, %v2972
    %v3885 = vpack.c.b16 %v2989, %v2973
    %v3886 = vpack.c.b16 %v2990, %v2974
    %v3887 = vpack.c.b16 %v2991, %v2975
    %v3888 = vpack.c.b16 %v2992, %v2976
    %v3889 = vpack.c.b16 %v2993, %v2977
    %v3890 = vpack.c.b16 %v2994, %v2978
    %v3891 = vpack.c.b16 %v2995, %v2979
    %v3892 = vpack.c.b16 %v2996, %v2980
    %v3893 = vpack.c.b16 %v2997, %v2981
    %v3894 = vpack.c.b16 %v2998, %v2982
    %v3895 = vpack.c.b16 %v3015, %v2999
    %v3896 = vpack.c.b16 %v3016, %v3000
    %v3897 = vpack.c.b16 %v3017, %v3001
    %v3898 = vpack.c.b16 %v3018, %v3002
    %v3899 = vpack.c.b16 %v3019, %v3003
    %v3900 = vpack.c.b16 %v3020, %v3004
    %v3901 = vpack.c.b16 %v3021, %v3005
    %v3902 = vpack.c.b16 %v3022, %v3006
    %v3903 = vpack.c.b16 %v3023, %v3007
    %v3904 = vpack.c.b16 %v3024, %v3008
    %v3905 = vpack.c.b16 %v3025, %v3009
    %v3906 = vpack.c.b16 %v3026, %v3010
    %v3907 = vpack.c.b16 %v3027, %v3011
    %v3908 = vpack.c.b16 %v3028, %v3012
    %v3909 = vpack.c.b16 %v3029, %v3013
    %v3910 = vpack.c.b16 %v3030, %v3014
    %v3911 = vpack.c.b16 %v3047, %v3031
    %v3912 = vpack.c.b16 %v3048, %v3032
    %v3913 = vpack.c.b16 %v3049, %v3033
    %v3914 = vpack.c.b16 %v3050, %v3034
    %v3915 = vpack.c.b16 %v3051, %v3035
    %v3916 = vpack.c.b16 %v3052, %v3036
    %v3917 = vpack.c.b16 %v3053, %v3037
    %v3918 = vpack.c.b16 %v3054, %v3038
    %v3919 = vpack.c.b16 %v3055, %v3039
    %v3920 = vpack.c.b16 %v3056, %v3040
    %v3921 = vpack.c.b16 %v3057, %v3041
    %v3922 = vpack.c.b16 %v3058, %v3042
    %v3923 = vpack.c.b16 %v3059, %v3043
    %v3924 = vpack.c.b16 %v3060, %v3044
    %v3925 = vpack.c.b16 %v3061, %v3045
    %v3926 = vpack.c.b16 %v3062, %v3046
    %v3927 = vpack.c.b16 %v3079, %v3063
    %v3928 = vpack.c.b16 %v3080, %v3064
    %v3929 = vpack.c.b16 %v3081, %v3065
    %v3930 = vpack.c.b16 %v3082, %v3066
    %v3931 = vpack.c.b16 %v3083, %v3067
    %v3932 = vpack.c.b16 %v3084, %v3068
    %v3933 = vpack.c.b16 %v3085, %v3069
    %v3934 = vpack.c.b16 %v3086, %v3070
    %v3935 = vpack.c.b16 %v3087, %v3071
    %v3936 = vpack.c.b16 %v3088, %v3072
    %v3937 = vpack.c.b16 %v3089, %v3073
    %v3938 = vpack.c.b16 %v3090, %v3074
    %v3939 = vpack.c.b16 %v3091, %v3075
    %v3940 = vpack.c.b16 %v3092, %v3076
    %v3941 = vpack.c.b16 %v3093, %v3077
    %v3942 = vpack.c.b16 %v3094, %v3078
    %v3943 = vpack.c.b16 %v3111, %v3095
    %v3944 = vpack.c.b16 %v3112, %v3096
    %v3945 = vpack.c.b16 %v3113, %v3097
    %v3946 = vpack.c.b16 %v3114, %v3098
    %v3947 = vpack.c.b16 %v3115, %v3099
    %v3948 = vpack.c.b16 %v3116, %v3100
    %v3949 = vpack.c.b16 %v3117, %v3101
    %v3950 = vpack.c.b16 %v3118, %v3102
    %v3951 = vpack.c.b16 %v3119, %v3103
    %v3952 = vpack.c.b16 %v3120, %v3104
    %v3953 = vpack.c.b16 %v3121, %v3105
    %v3954 = vpack.c.b16 %v3122, %v3106
    %v3955 = vpack.c.b16 %v3123, %v3107
    %v3956 = vpack.c.b16 %v3124, %v3108
    %v3957 = vpack.c.b16 %v3125, %v3109
    %v3958 = vpack.c.b16 %v3126, %v3110
    %v3959 = vpack.c.b16 %v3143, %v3127
    %v3960 = vpack.c.b16 %v3144, %v3128
    %v3961 = vpack.c.b16 %v3145, %v3129
    %v3962 = vpack.c.b16 %v3146, %v3130
    %v3963 = vpack.c.b16 %v3147, %v3131
    %v3964 = vpack.c.b16 %v3148, %v3132
    %v3965 = vpack.c.b16 %v3149, %v3133
    %v3966 = vpack.c.b16 %v3150, %v3134
    %v3967 = vpack.c.b16 %v3151, %v3135
    %v3968 = vpack.c.b16 %v3152, %v3136
    %v3969 = vpack.c.b16 %v3153, %v3137
    %v3970 = vpack.c.b16 %v3154, %v3138
    %v3971 = vpack.c.b16 %v3155, %v3139
    %v3972 = vpack.c.b16 %v3156, %v3140
    %v3973 = vpack.c.b16 %v3157, %v3141
    %v3974 = vpack.c.b16 %v3158, %v3142
    %v3975 = vpack.c.b16 %v3175, %v3159
    %v3976 = vpack.c.b16 %v3176, %v3160
    %v3977 = vpack.c.b16 %v3177, %v3161
    %v3978 = vpack.c.b16 %v3178, %v3162
    %v3979 = vpack.c.b16 %v3179, %v3163
    %v3980 = vpack.c.b16 %v3180, %v3164
    %v3981 = vpack.c.b16 %v3181, %v3165
    %v3982 = vpack.c.b16 %v3182, %v3166
    %v3983 = vpack.c.b16 %v3183, %v3167
    %v3984 = vpack.c.b16 %v3184, %v3168
    %v3985 = vpack.c.b16 %v3185, %v3169
    %v3986 = vpack.c.b16 %v3186, %v3170
    %v3987 = vpack.c.b16 %v3187, %v3171
    %v3988 = vpack.c.b16 %v3188, %v3172
    %v3989 = vpack.c.b16 %v3189, %v3173
    %v3990 = vpack.c.b16 %v3190, %v3174
    %v3991 = vpack.c.b16 %v3207, %v3191
    %v3992 = vpack.c.b16 %v3208, %v3192
    %v3993 = vpack.c.b16 %v3209, %v3193
    %v3994 = vpack.c.b16 %v3210, %v3194
    %v3995 = vpack.c.b16 %v3211, %v3195
    %v3996 = vpack.c.b16 %v3212, %v3196
    %v3997 = vpack.c.b16 %v3213, %v3197
    %v3998 = vpack.c.b16 %v3214, %v3198
    %v3999 = vpack.c.b16 %v3215, %v3199
    %v4000 = vpack.c.b16 %v3216, %v3200
    %v4001 = vpack.c.b16 %v3217, %v3201
    %v4002 = vpack.c.b16 %v3218, %v3202
    %v4003 = vpack.c.b16 %v3219, %v3203
    %v4004 = vpack.c.b16 %v3220, %v3204
    %v4005 = vpack.c.b16 %v3221, %v3205
    %v4006 = vpack.c.b16 %v3222, %v3206
    %v4007 = vpack.c.b16 %v3239, %v3223
    %v4008 = vpack.c.b16 %v3240, %v3224
    %v4009 = vpack.c.b16 %v3241, %v3225
    %v4010 = vpack.c.b16 %v3242, %v3226
    %v4011 = vpack.c.b16 %v3243, %v3227
    %v4012 = vpack.c.b16 %v3244, %v3228
    %v4013 = vpack.c.b16 %v3245, %v3229
    %v4014 = vpack.c.b16 %v3246, %v3230
    %v4015 = vpack.c.b16 %v3247, %v3231
    %v4016 = vpack.c.b16 %v3248, %v3232
    %v4017 = vpack.c.b16 %v3249, %v3233
    %v4018 = vpack.c.b16 %v3250, %v3234
    %v4019 = vpack.c.b16 %v3251, %v3235
    %v4020 = vpack.c.b16 %v3252, %v3236
    %v4021 = vpack.c.b16 %v3253, %v3237
    %v4022 = vpack.c.b16 %v3254, %v3238
    %v4023 = vpack.c.b16 %v3271, %v3255
    %v4024 = vpack.c.b16 %v3272, %v3256
    %v4025 = vpack.c.b16 %v3273, %v3257
    %v4026 = vpack.c.b16 %v3274, %v3258
    %v4027 = vpack.c.b16 %v3275, %v3259
    %v4028 = vpack.c.b16 %v3276, %v3260
    %v4029 = vpack.c.b16 %v3277, %v3261
    %v4030 = vpack.c.b16 %v3278, %v3262
    %v4031 = vpack.c.b16 %v3279, %v3263
    %v4032 = vpack.c.b16 %v3280, %v3264
    %v4033 = vpack.c.b16 %v3281, %v3265
    %v4034 = vpack.c.b16 %v3282, %v3266
    %v4035 = vpack.c.b16 %v3283, %v3267
    %v4036 = vpack.c.b16 %v3284, %v3268
    %v4037 = vpack.c.b16 %v3285, %v3269
    %v4038 = vpack.c.b16 %v3286, %v3270
    %v4039 = vpack.c.b16 %v3303, %v3287
    %v4040 = vpack.c.b16 %v3304, %v3288
    %v4041 = vpack.c.b16 %v3305, %v3289
    %v4042 = vpack.c.b16 %v3306, %v3290
    %v4043 = vpack.c.b16 %v3307, %v3291
    %v4044 = vpack.c.b16 %v3308, %v3292
    %v4045 = vpack.c.b16 %v3309, %v3293
    %v4046 = vpack.c.b16 %v3310, %v3294
    %v4047 = vpack.c.b16 %v3311, %v3295
    %v4048 = vpack.c.b16 %v3312, %v3296
    %v4049 = vpack.c.b16 %v3313, %v3297
    %v4050 = vpack.c.b16 %v3314, %v3298
    %v4051 = vpack.c.b16 %v3315, %v3299
    %v4052 = vpack.c.b16 %v3316, %v3300
    %v4053 = vpack.c.b16 %v3317, %v3301
    %v4054 = vpack.c.b16 %v3318, %v3302
    %v4055 = vpack.c.b16 %v3335, %v3319
    %v4056 = vpack.c.b16 %v3336, %v3320
    %v4057 = vpack.c.b16 %v3337, %v3321
    %v4058 = vpack.c.b16 %v3338, %v3322
    %v4059 = vpack.c.b16 %v3339, %v3323
    %v4060 = vpack.c.b16 %v3340, %v3324
    %v4061 = vpack.c.b16 %v3341, %v3325
    %v4062 = vpack.c.b16 %v3342, %v3326
    %v4063 = vpack.c.b16 %v3343, %v3327
    %v4064 = vpack.c.b16 %v3344, %v3328
    %v4065 = vpack.c.b16 %v3345, %v3329
    %v4066 = vpack.c.b16 %v3346, %v3330
    %v4067 = vpack.c.b16 %v3347, %v3331
    %v4068 = vpack.c.b16 %v3348, %v3332
    %v4069 = vpack.c.b16 %v3349, %v3333
    %v4070 = vpack.c.b16 %v3350, %v3334
    %v4071 = vpack.c.b16 %v3367, %v3351
    %v4072 = vpack.c.b16 %v3368, %v3352
    %v4073 = vpack.c.b16 %v3369, %v3353
    %v4074 = vpack.c.b16 %v3370, %v3354
    %v4075 = vpack.c.b16 %v3371, %v3355
    %v4076 = vpack.c.b16 %v3372, %v3356
    %v4077 = vpack.c.b16 %v3373, %v3357
    %v4078 = vpack.c.b16 %v3374, %v3358
    %v4079 = vpack.c.b16 %v3375, %v3359
    %v4080 = vpack.c.b16 %v3376, %v3360
    %v4081 = vpack.c.b16 %v3377, %v3361
    %v4082 = vpack.c.b16 %v3378, %v3362
    %v4083 = vpack.c.b16 %v3379, %v3363
    %v4084 = vpack.c.b16 %v3380, %v3364
    %v4085 = vpack.c.b16 %v3381, %v3365
    %v4086 = vpack.c.b16 %v3382, %v3366
    %v4087 = vpack.c.b16 %v3399, %v3383
    %v4088 = vpack.c.b16 %v3400, %v3384
    %v4089 = vpack.c.b16 %v3401, %v3385
    %v4090 = vpack.c.b16 %v3402, %v3386
    %v4091 = vpack.c.b16 %v3403, %v3387
    %v4092 = vpack.c.b16 %v3404, %v3388
    %v4093 = vpack.c.b16 %v3405, %v3389
    %v4094 = vpack.c.b16 %v3406, %v3390
    %v4095 = vpack.c.b16 %v3407, %v3391
    %v4096 = vpack.c.b16 %v3408, %v3392
    %v4097 = vpack.c.b16 %v3409, %v3393
    %v4098 = vpack.c.b16 %v3410, %v3394
    %v4099 = vpack.c.b16 %v3411, %v3395
    %v4100 = vpack.c.b16 %v3412, %v3396
    %v4101 = vpack.c.b16 %v3413, %v3397
    %v4102 = vpack.c.b16 %v3414, %v3398
    %v4103 = vpack.c.b16 %v3431, %v3415
    %v4104 = vpack.c.b16 %v3432, %v3416
    %v4105 = vpack.c.b16 %v3433, %v3417
    %v4106 = vpack.c.b16 %v3434, %v3418
    %v4107 = vpack.c.b16 %v3435, %v3419
    %v4108 = vpack.c.b16 %v3436, %v3420
    %v4109 = vpack.c.b16 %v3437, %v3421
    %v4110 = vpack.c.b16 %v3438, %v3422
    %v4111 = vpack.c.b16 %v3439, %v3423
    %v4112 = vpack.c.b16 %v3440, %v3424
    %v4113 = vpack.c.b16 %v3441, %v3425
    %v4114 = vpack.c.b16 %v3442, %v3426
    %v4115 = vpack.c.b16 %v3443, %v3427
    %v4116 = vpack.c.b16 %v3444, %v3428
    %v4117 = vpack.c.b16 %v3445, %v3429
    %v4118 = vpack.c.b16 %v3446, %v3430
    %v4119 = vpack.c.b16 %v3463, %v3447
    %v4120 = vpack.c.b16 %v3464, %v3448
    %v4121 = vpack.c.b16 %v3465, %v3449
    %v4122 = vpack.c.b16 %v3466, %v3450
    %v4123 = vpack.c.b16 %v3467, %v3451
    %v4124 = vpack.c.b16 %v3468, %v3452
    %v4125 = vpack.c.b16 %v3469, %v3453
    %v4126 = vpack.c.b16 %v3470, %v3454
    %v4127 = vpack.c.b16 %v3471, %v3455
    %v4128 = vpack.c.b16 %v3472, %v3456
    %v4129 = vpack.c.b16 %v3473, %v3457
    %v4130 = vpack.c.b16 %v3474, %v3458
    %v4131 = vpack.c.b16 %v3475, %v3459
    %v4132 = vpack.c.b16 %v3476, %v3460
    %v4133 = vpack.c.b16 %v3477, %v3461
    %v4134 = vpack.c.b16 %v3478, %v3462
    %v4135 = vpack.c.b16 %v3495, %v3479
    %v4136 = vpack.c.b16 %v3496, %v3480
    %v4137 = vpack.c.b16 %v3497, %v3481
    %v4138 = vpack.c.b16 %v3498, %v3482
    %v4139 = vpack.c.b16 %v3499, %v3483
    %v4140 = vpack.c.b16 %v3500, %v3484
    %v4141 = vpack.c.b16 %v3501, %v3485
    %v4142 = vpack.c.b16 %v3502, %v3486
    %v4143 = vpack.c.b16 %v3503, %v3487
    %v4144 = vpack.c.b16 %v3504, %v3488
    %v4145 = vpack.c.b16 %v3505, %v3489
    %v4146 = vpack.c.b16 %v3506, %v3490
    %v4147 = vpack.c.b16 %v3507, %v3491
    %v4148 = vpack.c.b16 %v3508, %v3492
    %v4149 = vpack.c.b16 %v3509, %v3493
    %v4150 = vpack.c.b16 %v3510, %v3494
    %v4151 = vpack.c.b16 %v3527, %v3511
    %v4152 = vpack.c.b16 %v3528, %v3512
    %v4153 = vpack.c.b16 %v3529, %v3513
    %v4154 = vpack.c.b16 %v3530, %v3514
    %v4155 = vpack.c.b16 %v3531, %v3515
    %v4156 = vpack.c.b16 %v3532, %v3516
    %v4157 = vpack.c.b16 %v3533, %v3517
    %v4158 = vpack.c.b16 %v3534, %v3518
    %v4159 = vpack.c.b16 %v3535, %v3519
    %v4160 = vpack.c.b16 %v3536, %v3520
    %v4161 = vpack.c.b16 %v3537, %v3521
    %v4162 = vpack.c.b16 %v3538, %v3522
    %v4163 = vpack.c.b16 %v3539, %v3523
    %v4164 = vpack.c.b16 %v3540, %v3524
    %v4165 = vpack.c.b16 %v3541, %v3525
    %v4166 = vpack.c.b16 %v3542, %v3526
    %v4167 = vpack.c.b16 %v3559, %v3543
    %v4168 = vpack.c.b16 %v3560, %v3544
    %v4169 = vpack.c.b16 %v3561, %v3545
    %v4170 = vpack.c.b16 %v3562, %v3546
    %v4171 = vpack.c.b16 %v3563, %v3547
    %v4172 = vpack.c.b16 %v3564, %v3548
    %v4173 = vpack.c.b16 %v3565, %v3549
    %v4174 = vpack.c.b16 %v3566, %v3550
    %v4175 = vpack.c.b16 %v3567, %v3551
    %v4176 = vpack.c.b16 %v3568, %v3552
    %v4177 = vpack.c.b16 %v3569, %v3553
    %v4178 = vpack.c.b16 %v3570, %v3554
    %v4179 = vpack.c.b16 %v3571, %v3555
    %v4180 = vpack.c.b16 %v3572, %v3556
    %v4181 = vpack.c.b16 %v3573, %v3557
    %v4182 = vpack.c.b16 %v3574, %v3558
    %v4183 = vpack.c.b16 %v3591, %v3575
    %v4184 = vpack.c.b16 %v3592, %v3576
    %v4185 = vpack.c.b16 %v3593, %v3577
    %v4186 = vpack.c.b16 %v3594, %v3578
    %v4187 = vpack.c.b16 %v3595, %v3579
    %v4188 = vpack.c.b16 %v3596, %v3580
    %v4189 = vpack.c.b16 %v3597, %v3581
    %v4190 = vpack.c.b16 %v3598, %v3582
    %v4191 = vpack.c.b16 %v3599, %v3583
    %v4192 = vpack.c.b16 %v3600, %v3584
    %v4193 = vpack.c.b16 %v3601, %v3585
    %v4194 = vpack.c.b16 %v3602, %v3586
    %v4195 = vpack.c.b16 %v3603, %v3587
    %v4196 = vpack.c.b16 %v3604, %v3588
    %v4197 = vpack.c.b16 %v3605, %v3589
    %v4198 = vpack.c.b16 %v3606, %v3590
    %v4199 = vpack.c.b16 %v3623, %v3607
    %v4200 = vpack.c.b16 %v3624, %v3608
    %v4201 = vpack.c.b16 %v3625, %v3609
    %v4202 = vpack.c.b16 %v3626, %v3610
    %v4203 = vpack.c.b16 %v3627, %v3611
    %v4204 = vpack.c.b16 %v3628, %v3612
    %v4205 = vpack.c.b16 %v3629, %v3613
    %v4206 = vpack.c.b16 %v3630, %v3614
    %v4207 = vpack.c.b16 %v3631, %v3615
    %v4208 = vpack.c.b16 %v3632, %v3616
    %v4209 = vpack.c.b16 %v3633, %v3617
    %v4210 = vpack.c.b16 %v3634, %v3618
    %v4211 = vpack.c.b16 %v3635, %v3619
    %v4212 = vpack.c.b16 %v3636, %v3620
    %v4213 = vpack.c.b16 %v3637, %v3621
    %v4214 = vpack.c.b16 %v3638, %v3622
    %v4215 = vpack.c.b16 %v3655, %v3639
    %v4216 = vpack.c.b16 %v3656, %v3640
    %v4217 = vpack.c.b16 %v3657, %v3641
    %v4218 = vpack.c.b16 %v3658, %v3642
    %v4219 = vpack.c.b16 %v3659, %v3643
    %v4220 = vpack.c.b16 %v3660, %v3644
    %v4221 = vpack.c.b16 %v3661, %v3645
    %v4222 = vpack.c.b16 %v3662, %v3646
    %v4223 = vpack.c.b16 %v3663, %v3647
    %v4224 = vpack.c.b16 %v3664, %v3648
    %v4225 = vpack.c.b16 %v3665, %v3649
    %v4226 = vpack.c.b16 %v3666, %v3650
    %v4227 = vpack.c.b16 %v3667, %v3651
    %v4228 = vpack.c.b16 %v3668, %v3652
    %v4229 = vpack.c.b16 %v3669, %v3653
    %v4230 = vpack.c.b16 %v3670, %v3654
    %v4231 = vpack.c.b16 %v3687, %v3671
    %v4232 = vpack.c.b16 %v3688, %v3672
    %v4233 = vpack.c.b16 %v3689, %v3673
    %v4234 = vpack.c.b16 %v3690, %v3674
    %v4235 = vpack.c.b16 %v3691, %v3675
    %v4236 = vpack.c.b16 %v3692, %v3676
    %v4237 = vpack.c.b16 %v3693, %v3677
    %v4238 = vpack.c.b16 %v3694, %v3678
    %v4239 = vpack.c.b16 %v3695, %v3679
    %v4240 = vpack.c.b16 %v3696, %v3680
    %v4241 = vpack.c.b16 %v3697, %v3681
    %v4242 = vpack.c.b16 %v3698, %v3682
    %v4243 = vpack.c.b16 %v3699, %v3683
    %v4244 = vpack.c.b16 %v3700, %v3684
    %v4245 = vpack.c.b16 %v3701, %v3685
    %v4246 = vpack.c.b16 %v3702, %v3686
    %v4247 = vpack.c.b16 %v3719, %v3703
    %v4248 = vpack.c.b16 %v3720, %v3704
    %v4249 = vpack.c.b16 %v3721, %v3705
    %v4250 = vpack.c.b16 %v3722, %v3706
    %v4251 = vpack.c.b16 %v3723, %v3707
    %v4252 = vpack.c.b16 %v3724, %v3708
    %v4253 = vpack.c.b16 %v3725, %v3709
    %v4254 = vpack.c.b16 %v3726, %v3710
    %v4255 = vpack.c.b16 %v3727, %v3711
    %v4256 = vpack.c.b16 %v3728, %v3712
    %v4257 = vpack.c.b16 %v3729, %v3713
    %v4258 = vpack.c.b16 %v3730, %v3714
    %v4259 = vpack.c.b16 %v3731, %v3715
    %v4260 = vpack.c.b16 %v3732, %v3716
    %v4261 = vpack.c.b16 %v3733, %v3717
    %v4262 = vpack.c.b16 %v3734, %v3718
    %v4263 = vpack.c.b16 %v3751, %v3735
    %v4264 = vpack.c.b16 %v3752, %v3736
    %v4265 = vpack.c.b16 %v3753, %v3737
    %v4266 = vpack.c.b16 %v3754, %v3738
    %v4267 = vpack.c.b16 %v3755, %v3739
    %v4268 = vpack.c.b16 %v3756, %v3740
    %v4269 = vpack.c.b16 %v3757, %v3741
    %v4270 = vpack.c.b16 %v3758, %v3742
    %v4271 = vpack.c.b16 %v3759, %v3743
    %v4272 = vpack.c.b16 %v3760, %v3744
    %v4273 = vpack.c.b16 %v3761, %v3745
    %v4274 = vpack.c.b16 %v3762, %v3746
    %v4275 = vpack.c.b16 %v3763, %v3747
    %v4276 = vpack.c.b16 %v3764, %v3748
    %v4277 = vpack.c.b16 %v3765, %v3749
    %v4278 = vpack.c.b16 %v3766, %v3750
    %4791 = vmatprep.subr.bf16.mxu0 %v3768
    %4792 = vmatpush1.bf16.msra.mxu0 %v3767
    %4793 = vmatprep.subr.bf16.mxu0 %v3784
    %4794 = vmatpush1.bf16.msra.mxu0 %v3783
    %4795 = vmatprep.subr.bf16.mxu0 %v3800
    %4796 = vmatpush1.bf16.msra.mxu0 %v3799
    %4797 = vmatprep.subr.bf16.mxu0 %v3816
    %4798 = vmatpush1.bf16.msra.mxu0 %v3815
    %4799 = vmatprep.subr.bf16.mxu0 %v3832
    %4800 = vmatpush1.bf16.msra.mxu0 %v3831
    %4801 = vmatprep.subr.bf16.mxu0 %v3848
    %4802 = vmatpush1.bf16.msra.mxu0 %v3847
    %4803 = vmatprep.subr.bf16.mxu0 %v3864
    %4804 = vmatpush1.bf16.msra.mxu0 %v3863
    %4805 = vmatprep.subr.bf16.mxu0 %v3880
    %4806 = vmatpush1.bf16.msra.mxu0 %v3879
    %4807 = vmatprep.subr.bf16.mxu0 %v3896
    %4808 = vmatpush1.bf16.msra.mxu0 %v3895
    %4809 = vmatprep.subr.bf16.mxu0 %v3912
    %4810 = vmatpush1.bf16.msra.mxu0 %v3911
    %4811 = vmatprep.subr.bf16.mxu0 %v3928
    %4812 = vmatpush1.bf16.msra.mxu0 %v3927
    %4813 = vmatprep.subr.bf16.mxu0 %v3944
    %4814 = vmatpush1.bf16.msra.mxu0 %v3943
    %4815 = vmatprep.subr.bf16.mxu0 %v3960
    %4816 = vmatpush1.bf16.msra.mxu0 %v3959
    %4817 = vmatprep.subr.bf16.mxu0 %v3976
    %4818 = vmatpush1.bf16.msra.mxu0 %v3975
    %4819 = vmatprep.subr.bf16.mxu0 %v3992
    %4820 = vmatpush1.bf16.msra.mxu0 %v3991
    %4821 = vmatprep.subr.bf16.mxu0 %v4008
    %4822 = vmatpush1.bf16.msra.mxu0 %v4007
    %4823 = vmatprep.mubr.bf16.mxu0 %v1628
    %4824 = vmatmul.mubr.bf16.gmra.mrb[0].mxu0 %v1627
    %v4825 = vpop.f32.mrb[0].mxu0
    %v4826 = vadd.f32 %v2154, %v4825
    %v4827 = vpop.f32.mrb[0].mxu0
    %v4828 = vadd.f32 %v2158, %v4827
    %v4829 = vpop.f32.mrb[0].mxu0
    %v4830 = vadd.f32 %v2154, %v4829
    %v4831 = vpop.f32.mrb[0].mxu0
    %v4832 = vadd.f32 %v2158, %v4831
    %4833 = vmatprep.mubr.bf16.mxu0 %v1632
    %4834 = vmatmul.mubr.bf16.gmra.mrb[0].mxu0 %v1631
    %v4835 = vpop.f32.mrb[0].mxu0
    %v4836 = vadd.f32 %v2154, %v4835
    %v4837 = vpop.f32.mrb[0].mxu0
    %v4838 = vadd.f32 %v2158, %v4837
    %v4839 = vpop.f32.mrb[0].mxu0
    %v4840 = vpop.f32.mrb[0].mxu0
    %4841 = vdwg.mxu0
    %4842 = vmatprep.subr.bf16.mxu0 %v4024
    %4843 = vmatpush1.bf16.msra.mxu0 %v4023
    %4844 = vmatprep.subr.bf16.mxu0 %v4040
    %4845 = vmatpush1.bf16.msra.mxu0 %v4039
    %4846 = vmatprep.subr.bf16.mxu0 %v4056
    %4847 = vmatpush1.bf16.msra.mxu0 %v4055
    %4848 = vmatprep.subr.bf16.mxu0 %v4072
    %4849 = vmatpush1.bf16.msra.mxu0 %v4071
    %4850 = vmatprep.subr.bf16.mxu0 %v4088
    %4851 = vmatpush1.bf16.msra.mxu0 %v4087
    %4852 = vmatprep.subr.bf16.mxu0 %v4104
    %4853 = vmatpush1.bf16.msra.mxu0 %v4103
    %4854 = vmatprep.subr.bf16.mxu0 %v4120
    %4855 = vmatpush1.bf16.msra.mxu0 %v4119
    %4856 = vmatprep.subr.bf16.mxu0 %v4136
    %4857 = vmatpush1.bf16.msra.mxu0 %v4135
    %4858 = vmatprep.subr.bf16.mxu0 %v4152
    %4859 = vmatpush1.bf16.msra.mxu0 %v4151
    %4860 = vmatprep.subr.bf16.mxu0 %v4168
    %4861 = vmatpush1.bf16.msra.mxu0 %v4167
    %4862 = vmatprep.subr.bf16.mxu0 %v4184
    %4863 = vmatpush1.bf16.msra.mxu0 %v4183
    %4864 = vmatprep.subr.bf16.mxu0 %v4200
    %4865 = vmatpush1.bf16.msra.mxu0 %v4199
    %4866 = vmatprep.subr.bf16.mxu0 %v4216
    %4867 = vmatpush1.bf16.msra.mxu0 %v4215
    %4868 = vmatprep.subr.bf16.mxu0 %v4232
    %4869 = vmatpush1.bf16.msra.mxu0 %v4231
    %4870 = vmatprep.subr.bf16.mxu0 %v4248
    %4871 = vmatpush1.bf16.msra.mxu0 %v4247
    %4872 = vmatprep.subr.bf16.mxu0 %v4264
    %4873 = vmatpush1.bf16.msra.mxu0 %v4263
    %4874 = vmatprep.mubr.bf16.mxu0 %v1630
    %4875 = vmatmul.mubr.bf16.gmra.mrb[0].mxu0 %v1629
    %v4876 = vpop.f32.mrb[0].mxu0
    %v4877 = vadd.f32 %v4826, %v4876
    %v4878 = vpop.f32.mrb[0].mxu0
    %v4879 = vadd.f32 %v4828, %v4878
    %v4880 = vpop.f32.mrb[0].mxu0
    %v4881 = vadd.f32 %v4830, %v4880
    %v4882 = vpop.f32.mrb[0].mxu0
    %v4883 = vadd.f32 %v4832, %v4882
    %4884 = vmatprep.mubr.bf16.mxu0 %v1634
    %4885 = vmatmul.mubr.bf16.gmra.mrb[0].mxu0 %v1633
    %v4886 = vpop.f32.mrb[0].mxu0
    %v4887 = vadd.f32 %v4836, %v4886
    %v4888 = vpop.f32.mrb[0].mxu0
    %v4889 = vadd.f32 %v4838, %v4888
    %v4890 = vpop.f32.mrb[0].mxu0
    %v4891 = vpop.f32.mrb[0].mxu0
    %4892 = vdwg.mxu0
    %4893 = vmatprep.subr.bf16.mxu0 %v3770
    %4894 = vmatpush1.bf16.msra.mxu0 %v3769
    %4895 = vmatprep.subr.bf16.mxu0 %v3786
    %4896 = vmatpush1.bf16.msra.mxu0 %v3785
    %4897 = vmatprep.subr.bf16.mxu0 %v3802
    %4898 = vmatpush1.bf16.msra.mxu0 %v3801
    %4899 = vmatprep.subr.bf16.mxu0 %v3818
    %4900 = vmatpush1.bf16.msra.mxu0 %v3817
    %4901 = vmatprep.subr.bf16.mxu0 %v3834
    %4902 = vmatpush1.bf16.msra.mxu0 %v3833
    %4903 = vmatprep.subr.bf16.mxu0 %v3850
    %4904 = vmatpush1.bf16.msra.mxu0 %v3849
    %4905 = vmatprep.subr.bf16.mxu0 %v3866
    %4906 = vmatpush1.bf16.msra.mxu0 %v3865
    %4907 = vmatprep.subr.bf16.mxu0 %v3882
    %4908 = vmatpush1.bf16.msra.mxu0 %v3881
    %4909 = vmatprep.subr.bf16.mxu0 %v3898
    %4910 = vmatpush1.bf16.msra.mxu0 %v3897
    %4911 = vmatprep.subr.bf16.mxu0 %v3914
    %4912 = vmatpush1.bf16.msra.mxu0 %v3913
    %4913 = vmatprep.subr.bf16.mxu0 %v3930
    %4914 = vmatpush1.bf16.msra.mxu0 %v3929
    %4915 = vmatprep.subr.bf16.mxu0 %v3946
    %4916 = vmatpush1.bf16.msra.mxu0 %v3945
    %4917 = vmatprep.subr.bf16.mxu0 %v3962
    %4918 = vmatpush1.bf16.msra.mxu0 %v3961
    %4919 = vmatprep.subr.bf16.mxu0 %v3978
    %4920 = vmatpush1.bf16.msra.mxu0 %v3977
    %4921 = vmatprep.subr.bf16.mxu0 %v3994
    %4922 = vmatpush1.bf16.msra.mxu0 %v3993
    %4923 = vmatprep.subr.bf16.mxu0 %v4010
    %4924 = vmatpush1.bf16.msra.mxu0 %v4009
    %4925 = vmatprep.mubr.bf16.mxu0 %v1628
    %4926 = vmatmul.mubr.bf16.gmra.mrb[0].mxu0 %v1627
    %v4927 = vpop.f32.mrb[0].mxu0
    %v4928 = vadd.f32 %v2162, %v4927
    %v4929 = vpop.f32.mrb[0].mxu0
    %v4930 = vadd.f32 %v2166, %v4929
    %v4931 = vpop.f32.mrb[0].mxu0
    %v4932 = vadd.f32 %v2162, %v4931
    %v4933 = vpop.f32.mrb[0].mxu0
    %v4934 = vadd.f32 %v2166, %v4933
    %4935 = vmatprep.mubr.bf16.mxu0 %v1632
    %4936 = vmatmul.mubr.bf16.gmra.mrb[0].mxu0 %v1631
    %v4937 = vpop.f32.mrb[0].mxu0
    %v4938 = vadd.f32 %v2162, %v4937
    %v4939 = vpop.f32.mrb[0].mxu0
    %v4940 = vadd.f32 %v2166, %v4939
    %v4941 = vpop.f32.mrb[0].mxu0
    %v4942 = vpop.f32.mrb[0].mxu0
    %4943 = vdwg.mxu0
    %4944 = vmatprep.subr.bf16.mxu0 %v4026
    %4945 = vmatpush1.bf16.msra.mxu0 %v4025
    %4946 = vmatprep.subr.bf16.mxu0 %v4042
    %4947 = vmatpush1.bf16.msra.mxu0 %v4041
    %4948 = vmatprep.subr.bf16.mxu0 %v4058
    %4949 = vmatpush1.bf16.msra.mxu0 %v4057
    %4950 = vmatprep.subr.bf16.mxu0 %v4074
    %4951 = vmatpush1.bf16.msra.mxu0 %v4073
    %4952 = vmatprep.subr.bf16.mxu0 %v4090
    %4953 = vmatpush1.bf16.msra.mxu0 %v4089
    %4954 = vmatprep.subr.bf16.mxu0 %v4106
    %4955 = vmatpush1.bf16.msra.mxu0 %v4105
    %4956 = vmatprep.subr.bf16.mxu0 %v4122
    %4957 = vmatpush1.bf16.msra.mxu0 %v4121
    %4958 = vmatprep.subr.bf16.mxu0 %v4138
    %4959 = vmatpush1.bf16.msra.mxu0 %v4137
    %4960 = vmatprep.subr.bf16.mxu0 %v4154
    %4961 = vmatpush1.bf16.msra.mxu0 %v4153
    %4962 = vmatprep.subr.bf16.mxu0 %v4170
    %4963 = vmatpush1.bf16.msra.mxu0 %v4169
    %4964 = vmatprep.subr.bf16.mxu0 %v4186
    %4965 = vmatpush1.bf16.msra.mxu0 %v4185
    %4966 = vmatprep.subr.bf16.mxu0 %v4202
    %4967 = vmatpush1.bf16.msra.mxu0 %v4201
    %4968 = vmatprep.subr.bf16.mxu0 %v4218
    %4969 = vmatpush1.bf16.msra.mxu0 %v4217
    %4970 = vmatprep.subr.bf16.mxu0 %v4234
    %4971 = vmatpush1.bf16.msra.mxu0 %v4233
    %4972 = vmatprep.subr.bf16.mxu0 %v4250
    %4973 = vmatpush1.bf16.msra.mxu0 %v4249
    %4974 = vmatprep.subr.bf16.mxu0 %v4266
    %4975 = vmatpush1.bf16.msra.mxu0 %v4265
    %4976 = vmatprep.mubr.bf16.mxu0 %v1630
    %4977 = vmatmul.mubr.bf16.gmra.mrb[0].mxu0 %v1629
    %v4978 = vpop.f32.mrb[0].mxu0
    %v4979 = vadd.f32 %v4928, %v4978
    %v4980 = vpop.f32.mrb[0].mxu0
    %v4981 = vadd.f32 %v4930, %v4980
    %v4982 = vpop.f32.mrb[0].mxu0
    %v4983 = vadd.f32 %v4932, %v4982
    %v4984 = vpop.f32.mrb[0].mxu0
    %v4985 = vadd.f32 %v4934, %v4984
    %4986 = vmatprep.mubr.bf16.mxu0 %v1634
    %4987 = vmatmul.mubr.bf16.gmra.mrb[0].mxu0 %v1633
    %v4988 = vpop.f32.mrb[0].mxu0
    %v4989 = vadd.f32 %v4938, %v4988
    %v4990 = vpop.f32.mrb[0].mxu0
    %v4991 = vadd.f32 %v4940, %v4990
    %v4992 = vpop.f32.mrb[0].mxu0
    %v4993 = vpop.f32.mrb[0].mxu0
    %4994 = vdwg.mxu0
    %4995 = vmatprep.subr.bf16.mxu0 %v3772
    %4996 = vmatpush1.bf16.msra.mxu0 %v3771
    %4997 = vmatprep.subr.bf16.mxu0 %v3788
    %4998 = vmatpush1.bf16.msra.mxu0 %v3787
    %4999 = vmatprep.subr.bf16.mxu0 %v3804
    %5000 = vmatpush1.bf16.msra.mxu0 %v3803
    %5001 = vmatprep.subr.bf16.mxu0 %v3820
    %5002 = vmatpush1.bf16.msra.mxu0 %v3819
    %5003 = vmatprep.subr.bf16.mxu0 %v3836
    %5004 = vmatpush1.bf16.msra.mxu0 %v3835
    %5005 = vmatprep.subr.bf16.mxu0 %v3852
    %5006 = vmatpush1.bf16.msra.mxu0 %v3851
    %5007 = vmatprep.subr.bf16.mxu0 %v3868
    %5008 = vmatpush1.bf16.msra.mxu0 %v3867
    %5009 = vmatprep.subr.bf16.mxu0 %v3884
    %5010 = vmatpush1.bf16.msra.mxu0 %v3883
    %5011 = vmatprep.subr.bf16.mxu0 %v3900
    %5012 = vmatpush1.bf16.msra.mxu0 %v3899
    %5013 = vmatprep.subr.bf16.mxu0 %v3916
    %5014 = vmatpush1.bf16.msra.mxu0 %v3915
    %5015 = vmatprep.subr.bf16.mxu0 %v3932
    %5016 = vmatpush1.bf16.msra.mxu0 %v3931
    %5017 = vmatprep.subr.bf16.mxu0 %v3948
    %5018 = vmatpush1.bf16.msra.mxu0 %v3947
    %5019 = vmatprep.subr.bf16.mxu0 %v3964
    %5020 = vmatpush1.bf16.msra.mxu0 %v3963
    %5021 = vmatprep.subr.bf16.mxu0 %v3980
    %5022 = vmatpush1.bf16.msra.mxu0 %v3979
    %5023 = vmatprep.subr.bf16.mxu0 %v3996
    %5024 = vmatpush1.bf16.msra.mxu0 %v3995
    %5025 = vmatprep.subr.bf16.mxu0 %v4012
    %5026 = vmatpush1.bf16.msra.mxu0 %v4011
    %5027 = vmatprep.mubr.bf16.mxu0 %v1628
    %5028 = vmatmul.mubr.bf16.gmra.mrb[0].mxu0 %v1627
    %v5029 = vpop.f32.mrb[0].mxu0
    %v5030 = vadd.f32 %v2170, %v5029
    %v5031 = vpop.f32.mrb[0].mxu0
    %v5032 = vadd.f32 %v2174, %v5031
    %v5033 = vpop.f32.mrb[0].mxu0
    %v5034 = vadd.f32 %v2170, %v5033
    %v5035 = vpop.f32.mrb[0].mxu0
    %v5036 = vadd.f32 %v2174, %v5035
    %5037 = vmatprep.mubr.bf16.mxu0 %v1632
    %5038 = vmatmul.mubr.bf16.gmra.mrb[0].mxu0 %v1631
    %v5039 = vpop.f32.mrb[0].mxu0
    %v5040 = vadd.f32 %v2170, %v5039
    %v5041 = vpop.f32.mrb[0].mxu0
    %v5042 = vadd.f32 %v2174, %v5041
    %v5043 = vpop.f32.mrb[0].mxu0
    %v5044 = vpop.f32.mrb[0].mxu0
    %5045 = vdwg.mxu0
    %5046 = vmatprep.subr.bf16.mxu0 %v4028
    %5047 = vmatpush1.bf16.msra.mxu0 %v4027
    %5048 = vmatprep.subr.bf16.mxu0 %v4044
    %5049 = vmatpush1.bf16.msra.mxu0 %v4043
    %5050 = vmatprep.subr.bf16.mxu0 %v4060
    %5051 = vmatpush1.bf16.msra.mxu0 %v4059
    %5052 = vmatprep.subr.bf16.mxu0 %v4076
    %5053 = vmatpush1.bf16.msra.mxu0 %v4075
    %5054 = vmatprep.subr.bf16.mxu0 %v4092
    %5055 = vmatpush1.bf16.msra.mxu0 %v4091
    %5056 = vmatprep.subr.bf16.mxu0 %v4108
    %5057 = vmatpush1.bf16.msra.mxu0 %v4107
    %5058 = vmatprep.subr.bf16.mxu0 %v4124
    %5059 = vmatpush1.bf16.msra.mxu0 %v4123
    %5060 = vmatprep.subr.bf16.mxu0 %v4140
    %5061 = vmatpush1.bf16.msra.mxu0 %v4139
    %5062 = vmatprep.subr.bf16.mxu0 %v4156
    %5063 = vmatpush1.bf16.msra.mxu0 %v4155
    %5064 = vmatprep.subr.bf16.mxu0 %v4172
    %5065 = vmatpush1.bf16.msra.mxu0 %v4171
    %5066 = vmatprep.subr.bf16.mxu0 %v4188
    %5067 = vmatpush1.bf16.msra.mxu0 %v4187
    %5068 = vmatprep.subr.bf16.mxu0 %v4204
    %5069 = vmatpush1.bf16.msra.mxu0 %v4203
    %5070 = vmatprep.subr.bf16.mxu0 %v4220
    %5071 = vmatpush1.bf16.msra.mxu0 %v4219
    %5072 = vmatprep.subr.bf16.mxu0 %v4236
    %5073 = vmatpush1.bf16.msra.mxu0 %v4235
    %5074 = vmatprep.subr.bf16.mxu0 %v4252
    %5075 = vmatpush1.bf16.msra.mxu0 %v4251
    %5076 = vmatprep.subr.bf16.mxu0 %v4268
    %5077 = vmatpush1.bf16.msra.mxu0 %v4267
    %5078 = vmatprep.mubr.bf16.mxu0 %v1630
    %5079 = vmatmul.mubr.bf16.gmra.mrb[0].mxu0 %v1629
    %v5080 = vpop.f32.mrb[0].mxu0
    %v5081 = vadd.f32 %v5030, %v5080
    %v5082 = vpop.f32.mrb[0].mxu0
    %v5083 = vadd.f32 %v5032, %v5082
    %v5084 = vpop.f32.mrb[0].mxu0
    %v5085 = vadd.f32 %v5034, %v5084
    %v5086 = vpop.f32.mrb[0].mxu0
    %v5087 = vadd.f32 %v5036, %v5086
    %5088 = vmatprep.mubr.bf16.mxu0 %v1634
    %5089 = vmatmul.mubr.bf16.gmra.mrb[0].mxu0 %v1633
    %v5090 = vpop.f32.mrb[0].mxu0
    %v5091 = vadd.f32 %v5040, %v5090
    %v5092 = vpop.f32.mrb[0].mxu0
    %v5093 = vadd.f32 %v5042, %v5092
    %v5094 = vpop.f32.mrb[0].mxu0
    %v5095 = vpop.f32.mrb[0].mxu0
    %5096 = vdwg.mxu0
    %5097 = vmatprep.subr.bf16.mxu0 %v3774
    %5098 = vmatpush1.bf16.msra.mxu0 %v3773
    %5099 = vmatprep.subr.bf16.mxu0 %v3790
    %5100 = vmatpush1.bf16.msra.mxu0 %v3789
    %5101 = vmatprep.subr.bf16.mxu0 %v3806
    %5102 = vmatpush1.bf16.msra.mxu0 %v3805
    %5103 = vmatprep.subr.bf16.mxu0 %v3822
    %5104 = vmatpush1.bf16.msra.mxu0 %v3821
    %5105 = vmatprep.subr.bf16.mxu0 %v3838
    %5106 = vmatpush1.bf16.msra.mxu0 %v3837
    %5107 = vmatprep.subr.bf16.mxu0 %v3854
    %5108 = vmatpush1.bf16.msra.mxu0 %v3853
    %5109 = vmatprep.subr.bf16.mxu0 %v3870
    %5110 = vmatpush1.bf16.msra.mxu0 %v3869
    %5111 = vmatprep.subr.bf16.mxu0 %v3886
    %5112 = vmatpush1.bf16.msra.mxu0 %v3885
    %5113 = vmatprep.subr.bf16.mxu0 %v3902
    %5114 = vmatpush1.bf16.msra.mxu0 %v3901
    %5115 = vmatprep.subr.bf16.mxu0 %v3918
    %5116 = vmatpush1.bf16.msra.mxu0 %v3917
    %5117 = vmatprep.subr.bf16.mxu0 %v3934
    %5118 = vmatpush1.bf16.msra.mxu0 %v3933
    %5119 = vmatprep.subr.bf16.mxu0 %v3950
    %5120 = vmatpush1.bf16.msra.mxu0 %v3949
    %5121 = vmatprep.subr.bf16.mxu0 %v3966
    %5122 = vmatpush1.bf16.msra.mxu0 %v3965
    %5123 = vmatprep.subr.bf16.mxu0 %v3982
    %5124 = vmatpush1.bf16.msra.mxu0 %v3981
    %5125 = vmatprep.subr.bf16.mxu0 %v3998
    %5126 = vmatpush1.bf16.msra.mxu0 %v3997
    %5127 = vmatprep.subr.bf16.mxu0 %v4014
    %5128 = vmatpush1.bf16.msra.mxu0 %v4013
    %5129 = vmatprep.mubr.bf16.mxu0 %v1628
    %5130 = vmatmul.mubr.bf16.gmra.mrb[0].mxu0 %v1627
    %v5131 = vpop.f32.mrb[0].mxu0
    %v5132 = vadd.f32 %v2178, %v5131
    %v5133 = vpop.f32.mrb[0].mxu0
    %v5134 = vadd.f32 %v2182, %v5133
    %v5135 = vpop.f32.mrb[0].mxu0
    %v5136 = vadd.f32 %v2178, %v5135
    %v5137 = vpop.f32.mrb[0].mxu0
    %v5138 = vadd.f32 %v2182, %v5137
    %5139 = vmatprep.mubr.bf16.mxu0 %v1632
    %5140 = vmatmul.mubr.bf16.gmra.mrb[0].mxu0 %v1631
    %v5141 = vpop.f32.mrb[0].mxu0
    %v5142 = vadd.f32 %v2178, %v5141
    %v5143 = vpop.f32.mrb[0].mxu0
    %v5144 = vadd.f32 %v2182, %v5143
    %v5145 = vpop.f32.mrb[0].mxu0
    %v5146 = vpop.f32.mrb[0].mxu0
    %5147 = vdwg.mxu0
    %5148 = vmatprep.subr.bf16.mxu0 %v4030
    %5149 = vmatpush1.bf16.msra.mxu0 %v4029
    %5150 = vmatprep.subr.bf16.mxu0 %v4046
    %5151 = vmatpush1.bf16.msra.mxu0 %v4045
    %5152 = vmatprep.subr.bf16.mxu0 %v4062
    %5153 = vmatpush1.bf16.msra.mxu0 %v4061
    %5154 = vmatprep.subr.bf16.mxu0 %v4078
    %5155 = vmatpush1.bf16.msra.mxu0 %v4077
    %5156 = vmatprep.subr.bf16.mxu0 %v4094
    %5157 = vmatpush1.bf16.msra.mxu0 %v4093
    %5158 = vmatprep.subr.bf16.mxu0 %v4110
    %5159 = vmatpush1.bf16.msra.mxu0 %v4109
    %5160 = vmatprep.subr.bf16.mxu0 %v4126
    %5161 = vmatpush1.bf16.msra.mxu0 %v4125
    %5162 = vmatprep.subr.bf16.mxu0 %v4142
    %5163 = vmatpush1.bf16.msra.mxu0 %v4141
    %5164 = vmatprep.subr.bf16.mxu0 %v4158
    %5165 = vmatpush1.bf16.msra.mxu0 %v4157
    %5166 = vmatprep.subr.bf16.mxu0 %v4174
    %5167 = vmatpush1.bf16.msra.mxu0 %v4173
    %5168 = vmatprep.subr.bf16.mxu0 %v4190
    %5169 = vmatpush1.bf16.msra.mxu0 %v4189
    %5170 = vmatprep.subr.bf16.mxu0 %v4206
    %5171 = vmatpush1.bf16.msra.mxu0 %v4205
    %5172 = vmatprep.subr.bf16.mxu0 %v4222
    %5173 = vmatpush1.bf16.msra.mxu0 %v4221
    %5174 = vmatprep.subr.bf16.mxu0 %v4238
    %5175 = vmatpush1.bf16.msra.mxu0 %v4237
    %5176 = vmatprep.subr.bf16.mxu0 %v4254
    %5177 = vmatpush1.bf16.msra.mxu0 %v4253
    %5178 = vmatprep.subr.bf16.mxu0 %v4270
    %5179 = vmatpush1.bf16.msra.mxu0 %v4269
    %5180 = vmatprep.mubr.bf16.mxu0 %v1630
    %5181 = vmatmul.mubr.bf16.gmra.mrb[0].mxu0 %v1629
    %v5182 = vpop.f32.mrb[0].mxu0
    %v5183 = vadd.f32 %v5132, %v5182
    %v5184 = vpop.f32.mrb[0].mxu0
    %v5185 = vadd.f32 %v5134, %v5184
    %v5186 = vpop.f32.mrb[0].mxu0
    %v5187 = vadd.f32 %v5136, %v5186
    %v5188 = vpop.f32.mrb[0].mxu0
    %v5189 = vadd.f32 %v5138, %v5188
    %5190 = vmatprep.mubr.bf16.mxu0 %v1634
    %5191 = vmatmul.mubr.bf16.gmra.mrb[0].mxu0 %v1633
    %v5192 = vpop.f32.mrb[0].mxu0
    %v5193 = vadd.f32 %v5142, %v5192
    %v5194 = vpop.f32.mrb[0].mxu0
    %v5195 = vadd.f32 %v5144, %v5194
    %v5196 = vpop.f32.mrb[0].mxu0
    %v5197 = vpop.f32.mrb[0].mxu0
    %5198 = vdwg.mxu0
    %5199 = vmatprep.subr.bf16.mxu0 %v3776
    %5200 = vmatpush1.bf16.msra.mxu0 %v3775
    %5201 = vmatprep.subr.bf16.mxu0 %v3792
    %5202 = vmatpush1.bf16.msra.mxu0 %v3791
    %5203 = vmatprep.subr.bf16.mxu0 %v3808
    %5204 = vmatpush1.bf16.msra.mxu0 %v3807
    %5205 = vmatprep.subr.bf16.mxu0 %v3824
    %5206 = vmatpush1.bf16.msra.mxu0 %v3823
    %5207 = vmatprep.subr.bf16.mxu0 %v3840
    %5208 = vmatpush1.bf16.msra.mxu0 %v3839
    %5209 = vmatprep.subr.bf16.mxu0 %v3856
    %5210 = vmatpush1.bf16.msra.mxu0 %v3855
    %5211 = vmatprep.subr.bf16.mxu0 %v3872
    %5212 = vmatpush1.bf16.msra.mxu0 %v3871
    %5213 = vmatprep.subr.bf16.mxu0 %v3888
    %5214 = vmatpush1.bf16.msra.mxu0 %v3887
    %5215 = vmatprep.subr.bf16.mxu0 %v3904
    %5216 = vmatpush1.bf16.msra.mxu0 %v3903
    %5217 = vmatprep.subr.bf16.mxu0 %v3920
    %5218 = vmatpush1.bf16.msra.mxu0 %v3919
    %5219 = vmatprep.subr.bf16.mxu0 %v3936
    %5220 = vmatpush1.bf16.msra.mxu0 %v3935
    %5221 = vmatprep.subr.bf16.mxu0 %v3952
    %5222 = vmatpush1.bf16.msra.mxu0 %v3951
    %5223 = vmatprep.subr.bf16.mxu0 %v3968
    %5224 = vmatpush1.bf16.msra.mxu0 %v3967
    %5225 = vmatprep.subr.bf16.mxu0 %v3984
    %5226 = vmatpush1.bf16.msra.mxu0 %v3983
    %5227 = vmatprep.subr.bf16.mxu0 %v4000
    %5228 = vmatpush1.bf16.msra.mxu0 %v3999
    %5229 = vmatprep.subr.bf16.mxu0 %v4016
    %5230 = vmatpush1.bf16.msra.mxu0 %v4015
    %5231 = vmatprep.mubr.bf16.mxu0 %v1628
    %5232 = vmatmul.mubr.bf16.gmra.mrb[0].mxu0 %v1627
    %v5233 = vpop.f32.mrb[0].mxu0
    %v5234 = vadd.f32 %v2186, %v5233
    %v5235 = vpop.f32.mrb[0].mxu0
    %v5236 = vadd.f32 %v2190, %v5235
    %v5237 = vpop.f32.mrb[0].mxu0
    %v5238 = vadd.f32 %v2186, %v5237
    %v5239 = vpop.f32.mrb[0].mxu0
    %v5240 = vadd.f32 %v2190, %v5239
    %5241 = vmatprep.mubr.bf16.mxu0 %v1632
    %5242 = vmatmul.mubr.bf16.gmra.mrb[0].mxu0 %v1631
    %v5243 = vpop.f32.mrb[0].mxu0
    %v5244 = vadd.f32 %v2186, %v5243
    %v5245 = vpop.f32.mrb[0].mxu0
    %v5246 = vadd.f32 %v2190, %v5245
    %v5247 = vpop.f32.mrb[0].mxu0
    %v5248 = vpop.f32.mrb[0].mxu0
    %5249 = vdwg.mxu0
    %5250 = vmatprep.subr.bf16.mxu0 %v4032
    %5251 = vmatpush1.bf16.msra.mxu0 %v4031
    %5252 = vmatprep.subr.bf16.mxu0 %v4048
    %5253 = vmatpush1.bf16.msra.mxu0 %v4047
    %5254 = vmatprep.subr.bf16.mxu0 %v4064
    %5255 = vmatpush1.bf16.msra.mxu0 %v4063
    %5256 = vmatprep.subr.bf16.mxu0 %v4080
    %5257 = vmatpush1.bf16.msra.mxu0 %v4079
    %5258 = vmatprep.subr.bf16.mxu0 %v4096
    %5259 = vmatpush1.bf16.msra.mxu0 %v4095
    %5260 = vmatprep.subr.bf16.mxu0 %v4112
    %5261 = vmatpush1.bf16.msra.mxu0 %v4111
    %5262 = vmatprep.subr.bf16.mxu0 %v4128
    %5263 = vmatpush1.bf16.msra.mxu0 %v4127
    %5264 = vmatprep.subr.bf16.mxu0 %v4144
    %5265 = vmatpush1.bf16.msra.mxu0 %v4143
    %5266 = vmatprep.subr.bf16.mxu0 %v4160
    %5267 = vmatpush1.bf16.msra.mxu0 %v4159
    %5268 = vmatprep.subr.bf16.mxu0 %v4176
    %5269 = vmatpush1.bf16.msra.mxu0 %v4175
    %5270 = vmatprep.subr.bf16.mxu0 %v4192
    %5271 = vmatpush1.bf16.msra.mxu0 %v4191
    %5272 = vmatprep.subr.bf16.mxu0 %v4208
    %5273 = vmatpush1.bf16.msra.mxu0 %v4207
    %5274 = vmatprep.subr.bf16.mxu0 %v4224
    %5275 = vmatpush1.bf16.msra.mxu0 %v4223
    %5276 = vmatprep.subr.bf16.mxu0 %v4240
    %5277 = vmatpush1.bf16.msra.mxu0 %v4239
    %5278 = vmatprep.subr.bf16.mxu0 %v4256
    %5279 = vmatpush1.bf16.msra.mxu0 %v4255
    %5280 = vmatprep.subr.bf16.mxu0 %v4272
    %5281 = vmatpush1.bf16.msra.mxu0 %v4271
    %5282 = vmatprep.mubr.bf16.mxu0 %v1630
    %5283 = vmatmul.mubr.bf16.gmra.mrb[0].mxu0 %v1629
    %v5284 = vpop.f32.mrb[0].mxu0
    %v5285 = vadd.f32 %v5234, %v5284
    %v5286 = vpop.f32.mrb[0].mxu0
    %v5287 = vadd.f32 %v5236, %v5286
    %v5288 = vpop.f32.mrb[0].mxu0
    %v5289 = vadd.f32 %v5238, %v5288
    %v5290 = vpop.f32.mrb[0].mxu0
    %v5291 = vadd.f32 %v5240, %v5290
    %5292 = vmatprep.mubr.bf16.mxu0 %v1634
    %5293 = vmatmul.mubr.bf16.gmra.mrb[0].mxu0 %v1633
    %v5294 = vpop.f32.mrb[0].mxu0
    %v5295 = vadd.f32 %v5244, %v5294
    %v5296 = vpop.f32.mrb[0].mxu0
    %v5297 = vadd.f32 %v5246, %v5296
    %v5298 = vpop.f32.mrb[0].mxu0
    %v5299 = vpop.f32.mrb[0].mxu0
    %5300 = vdwg.mxu0
    %5301 = vmatprep.subr.bf16.mxu0 %v3778
    %5302 = vmatpush1.bf16.msra.mxu0 %v3777
    %5303 = vmatprep.subr.bf16.mxu0 %v3794
    %5304 = vmatpush1.bf16.msra.mxu0 %v3793
    %5305 = vmatprep.subr.bf16.mxu0 %v3810
    %5306 = vmatpush1.bf16.msra.mxu0 %v3809
    %5307 = vmatprep.subr.bf16.mxu0 %v3826
    %5308 = vmatpush1.bf16.msra.mxu0 %v3825
    %5309 = vmatprep.subr.bf16.mxu0 %v3842
    %5310 = vmatpush1.bf16.msra.mxu0 %v3841
    %5311 = vmatprep.subr.bf16.mxu0 %v3858
    %5312 = vmatpush1.bf16.msra.mxu0 %v3857
    %5313 = vmatprep.subr.bf16.mxu0 %v3874
    %5314 = vmatpush1.bf16.msra.mxu0 %v3873
    %5315 = vmatprep.subr.bf16.mxu0 %v3890
    %5316 = vmatpush1.bf16.msra.mxu0 %v3889
    %5317 = vmatprep.subr.bf16.mxu0 %v3906
    %5318 = vmatpush1.bf16.msra.mxu0 %v3905
    %5319 = vmatprep.subr.bf16.mxu0 %v3922
    %5320 = vmatpush1.bf16.msra.mxu0 %v3921
    %5321 = vmatprep.subr.bf16.mxu0 %v3938
    %5322 = vmatpush1.bf16.msra.mxu0 %v3937
    %5323 = vmatprep.subr.bf16.mxu0 %v3954
    %5324 = vmatpush1.bf16.msra.mxu0 %v3953
    %5325 = vmatprep.subr.bf16.mxu0 %v3970
    %5326 = vmatpush1.bf16.msra.mxu0 %v3969
    %5327 = vmatprep.subr.bf16.mxu0 %v3986
    %5328 = vmatpush1.bf16.msra.mxu0 %v3985
    %5329 = vmatprep.subr.bf16.mxu0 %v4002
    %5330 = vmatpush1.bf16.msra.mxu0 %v4001
    %5331 = vmatprep.subr.bf16.mxu0 %v4018
    %5332 = vmatpush1.bf16.msra.mxu0 %v4017
    %5333 = vmatprep.mubr.bf16.mxu0 %v1628
    %5334 = vmatmul.mubr.bf16.gmra.mrb[0].mxu0 %v1627
    %v5335 = vpop.f32.mrb[0].mxu0
    %v5336 = vadd.f32 %v2194, %v5335
    %v5337 = vpop.f32.mrb[0].mxu0
    %v5338 = vadd.f32 %v2198, %v5337
    %v5339 = vpop.f32.mrb[0].mxu0
    %v5340 = vadd.f32 %v2194, %v5339
    %v5341 = vpop.f32.mrb[0].mxu0
    %v5342 = vadd.f32 %v2198, %v5341
    %5343 = vmatprep.mubr.bf16.mxu0 %v1632
    %5344 = vmatmul.mubr.bf16.gmra.mrb[0].mxu0 %v1631
    %v5345 = vpop.f32.mrb[0].mxu0
    %v5346 = vadd.f32 %v2194, %v5345
    %v5347 = vpop.f32.mrb[0].mxu0
    %v5348 = vadd.f32 %v2198, %v5347
    %v5349 = vpop.f32.mrb[0].mxu0
    %v5350 = vpop.f32.mrb[0].mxu0
    %5351 = vdwg.mxu0
    %5352 = vmatprep.subr.bf16.mxu0 %v4034
    %5353 = vmatpush1.bf16.msra.mxu0 %v4033
    %5354 = vmatprep.subr.bf16.mxu0 %v4050
    %5355 = vmatpush1.bf16.msra.mxu0 %v4049
    %5356 = vmatprep.subr.bf16.mxu0 %v4066
    %5357 = vmatpush1.bf16.msra.mxu0 %v4065
    %5358 = vmatprep.subr.bf16.mxu0 %v4082
    %5359 = vmatpush1.bf16.msra.mxu0 %v4081
    %5360 = vmatprep.subr.bf16.mxu0 %v4098
    %5361 = vmatpush1.bf16.msra.mxu0 %v4097
    %5362 = vmatprep.subr.bf16.mxu0 %v4114
    %5363 = vmatpush1.bf16.msra.mxu0 %v4113
    %5364 = vmatprep.subr.bf16.mxu0 %v4130
    %5365 = vmatpush1.bf16.msra.mxu0 %v4129
    %5366 = vmatprep.subr.bf16.mxu0 %v4146
    %5367 = vmatpush1.bf16.msra.mxu0 %v4145
    %5368 = vmatprep.subr.bf16.mxu0 %v4162
    %5369 = vmatpush1.bf16.msra.mxu0 %v4161
    %5370 = vmatprep.subr.bf16.mxu0 %v4178
    %5371 = vmatpush1.bf16.msra.mxu0 %v4177
    %5372 = vmatprep.subr.bf16.mxu0 %v4194
    %5373 = vmatpush1.bf16.msra.mxu0 %v4193
    %5374 = vmatprep.subr.bf16.mxu0 %v4210
    %5375 = vmatpush1.bf16.msra.mxu0 %v4209
    %5376 = vmatprep.subr.bf16.mxu0 %v4226
    %5377 = vmatpush1.bf16.msra.mxu0 %v4225
    %5378 = vmatprep.subr.bf16.mxu0 %v4242
    %5379 = vmatpush1.bf16.msra.mxu0 %v4241
    %5380 = vmatprep.subr.bf16.mxu0 %v4258
    %5381 = vmatpush1.bf16.msra.mxu0 %v4257
    %5382 = vmatprep.subr.bf16.mxu0 %v4274
    %5383 = vmatpush1.bf16.msra.mxu0 %v4273
    %5384 = vmatprep.mubr.bf16.mxu0 %v1630
    %5385 = vmatmul.mubr.bf16.gmra.mrb[0].mxu0 %v1629
    %v5386 = vpop.f32.mrb[0].mxu0
    %v5387 = vadd.f32 %v5336, %v5386
    %v5388 = vpop.f32.mrb[0].mxu0
    %v5389 = vadd.f32 %v5338, %v5388
    %v5390 = vpop.f32.mrb[0].mxu0
    %v5391 = vadd.f32 %v5340, %v5390
    %v5392 = vpop.f32.mrb[0].mxu0
    %v5393 = vadd.f32 %v5342, %v5392
    %5394 = vmatprep.mubr.bf16.mxu0 %v1634
    %5395 = vmatmul.mubr.bf16.gmra.mrb[0].mxu0 %v1633
    %v5396 = vpop.f32.mrb[0].mxu0
    %v5397 = vadd.f32 %v5346, %v5396
    %v5398 = vpop.f32.mrb[0].mxu0
    %v5399 = vadd.f32 %v5348, %v5398
    %v5400 = vpop.f32.mrb[0].mxu0
    %v5401 = vpop.f32.mrb[0].mxu0
    %5402 = vdwg.mxu0
    %5403 = vmatprep.subr.bf16.mxu0 %v3780
    %5404 = vmatpush1.bf16.msra.mxu0 %v3779
    %5405 = vmatprep.subr.bf16.mxu0 %v3796
    %5406 = vmatpush1.bf16.msra.mxu0 %v3795
    %5407 = vmatprep.subr.bf16.mxu0 %v3812
    %5408 = vmatpush1.bf16.msra.mxu0 %v3811
    %5409 = vmatprep.subr.bf16.mxu0 %v3828
    %5410 = vmatpush1.bf16.msra.mxu0 %v3827
    %5411 = vmatprep.subr.bf16.mxu0 %v3844
    %5412 = vmatpush1.bf16.msra.mxu0 %v3843
    %5413 = vmatprep.subr.bf16.mxu0 %v3860
    %5414 = vmatpush1.bf16.msra.mxu0 %v3859
    %5415 = vmatprep.subr.bf16.mxu0 %v3876
    %5416 = vmatpush1.bf16.msra.mxu0 %v3875
    %5417 = vmatprep.subr.bf16.mxu0 %v3892
    %5418 = vmatpush1.bf16.msra.mxu0 %v3891
    %5419 = vmatprep.subr.bf16.mxu0 %v3908
    %5420 = vmatpush1.bf16.msra.mxu0 %v3907
    %5421 = vmatprep.subr.bf16.mxu0 %v3924
    %5422 = vmatpush1.bf16.msra.mxu0 %v3923
    %5423 = vmatprep.subr.bf16.mxu0 %v3940
    %5424 = vmatpush1.bf16.msra.mxu0 %v3939
    %5425 = vmatprep.subr.bf16.mxu0 %v3956
    %5426 = vmatpush1.bf16.msra.mxu0 %v3955
    %5427 = vmatprep.subr.bf16.mxu0 %v3972
    %5428 = vmatpush1.bf16.msra.mxu0 %v3971
    %5429 = vmatprep.subr.bf16.mxu0 %v3988
    %5430 = vmatpush1.bf16.msra.mxu0 %v3987
    %5431 = vmatprep.subr.bf16.mxu0 %v4004
    %5432 = vmatpush1.bf16.msra.mxu0 %v4003
    %5433 = vmatprep.subr.bf16.mxu0 %v4020
    %5434 = vmatpush1.bf16.msra.mxu0 %v4019
    %5435 = vmatprep.mubr.bf16.mxu0 %v1628
    %5436 = vmatmul.mubr.bf16.gmra.mrb[0].mxu0 %v1627
    %v5437 = vpop.f32.mrb[0].mxu0
    %v5438 = vadd.f32 %v2202, %v5437
    %v5439 = vpop.f32.mrb[0].mxu0
    %v5440 = vadd.f32 %v2206, %v5439
    %v5441 = vpop.f32.mrb[0].mxu0
    %v5442 = vadd.f32 %v2202, %v5441
    %v5443 = vpop.f32.mrb[0].mxu0
    %v5444 = vadd.f32 %v2206, %v5443
    %5445 = vmatprep.mubr.bf16.mxu0 %v1632
    %5446 = vmatmul.mubr.bf16.gmra.mrb[0].mxu0 %v1631
    %v5447 = vpop.f32.mrb[0].mxu0
    %v5448 = vadd.f32 %v2202, %v5447
    %v5449 = vpop.f32.mrb[0].mxu0
    %v5450 = vadd.f32 %v2206, %v5449
    %v5451 = vpop.f32.mrb[0].mxu0
    %v5452 = vpop.f32.mrb[0].mxu0
    %5453 = vdwg.mxu0
    %5454 = vmatprep.subr.bf16.mxu0 %v4036
    %5455 = vmatpush1.bf16.msra.mxu0 %v4035
    %5456 = vmatprep.subr.bf16.mxu0 %v4052
    %5457 = vmatpush1.bf16.msra.mxu0 %v4051
    %5458 = vmatprep.subr.bf16.mxu0 %v4068
    %5459 = vmatpush1.bf16.msra.mxu0 %v4067
    %5460 = vmatprep.subr.bf16.mxu0 %v4084
    %5461 = vmatpush1.bf16.msra.mxu0 %v4083
    %5462 = vmatprep.subr.bf16.mxu0 %v4100
    %5463 = vmatpush1.bf16.msra.mxu0 %v4099
    %5464 = vmatprep.subr.bf16.mxu0 %v4116
    %5465 = vmatpush1.bf16.msra.mxu0 %v4115
    %5466 = vmatprep.subr.bf16.mxu0 %v4132
    %5467 = vmatpush1.bf16.msra.mxu0 %v4131
    %5468 = vmatprep.subr.bf16.mxu0 %v4148
    %5469 = vmatpush1.bf16.msra.mxu0 %v4147
    %5470 = vmatprep.subr.bf16.mxu0 %v4164
    %5471 = vmatpush1.bf16.msra.mxu0 %v4163
    %5472 = vmatprep.subr.bf16.mxu0 %v4180
    %5473 = vmatpush1.bf16.msra.mxu0 %v4179
    %5474 = vmatprep.subr.bf16.mxu0 %v4196
    %5475 = vmatpush1.bf16.msra.mxu0 %v4195
    %5476 = vmatprep.subr.bf16.mxu0 %v4212
    %5477 = vmatpush1.bf16.msra.mxu0 %v4211
    %5478 = vmatprep.subr.bf16.mxu0 %v4228
    %5479 = vmatpush1.bf16.msra.mxu0 %v4227
    %5480 = vmatprep.subr.bf16.mxu0 %v4244
    %5481 = vmatpush1.bf16.msra.mxu0 %v4243
    %5482 = vmatprep.subr.bf16.mxu0 %v4260
    %5483 = vmatpush1.bf16.msra.mxu0 %v4259
    %5484 = vmatprep.subr.bf16.mxu0 %v4276
    %5485 = vmatpush1.bf16.msra.mxu0 %v4275
    %5486 = vmatprep.mubr.bf16.mxu0 %v1630
    %5487 = vmatmul.mubr.bf16.gmra.mrb[0].mxu0 %v1629
    %v5488 = vpop.f32.mrb[0].mxu0
    %v5489 = vadd.f32 %v5438, %v5488
    %v5490 = vpop.f32.mrb[0].mxu0
    %v5491 = vadd.f32 %v5440, %v5490
    %v5492 = vpop.f32.mrb[0].mxu0
    %v5493 = vadd.f32 %v5442, %v5492
    %v5494 = vpop.f32.mrb[0].mxu0
    %v5495 = vadd.f32 %v5444, %v5494
    %5496 = vmatprep.mubr.bf16.mxu0 %v1634
    %5497 = vmatmul.mubr.bf16.gmra.mrb[0].mxu0 %v1633
    %v5498 = vpop.f32.mrb[0].mxu0
    %v5499 = vadd.f32 %v5448, %v5498
    %v5500 = vpop.f32.mrb[0].mxu0
    %v5501 = vadd.f32 %v5450, %v5500
    %v5502 = vpop.f32.mrb[0].mxu0
    %v5503 = vpop.f32.mrb[0].mxu0
    %5504 = vdwg.mxu0
    %5505 = vmatprep.subr.bf16.mxu0 %v3782
    %5506 = vmatpush1.bf16.msra.mxu0 %v3781
    %5507 = vmatprep.subr.bf16.mxu0 %v3798
    %5508 = vmatpush1.bf16.msra.mxu0 %v3797
    %5509 = vmatprep.subr.bf16.mxu0 %v3814
    %5510 = vmatpush1.bf16.msra.mxu0 %v3813
    %5511 = vmatprep.subr.bf16.mxu0 %v3830
    %5512 = vmatpush1.bf16.msra.mxu0 %v3829
    %5513 = vmatprep.subr.bf16.mxu0 %v3846
    %5514 = vmatpush1.bf16.msra.mxu0 %v3845
    %5515 = vmatprep.subr.bf16.mxu0 %v3862
    %5516 = vmatpush1.bf16.msra.mxu0 %v3861
    %5517 = vmatprep.subr.bf16.mxu0 %v3878
    %5518 = vmatpush1.bf16.msra.mxu0 %v3877
    %5519 = vmatprep.subr.bf16.mxu0 %v3894
    %5520 = vmatpush1.bf16.msra.mxu0 %v3893
    %5521 = vmatprep.subr.bf16.mxu0 %v3910
    %5522 = vmatpush1.bf16.msra.mxu0 %v3909
    %5523 = vmatprep.subr.bf16.mxu0 %v3926
    %5524 = vmatpush1.bf16.msra.mxu0 %v3925
    %5525 = vmatprep.subr.bf16.mxu0 %v3942
    %5526 = vmatpush1.bf16.msra.mxu0 %v3941
    %5527 = vmatprep.subr.bf16.mxu0 %v3958
    %5528 = vmatpush1.bf16.msra.mxu0 %v3957
    %5529 = vmatprep.subr.bf16.mxu0 %v3974
    %5530 = vmatpush1.bf16.msra.mxu0 %v3973
    %5531 = vmatprep.subr.bf16.mxu0 %v3990
    %5532 = vmatpush1.bf16.msra.mxu0 %v3989
    %5533 = vmatprep.subr.bf16.mxu0 %v4006
    %5534 = vmatpush1.bf16.msra.mxu0 %v4005
    %5535 = vmatprep.subr.bf16.mxu0 %v4022
    %5536 = vmatpush1.bf16.msra.mxu0 %v4021
    %5537 = vmatprep.mubr.bf16.mxu0 %v1628
    %5538 = vmatmul.mubr.bf16.gmra.mrb[0].mxu0 %v1627
    %v5539 = vpop.f32.mrb[0].mxu0
    %v5540 = vadd.f32 %v2210, %v5539
    %v5541 = vpop.f32.mrb[0].mxu0
    %v5542 = vadd.f32 %v2214, %v5541
    %v5543 = vpop.f32.mrb[0].mxu0
    %v5544 = vadd.f32 %v2210, %v5543
    %v5545 = vpop.f32.mrb[0].mxu0
    %v5546 = vadd.f32 %v2214, %v5545
    %5547 = vmatprep.mubr.bf16.mxu0 %v1632
    %5548 = vmatmul.mubr.bf16.gmra.mrb[0].mxu0 %v1631
    %v5549 = vpop.f32.mrb[0].mxu0
    %v5550 = vadd.f32 %v2210, %v5549
    %v5551 = vpop.f32.mrb[0].mxu0
    %v5552 = vadd.f32 %v2214, %v5551
    %v5553 = vpop.f32.mrb[0].mxu0
    %v5554 = vpop.f32.mrb[0].mxu0
    %5555 = vdwg.mxu0
    %5556 = vmatprep.subr.bf16.mxu0 %v4038
    %5557 = vmatpush1.bf16.msra.mxu0 %v4037
    %5558 = vmatprep.subr.bf16.mxu0 %v4054
    %5559 = vmatpush1.bf16.msra.mxu0 %v4053
    %5560 = vmatprep.subr.bf16.mxu0 %v4070
    %5561 = vmatpush1.bf16.msra.mxu0 %v4069
    %5562 = vmatprep.subr.bf16.mxu0 %v4086
    %5563 = vmatpush1.bf16.msra.mxu0 %v4085
    %5564 = vmatprep.subr.bf16.mxu0 %v4102
    %5565 = vmatpush1.bf16.msra.mxu0 %v4101
    %5566 = vmatprep.subr.bf16.mxu0 %v4118
    %5567 = vmatpush1.bf16.msra.mxu0 %v4117
    %5568 = vmatprep.subr.bf16.mxu0 %v4134
    %5569 = vmatpush1.bf16.msra.mxu0 %v4133
    %5570 = vmatprep.subr.bf16.mxu0 %v4150
    %5571 = vmatpush1.bf16.msra.mxu0 %v4149
    %5572 = vmatprep.subr.bf16.mxu0 %v4166
    %5573 = vmatpush1.bf16.msra.mxu0 %v4165
    %5574 = vmatprep.subr.bf16.mxu0 %v4182
    %5575 = vmatpush1.bf16.msra.mxu0 %v4181
    %5576 = vmatprep.subr.bf16.mxu0 %v4198
    %5577 = vmatpush1.bf16.msra.mxu0 %v4197
    %5578 = vmatprep.subr.bf16.mxu0 %v4214
    %5579 = vmatpush1.bf16.msra.mxu0 %v4213
    %5580 = vmatprep.subr.bf16.mxu0 %v4230
    %5581 = vmatpush1.bf16.msra.mxu0 %v4229
    %5582 = vmatprep.subr.bf16.mxu0 %v4246
    %5583 = vmatpush1.bf16.msra.mxu0 %v4245
    %5584 = vmatprep.subr.bf16.mxu0 %v4262
    %5585 = vmatpush1.bf16.msra.mxu0 %v4261
    %5586 = vmatprep.subr.bf16.mxu0 %v4278
    %5587 = vmatpush1.bf16.msra.mxu0 %v4277
    %5588 = vmatprep.mubr.bf16.mxu0 %v1630
    %5589 = vmatmul.mubr.bf16.gmra.mrb[0].mxu0 %v1629
    %v5590 = vpop.f32.mrb[0].mxu0
    %v5591 = vadd.f32 %v5540, %v5590
    %v5592 = vpop.f32.mrb[0].mxu0
    %v5593 = vadd.f32 %v5542, %v5592
    %v5594 = vpop.f32.mrb[0].mxu0
    %v5595 = vadd.f32 %v5544, %v5594
    %v5596 = vpop.f32.mrb[0].mxu0
    %v5597 = vadd.f32 %v5546, %v5596
    %5598 = vmatprep.mubr.bf16.mxu0 %v1634
    %5599 = vmatmul.mubr.bf16.gmra.mrb[0].mxu0 %v1633
    %v5600 = vpop.f32.mrb[0].mxu0
    %v5601 = vadd.f32 %v5550, %v5600
    %v5602 = vpop.f32.mrb[0].mxu0
    %v5603 = vadd.f32 %v5552, %v5602
    %v5604 = vpop.f32.mrb[0].mxu0
    %v5605 = vpop.f32.mrb[0].mxu0
    %5606 = vdwg.mxu0
    %v5607 = vmax.f32 %v4877, 0.0
    %v5608 = vmax.f32 %v4879, 0.0
    %v5609 = vmax.f32 %v4979, 0.0
    %v5610 = vmax.f32 %v4981, 0.0
    %v5611 = vmax.f32 %v5081, 0.0
    %v5612 = vmax.f32 %v5083, 0.0
    %v5613 = vmax.f32 %v5183, 0.0
    %v5614 = vmax.f32 %v5185, 0.0
    %v5615 = vmax.f32 %v5285, 0.0
    %v5616 = vmax.f32 %v5287, 0.0
    %v5617 = vmax.f32 %v5387, 0.0
    %v5618 = vmax.f32 %v5389, 0.0
    %v5619 = vmax.f32 %v5489, 0.0
    %v5620 = vmax.f32 %v5491, 0.0
    %v5621 = vmax.f32 %v5591, 0.0
    %v5622 = vmax.f32 %v5593, 0.0
    %v5623 = vmax.f32 %v4881, 0.0
    %v5624 = vmax.f32 %v4883, 0.0
    %v5625 = vmax.f32 %v4983, 0.0
    %v5626 = vmax.f32 %v4985, 0.0
    %v5627 = vmax.f32 %v5085, 0.0
    %v5628 = vmax.f32 %v5087, 0.0
    %v5629 = vmax.f32 %v5187, 0.0
    %v5630 = vmax.f32 %v5189, 0.0
    %v5631 = vmax.f32 %v5289, 0.0
    %v5632 = vmax.f32 %v5291, 0.0
    %v5633 = vmax.f32 %v5391, 0.0
    %v5634 = vmax.f32 %v5393, 0.0
    %v5635 = vmax.f32 %v5493, 0.0
    %v5636 = vmax.f32 %v5495, 0.0
    %v5637 = vmax.f32 %v5595, 0.0
    %v5638 = vmax.f32 %v5597, 0.0
    %v5639 = vmax.f32 %v4887, 0.0
    %v5640 = vmax.f32 %v4889, 0.0
    %v5641 = vmax.f32 %v4989, 0.0
    %v5642 = vmax.f32 %v4991, 0.0
    %v5643 = vmax.f32 %v5091, 0.0
    %v5644 = vmax.f32 %v5093, 0.0
    %v5645 = vmax.f32 %v5193, 0.0
    %v5646 = vmax.f32 %v5195, 0.0
    %v5647 = vmax.f32 %v5295, 0.0
    %v5648 = vmax.f32 %v5297, 0.0
    %v5649 = vmax.f32 %v5397, 0.0
    %v5650 = vmax.f32 %v5399, 0.0
    %v5651 = vmax.f32 %v5499, 0.0
    %v5652 = vmax.f32 %v5501, 0.0
    %v5653 = vmax.f32 %v5601, 0.0
    %v5654 = vmax.f32 %v5603, 0.0
    %v5655 = vpack.c.bf16 %v5623, %v5607
    %v5656 = vpack.c.bf16 %v5624, %v5608
    %v5657 = vpack.c.bf16 %v5625, %v5609
    %v5658 = vpack.c.bf16 %v5626, %v5610
    %v5659 = vpack.c.bf16 %v5627, %v5611
    %v5660 = vpack.c.bf16 %v5628, %v5612
    %v5661 = vpack.c.bf16 %v5629, %v5613
    %v5662 = vpack.c.bf16 %v5630, %v5614
    %v5663 = vpack.c.bf16 %v5639, %v5639
    %v5664 = vpack.c.bf16 %v5640, %v5640
    %v5665 = vpack.c.bf16 %v5641, %v5641
    %v5666 = vpack.c.bf16 %v5642, %v5642
    %v5667 = vpack.c.bf16 %v5643, %v5643
    %v5668 = vpack.c.bf16 %v5644, %v5644
    %v5669 = vpack.c.bf16 %v5645, %v5645
    %v5670 = vpack.c.bf16 %v5646, %v5646
    %v5671 = vld [vmem:[#allocation9] sm:$0xff]
    %v5672 = vld [vmem:[#allocation9 + $0x8] sm:$0xff]
    %v5673 = vld [vmem:[#allocation9 + $0x10] sm:$0xff]
    %v5674 = vld [vmem:[#allocation9 + $0x18] sm:$0xff]
    %v5675 = vld [vmem:[#allocation9 + $0x20] sm:$0xff]
    %v5676 = vld [vmem:[#allocation9 + $0x28] sm:$0xff]
    %v5677 = vld [vmem:[#allocation9 + $0x30] sm:$0xff]
    %v5678 = vld [vmem:[#allocation9 + $0x38] sm:$0xff]
    %v5679 = vld [vmem:[#allocation9 + $0x40] sm:$0xff]
    %v5680 = vld [vmem:[#allocation9 + $0x48] sm:$0xff]
    %v5681 = vld [vmem:[#allocation9 + $0x50] sm:$0xff]
    %v5682 = vld [vmem:[#allocation9 + $0x58] sm:$0xff]
    %v5683 = vld [vmem:[#allocation9 + $0x60] sm:$0xff]
    %v5684 = vld [vmem:[#allocation9 + $0x68] sm:$0xff]
    %v5685 = vld [vmem:[#allocation9 + $0x70] sm:$0xff]
    %v5686 = vld [vmem:[#allocation9 + $0x78] sm:$0xff]
    %v5687 = vld [vmem:[#allocation9 + $0x80] sm:$0xff]
    %v5688 = vld [vmem:[#allocation9 + $0x88] sm:$0xff]
    %v5689 = vld [vmem:[#allocation9 + $0x90] sm:$0xff]
    %v5690 = vld [vmem:[#allocation9 + $0x98] sm:$0xff]
    %v5691 = vld [vmem:[#allocation9 + $0xa0] sm:$0xff]
    %v5692 = vld [vmem:[#allocation9 + $0xa8] sm:$0xff]
    %v5693 = vld [vmem:[#allocation9 + $0xb0] sm:$0xff]
    %v5694 = vld [vmem:[#allocation9 + $0xb8] sm:$0xff]
    %v5695 = vld [vmem:[#allocation9 + $0xc0] sm:$0xff]
    %v5696 = vld [vmem:[#allocation9 + $0xc8] sm:$0xff]
    %v5697 = vld [vmem:[#allocation9 + $0xd0] sm:$0xff]
    %v5698 = vld [vmem:[#allocation9 + $0xd8] sm:$0xff]
    %v5699 = vld [vmem:[#allocation9 + $0xe0] sm:$0xff]
    %v5700 = vld [vmem:[#allocation9 + $0xe8] sm:$0xff]
    %v5701 = vld [vmem:[#allocation9 + $0xf0] sm:$0xff]
    %v5702 = vld [vmem:[#allocation9 + $0xf8] sm:$0xff]
    %v5703 = vld [vmem:[#allocation9 + $0x100] sm:$0xff]
    %v5704 = vld [vmem:[#allocation9 + $0x108] sm:$0xff]
    %v5705 = vld [vmem:[#allocation9 + $0x110] sm:$0xff]
    %v5706 = vld [vmem:[#allocation9 + $0x118] sm:$0xff]
    %v5707 = vld [vmem:[#allocation9 + $0x120] sm:$0xff]
    %v5708 = vld [vmem:[#allocation9 + $0x128] sm:$0xff]
    %v5709 = vld [vmem:[#allocation9 + $0x130] sm:$0xff]
    %v5710 = vld [vmem:[#allocation9 + $0x138] sm:$0xff]
    %v5711 = vld [vmem:[#allocation9 + $0x140] sm:$0xff]
    %v5712 = vld [vmem:[#allocation9 + $0x148] sm:$0xff]
    %v5713 = vld [vmem:[#allocation9 + $0x150] sm:$0xff]
    %v5714 = vld [vmem:[#allocation9 + $0x158] sm:$0xff]
    %v5715 = vld [vmem:[#allocation9 + $0x160] sm:$0xff]
    %v5716 = vld [vmem:[#allocation9 + $0x168] sm:$0xff]
    %v5717 = vld [vmem:[#allocation9 + $0x170] sm:$0xff]
    %v5718 = vld [vmem:[#allocation9 + $0x178] sm:$0xff]
    %v5719 = vld [vmem:[#allocation9 + $0x180] sm:$0xff]
    %v5720 = vld [vmem:[#allocation9 + $0x188] sm:$0xff]
    %v5721 = vld [vmem:[#allocation9 + $0x190] sm:$0xff]
    %v5722 = vld [vmem:[#allocation9 + $0x198] sm:$0xff]
    %v5723 = vld [vmem:[#allocation9 + $0x1a0] sm:$0xff]
    %v5724 = vld [vmem:[#allocation9 + $0x1a8] sm:$0xff]
    %v5725 = vld [vmem:[#allocation9 + $0x1b0] sm:$0xff]
    %v5726 = vld [vmem:[#allocation9 + $0x1b8] sm:$0xff]
    %v5727 = vld [vmem:[#allocation9 + $0x1c0] sm:$0xff]
    %v5728 = vld [vmem:[#allocation9 + $0x1c8] sm:$0xff]
    %v5729 = vld [vmem:[#allocation9 + $0x1d0] sm:$0xff]
    %v5730 = vld [vmem:[#allocation9 + $0x1d8] sm:$0xff]
    %v5731 = vld [vmem:[#allocation9 + $0x1e0] sm:$0xff]
    %v5732 = vld [vmem:[#allocation9 + $0x1e8] sm:$0xff]
    %v5733 = vld [vmem:[#allocation9 + $0x1f0] sm:$0xff]
    %v5734 = vld [vmem:[#allocation9 + $0x1f8] sm:$0xff]
    %v5735 = vld [vmem:[#allocation9 + $0x200] sm:$0xff]
    %v5736 = vld [vmem:[#allocation9 + $0x208] sm:$0xff]
    %v5737 = vld [vmem:[#allocation9 + $0x210] sm:$0xff]
    %v5738 = vld [vmem:[#allocation9 + $0x218] sm:$0xff]
    %v5739 = vld [vmem:[#allocation9 + $0x220] sm:$0xff]
    %v5740 = vld [vmem:[#allocation9 + $0x228] sm:$0xff]
    %v5741 = vld [vmem:[#allocation9 + $0x230] sm:$0xff]
    %v5742 = vld [vmem:[#allocation9 + $0x238] sm:$0xff]
    %v5743 = vld [vmem:[#allocation9 + $0x240] sm:$0xff]
    %v5744 = vld [vmem:[#allocation9 + $0x248] sm:$0xff]
    %v5745 = vld [vmem:[#allocation9 + $0x250] sm:$0xff]
    %v5746 = vld [vmem:[#allocation9 + $0x258] sm:$0xff]
    %v5747 = vld [vmem:[#allocation9 + $0x260] sm:$0xff]
    %v5748 = vld [vmem:[#allocation9 + $0x268] sm:$0xff]
    %v5749 = vld [vmem:[#allocation9 + $0x270] sm:$0xff]
    %v5750 = vld [vmem:[#allocation9 + $0x278] sm:$0xff]
    %v5751 = vld [vmem:[#allocation9 + $0x280] sm:$0xff]
    %v5752 = vld [vmem:[#allocation9 + $0x288] sm:$0xff]
    %v5753 = vld [vmem:[#allocation9 + $0x290] sm:$0xff]
    %v5754 = vld [vmem:[#allocation9 + $0x298] sm:$0xff]
    %v5755 = vld [vmem:[#allocation9 + $0x2a0] sm:$0xff]
    %v5756 = vld [vmem:[#allocation9 + $0x2a8] sm:$0xff]
    %v5757 = vld [vmem:[#allocation9 + $0x2b0] sm:$0xff]
    %v5758 = vld [vmem:[#allocation9 + $0x2b8] sm:$0xff]
    %v5759 = vld [vmem:[#allocation9 + $0x2c0] sm:$0xff]
    %v5760 = vld [vmem:[#allocation9 + $0x2c8] sm:$0xff]
    %v5761 = vld [vmem:[#allocation9 + $0x2d0] sm:$0xff]
    %v5762 = vld [vmem:[#allocation9 + $0x2d8] sm:$0xff]
    %v5763 = vld [vmem:[#allocation9 + $0x2e0] sm:$0xff]
    %v5764 = vld [vmem:[#allocation9 + $0x2e8] sm:$0xff]
    %v5765 = vld [vmem:[#allocation9 + $0x2f0] sm:$0xff]
    %v5766 = vld [vmem:[#allocation9 + $0x2f8] sm:$0xff]
    %v5767 = vld [vmem:[#allocation9 + $0x300] sm:$0xff]
    %v5768 = vld [vmem:[#allocation9 + $0x308] sm:$0xff]
    %v5769 = vld [vmem:[#allocation9 + $0x310] sm:$0xff]
    %v5770 = vld [vmem:[#allocation9 + $0x318] sm:$0xff]
    %v5771 = vld [vmem:[#allocation9 + $0x320] sm:$0xff]
    %v5772 = vld [vmem:[#allocation9 + $0x328] sm:$0xff]
    %v5773 = vld [vmem:[#allocation9 + $0x330] sm:$0xff]
    %v5774 = vld [vmem:[#allocation9 + $0x338] sm:$0xff]
    %v5775 = vld [vmem:[#allocation9 + $0x340] sm:$0xff]
    %v5776 = vld [vmem:[#allocation9 + $0x348] sm:$0xff]
    %v5777 = vld [vmem:[#allocation9 + $0x350] sm:$0xff]
    %v5778 = vld [vmem:[#allocation9 + $0x358] sm:$0xff]
    %v5779 = vld [vmem:[#allocation9 + $0x360] sm:$0xff]
    %v5780 = vld [vmem:[#allocation9 + $0x368] sm:$0xff]
    %v5781 = vld [vmem:[#allocation9 + $0x370] sm:$0xff]
    %v5782 = vld [vmem:[#allocation9 + $0x378] sm:$0xff]
    %v5783 = vld [vmem:[#allocation9 + $0x380] sm:$0xff]
    %v5784 = vld [vmem:[#allocation9 + $0x388] sm:$0xff]
    %v5785 = vld [vmem:[#allocation9 + $0x390] sm:$0xff]
    %v5786 = vld [vmem:[#allocation9 + $0x398] sm:$0xff]
    %v5787 = vld [vmem:[#allocation9 + $0x3a0] sm:$0xff]
    %v5788 = vld [vmem:[#allocation9 + $0x3a8] sm:$0xff]
    %v5789 = vld [vmem:[#allocation9 + $0x3b0] sm:$0xff]
    %v5790 = vld [vmem:[#allocation9 + $0x3b8] sm:$0xff]
    %v5791 = vld [vmem:[#allocation9 + $0x3c0] sm:$0xff]
    %v5792 = vld [vmem:[#allocation9 + $0x3c8] sm:$0xff]
    %v5793 = vld [vmem:[#allocation9 + $0x3d0] sm:$0xff]
    %v5794 = vld [vmem:[#allocation9 + $0x3d8] sm:$0xff]
    %v5795 = vld [vmem:[#allocation9 + $0x3e0] sm:$0xff]
    %v5796 = vld [vmem:[#allocation9 + $0x3e8] sm:$0xff]
    %v5797 = vld [vmem:[#allocation9 + $0x3f0] sm:$0xff]
    %v5798 = vld [vmem:[#allocation9 + $0x3f8] sm:$0xff]
    %v5799 = vld [vmem:[#allocation9 + $0x400] sm:$0xff]
    %v5800 = vld [vmem:[#allocation9 + $0x408] sm:$0xff]
    %v5801 = vld [vmem:[#allocation9 + $0x410] sm:$0xff]
    %v5802 = vld [vmem:[#allocation9 + $0x418] sm:$0xff]
    %v5803 = vld [vmem:[#allocation9 + $0x420] sm:$0xff]
    %v5804 = vld [vmem:[#allocation9 + $0x428] sm:$0xff]
    %v5805 = vld [vmem:[#allocation9 + $0x430] sm:$0xff]
    %v5806 = vld [vmem:[#allocation9 + $0x438] sm:$0xff]
    %v5807 = vld [vmem:[#allocation9 + $0x440] sm:$0xff]
    %v5808 = vld [vmem:[#allocation9 + $0x448] sm:$0xff]
    %v5809 = vld [vmem:[#allocation9 + $0x450] sm:$0xff]
    %v5810 = vld [vmem:[#allocation9 + $0x458] sm:$0xff]
    %v5811 = vld [vmem:[#allocation9 + $0x460] sm:$0xff]
    %v5812 = vld [vmem:[#allocation9 + $0x468] sm:$0xff]
    %v5813 = vld [vmem:[#allocation9 + $0x470] sm:$0xff]
    %v5814 = vld [vmem:[#allocation9 + $0x478] sm:$0xff]
    %v5815 = vld [vmem:[#allocation9 + $0x480] sm:$0xff]
    %v5816 = vld [vmem:[#allocation9 + $0x488] sm:$0xff]
    %v5817 = vld [vmem:[#allocation9 + $0x490] sm:$0xff]
    %v5818 = vld [vmem:[#allocation9 + $0x498] sm:$0xff]
    %v5819 = vld [vmem:[#allocation9 + $0x4a0] sm:$0xff]
    %v5820 = vld [vmem:[#allocation9 + $0x4a8] sm:$0xff]
    %v5821 = vld [vmem:[#allocation9 + $0x4b0] sm:$0xff]
    %v5822 = vld [vmem:[#allocation9 + $0x4b8] sm:$0xff]
    %v5823 = vld [vmem:[#allocation9 + $0x4c0] sm:$0xff]
    %v5824 = vld [vmem:[#allocation9 + $0x4c8] sm:$0xff]
    %v5825 = vld [vmem:[#allocation9 + $0x4d0] sm:$0xff]
    %v5826 = vld [vmem:[#allocation9 + $0x4d8] sm:$0xff]
    %v5827 = vld [vmem:[#allocation9 + $0x4e0] sm:$0xff]
    %v5828 = vld [vmem:[#allocation9 + $0x4e8] sm:$0xff]
    %v5829 = vld [vmem:[#allocation9 + $0x4f0] sm:$0xff]
    %v5830 = vld [vmem:[#allocation9 + $0x4f8] sm:$0xff]
    %v5831 = vld [vmem:[#allocation9 + $0x500] sm:$0xff]
    %v5832 = vld [vmem:[#allocation9 + $0x508] sm:$0xff]
    %v5833 = vld [vmem:[#allocation9 + $0x510] sm:$0xff]
    %v5834 = vld [vmem:[#allocation9 + $0x518] sm:$0xff]
    %v5835 = vld [vmem:[#allocation9 + $0x520] sm:$0xff]
    %v5836 = vld [vmem:[#allocation9 + $0x528] sm:$0xff]
    %v5837 = vld [vmem:[#allocation9 + $0x530] sm:$0xff]
    %v5838 = vld [vmem:[#allocation9 + $0x538] sm:$0xff]
    %v5839 = vld [vmem:[#allocation9 + $0x540] sm:$0xff]
    %v5840 = vld [vmem:[#allocation9 + $0x548] sm:$0xff]
    %v5841 = vld [vmem:[#allocation9 + $0x550] sm:$0xff]
    %v5842 = vld [vmem:[#allocation9 + $0x558] sm:$0xff]
    %v5843 = vld [vmem:[#allocation9 + $0x560] sm:$0xff]
    %v5844 = vld [vmem:[#allocation9 + $0x568] sm:$0xff]
    %v5845 = vld [vmem:[#allocation9 + $0x570] sm:$0xff]
    %v5846 = vld [vmem:[#allocation9 + $0x578] sm:$0xff]
    %v5847 = vld [vmem:[#allocation9 + $0x580] sm:$0xff]
    %v5848 = vld [vmem:[#allocation9 + $0x588] sm:$0xff]
    %v5849 = vld [vmem:[#allocation9 + $0x590] sm:$0xff]
    %v5850 = vld [vmem:[#allocation9 + $0x598] sm:$0xff]
    %v5851 = vld [vmem:[#allocation9 + $0x5a0] sm:$0xff]
    %v5852 = vld [vmem:[#allocation9 + $0x5a8] sm:$0xff]
    %v5853 = vld [vmem:[#allocation9 + $0x5b0] sm:$0xff]
    %v5854 = vld [vmem:[#allocation9 + $0x5b8] sm:$0xff]
    %v5855 = vld [vmem:[#allocation9 + $0x5c0] sm:$0xff]
    %v5856 = vld [vmem:[#allocation9 + $0x5c8] sm:$0xff]
    %v5857 = vld [vmem:[#allocation9 + $0x5d0] sm:$0xff]
    %v5858 = vld [vmem:[#allocation9 + $0x5d8] sm:$0xff]
    %v5859 = vld [vmem:[#allocation9 + $0x5e0] sm:$0xff]
    %v5860 = vld [vmem:[#allocation9 + $0x5e8] sm:$0xff]
    %v5861 = vld [vmem:[#allocation9 + $0x5f0] sm:$0xff]
    %v5862 = vld [vmem:[#allocation9 + $0x5f8] sm:$0xff]
    %v5863 = vld [vmem:[#allocation9 + $0x600] sm:$0xff]
    %v5864 = vld [vmem:[#allocation9 + $0x608] sm:$0xff]
    %v5865 = vld [vmem:[#allocation9 + $0x610] sm:$0xff]
    %v5866 = vld [vmem:[#allocation9 + $0x618] sm:$0xff]
    %v5867 = vld [vmem:[#allocation9 + $0x620] sm:$0xff]
    %v5868 = vld [vmem:[#allocation9 + $0x628] sm:$0xff]
    %v5869 = vld [vmem:[#allocation9 + $0x630] sm:$0xff]
    %v5870 = vld [vmem:[#allocation9 + $0x638] sm:$0xff]
    %v5871 = vld [vmem:[#allocation9 + $0x640] sm:$0xff]
    %v5872 = vld [vmem:[#allocation9 + $0x648] sm:$0xff]
    %v5873 = vld [vmem:[#allocation9 + $0x650] sm:$0xff]
    %v5874 = vld [vmem:[#allocation9 + $0x658] sm:$0xff]
    %v5875 = vld [vmem:[#allocation9 + $0x660] sm:$0xff]
    %v5876 = vld [vmem:[#allocation9 + $0x668] sm:$0xff]
    %v5877 = vld [vmem:[#allocation9 + $0x670] sm:$0xff]
    %v5878 = vld [vmem:[#allocation9 + $0x678] sm:$0xff]
    %v5879 = vld [vmem:[#allocation9 + $0x680] sm:$0xff]
    %v5880 = vld [vmem:[#allocation9 + $0x688] sm:$0xff]
    %v5881 = vld [vmem:[#allocation9 + $0x690] sm:$0xff]
    %v5882 = vld [vmem:[#allocation9 + $0x698] sm:$0xff]
    %v5883 = vld [vmem:[#allocation9 + $0x6a0] sm:$0xff]
    %v5884 = vld [vmem:[#allocation9 + $0x6a8] sm:$0xff]
    %v5885 = vld [vmem:[#allocation9 + $0x6b0] sm:$0xff]
    %v5886 = vld [vmem:[#allocation9 + $0x6b8] sm:$0xff]
    %v5887 = vld [vmem:[#allocation9 + $0x6c0] sm:$0xff]
    %v5888 = vld [vmem:[#allocation9 + $0x6c8] sm:$0xff]
    %v5889 = vld [vmem:[#allocation9 + $0x6d0] sm:$0xff]
    %v5890 = vld [vmem:[#allocation9 + $0x6d8] sm:$0xff]
    %v5891 = vld [vmem:[#allocation9 + $0x6e0] sm:$0xff]
    %v5892 = vld [vmem:[#allocation9 + $0x6e8] sm:$0xff]
    %v5893 = vld [vmem:[#allocation9 + $0x6f0] sm:$0xff]
    %v5894 = vld [vmem:[#allocation9 + $0x6f8] sm:$0xff]
    %v5895 = vld [vmem:[#allocation9 + $0x700] sm:$0xff]
    %v5896 = vld [vmem:[#allocation9 + $0x708] sm:$0xff]
    %v5897 = vld [vmem:[#allocation9 + $0x710] sm:$0xff]
    %v5898 = vld [vmem:[#allocation9 + $0x718] sm:$0xff]
    %v5899 = vld [vmem:[#allocation9 + $0x720] sm:$0xff]
    %v5900 = vld [vmem:[#allocation9 + $0x728] sm:$0xff]
    %v5901 = vld [vmem:[#allocation9 + $0x730] sm:$0xff]
    %v5902 = vld [vmem:[#allocation9 + $0x738] sm:$0xff]
    %v5903 = vld [vmem:[#allocation9 + $0x740] sm:$0xff]
    %v5904 = vld [vmem:[#allocation9 + $0x748] sm:$0xff]
    %v5905 = vld [vmem:[#allocation9 + $0x750] sm:$0xff]
    %v5906 = vld [vmem:[#allocation9 + $0x758] sm:$0xff]
    %v5907 = vld [vmem:[#allocation9 + $0x760] sm:$0xff]
    %v5908 = vld [vmem:[#allocation9 + $0x768] sm:$0xff]
    %v5909 = vld [vmem:[#allocation9 + $0x770] sm:$0xff]
    %v5910 = vld [vmem:[#allocation9 + $0x778] sm:$0xff]
    %v5911 = vld [vmem:[#allocation9 + $0x780] sm:$0xff]
    %v5912 = vld [vmem:[#allocation9 + $0x788] sm:$0xff]
    %v5913 = vld [vmem:[#allocation9 + $0x790] sm:$0xff]
    %v5914 = vld [vmem:[#allocation9 + $0x798] sm:$0xff]
    %v5915 = vld [vmem:[#allocation9 + $0x7a0] sm:$0xff]
    %v5916 = vld [vmem:[#allocation9 + $0x7a8] sm:$0xff]
    %v5917 = vld [vmem:[#allocation9 + $0x7b0] sm:$0xff]
    %v5918 = vld [vmem:[#allocation9 + $0x7b8] sm:$0xff]
    %v5919 = vld [vmem:[#allocation9 + $0x7c0] sm:$0xff]
    %v5920 = vld [vmem:[#allocation9 + $0x7c8] sm:$0xff]
    %v5921 = vld [vmem:[#allocation9 + $0x7d0] sm:$0xff]
    %v5922 = vld [vmem:[#allocation9 + $0x7d8] sm:$0xff]
    %v5923 = vld [vmem:[#allocation9 + $0x7e0] sm:$0xff]
    %v5924 = vld [vmem:[#allocation9 + $0x7e8] sm:$0xff]
    %v5925 = vld [vmem:[#allocation9 + $0x7f0] sm:$0xff]
    %v5926 = vld [vmem:[#allocation9 + $0x7f8] sm:$0xff]
    %v5927 = vld [vmem:[#allocation9 + $0x800] sm:$0xff]
    %v5928 = vld [vmem:[#allocation9 + $0x808] sm:$0xff]
    %v5929 = vld [vmem:[#allocation9 + $0x810] sm:$0xff]
    %v5930 = vld [vmem:[#allocation9 + $0x818] sm:$0xff]
    %v5931 = vld [vmem:[#allocation9 + $0x820] sm:$0xff]
    %v5932 = vld [vmem:[#allocation9 + $0x828] sm:$0xff]
    %v5933 = vld [vmem:[#allocation9 + $0x830] sm:$0xff]
    %v5934 = vld [vmem:[#allocation9 + $0x838] sm:$0xff]
    %v5935 = vld [vmem:[#allocation9 + $0x840] sm:$0xff]
    %v5936 = vld [vmem:[#allocation9 + $0x848] sm:$0xff]
    %v5937 = vld [vmem:[#allocation9 + $0x850] sm:$0xff]
    %v5938 = vld [vmem:[#allocation9 + $0x858] sm:$0xff]
    %v5939 = vld [vmem:[#allocation9 + $0x860] sm:$0xff]
    %v5940 = vld [vmem:[#allocation9 + $0x868] sm:$0xff]
    %v5941 = vld [vmem:[#allocation9 + $0x870] sm:$0xff]
    %v5942 = vld [vmem:[#allocation9 + $0x878] sm:$0xff]
    %v5943 = vld [vmem:[#allocation9 + $0x880] sm:$0xff]
    %v5944 = vld [vmem:[#allocation9 + $0x888] sm:$0xff]
    %v5945 = vld [vmem:[#allocation9 + $0x890] sm:$0xff]
    %v5946 = vld [vmem:[#allocation9 + $0x898] sm:$0xff]
    %v5947 = vld [vmem:[#allocation9 + $0x8a0] sm:$0xff]
    %v5948 = vld [vmem:[#allocation9 + $0x8a8] sm:$0xff]
    %v5949 = vld [vmem:[#allocation9 + $0x8b0] sm:$0xff]
    %v5950 = vld [vmem:[#allocation9 + $0x8b8] sm:$0xff]
    %v5951 = vld [vmem:[#allocation9 + $0x8c0] sm:$0xff]
    %v5952 = vld [vmem:[#allocation9 + $0x8c8] sm:$0xff]
    %v5953 = vld [vmem:[#allocation9 + $0x8d0] sm:$0xff]
    %v5954 = vld [vmem:[#allocation9 + $0x8d8] sm:$0xff]
    %v5955 = vld [vmem:[#allocation9 + $0x8e0] sm:$0xff]
    %v5956 = vld [vmem:[#allocation9 + $0x8e8] sm:$0xff]
    %v5957 = vld [vmem:[#allocation9 + $0x8f0] sm:$0xff]
    %v5958 = vld [vmem:[#allocation9 + $0x8f8] sm:$0xff]
    %v5959 = vld [vmem:[#allocation9 + $0x900] sm:$0xff]
    %v5960 = vld [vmem:[#allocation9 + $0x908] sm:$0xff]
    %v5961 = vld [vmem:[#allocation9 + $0x910] sm:$0xff]
    %v5962 = vld [vmem:[#allocation9 + $0x918] sm:$0xff]
    %v5963 = vld [vmem:[#allocation9 + $0x920] sm:$0xff]
    %v5964 = vld [vmem:[#allocation9 + $0x928] sm:$0xff]
    %v5965 = vld [vmem:[#allocation9 + $0x930] sm:$0xff]
    %v5966 = vld [vmem:[#allocation9 + $0x938] sm:$0xff]
    %v5967 = vld [vmem:[#allocation9 + $0x940] sm:$0xff]
    %v5968 = vld [vmem:[#allocation9 + $0x948] sm:$0xff]
    %v5969 = vld [vmem:[#allocation9 + $0x950] sm:$0xff]
    %v5970 = vld [vmem:[#allocation9 + $0x958] sm:$0xff]
    %v5971 = vld [vmem:[#allocation9 + $0x960] sm:$0xff]
    %v5972 = vld [vmem:[#allocation9 + $0x968] sm:$0xff]
    %v5973 = vld [vmem:[#allocation9 + $0x970] sm:$0xff]
    %v5974 = vld [vmem:[#allocation9 + $0x978] sm:$0xff]
    %v5975 = vld [vmem:[#allocation9 + $0x980] sm:$0xff]
    %v5976 = vld [vmem:[#allocation9 + $0x988] sm:$0xff]
    %v5977 = vld [vmem:[#allocation9 + $0x990] sm:$0xff]
    %v5978 = vld [vmem:[#allocation9 + $0x998] sm:$0xff]
    %v5979 = vld [vmem:[#allocation9 + $0x9a0] sm:$0xff]
    %v5980 = vld [vmem:[#allocation9 + $0x9a8] sm:$0xff]
    %v5981 = vld [vmem:[#allocation9 + $0x9b0] sm:$0xff]
    %v5982 = vld [vmem:[#allocation9 + $0x9b8] sm:$0xff]
    %v5983 = vld [vmem:[#allocation9 + $0x9c0] sm:$0xff]
    %v5984 = vld [vmem:[#allocation9 + $0x9c8] sm:$0xff]
    %v5985 = vld [vmem:[#allocation9 + $0x9d0] sm:$0xff]
    %v5986 = vld [vmem:[#allocation9 + $0x9d8] sm:$0xff]
    %v5987 = vld [vmem:[#allocation9 + $0x9e0] sm:$0xff]
    %v5988 = vld [vmem:[#allocation9 + $0x9e8] sm:$0xff]
    %v5989 = vld [vmem:[#allocation9 + $0x9f0] sm:$0xff]
    %v5990 = vld [vmem:[#allocation9 + $0x9f8] sm:$0xff]
    %v5991 = vld [vmem:[#allocation9 + $0xa00] sm:$0xff]
    %v5992 = vld [vmem:[#allocation9 + $0xa08] sm:$0xff]
    %v5993 = vld [vmem:[#allocation9 + $0xa10] sm:$0xff]
    %v5994 = vld [vmem:[#allocation9 + $0xa18] sm:$0xff]
    %v5995 = vld [vmem:[#allocation9 + $0xa20] sm:$0xff]
    %v5996 = vld [vmem:[#allocation9 + $0xa28] sm:$0xff]
    %v5997 = vld [vmem:[#allocation9 + $0xa30] sm:$0xff]
    %v5998 = vld [vmem:[#allocation9 + $0xa38] sm:$0xff]
    %v5999 = vld [vmem:[#allocation9 + $0xa40] sm:$0xff]
    %v6000 = vld [vmem:[#allocation9 + $0xa48] sm:$0xff]
    %v6001 = vld [vmem:[#allocation9 + $0xa50] sm:$0xff]
    %v6002 = vld [vmem:[#allocation9 + $0xa58] sm:$0xff]
    %v6003 = vld [vmem:[#allocation9 + $0xa60] sm:$0xff]
    %v6004 = vld [vmem:[#allocation9 + $0xa68] sm:$0xff]
    %v6005 = vld [vmem:[#allocation9 + $0xa70] sm:$0xff]
    %v6006 = vld [vmem:[#allocation9 + $0xa78] sm:$0xff]
    %v6007 = vld [vmem:[#allocation9 + $0xa80] sm:$0xff]
    %v6008 = vld [vmem:[#allocation9 + $0xa88] sm:$0xff]
    %v6009 = vld [vmem:[#allocation9 + $0xa90] sm:$0xff]
    %v6010 = vld [vmem:[#allocation9 + $0xa98] sm:$0xff]
    %v6011 = vld [vmem:[#allocation9 + $0xaa0] sm:$0xff]
    %v6012 = vld [vmem:[#allocation9 + $0xaa8] sm:$0xff]
    %v6013 = vld [vmem:[#allocation9 + $0xab0] sm:$0xff]
    %v6014 = vld [vmem:[#allocation9 + $0xab8] sm:$0xff]
    %v6015 = vld [vmem:[#allocation9 + $0xac0] sm:$0xff]
    %v6016 = vld [vmem:[#allocation9 + $0xac8] sm:$0xff]
    %v6017 = vld [vmem:[#allocation9 + $0xad0] sm:$0xff]
    %v6018 = vld [vmem:[#allocation9 + $0xad8] sm:$0xff]
    %v6019 = vld [vmem:[#allocation9 + $0xae0] sm:$0xff]
    %v6020 = vld [vmem:[#allocation9 + $0xae8] sm:$0xff]
    %v6021 = vld [vmem:[#allocation9 + $0xaf0] sm:$0xff]
    %v6022 = vld [vmem:[#allocation9 + $0xaf8] sm:$0xff]
    %v6023 = vld [vmem:[#allocation9 + $0xb00] sm:$0xff]
    %v6024 = vld [vmem:[#allocation9 + $0xb08] sm:$0xff]
    %v6025 = vld [vmem:[#allocation9 + $0xb10] sm:$0xff]
    %v6026 = vld [vmem:[#allocation9 + $0xb18] sm:$0xff]
    %v6027 = vld [vmem:[#allocation9 + $0xb20] sm:$0xff]
    %v6028 = vld [vmem:[#allocation9 + $0xb28] sm:$0xff]
    %v6029 = vld [vmem:[#allocation9 + $0xb30] sm:$0xff]
    %v6030 = vld [vmem:[#allocation9 + $0xb38] sm:$0xff]
    %v6031 = vld [vmem:[#allocation9 + $0xb40] sm:$0xff]
    %v6032 = vld [vmem:[#allocation9 + $0xb48] sm:$0xff]
    %v6033 = vld [vmem:[#allocation9 + $0xb50] sm:$0xff]
    %v6034 = vld [vmem:[#allocation9 + $0xb58] sm:$0xff]
    %v6035 = vld [vmem:[#allocation9 + $0xb60] sm:$0xff]
    %v6036 = vld [vmem:[#allocation9 + $0xb68] sm:$0xff]
    %v6037 = vld [vmem:[#allocation9 + $0xb70] sm:$0xff]
    %v6038 = vld [vmem:[#allocation9 + $0xb78] sm:$0xff]
    %v6039 = vld [vmem:[#allocation9 + $0xb80] sm:$0xff]
    %v6040 = vld [vmem:[#allocation9 + $0xb88] sm:$0xff]
    %v6041 = vld [vmem:[#allocation9 + $0xb90] sm:$0xff]
    %v6042 = vld [vmem:[#allocation9 + $0xb98] sm:$0xff]
    %v6043 = vld [vmem:[#allocation9 + $0xba0] sm:$0xff]
    %v6044 = vld [vmem:[#allocation9 + $0xba8] sm:$0xff]
    %v6045 = vld [vmem:[#allocation9 + $0xbb0] sm:$0xff]
    %v6046 = vld [vmem:[#allocation9 + $0xbb8] sm:$0xff]
    %v6047 = vld [vmem:[#allocation9 + $0xbc0] sm:$0xff]
    %v6048 = vld [vmem:[#allocation9 + $0xbc8] sm:$0xff]
    %v6049 = vld [vmem:[#allocation9 + $0xbd0] sm:$0xff]
    %v6050 = vld [vmem:[#allocation9 + $0xbd8] sm:$0xff]
    %v6051 = vld [vmem:[#allocation9 + $0xbe0] sm:$0xff]
    %v6052 = vld [vmem:[#allocation9 + $0xbe8] sm:$0xff]
    %v6053 = vld [vmem:[#allocation9 + $0xbf0] sm:$0xff]
    %v6054 = vld [vmem:[#allocation9 + $0xbf8] sm:$0xff]
    %v6055 = vld [vmem:[#allocation9 + $0xc00] sm:$0xff]
    %v6056 = vld [vmem:[#allocation9 + $0xc08] sm:$0xff]
    %v6057 = vld [vmem:[#allocation9 + $0xc10] sm:$0xff]
    %v6058 = vld [vmem:[#allocation9 + $0xc18] sm:$0xff]
    %v6059 = vld [vmem:[#allocation9 + $0xc20] sm:$0xff]
    %v6060 = vld [vmem:[#allocation9 + $0xc28] sm:$0xff]
    %v6061 = vld [vmem:[#allocation9 + $0xc30] sm:$0xff]
    %v6062 = vld [vmem:[#allocation9 + $0xc38] sm:$0xff]
    %v6063 = vld [vmem:[#allocation9 + $0xc40] sm:$0xff]
    %v6064 = vld [vmem:[#allocation9 + $0xc48] sm:$0xff]
    %v6065 = vld [vmem:[#allocation9 + $0xc50] sm:$0xff]
    %v6066 = vld [vmem:[#allocation9 + $0xc58] sm:$0xff]
    %v6067 = vld [vmem:[#allocation9 + $0xc60] sm:$0xff]
    %v6068 = vld [vmem:[#allocation9 + $0xc68] sm:$0xff]
    %v6069 = vld [vmem:[#allocation9 + $0xc70] sm:$0xff]
    %v6070 = vld [vmem:[#allocation9 + $0xc78] sm:$0xff]
    %v6071 = vld [vmem:[#allocation9 + $0xc80] sm:$0xff]
    %v6072 = vld [vmem:[#allocation9 + $0xc88] sm:$0xff]
    %v6073 = vld [vmem:[#allocation9 + $0xc90] sm:$0xff]
    %v6074 = vld [vmem:[#allocation9 + $0xc98] sm:$0xff]
    %v6075 = vld [vmem:[#allocation9 + $0xca0] sm:$0xff]
    %v6076 = vld [vmem:[#allocation9 + $0xca8] sm:$0xff]
    %v6077 = vld [vmem:[#allocation9 + $0xcb0] sm:$0xff]
    %v6078 = vld [vmem:[#allocation9 + $0xcb8] sm:$0xff]
    %v6079 = vld [vmem:[#allocation9 + $0xcc0] sm:$0xff]
    %v6080 = vld [vmem:[#allocation9 + $0xcc8] sm:$0xff]
    %v6081 = vld [vmem:[#allocation9 + $0xcd0] sm:$0xff]
    %v6082 = vld [vmem:[#allocation9 + $0xcd8] sm:$0xff]
    %v6083 = vld [vmem:[#allocation9 + $0xce0] sm:$0xff]
    %v6084 = vld [vmem:[#allocation9 + $0xce8] sm:$0xff]
    %v6085 = vld [vmem:[#allocation9 + $0xcf0] sm:$0xff]
    %v6086 = vld [vmem:[#allocation9 + $0xcf8] sm:$0xff]
    %v6087 = vld [vmem:[#allocation9 + $0xd00] sm:$0xff]
    %v6088 = vld [vmem:[#allocation9 + $0xd08] sm:$0xff]
    %v6089 = vld [vmem:[#allocation9 + $0xd10] sm:$0xff]
    %v6090 = vld [vmem:[#allocation9 + $0xd18] sm:$0xff]
    %v6091 = vld [vmem:[#allocation9 + $0xd20] sm:$0xff]
    %v6092 = vld [vmem:[#allocation9 + $0xd28] sm:$0xff]
    %v6093 = vld [vmem:[#allocation9 + $0xd30] sm:$0xff]
    %v6094 = vld [vmem:[#allocation9 + $0xd38] sm:$0xff]
    %v6095 = vld [vmem:[#allocation9 + $0xd40] sm:$0xff]
    %v6096 = vld [vmem:[#allocation9 + $0xd48] sm:$0xff]
    %v6097 = vld [vmem:[#allocation9 + $0xd50] sm:$0xff]
    %v6098 = vld [vmem:[#allocation9 + $0xd58] sm:$0xff]
    %v6099 = vld [vmem:[#allocation9 + $0xd60] sm:$0xff]
    %v6100 = vld [vmem:[#allocation9 + $0xd68] sm:$0xff]
    %v6101 = vld [vmem:[#allocation9 + $0xd70] sm:$0xff]
    %v6102 = vld [vmem:[#allocation9 + $0xd78] sm:$0xff]
    %v6103 = vld [vmem:[#allocation9 + $0xd80] sm:$0xff]
    %v6104 = vld [vmem:[#allocation9 + $0xd88] sm:$0xff]
    %v6105 = vld [vmem:[#allocation9 + $0xd90] sm:$0xff]
    %v6106 = vld [vmem:[#allocation9 + $0xd98] sm:$0xff]
    %v6107 = vld [vmem:[#allocation9 + $0xda0] sm:$0xff]
    %v6108 = vld [vmem:[#allocation9 + $0xda8] sm:$0xff]
    %v6109 = vld [vmem:[#allocation9 + $0xdb0] sm:$0xff]
    %v6110 = vld [vmem:[#allocation9 + $0xdb8] sm:$0xff]
    %v6111 = vld [vmem:[#allocation9 + $0xdc0] sm:$0xff]
    %v6112 = vld [vmem:[#allocation9 + $0xdc8] sm:$0xff]
    %v6113 = vld [vmem:[#allocation9 + $0xdd0] sm:$0xff]
    %v6114 = vld [vmem:[#allocation9 + $0xdd8] sm:$0xff]
    %v6115 = vld [vmem:[#allocation9 + $0xde0] sm:$0xff]
    %v6116 = vld [vmem:[#allocation9 + $0xde8] sm:$0xff]
    %v6117 = vld [vmem:[#allocation9 + $0xdf0] sm:$0xff]
    %v6118 = vld [vmem:[#allocation9 + $0xdf8] sm:$0xff]
    %v6119 = vld [vmem:[#allocation9 + $0xe00] sm:$0xff]
    %v6120 = vld [vmem:[#allocation9 + $0xe08] sm:$0xff]
    %v6121 = vld [vmem:[#allocation9 + $0xe10] sm:$0xff]
    %v6122 = vld [vmem:[#allocation9 + $0xe18] sm:$0xff]
    %v6123 = vld [vmem:[#allocation9 + $0xe20] sm:$0xff]
    %v6124 = vld [vmem:[#allocation9 + $0xe28] sm:$0xff]
    %v6125 = vld [vmem:[#allocation9 + $0xe30] sm:$0xff]
    %v6126 = vld [vmem:[#allocation9 + $0xe38] sm:$0xff]
    %v6127 = vld [vmem:[#allocation9 + $0xe40] sm:$0xff]
    %v6128 = vld [vmem:[#allocation9 + $0xe48] sm:$0xff]
    %v6129 = vld [vmem:[#allocation9 + $0xe50] sm:$0xff]
    %v6130 = vld [vmem:[#allocation9 + $0xe58] sm:$0xff]
    %v6131 = vld [vmem:[#allocation9 + $0xe60] sm:$0xff]
    %v6132 = vld [vmem:[#allocation9 + $0xe68] sm:$0xff]
    %v6133 = vld [vmem:[#allocation9 + $0xe70] sm:$0xff]
    %v6134 = vld [vmem:[#allocation9 + $0xe78] sm:$0xff]
    %v6135 = vld [vmem:[#allocation9 + $0xe80] sm:$0xff]
    %v6136 = vld [vmem:[#allocation9 + $0xe88] sm:$0xff]
    %v6137 = vld [vmem:[#allocation9 + $0xe90] sm:$0xff]
    %v6138 = vld [vmem:[#allocation9 + $0xe98] sm:$0xff]
    %v6139 = vld [vmem:[#allocation9 + $0xea0] sm:$0xff]
    %v6140 = vld [vmem:[#allocation9 + $0xea8] sm:$0xff]
    %v6141 = vld [vmem:[#allocation9 + $0xeb0] sm:$0xff]
    %v6142 = vld [vmem:[#allocation9 + $0xeb8] sm:$0xff]
    %v6143 = vld [vmem:[#allocation9 + $0xec0] sm:$0xff]
    %v6144 = vld [vmem:[#allocation9 + $0xec8] sm:$0xff]
    %v6145 = vld [vmem:[#allocation9 + $0xed0] sm:$0xff]
    %v6146 = vld [vmem:[#allocation9 + $0xed8] sm:$0xff]
    %v6147 = vld [vmem:[#allocation9 + $0xee0] sm:$0xff]
    %v6148 = vld [vmem:[#allocation9 + $0xee8] sm:$0xff]
    %v6149 = vld [vmem:[#allocation9 + $0xef0] sm:$0xff]
    %v6150 = vld [vmem:[#allocation9 + $0xef8] sm:$0xff]
    %v6151 = vld [vmem:[#allocation9 + $0xf00] sm:$0xff]
    %v6152 = vld [vmem:[#allocation9 + $0xf08] sm:$0xff]
    %v6153 = vld [vmem:[#allocation9 + $0xf10] sm:$0xff]
    %v6154 = vld [vmem:[#allocation9 + $0xf18] sm:$0xff]
    %v6155 = vld [vmem:[#allocation9 + $0xf20] sm:$0xff]
    %v6156 = vld [vmem:[#allocation9 + $0xf28] sm:$0xff]
    %v6157 = vld [vmem:[#allocation9 + $0xf30] sm:$0xff]
    %v6158 = vld [vmem:[#allocation9 + $0xf38] sm:$0xff]
    %v6159 = vld [vmem:[#allocation9 + $0xf40] sm:$0xff]
    %v6160 = vld [vmem:[#allocation9 + $0xf48] sm:$0xff]
    %v6161 = vld [vmem:[#allocation9 + $0xf50] sm:$0xff]
    %v6162 = vld [vmem:[#allocation9 + $0xf58] sm:$0xff]
    %v6163 = vld [vmem:[#allocation9 + $0xf60] sm:$0xff]
    %v6164 = vld [vmem:[#allocation9 + $0xf68] sm:$0xff]
    %v6165 = vld [vmem:[#allocation9 + $0xf70] sm:$0xff]
    %v6166 = vld [vmem:[#allocation9 + $0xf78] sm:$0xff]
    %v6167 = vld [vmem:[#allocation9 + $0xf80] sm:$0xff]
    %v6168 = vld [vmem:[#allocation9 + $0xf88] sm:$0xff]
    %v6169 = vld [vmem:[#allocation9 + $0xf90] sm:$0xff]
    %v6170 = vld [vmem:[#allocation9 + $0xf98] sm:$0xff]
    %v6171 = vld [vmem:[#allocation9 + $0xfa0] sm:$0xff]
    %v6172 = vld [vmem:[#allocation9 + $0xfa8] sm:$0xff]
    %v6173 = vld [vmem:[#allocation9 + $0xfb0] sm:$0xff]
    %v6174 = vld [vmem:[#allocation9 + $0xfb8] sm:$0xff]
    %v6175 = vld [vmem:[#allocation9 + $0xfc0] sm:$0xff]
    %v6176 = vld [vmem:[#allocation9 + $0xfc8] sm:$0xff]
    %v6177 = vld [vmem:[#allocation9 + $0xfd0] sm:$0xff]
    %v6178 = vld [vmem:[#allocation9 + $0xfd8] sm:$0xff]
    %v6179 = vld [vmem:[#allocation9 + $0xfe0] sm:$0xff]
    %v6180 = vld [vmem:[#allocation9 + $0xfe8] sm:$0xff]
    %v6181 = vld [vmem:[#allocation9 + $0xff0] sm:$0xff]
    %v6182 = vld [vmem:[#allocation9 + $0xff8] sm:$0xff]
    %v6183 = vld [vmem:[#allocation10] sm:$0xff]
    %v6185 = vlaneseq
    %v6186 = vshrl.u32 %v6185, 7
    %v6187 = vsub.s32 0, %v6186
    %v6188 = vrot.slane %v6183, %v6187
    %v6189 = vlaneseq
    %v6190 = vshrl.u32 %v6189, 7
    %v6191 = vsub.s32 1, %v6190
    %v6192 = vrot.slane %v6183, %v6191
    %v6193 = vlaneseq
    %v6194 = vshrl.u32 %v6193, 7
    %v6195 = vsub.s32 2, %v6194
    %v6196 = vrot.slane %v6183, %v6195
    %v6197 = vlaneseq
    %v6198 = vshrl.u32 %v6197, 7
    %v6199 = vsub.s32 3, %v6198
    %v6200 = vrot.slane %v6183, %v6199
    %v6201 = vlaneseq
    %v6202 = vshrl.u32 %v6201, 7
    %v6203 = vsub.s32 4, %v6202
    %v6204 = vrot.slane %v6183, %v6203
    %v6205 = vlaneseq
    %v6206 = vshrl.u32 %v6205, 7
    %v6207 = vsub.s32 5, %v6206
    %v6208 = vrot.slane %v6183, %v6207
    %v6209 = vlaneseq
    %v6210 = vshrl.u32 %v6209, 7
    %v6211 = vsub.s32 6, %v6210
    %v6212 = vrot.slane %v6183, %v6211
    %v6213 = vlaneseq
    %v6214 = vshrl.u32 %v6213, 7
    %v6215 = vsub.s32 7, %v6214
    %v6216 = vrot.slane %v6183, %v6215
    %v6737 = vunpack.c.l.b16 %v5671
    %v6738 = vunpack.c.h.b16 %v5671
    %v6739 = vunpack.c.l.b16 %v5672
    %v6740 = vunpack.c.h.b16 %v5672
    %v6741 = vunpack.c.l.b16 %v5673
    %v6742 = vunpack.c.h.b16 %v5673
    %v6743 = vunpack.c.l.b16 %v5674
    %v6744 = vunpack.c.h.b16 %v5674
    %v6745 = vunpack.c.l.b16 %v5675
    %v6746 = vunpack.c.h.b16 %v5675
    %v6747 = vunpack.c.l.b16 %v5676
    %v6748 = vunpack.c.h.b16 %v5676
    %v6749 = vunpack.c.l.b16 %v5677
    %v6750 = vunpack.c.h.b16 %v5677
    %v6751 = vunpack.c.l.b16 %v5678
    %v6752 = vunpack.c.h.b16 %v5678
    %v6753 = vunpack.c.l.b16 %v5679
    %v6754 = vunpack.c.h.b16 %v5679
    %v6755 = vunpack.c.l.b16 %v5680
    %v6756 = vunpack.c.h.b16 %v5680
    %v6757 = vunpack.c.l.b16 %v5681
    %v6758 = vunpack.c.h.b16 %v5681
    %v6759 = vunpack.c.l.b16 %v5682
    %v6760 = vunpack.c.h.b16 %v5682
    %v6761 = vunpack.c.l.b16 %v5683
    %v6762 = vunpack.c.h.b16 %v5683
    %v6763 = vunpack.c.l.b16 %v5684
    %v6764 = vunpack.c.h.b16 %v5684
    %v6765 = vunpack.c.l.b16 %v5685
    %v6766 = vunpack.c.h.b16 %v5685
    %v6767 = vunpack.c.l.b16 %v5686
    %v6768 = vunpack.c.h.b16 %v5686
    %v6769 = vunpack.c.l.b16 %v5687
    %v6770 = vunpack.c.h.b16 %v5687
    %v6771 = vunpack.c.l.b16 %v5688
    %v6772 = vunpack.c.h.b16 %v5688
    %v6773 = vunpack.c.l.b16 %v5689
    %v6774 = vunpack.c.h.b16 %v5689
    %v6775 = vunpack.c.l.b16 %v5690
    %v6776 = vunpack.c.h.b16 %v5690
    %v6777 = vunpack.c.l.b16 %v5691
    %v6778 = vunpack.c.h.b16 %v5691
    %v6779 = vunpack.c.l.b16 %v5692
    %v6780 = vunpack.c.h.b16 %v5692
    %v6781 = vunpack.c.l.b16 %v5693
    %v6782 = vunpack.c.h.b16 %v5693
    %v6783 = vunpack.c.l.b16 %v5694
    %v6784 = vunpack.c.h.b16 %v5694
    %v6785 = vunpack.c.l.b16 %v5695
    %v6786 = vunpack.c.h.b16 %v5695
    %v6787 = vunpack.c.l.b16 %v5696
    %v6788 = vunpack.c.h.b16 %v5696
    %v6789 = vunpack.c.l.b16 %v5697
    %v6790 = vunpack.c.h.b16 %v5697
    %v6791 = vunpack.c.l.b16 %v5698
    %v6792 = vunpack.c.h.b16 %v5698
    %v6793 = vunpack.c.l.b16 %v5699
    %v6794 = vunpack.c.h.b16 %v5699
    %v6795 = vunpack.c.l.b16 %v5700
    %v6796 = vunpack.c.h.b16 %v5700
    %v6797 = vunpack.c.l.b16 %v5701
    %v6798 = vunpack.c.h.b16 %v5701
    %v6799 = vunpack.c.l.b16 %v5702
    %v6800 = vunpack.c.h.b16 %v5702
    %v6801 = vunpack.c.l.b16 %v5703
    %v6802 = vunpack.c.h.b16 %v5703
    %v6803 = vunpack.c.l.b16 %v5704
    %v6804 = vunpack.c.h.b16 %v5704
    %v6805 = vunpack.c.l.b16 %v5705
    %v6806 = vunpack.c.h.b16 %v5705
    %v6807 = vunpack.c.l.b16 %v5706
    %v6808 = vunpack.c.h.b16 %v5706
    %v6809 = vunpack.c.l.b16 %v5707
    %v6810 = vunpack.c.h.b16 %v5707
    %v6811 = vunpack.c.l.b16 %v5708
    %v6812 = vunpack.c.h.b16 %v5708
    %v6813 = vunpack.c.l.b16 %v5709
    %v6814 = vunpack.c.h.b16 %v5709
    %v6815 = vunpack.c.l.b16 %v5710
    %v6816 = vunpack.c.h.b16 %v5710
    %v6817 = vunpack.c.l.b16 %v5711
    %v6818 = vunpack.c.h.b16 %v5711
    %v6819 = vunpack.c.l.b16 %v5712
    %v6820 = vunpack.c.h.b16 %v5712
    %v6821 = vunpack.c.l.b16 %v5713
    %v6822 = vunpack.c.h.b16 %v5713
    %v6823 = vunpack.c.l.b16 %v5714
    %v6824 = vunpack.c.h.b16 %v5714
    %v6825 = vunpack.c.l.b16 %v5715
    %v6826 = vunpack.c.h.b16 %v5715
    %v6827 = vunpack.c.l.b16 %v5716
    %v6828 = vunpack.c.h.b16 %v5716
    %v6829 = vunpack.c.l.b16 %v5717
    %v6830 = vunpack.c.h.b16 %v5717
    %v6831 = vunpack.c.l.b16 %v5718
    %v6832 = vunpack.c.h.b16 %v5718
    %v6833 = vunpack.c.l.b16 %v5719
    %v6834 = vunpack.c.h.b16 %v5719
    %v6835 = vunpack.c.l.b16 %v5720
    %v6836 = vunpack.c.h.b16 %v5720
    %v6837 = vunpack.c.l.b16 %v5721
    %v6838 = vunpack.c.h.b16 %v5721
    %v6839 = vunpack.c.l.b16 %v5722
    %v6840 = vunpack.c.h.b16 %v5722
    %v6841 = vunpack.c.l.b16 %v5723
    %v6842 = vunpack.c.h.b16 %v5723
    %v6843 = vunpack.c.l.b16 %v5724
    %v6844 = vunpack.c.h.b16 %v5724
    %v6845 = vunpack.c.l.b16 %v5725
    %v6846 = vunpack.c.h.b16 %v5725
    %v6847 = vunpack.c.l.b16 %v5726
    %v6848 = vunpack.c.h.b16 %v5726
    %v6849 = vunpack.c.l.b16 %v5727
    %v6850 = vunpack.c.h.b16 %v5727
    %v6851 = vunpack.c.l.b16 %v5728
    %v6852 = vunpack.c.h.b16 %v5728
    %v6853 = vunpack.c.l.b16 %v5729
    %v6854 = vunpack.c.h.b16 %v5729
    %v6855 = vunpack.c.l.b16 %v5730
    %v6856 = vunpack.c.h.b16 %v5730
    %v6857 = vunpack.c.l.b16 %v5731
    %v6858 = vunpack.c.h.b16 %v5731
    %v6859 = vunpack.c.l.b16 %v5732
    %v6860 = vunpack.c.h.b16 %v5732
    %v6861 = vunpack.c.l.b16 %v5733
    %v6862 = vunpack.c.h.b16 %v5733
    %v6863 = vunpack.c.l.b16 %v5734
    %v6864 = vunpack.c.h.b16 %v5734
    %v6865 = vunpack.c.l.b16 %v5735
    %v6866 = vunpack.c.h.b16 %v5735
    %v6867 = vunpack.c.l.b16 %v5736
    %v6868 = vunpack.c.h.b16 %v5736
    %v6869 = vunpack.c.l.b16 %v5737
    %v6870 = vunpack.c.h.b16 %v5737
    %v6871 = vunpack.c.l.b16 %v5738
    %v6872 = vunpack.c.h.b16 %v5738
    %v6873 = vunpack.c.l.b16 %v5739
    %v6874 = vunpack.c.h.b16 %v5739
    %v6875 = vunpack.c.l.b16 %v5740
    %v6876 = vunpack.c.h.b16 %v5740
    %v6877 = vunpack.c.l.b16 %v5741
    %v6878 = vunpack.c.h.b16 %v5741
    %v6879 = vunpack.c.l.b16 %v5742
    %v6880 = vunpack.c.h.b16 %v5742
    %v6881 = vunpack.c.l.b16 %v5743
    %v6882 = vunpack.c.h.b16 %v5743
    %v6883 = vunpack.c.l.b16 %v5744
    %v6884 = vunpack.c.h.b16 %v5744
    %v6885 = vunpack.c.l.b16 %v5745
    %v6886 = vunpack.c.h.b16 %v5745
    %v6887 = vunpack.c.l.b16 %v5746
    %v6888 = vunpack.c.h.b16 %v5746
    %v6889 = vunpack.c.l.b16 %v5747
    %v6890 = vunpack.c.h.b16 %v5747
    %v6891 = vunpack.c.l.b16 %v5748
    %v6892 = vunpack.c.h.b16 %v5748
    %v6893 = vunpack.c.l.b16 %v5749
    %v6894 = vunpack.c.h.b16 %v5749
    %v6895 = vunpack.c.l.b16 %v5750
    %v6896 = vunpack.c.h.b16 %v5750
    %v6897 = vunpack.c.l.b16 %v5751
    %v6898 = vunpack.c.h.b16 %v5751
    %v6899 = vunpack.c.l.b16 %v5752
    %v6900 = vunpack.c.h.b16 %v5752
    %v6901 = vunpack.c.l.b16 %v5753
    %v6902 = vunpack.c.h.b16 %v5753
    %v6903 = vunpack.c.l.b16 %v5754
    %v6904 = vunpack.c.h.b16 %v5754
    %v6905 = vunpack.c.l.b16 %v5755
    %v6906 = vunpack.c.h.b16 %v5755
    %v6907 = vunpack.c.l.b16 %v5756
    %v6908 = vunpack.c.h.b16 %v5756
    %v6909 = vunpack.c.l.b16 %v5757
    %v6910 = vunpack.c.h.b16 %v5757
    %v6911 = vunpack.c.l.b16 %v5758
    %v6912 = vunpack.c.h.b16 %v5758
    %v6913 = vunpack.c.l.b16 %v5759
    %v6914 = vunpack.c.h.b16 %v5759
    %v6915 = vunpack.c.l.b16 %v5760
    %v6916 = vunpack.c.h.b16 %v5760
    %v6917 = vunpack.c.l.b16 %v5761
    %v6918 = vunpack.c.h.b16 %v5761
    %v6919 = vunpack.c.l.b16 %v5762
    %v6920 = vunpack.c.h.b16 %v5762
    %v6921 = vunpack.c.l.b16 %v5763
    %v6922 = vunpack.c.h.b16 %v5763
    %v6923 = vunpack.c.l.b16 %v5764
    %v6924 = vunpack.c.h.b16 %v5764
    %v6925 = vunpack.c.l.b16 %v5765
    %v6926 = vunpack.c.h.b16 %v5765
    %v6927 = vunpack.c.l.b16 %v5766
    %v6928 = vunpack.c.h.b16 %v5766
    %v6929 = vunpack.c.l.b16 %v5767
    %v6930 = vunpack.c.h.b16 %v5767
    %v6931 = vunpack.c.l.b16 %v5768
    %v6932 = vunpack.c.h.b16 %v5768
    %v6933 = vunpack.c.l.b16 %v5769
    %v6934 = vunpack.c.h.b16 %v5769
    %v6935 = vunpack.c.l.b16 %v5770
    %v6936 = vunpack.c.h.b16 %v5770
    %v6937 = vunpack.c.l.b16 %v5771
    %v6938 = vunpack.c.h.b16 %v5771
    %v6939 = vunpack.c.l.b16 %v5772
    %v6940 = vunpack.c.h.b16 %v5772
    %v6941 = vunpack.c.l.b16 %v5773
    %v6942 = vunpack.c.h.b16 %v5773
    %v6943 = vunpack.c.l.b16 %v5774
    %v6944 = vunpack.c.h.b16 %v5774
    %v6945 = vunpack.c.l.b16 %v5775
    %v6946 = vunpack.c.h.b16 %v5775
    %v6947 = vunpack.c.l.b16 %v5776
    %v6948 = vunpack.c.h.b16 %v5776
    %v6949 = vunpack.c.l.b16 %v5777
    %v6950 = vunpack.c.h.b16 %v5777
    %v6951 = vunpack.c.l.b16 %v5778
    %v6952 = vunpack.c.h.b16 %v5778
    %v6953 = vunpack.c.l.b16 %v5779
    %v6954 = vunpack.c.h.b16 %v5779
    %v6955 = vunpack.c.l.b16 %v5780
    %v6956 = vunpack.c.h.b16 %v5780
    %v6957 = vunpack.c.l.b16 %v5781
    %v6958 = vunpack.c.h.b16 %v5781
    %v6959 = vunpack.c.l.b16 %v5782
    %v6960 = vunpack.c.h.b16 %v5782
    %v6961 = vunpack.c.l.b16 %v5783
    %v6962 = vunpack.c.h.b16 %v5783
    %v6963 = vunpack.c.l.b16 %v5784
    %v6964 = vunpack.c.h.b16 %v5784
    %v6965 = vunpack.c.l.b16 %v5785
    %v6966 = vunpack.c.h.b16 %v5785
    %v6967 = vunpack.c.l.b16 %v5786
    %v6968 = vunpack.c.h.b16 %v5786
    %v6969 = vunpack.c.l.b16 %v5787
    %v6970 = vunpack.c.h.b16 %v5787
    %v6971 = vunpack.c.l.b16 %v5788
    %v6972 = vunpack.c.h.b16 %v5788
    %v6973 = vunpack.c.l.b16 %v5789
    %v6974 = vunpack.c.h.b16 %v5789
    %v6975 = vunpack.c.l.b16 %v5790
    %v6976 = vunpack.c.h.b16 %v5790
    %v6977 = vunpack.c.l.b16 %v5791
    %v6978 = vunpack.c.h.b16 %v5791
    %v6979 = vunpack.c.l.b16 %v5792
    %v6980 = vunpack.c.h.b16 %v5792
    %v6981 = vunpack.c.l.b16 %v5793
    %v6982 = vunpack.c.h.b16 %v5793
    %v6983 = vunpack.c.l.b16 %v5794
    %v6984 = vunpack.c.h.b16 %v5794
    %v6985 = vunpack.c.l.b16 %v5795
    %v6986 = vunpack.c.h.b16 %v5795
    %v6987 = vunpack.c.l.b16 %v5796
    %v6988 = vunpack.c.h.b16 %v5796
    %v6989 = vunpack.c.l.b16 %v5797
    %v6990 = vunpack.c.h.b16 %v5797
    %v6991 = vunpack.c.l.b16 %v5798
    %v6992 = vunpack.c.h.b16 %v5798
    %v6993 = vunpack.c.l.b16 %v5799
    %v6994 = vunpack.c.h.b16 %v5799
    %v6995 = vunpack.c.l.b16 %v5800
    %v6996 = vunpack.c.h.b16 %v5800
    %v6997 = vunpack.c.l.b16 %v5801
    %v6998 = vunpack.c.h.b16 %v5801
    %v6999 = vunpack.c.l.b16 %v5802
    %v7000 = vunpack.c.h.b16 %v5802
    %v7001 = vunpack.c.l.b16 %v5803
    %v7002 = vunpack.c.h.b16 %v5803
    %v7003 = vunpack.c.l.b16 %v5804
    %v7004 = vunpack.c.h.b16 %v5804
    %v7005 = vunpack.c.l.b16 %v5805
    %v7006 = vunpack.c.h.b16 %v5805
    %v7007 = vunpack.c.l.b16 %v5806
    %v7008 = vunpack.c.h.b16 %v5806
    %v7009 = vunpack.c.l.b16 %v5807
    %v7010 = vunpack.c.h.b16 %v5807
    %v7011 = vunpack.c.l.b16 %v5808
    %v7012 = vunpack.c.h.b16 %v5808
    %v7013 = vunpack.c.l.b16 %v5809
    %v7014 = vunpack.c.h.b16 %v5809
    %v7015 = vunpack.c.l.b16 %v5810
    %v7016 = vunpack.c.h.b16 %v5810
    %v7017 = vunpack.c.l.b16 %v5811
    %v7018 = vunpack.c.h.b16 %v5811
    %v7019 = vunpack.c.l.b16 %v5812
    %v7020 = vunpack.c.h.b16 %v5812
    %v7021 = vunpack.c.l.b16 %v5813
    %v7022 = vunpack.c.h.b16 %v5813
    %v7023 = vunpack.c.l.b16 %v5814
    %v7024 = vunpack.c.h.b16 %v5814
    %v7025 = vunpack.c.l.b16 %v5815
    %v7026 = vunpack.c.h.b16 %v5815
    %v7027 = vunpack.c.l.b16 %v5816
    %v7028 = vunpack.c.h.b16 %v5816
    %v7029 = vunpack.c.l.b16 %v5817
    %v7030 = vunpack.c.h.b16 %v5817
    %v7031 = vunpack.c.l.b16 %v5818
    %v7032 = vunpack.c.h.b16 %v5818
    %v7033 = vunpack.c.l.b16 %v5819
    %v7034 = vunpack.c.h.b16 %v5819
    %v7035 = vunpack.c.l.b16 %v5820
    %v7036 = vunpack.c.h.b16 %v5820
    %v7037 = vunpack.c.l.b16 %v5821
    %v7038 = vunpack.c.h.b16 %v5821
    %v7039 = vunpack.c.l.b16 %v5822
    %v7040 = vunpack.c.h.b16 %v5822
    %v7041 = vunpack.c.l.b16 %v5823
    %v7042 = vunpack.c.h.b16 %v5823
    %v7043 = vunpack.c.l.b16 %v5824
    %v7044 = vunpack.c.h.b16 %v5824
    %v7045 = vunpack.c.l.b16 %v5825
    %v7046 = vunpack.c.h.b16 %v5825
    %v7047 = vunpack.c.l.b16 %v5826
    %v7048 = vunpack.c.h.b16 %v5826
    %v7049 = vunpack.c.l.b16 %v5827
    %v7050 = vunpack.c.h.b16 %v5827
    %v7051 = vunpack.c.l.b16 %v5828
    %v7052 = vunpack.c.h.b16 %v5828
    %v7053 = vunpack.c.l.b16 %v5829
    %v7054 = vunpack.c.h.b16 %v5829
    %v7055 = vunpack.c.l.b16 %v5830
    %v7056 = vunpack.c.h.b16 %v5830
    %v7057 = vunpack.c.l.b16 %v5831
    %v7058 = vunpack.c.h.b16 %v5831
    %v7059 = vunpack.c.l.b16 %v5832
    %v7060 = vunpack.c.h.b16 %v5832
    %v7061 = vunpack.c.l.b16 %v5833
    %v7062 = vunpack.c.h.b16 %v5833
    %v7063 = vunpack.c.l.b16 %v5834
    %v7064 = vunpack.c.h.b16 %v5834
    %v7065 = vunpack.c.l.b16 %v5835
    %v7066 = vunpack.c.h.b16 %v5835
    %v7067 = vunpack.c.l.b16 %v5836
    %v7068 = vunpack.c.h.b16 %v5836
    %v7069 = vunpack.c.l.b16 %v5837
    %v7070 = vunpack.c.h.b16 %v5837
    %v7071 = vunpack.c.l.b16 %v5838
    %v7072 = vunpack.c.h.b16 %v5838
    %v7073 = vunpack.c.l.b16 %v5839
    %v7074 = vunpack.c.h.b16 %v5839
    %v7075 = vunpack.c.l.b16 %v5840
    %v7076 = vunpack.c.h.b16 %v5840
    %v7077 = vunpack.c.l.b16 %v5841
    %v7078 = vunpack.c.h.b16 %v5841
    %v7079 = vunpack.c.l.b16 %v5842
    %v7080 = vunpack.c.h.b16 %v5842
    %v7081 = vunpack.c.l.b16 %v5843
    %v7082 = vunpack.c.h.b16 %v5843
    %v7083 = vunpack.c.l.b16 %v5844
    %v7084 = vunpack.c.h.b16 %v5844
    %v7085 = vunpack.c.l.b16 %v5845
    %v7086 = vunpack.c.h.b16 %v5845
    %v7087 = vunpack.c.l.b16 %v5846
    %v7088 = vunpack.c.h.b16 %v5846
    %v7089 = vunpack.c.l.b16 %v5847
    %v7090 = vunpack.c.h.b16 %v5847
    %v7091 = vunpack.c.l.b16 %v5848
    %v7092 = vunpack.c.h.b16 %v5848
    %v7093 = vunpack.c.l.b16 %v5849
    %v7094 = vunpack.c.h.b16 %v5849
    %v7095 = vunpack.c.l.b16 %v5850
    %v7096 = vunpack.c.h.b16 %v5850
    %v7097 = vunpack.c.l.b16 %v5851
    %v7098 = vunpack.c.h.b16 %v5851
    %v7099 = vunpack.c.l.b16 %v5852
    %v7100 = vunpack.c.h.b16 %v5852
    %v7101 = vunpack.c.l.b16 %v5853
    %v7102 = vunpack.c.h.b16 %v5853
    %v7103 = vunpack.c.l.b16 %v5854
    %v7104 = vunpack.c.h.b16 %v5854
    %v7105 = vunpack.c.l.b16 %v5855
    %v7106 = vunpack.c.h.b16 %v5855
    %v7107 = vunpack.c.l.b16 %v5856
    %v7108 = vunpack.c.h.b16 %v5856
    %v7109 = vunpack.c.l.b16 %v5857
    %v7110 = vunpack.c.h.b16 %v5857
    %v7111 = vunpack.c.l.b16 %v5858
    %v7112 = vunpack.c.h.b16 %v5858
    %v7113 = vunpack.c.l.b16 %v5859
    %v7114 = vunpack.c.h.b16 %v5859
    %v7115 = vunpack.c.l.b16 %v5860
    %v7116 = vunpack.c.h.b16 %v5860
    %v7117 = vunpack.c.l.b16 %v5861
    %v7118 = vunpack.c.h.b16 %v5861
    %v7119 = vunpack.c.l.b16 %v5862
    %v7120 = vunpack.c.h.b16 %v5862
    %v7121 = vunpack.c.l.b16 %v5863
    %v7122 = vunpack.c.h.b16 %v5863
    %v7123 = vunpack.c.l.b16 %v5864
    %v7124 = vunpack.c.h.b16 %v5864
    %v7125 = vunpack.c.l.b16 %v5865
    %v7126 = vunpack.c.h.b16 %v5865
    %v7127 = vunpack.c.l.b16 %v5866
    %v7128 = vunpack.c.h.b16 %v5866
    %v7129 = vunpack.c.l.b16 %v5867
    %v7130 = vunpack.c.h.b16 %v5867
    %v7131 = vunpack.c.l.b16 %v5868
    %v7132 = vunpack.c.h.b16 %v5868
    %v7133 = vunpack.c.l.b16 %v5869
    %v7134 = vunpack.c.h.b16 %v5869
    %v7135 = vunpack.c.l.b16 %v5870
    %v7136 = vunpack.c.h.b16 %v5870
    %v7137 = vunpack.c.l.b16 %v5871
    %v7138 = vunpack.c.h.b16 %v5871
    %v7139 = vunpack.c.l.b16 %v5872
    %v7140 = vunpack.c.h.b16 %v5872
    %v7141 = vunpack.c.l.b16 %v5873
    %v7142 = vunpack.c.h.b16 %v5873
    %v7143 = vunpack.c.l.b16 %v5874
    %v7144 = vunpack.c.h.b16 %v5874
    %v7145 = vunpack.c.l.b16 %v5875
    %v7146 = vunpack.c.h.b16 %v5875
    %v7147 = vunpack.c.l.b16 %v5876
    %v7148 = vunpack.c.h.b16 %v5876
    %v7149 = vunpack.c.l.b16 %v5877
    %v7150 = vunpack.c.h.b16 %v5877
    %v7151 = vunpack.c.l.b16 %v5878
    %v7152 = vunpack.c.h.b16 %v5878
    %v7153 = vunpack.c.l.b16 %v5879
    %v7154 = vunpack.c.h.b16 %v5879
    %v7155 = vunpack.c.l.b16 %v5880
    %v7156 = vunpack.c.h.b16 %v5880
    %v7157 = vunpack.c.l.b16 %v5881
    %v7158 = vunpack.c.h.b16 %v5881
    %v7159 = vunpack.c.l.b16 %v5882
    %v7160 = vunpack.c.h.b16 %v5882
    %v7161 = vunpack.c.l.b16 %v5883
    %v7162 = vunpack.c.h.b16 %v5883
    %v7163 = vunpack.c.l.b16 %v5884
    %v7164 = vunpack.c.h.b16 %v5884
    %v7165 = vunpack.c.l.b16 %v5885
    %v7166 = vunpack.c.h.b16 %v5885
    %v7167 = vunpack.c.l.b16 %v5886
    %v7168 = vunpack.c.h.b16 %v5886
    %v7169 = vunpack.c.l.b16 %v5887
    %v7170 = vunpack.c.h.b16 %v5887
    %v7171 = vunpack.c.l.b16 %v5888
    %v7172 = vunpack.c.h.b16 %v5888
    %v7173 = vunpack.c.l.b16 %v5889
    %v7174 = vunpack.c.h.b16 %v5889
    %v7175 = vunpack.c.l.b16 %v5890
    %v7176 = vunpack.c.h.b16 %v5890
    %v7177 = vunpack.c.l.b16 %v5891
    %v7178 = vunpack.c.h.b16 %v5891
    %v7179 = vunpack.c.l.b16 %v5892
    %v7180 = vunpack.c.h.b16 %v5892
    %v7181 = vunpack.c.l.b16 %v5893
    %v7182 = vunpack.c.h.b16 %v5893
    %v7183 = vunpack.c.l.b16 %v5894
    %v7184 = vunpack.c.h.b16 %v5894
    %v7185 = vunpack.c.l.b16 %v5895
    %v7186 = vunpack.c.h.b16 %v5895
    %v7187 = vunpack.c.l.b16 %v5896
    %v7188 = vunpack.c.h.b16 %v5896
    %v7189 = vunpack.c.l.b16 %v5897
    %v7190 = vunpack.c.h.b16 %v5897
    %v7191 = vunpack.c.l.b16 %v5898
    %v7192 = vunpack.c.h.b16 %v5898
    %v7193 = vunpack.c.l.b16 %v5899
    %v7194 = vunpack.c.h.b16 %v5899
    %v7195 = vunpack.c.l.b16 %v5900
    %v7196 = vunpack.c.h.b16 %v5900
    %v7197 = vunpack.c.l.b16 %v5901
    %v7198 = vunpack.c.h.b16 %v5901
    %v7199 = vunpack.c.l.b16 %v5902
    %v7200 = vunpack.c.h.b16 %v5902
    %v7201 = vunpack.c.l.b16 %v5903
    %v7202 = vunpack.c.h.b16 %v5903
    %v7203 = vunpack.c.l.b16 %v5904
    %v7204 = vunpack.c.h.b16 %v5904
    %v7205 = vunpack.c.l.b16 %v5905
    %v7206 = vunpack.c.h.b16 %v5905
    %v7207 = vunpack.c.l.b16 %v5906
    %v7208 = vunpack.c.h.b16 %v5906
    %v7209 = vunpack.c.l.b16 %v5907
    %v7210 = vunpack.c.h.b16 %v5907
    %v7211 = vunpack.c.l.b16 %v5908
    %v7212 = vunpack.c.h.b16 %v5908
    %v7213 = vunpack.c.l.b16 %v5909
    %v7214 = vunpack.c.h.b16 %v5909
    %v7215 = vunpack.c.l.b16 %v5910
    %v7216 = vunpack.c.h.b16 %v5910
    %v7217 = vunpack.c.l.b16 %v5911
    %v7218 = vunpack.c.h.b16 %v5911
    %v7219 = vunpack.c.l.b16 %v5912
    %v7220 = vunpack.c.h.b16 %v5912
    %v7221 = vunpack.c.l.b16 %v5913
    %v7222 = vunpack.c.h.b16 %v5913
    %v7223 = vunpack.c.l.b16 %v5914
    %v7224 = vunpack.c.h.b16 %v5914
    %v7225 = vunpack.c.l.b16 %v5915
    %v7226 = vunpack.c.h.b16 %v5915
    %v7227 = vunpack.c.l.b16 %v5916
    %v7228 = vunpack.c.h.b16 %v5916
    %v7229 = vunpack.c.l.b16 %v5917
    %v7230 = vunpack.c.h.b16 %v5917
    %v7231 = vunpack.c.l.b16 %v5918
    %v7232 = vunpack.c.h.b16 %v5918
    %v7233 = vunpack.c.l.b16 %v5919
    %v7234 = vunpack.c.h.b16 %v5919
    %v7235 = vunpack.c.l.b16 %v5920
    %v7236 = vunpack.c.h.b16 %v5920
    %v7237 = vunpack.c.l.b16 %v5921
    %v7238 = vunpack.c.h.b16 %v5921
    %v7239 = vunpack.c.l.b16 %v5922
    %v7240 = vunpack.c.h.b16 %v5922
    %v7241 = vunpack.c.l.b16 %v5923
    %v7242 = vunpack.c.h.b16 %v5923
    %v7243 = vunpack.c.l.b16 %v5924
    %v7244 = vunpack.c.h.b16 %v5924
    %v7245 = vunpack.c.l.b16 %v5925
    %v7246 = vunpack.c.h.b16 %v5925
    %v7247 = vunpack.c.l.b16 %v5926
    %v7248 = vunpack.c.h.b16 %v5926
    %v7249 = vunpack.c.l.b16 %v5927
    %v7250 = vunpack.c.h.b16 %v5927
    %v7251 = vunpack.c.l.b16 %v5928
    %v7252 = vunpack.c.h.b16 %v5928
    %v7253 = vunpack.c.l.b16 %v5929
    %v7254 = vunpack.c.h.b16 %v5929
    %v7255 = vunpack.c.l.b16 %v5930
    %v7256 = vunpack.c.h.b16 %v5930
    %v7257 = vunpack.c.l.b16 %v5931
    %v7258 = vunpack.c.h.b16 %v5931
    %v7259 = vunpack.c.l.b16 %v5932
    %v7260 = vunpack.c.h.b16 %v5932
    %v7261 = vunpack.c.l.b16 %v5933
    %v7262 = vunpack.c.h.b16 %v5933
    %v7263 = vunpack.c.l.b16 %v5934
    %v7264 = vunpack.c.h.b16 %v5934
    %v7265 = vunpack.c.l.b16 %v5935
    %v7266 = vunpack.c.h.b16 %v5935
    %v7267 = vunpack.c.l.b16 %v5936
    %v7268 = vunpack.c.h.b16 %v5936
    %v7269 = vunpack.c.l.b16 %v5937
    %v7270 = vunpack.c.h.b16 %v5937
    %v7271 = vunpack.c.l.b16 %v5938
    %v7272 = vunpack.c.h.b16 %v5938
    %v7273 = vunpack.c.l.b16 %v5939
    %v7274 = vunpack.c.h.b16 %v5939
    %v7275 = vunpack.c.l.b16 %v5940
    %v7276 = vunpack.c.h.b16 %v5940
    %v7277 = vunpack.c.l.b16 %v5941
    %v7278 = vunpack.c.h.b16 %v5941
    %v7279 = vunpack.c.l.b16 %v5942
    %v7280 = vunpack.c.h.b16 %v5942
    %v7281 = vunpack.c.l.b16 %v5943
    %v7282 = vunpack.c.h.b16 %v5943
    %v7283 = vunpack.c.l.b16 %v5944
    %v7284 = vunpack.c.h.b16 %v5944
    %v7285 = vunpack.c.l.b16 %v5945
    %v7286 = vunpack.c.h.b16 %v5945
    %v7287 = vunpack.c.l.b16 %v5946
    %v7288 = vunpack.c.h.b16 %v5946
    %v7289 = vunpack.c.l.b16 %v5947
    %v7290 = vunpack.c.h.b16 %v5947
    %v7291 = vunpack.c.l.b16 %v5948
    %v7292 = vunpack.c.h.b16 %v5948
    %v7293 = vunpack.c.l.b16 %v5949
    %v7294 = vunpack.c.h.b16 %v5949
    %v7295 = vunpack.c.l.b16 %v5950
    %v7296 = vunpack.c.h.b16 %v5950
    %v7297 = vunpack.c.l.b16 %v5951
    %v7298 = vunpack.c.h.b16 %v5951
    %v7299 = vunpack.c.l.b16 %v5952
    %v7300 = vunpack.c.h.b16 %v5952
    %v7301 = vunpack.c.l.b16 %v5953
    %v7302 = vunpack.c.h.b16 %v5953
    %v7303 = vunpack.c.l.b16 %v5954
    %v7304 = vunpack.c.h.b16 %v5954
    %v7305 = vunpack.c.l.b16 %v5955
    %v7306 = vunpack.c.h.b16 %v5955
    %v7307 = vunpack.c.l.b16 %v5956
    %v7308 = vunpack.c.h.b16 %v5956
    %v7309 = vunpack.c.l.b16 %v5957
    %v7310 = vunpack.c.h.b16 %v5957
    %v7311 = vunpack.c.l.b16 %v5958
    %v7312 = vunpack.c.h.b16 %v5958
    %v7313 = vunpack.c.l.b16 %v5959
    %v7314 = vunpack.c.h.b16 %v5959
    %v7315 = vunpack.c.l.b16 %v5960
    %v7316 = vunpack.c.h.b16 %v5960
    %v7317 = vunpack.c.l.b16 %v5961
    %v7318 = vunpack.c.h.b16 %v5961
    %v7319 = vunpack.c.l.b16 %v5962
    %v7320 = vunpack.c.h.b16 %v5962
    %v7321 = vunpack.c.l.b16 %v5963
    %v7322 = vunpack.c.h.b16 %v5963
    %v7323 = vunpack.c.l.b16 %v5964
    %v7324 = vunpack.c.h.b16 %v5964
    %v7325 = vunpack.c.l.b16 %v5965
    %v7326 = vunpack.c.h.b16 %v5965
    %v7327 = vunpack.c.l.b16 %v5966
    %v7328 = vunpack.c.h.b16 %v5966
    %v7329 = vunpack.c.l.b16 %v5967
    %v7330 = vunpack.c.h.b16 %v5967
    %v7331 = vunpack.c.l.b16 %v5968
    %v7332 = vunpack.c.h.b16 %v5968
    %v7333 = vunpack.c.l.b16 %v5969
    %v7334 = vunpack.c.h.b16 %v5969
    %v7335 = vunpack.c.l.b16 %v5970
    %v7336 = vunpack.c.h.b16 %v5970
    %v7337 = vunpack.c.l.b16 %v5971
    %v7338 = vunpack.c.h.b16 %v5971
    %v7339 = vunpack.c.l.b16 %v5972
    %v7340 = vunpack.c.h.b16 %v5972
    %v7341 = vunpack.c.l.b16 %v5973
    %v7342 = vunpack.c.h.b16 %v5973
    %v7343 = vunpack.c.l.b16 %v5974
    %v7344 = vunpack.c.h.b16 %v5974
    %v7345 = vunpack.c.l.b16 %v5975
    %v7346 = vunpack.c.h.b16 %v5975
    %v7347 = vunpack.c.l.b16 %v5976
    %v7348 = vunpack.c.h.b16 %v5976
    %v7349 = vunpack.c.l.b16 %v5977
    %v7350 = vunpack.c.h.b16 %v5977
    %v7351 = vunpack.c.l.b16 %v5978
    %v7352 = vunpack.c.h.b16 %v5978
    %v7353 = vunpack.c.l.b16 %v5979
    %v7354 = vunpack.c.h.b16 %v5979
    %v7355 = vunpack.c.l.b16 %v5980
    %v7356 = vunpack.c.h.b16 %v5980
    %v7357 = vunpack.c.l.b16 %v5981
    %v7358 = vunpack.c.h.b16 %v5981
    %v7359 = vunpack.c.l.b16 %v5982
    %v7360 = vunpack.c.h.b16 %v5982
    %v7361 = vunpack.c.l.b16 %v5983
    %v7362 = vunpack.c.h.b16 %v5983
    %v7363 = vunpack.c.l.b16 %v5984
    %v7364 = vunpack.c.h.b16 %v5984
    %v7365 = vunpack.c.l.b16 %v5985
    %v7366 = vunpack.c.h.b16 %v5985
    %v7367 = vunpack.c.l.b16 %v5986
    %v7368 = vunpack.c.h.b16 %v5986
    %v7369 = vunpack.c.l.b16 %v5987
    %v7370 = vunpack.c.h.b16 %v5987
    %v7371 = vunpack.c.l.b16 %v5988
    %v7372 = vunpack.c.h.b16 %v5988
    %v7373 = vunpack.c.l.b16 %v5989
    %v7374 = vunpack.c.h.b16 %v5989
    %v7375 = vunpack.c.l.b16 %v5990
    %v7376 = vunpack.c.h.b16 %v5990
    %v7377 = vunpack.c.l.b16 %v5991
    %v7378 = vunpack.c.h.b16 %v5991
    %v7379 = vunpack.c.l.b16 %v5992
    %v7380 = vunpack.c.h.b16 %v5992
    %v7381 = vunpack.c.l.b16 %v5993
    %v7382 = vunpack.c.h.b16 %v5993
    %v7383 = vunpack.c.l.b16 %v5994
    %v7384 = vunpack.c.h.b16 %v5994
    %v7385 = vunpack.c.l.b16 %v5995
    %v7386 = vunpack.c.h.b16 %v5995
    %v7387 = vunpack.c.l.b16 %v5996
    %v7388 = vunpack.c.h.b16 %v5996
    %v7389 = vunpack.c.l.b16 %v5997
    %v7390 = vunpack.c.h.b16 %v5997
    %v7391 = vunpack.c.l.b16 %v5998
    %v7392 = vunpack.c.h.b16 %v5998
    %v7393 = vunpack.c.l.b16 %v5999
    %v7394 = vunpack.c.h.b16 %v5999
    %v7395 = vunpack.c.l.b16 %v6000
    %v7396 = vunpack.c.h.b16 %v6000
    %v7397 = vunpack.c.l.b16 %v6001
    %v7398 = vunpack.c.h.b16 %v6001
    %v7399 = vunpack.c.l.b16 %v6002
    %v7400 = vunpack.c.h.b16 %v6002
    %v7401 = vunpack.c.l.b16 %v6003
    %v7402 = vunpack.c.h.b16 %v6003
    %v7403 = vunpack.c.l.b16 %v6004
    %v7404 = vunpack.c.h.b16 %v6004
    %v7405 = vunpack.c.l.b16 %v6005
    %v7406 = vunpack.c.h.b16 %v6005
    %v7407 = vunpack.c.l.b16 %v6006
    %v7408 = vunpack.c.h.b16 %v6006
    %v7409 = vunpack.c.l.b16 %v6007
    %v7410 = vunpack.c.h.b16 %v6007
    %v7411 = vunpack.c.l.b16 %v6008
    %v7412 = vunpack.c.h.b16 %v6008
    %v7413 = vunpack.c.l.b16 %v6009
    %v7414 = vunpack.c.h.b16 %v6009
    %v7415 = vunpack.c.l.b16 %v6010
    %v7416 = vunpack.c.h.b16 %v6010
    %v7417 = vunpack.c.l.b16 %v6011
    %v7418 = vunpack.c.h.b16 %v6011
    %v7419 = vunpack.c.l.b16 %v6012
    %v7420 = vunpack.c.h.b16 %v6012
    %v7421 = vunpack.c.l.b16 %v6013
    %v7422 = vunpack.c.h.b16 %v6013
    %v7423 = vunpack.c.l.b16 %v6014
    %v7424 = vunpack.c.h.b16 %v6014
    %v7425 = vunpack.c.l.b16 %v6015
    %v7426 = vunpack.c.h.b16 %v6015
    %v7427 = vunpack.c.l.b16 %v6016
    %v7428 = vunpack.c.h.b16 %v6016
    %v7429 = vunpack.c.l.b16 %v6017
    %v7430 = vunpack.c.h.b16 %v6017
    %v7431 = vunpack.c.l.b16 %v6018
    %v7432 = vunpack.c.h.b16 %v6018
    %v7433 = vunpack.c.l.b16 %v6019
    %v7434 = vunpack.c.h.b16 %v6019
    %v7435 = vunpack.c.l.b16 %v6020
    %v7436 = vunpack.c.h.b16 %v6020
    %v7437 = vunpack.c.l.b16 %v6021
    %v7438 = vunpack.c.h.b16 %v6021
    %v7439 = vunpack.c.l.b16 %v6022
    %v7440 = vunpack.c.h.b16 %v6022
    %v7441 = vunpack.c.l.b16 %v6023
    %v7442 = vunpack.c.h.b16 %v6023
    %v7443 = vunpack.c.l.b16 %v6024
    %v7444 = vunpack.c.h.b16 %v6024
    %v7445 = vunpack.c.l.b16 %v6025
    %v7446 = vunpack.c.h.b16 %v6025
    %v7447 = vunpack.c.l.b16 %v6026
    %v7448 = vunpack.c.h.b16 %v6026
    %v7449 = vunpack.c.l.b16 %v6027
    %v7450 = vunpack.c.h.b16 %v6027
    %v7451 = vunpack.c.l.b16 %v6028
    %v7452 = vunpack.c.h.b16 %v6028
    %v7453 = vunpack.c.l.b16 %v6029
    %v7454 = vunpack.c.h.b16 %v6029
    %v7455 = vunpack.c.l.b16 %v6030
    %v7456 = vunpack.c.h.b16 %v6030
    %v7457 = vunpack.c.l.b16 %v6031
    %v7458 = vunpack.c.h.b16 %v6031
    %v7459 = vunpack.c.l.b16 %v6032
    %v7460 = vunpack.c.h.b16 %v6032
    %v7461 = vunpack.c.l.b16 %v6033
    %v7462 = vunpack.c.h.b16 %v6033
    %v7463 = vunpack.c.l.b16 %v6034
    %v7464 = vunpack.c.h.b16 %v6034
    %v7465 = vunpack.c.l.b16 %v6035
    %v7466 = vunpack.c.h.b16 %v6035
    %v7467 = vunpack.c.l.b16 %v6036
    %v7468 = vunpack.c.h.b16 %v6036
    %v7469 = vunpack.c.l.b16 %v6037
    %v7470 = vunpack.c.h.b16 %v6037
    %v7471 = vunpack.c.l.b16 %v6038
    %v7472 = vunpack.c.h.b16 %v6038
    %v7473 = vunpack.c.l.b16 %v6039
    %v7474 = vunpack.c.h.b16 %v6039
    %v7475 = vunpack.c.l.b16 %v6040
    %v7476 = vunpack.c.h.b16 %v6040
    %v7477 = vunpack.c.l.b16 %v6041
    %v7478 = vunpack.c.h.b16 %v6041
    %v7479 = vunpack.c.l.b16 %v6042
    %v7480 = vunpack.c.h.b16 %v6042
    %v7481 = vunpack.c.l.b16 %v6043
    %v7482 = vunpack.c.h.b16 %v6043
    %v7483 = vunpack.c.l.b16 %v6044
    %v7484 = vunpack.c.h.b16 %v6044
    %v7485 = vunpack.c.l.b16 %v6045
    %v7486 = vunpack.c.h.b16 %v6045
    %v7487 = vunpack.c.l.b16 %v6046
    %v7488 = vunpack.c.h.b16 %v6046
    %v7489 = vunpack.c.l.b16 %v6047
    %v7490 = vunpack.c.h.b16 %v6047
    %v7491 = vunpack.c.l.b16 %v6048
    %v7492 = vunpack.c.h.b16 %v6048
    %v7493 = vunpack.c.l.b16 %v6049
    %v7494 = vunpack.c.h.b16 %v6049
    %v7495 = vunpack.c.l.b16 %v6050
    %v7496 = vunpack.c.h.b16 %v6050
    %v7497 = vunpack.c.l.b16 %v6051
    %v7498 = vunpack.c.h.b16 %v6051
    %v7499 = vunpack.c.l.b16 %v6052
    %v7500 = vunpack.c.h.b16 %v6052
    %v7501 = vunpack.c.l.b16 %v6053
    %v7502 = vunpack.c.h.b16 %v6053
    %v7503 = vunpack.c.l.b16 %v6054
    %v7504 = vunpack.c.h.b16 %v6054
    %v7505 = vunpack.c.l.b16 %v6055
    %v7506 = vunpack.c.h.b16 %v6055
    %v7507 = vunpack.c.l.b16 %v6056
    %v7508 = vunpack.c.h.b16 %v6056
    %v7509 = vunpack.c.l.b16 %v6057
    %v7510 = vunpack.c.h.b16 %v6057
    %v7511 = vunpack.c.l.b16 %v6058
    %v7512 = vunpack.c.h.b16 %v6058
    %v7513 = vunpack.c.l.b16 %v6059
    %v7514 = vunpack.c.h.b16 %v6059
    %v7515 = vunpack.c.l.b16 %v6060
    %v7516 = vunpack.c.h.b16 %v6060
    %v7517 = vunpack.c.l.b16 %v6061
    %v7518 = vunpack.c.h.b16 %v6061
    %v7519 = vunpack.c.l.b16 %v6062
    %v7520 = vunpack.c.h.b16 %v6062
    %v7521 = vunpack.c.l.b16 %v6063
    %v7522 = vunpack.c.h.b16 %v6063
    %v7523 = vunpack.c.l.b16 %v6064
    %v7524 = vunpack.c.h.b16 %v6064
    %v7525 = vunpack.c.l.b16 %v6065
    %v7526 = vunpack.c.h.b16 %v6065
    %v7527 = vunpack.c.l.b16 %v6066
    %v7528 = vunpack.c.h.b16 %v6066
    %v7529 = vunpack.c.l.b16 %v6067
    %v7530 = vunpack.c.h.b16 %v6067
    %v7531 = vunpack.c.l.b16 %v6068
    %v7532 = vunpack.c.h.b16 %v6068
    %v7533 = vunpack.c.l.b16 %v6069
    %v7534 = vunpack.c.h.b16 %v6069
    %v7535 = vunpack.c.l.b16 %v6070
    %v7536 = vunpack.c.h.b16 %v6070
    %v7537 = vunpack.c.l.b16 %v6071
    %v7538 = vunpack.c.h.b16 %v6071
    %v7539 = vunpack.c.l.b16 %v6072
    %v7540 = vunpack.c.h.b16 %v6072
    %v7541 = vunpack.c.l.b16 %v6073
    %v7542 = vunpack.c.h.b16 %v6073
    %v7543 = vunpack.c.l.b16 %v6074
    %v7544 = vunpack.c.h.b16 %v6074
    %v7545 = vunpack.c.l.b16 %v6075
    %v7546 = vunpack.c.h.b16 %v6075
    %v7547 = vunpack.c.l.b16 %v6076
    %v7548 = vunpack.c.h.b16 %v6076
    %v7549 = vunpack.c.l.b16 %v6077
    %v7550 = vunpack.c.h.b16 %v6077
    %v7551 = vunpack.c.l.b16 %v6078
    %v7552 = vunpack.c.h.b16 %v6078
    %v7553 = vunpack.c.l.b16 %v6079
    %v7554 = vunpack.c.h.b16 %v6079
    %v7555 = vunpack.c.l.b16 %v6080
    %v7556 = vunpack.c.h.b16 %v6080
    %v7557 = vunpack.c.l.b16 %v6081
    %v7558 = vunpack.c.h.b16 %v6081
    %v7559 = vunpack.c.l.b16 %v6082
    %v7560 = vunpack.c.h.b16 %v6082
    %v7561 = vunpack.c.l.b16 %v6083
    %v7562 = vunpack.c.h.b16 %v6083
    %v7563 = vunpack.c.l.b16 %v6084
    %v7564 = vunpack.c.h.b16 %v6084
    %v7565 = vunpack.c.l.b16 %v6085
    %v7566 = vunpack.c.h.b16 %v6085
    %v7567 = vunpack.c.l.b16 %v6086
    %v7568 = vunpack.c.h.b16 %v6086
    %v7569 = vunpack.c.l.b16 %v6087
    %v7570 = vunpack.c.h.b16 %v6087
    %v7571 = vunpack.c.l.b16 %v6088
    %v7572 = vunpack.c.h.b16 %v6088
    %v7573 = vunpack.c.l.b16 %v6089
    %v7574 = vunpack.c.h.b16 %v6089
    %v7575 = vunpack.c.l.b16 %v6090
    %v7576 = vunpack.c.h.b16 %v6090
    %v7577 = vunpack.c.l.b16 %v6091
    %v7578 = vunpack.c.h.b16 %v6091
    %v7579 = vunpack.c.l.b16 %v6092
    %v7580 = vunpack.c.h.b16 %v6092
    %v7581 = vunpack.c.l.b16 %v6093
    %v7582 = vunpack.c.h.b16 %v6093
    %v7583 = vunpack.c.l.b16 %v6094
    %v7584 = vunpack.c.h.b16 %v6094
    %v7585 = vunpack.c.l.b16 %v6095
    %v7586 = vunpack.c.h.b16 %v6095
    %v7587 = vunpack.c.l.b16 %v6096
    %v7588 = vunpack.c.h.b16 %v6096
    %v7589 = vunpack.c.l.b16 %v6097
    %v7590 = vunpack.c.h.b16 %v6097
    %v7591 = vunpack.c.l.b16 %v6098
    %v7592 = vunpack.c.h.b16 %v6098
    %v7593 = vunpack.c.l.b16 %v6099
    %v7594 = vunpack.c.h.b16 %v6099
    %v7595 = vunpack.c.l.b16 %v6100
    %v7596 = vunpack.c.h.b16 %v6100
    %v7597 = vunpack.c.l.b16 %v6101
    %v7598 = vunpack.c.h.b16 %v6101
    %v7599 = vunpack.c.l.b16 %v6102
    %v7600 = vunpack.c.h.b16 %v6102
    %v7601 = vunpack.c.l.b16 %v6103
    %v7602 = vunpack.c.h.b16 %v6103
    %v7603 = vunpack.c.l.b16 %v6104
    %v7604 = vunpack.c.h.b16 %v6104
    %v7605 = vunpack.c.l.b16 %v6105
    %v7606 = vunpack.c.h.b16 %v6105
    %v7607 = vunpack.c.l.b16 %v6106
    %v7608 = vunpack.c.h.b16 %v6106
    %v7609 = vunpack.c.l.b16 %v6107
    %v7610 = vunpack.c.h.b16 %v6107
    %v7611 = vunpack.c.l.b16 %v6108
    %v7612 = vunpack.c.h.b16 %v6108
    %v7613 = vunpack.c.l.b16 %v6109
    %v7614 = vunpack.c.h.b16 %v6109
    %v7615 = vunpack.c.l.b16 %v6110
    %v7616 = vunpack.c.h.b16 %v6110
    %v7617 = vunpack.c.l.b16 %v6111
    %v7618 = vunpack.c.h.b16 %v6111
    %v7619 = vunpack.c.l.b16 %v6112
    %v7620 = vunpack.c.h.b16 %v6112
    %v7621 = vunpack.c.l.b16 %v6113
    %v7622 = vunpack.c.h.b16 %v6113
    %v7623 = vunpack.c.l.b16 %v6114
    %v7624 = vunpack.c.h.b16 %v6114
    %v7625 = vunpack.c.l.b16 %v6115
    %v7626 = vunpack.c.h.b16 %v6115
    %v7627 = vunpack.c.l.b16 %v6116
    %v7628 = vunpack.c.h.b16 %v6116
    %v7629 = vunpack.c.l.b16 %v6117
    %v7630 = vunpack.c.h.b16 %v6117
    %v7631 = vunpack.c.l.b16 %v6118
    %v7632 = vunpack.c.h.b16 %v6118
    %v7633 = vunpack.c.l.b16 %v6119
    %v7634 = vunpack.c.h.b16 %v6119
    %v7635 = vunpack.c.l.b16 %v6120
    %v7636 = vunpack.c.h.b16 %v6120
    %v7637 = vunpack.c.l.b16 %v6121
    %v7638 = vunpack.c.h.b16 %v6121
    %v7639 = vunpack.c.l.b16 %v6122
    %v7640 = vunpack.c.h.b16 %v6122
    %v7641 = vunpack.c.l.b16 %v6123
    %v7642 = vunpack.c.h.b16 %v6123
    %v7643 = vunpack.c.l.b16 %v6124
    %v7644 = vunpack.c.h.b16 %v6124
    %v7645 = vunpack.c.l.b16 %v6125
    %v7646 = vunpack.c.h.b16 %v6125
    %v7647 = vunpack.c.l.b16 %v6126
    %v7648 = vunpack.c.h.b16 %v6126
    %v7649 = vunpack.c.l.b16 %v6127
    %v7650 = vunpack.c.h.b16 %v6127
    %v7651 = vunpack.c.l.b16 %v6128
    %v7652 = vunpack.c.h.b16 %v6128
    %v7653 = vunpack.c.l.b16 %v6129
    %v7654 = vunpack.c.h.b16 %v6129
    %v7655 = vunpack.c.l.b16 %v6130
    %v7656 = vunpack.c.h.b16 %v6130
    %v7657 = vunpack.c.l.b16 %v6131
    %v7658 = vunpack.c.h.b16 %v6131
    %v7659 = vunpack.c.l.b16 %v6132
    %v7660 = vunpack.c.h.b16 %v6132
    %v7661 = vunpack.c.l.b16 %v6133
    %v7662 = vunpack.c.h.b16 %v6133
    %v7663 = vunpack.c.l.b16 %v6134
    %v7664 = vunpack.c.h.b16 %v6134
    %v7665 = vunpack.c.l.b16 %v6135
    %v7666 = vunpack.c.h.b16 %v6135
    %v7667 = vunpack.c.l.b16 %v6136
    %v7668 = vunpack.c.h.b16 %v6136
    %v7669 = vunpack.c.l.b16 %v6137
    %v7670 = vunpack.c.h.b16 %v6137
    %v7671 = vunpack.c.l.b16 %v6138
    %v7672 = vunpack.c.h.b16 %v6138
    %v7673 = vunpack.c.l.b16 %v6139
    %v7674 = vunpack.c.h.b16 %v6139
    %v7675 = vunpack.c.l.b16 %v6140
    %v7676 = vunpack.c.h.b16 %v6140
    %v7677 = vunpack.c.l.b16 %v6141
    %v7678 = vunpack.c.h.b16 %v6141
    %v7679 = vunpack.c.l.b16 %v6142
    %v7680 = vunpack.c.h.b16 %v6142
    %v7681 = vunpack.c.l.b16 %v6143
    %v7682 = vunpack.c.h.b16 %v6143
    %v7683 = vunpack.c.l.b16 %v6144
    %v7684 = vunpack.c.h.b16 %v6144
    %v7685 = vunpack.c.l.b16 %v6145
    %v7686 = vunpack.c.h.b16 %v6145
    %v7687 = vunpack.c.l.b16 %v6146
    %v7688 = vunpack.c.h.b16 %v6146
    %v7689 = vunpack.c.l.b16 %v6147
    %v7690 = vunpack.c.h.b16 %v6147
    %v7691 = vunpack.c.l.b16 %v6148
    %v7692 = vunpack.c.h.b16 %v6148
    %v7693 = vunpack.c.l.b16 %v6149
    %v7694 = vunpack.c.h.b16 %v6149
    %v7695 = vunpack.c.l.b16 %v6150
    %v7696 = vunpack.c.h.b16 %v6150
    %v7697 = vunpack.c.l.b16 %v6151
    %v7698 = vunpack.c.h.b16 %v6151
    %v7699 = vunpack.c.l.b16 %v6152
    %v7700 = vunpack.c.h.b16 %v6152
    %v7701 = vunpack.c.l.b16 %v6153
    %v7702 = vunpack.c.h.b16 %v6153
    %v7703 = vunpack.c.l.b16 %v6154
    %v7704 = vunpack.c.h.b16 %v6154
    %v7705 = vunpack.c.l.b16 %v6155
    %v7706 = vunpack.c.h.b16 %v6155
    %v7707 = vunpack.c.l.b16 %v6156
    %v7708 = vunpack.c.h.b16 %v6156
    %v7709 = vunpack.c.l.b16 %v6157
    %v7710 = vunpack.c.h.b16 %v6157
    %v7711 = vunpack.c.l.b16 %v6158
    %v7712 = vunpack.c.h.b16 %v6158
    %v7713 = vunpack.c.l.b16 %v6159
    %v7714 = vunpack.c.h.b16 %v6159
    %v7715 = vunpack.c.l.b16 %v6160
    %v7716 = vunpack.c.h.b16 %v6160
    %v7717 = vunpack.c.l.b16 %v6161
    %v7718 = vunpack.c.h.b16 %v6161
    %v7719 = vunpack.c.l.b16 %v6162
    %v7720 = vunpack.c.h.b16 %v6162
    %v7721 = vunpack.c.l.b16 %v6163
    %v7722 = vunpack.c.h.b16 %v6163
    %v7723 = vunpack.c.l.b16 %v6164
    %v7724 = vunpack.c.h.b16 %v6164
    %v7725 = vunpack.c.l.b16 %v6165
    %v7726 = vunpack.c.h.b16 %v6165
    %v7727 = vunpack.c.l.b16 %v6166
    %v7728 = vunpack.c.h.b16 %v6166
    %v7729 = vunpack.c.l.b16 %v6167
    %v7730 = vunpack.c.h.b16 %v6167
    %v7731 = vunpack.c.l.b16 %v6168
    %v7732 = vunpack.c.h.b16 %v6168
    %v7733 = vunpack.c.l.b16 %v6169
    %v7734 = vunpack.c.h.b16 %v6169
    %v7735 = vunpack.c.l.b16 %v6170
    %v7736 = vunpack.c.h.b16 %v6170
    %v7737 = vunpack.c.l.b16 %v6171
    %v7738 = vunpack.c.h.b16 %v6171
    %v7739 = vunpack.c.l.b16 %v6172
    %v7740 = vunpack.c.h.b16 %v6172
    %v7741 = vunpack.c.l.b16 %v6173
    %v7742 = vunpack.c.h.b16 %v6173
    %v7743 = vunpack.c.l.b16 %v6174
    %v7744 = vunpack.c.h.b16 %v6174
    %v7745 = vunpack.c.l.b16 %v6175
    %v7746 = vunpack.c.h.b16 %v6175
    %v7747 = vunpack.c.l.b16 %v6176
    %v7748 = vunpack.c.h.b16 %v6176
    %v7749 = vunpack.c.l.b16 %v6177
    %v7750 = vunpack.c.h.b16 %v6177
    %v7751 = vunpack.c.l.b16 %v6178
    %v7752 = vunpack.c.h.b16 %v6178
    %v7753 = vunpack.c.l.b16 %v6179
    %v7754 = vunpack.c.h.b16 %v6179
    %v7755 = vunpack.c.l.b16 %v6180
    %v7756 = vunpack.c.h.b16 %v6180
    %v7757 = vunpack.c.l.b16 %v6181
    %v7758 = vunpack.c.h.b16 %v6181
    %v7759 = vunpack.c.l.b16 %v6182
    %v7760 = vunpack.c.h.b16 %v6182
    %v7761 = vpack.c.b16 %v6745, %v6737
    %v7762 = vpack.c.b16 %v6746, %v6738
    %v7763 = vpack.c.b16 %v6747, %v6739
    %v7764 = vpack.c.b16 %v6748, %v6740
    %v7765 = vpack.c.b16 %v6749, %v6741
    %v7766 = vpack.c.b16 %v6750, %v6742
    %v7767 = vpack.c.b16 %v6751, %v6743
    %v7768 = vpack.c.b16 %v6752, %v6744
    %v7769 = vpack.c.b16 %v6761, %v6753
    %v7770 = vpack.c.b16 %v6762, %v6754
    %v7771 = vpack.c.b16 %v6763, %v6755
    %v7772 = vpack.c.b16 %v6764, %v6756
    %v7773 = vpack.c.b16 %v6765, %v6757
    %v7774 = vpack.c.b16 %v6766, %v6758
    %v7775 = vpack.c.b16 %v6767, %v6759
    %v7776 = vpack.c.b16 %v6768, %v6760
    %v7777 = vpack.c.b16 %v6777, %v6769
    %v7778 = vpack.c.b16 %v6778, %v6770
    %v7779 = vpack.c.b16 %v6779, %v6771
    %v7780 = vpack.c.b16 %v6780, %v6772
    %v7781 = vpack.c.b16 %v6781, %v6773
    %v7782 = vpack.c.b16 %v6782, %v6774
    %v7783 = vpack.c.b16 %v6783, %v6775
    %v7784 = vpack.c.b16 %v6784, %v6776
    %v7785 = vpack.c.b16 %v6793, %v6785
    %v7786 = vpack.c.b16 %v6794, %v6786
    %v7787 = vpack.c.b16 %v6795, %v6787
    %v7788 = vpack.c.b16 %v6796, %v6788
    %v7789 = vpack.c.b16 %v6797, %v6789
    %v7790 = vpack.c.b16 %v6798, %v6790
    %v7791 = vpack.c.b16 %v6799, %v6791
    %v7792 = vpack.c.b16 %v6800, %v6792
    %v7793 = vpack.c.b16 %v6809, %v6801
    %v7794 = vpack.c.b16 %v6810, %v6802
    %v7795 = vpack.c.b16 %v6811, %v6803
    %v7796 = vpack.c.b16 %v6812, %v6804
    %v7797 = vpack.c.b16 %v6813, %v6805
    %v7798 = vpack.c.b16 %v6814, %v6806
    %v7799 = vpack.c.b16 %v6815, %v6807
    %v7800 = vpack.c.b16 %v6816, %v6808
    %v7801 = vpack.c.b16 %v6825, %v6817
    %v7802 = vpack.c.b16 %v6826, %v6818
    %v7803 = vpack.c.b16 %v6827, %v6819
    %v7804 = vpack.c.b16 %v6828, %v6820
    %v7805 = vpack.c.b16 %v6829, %v6821
    %v7806 = vpack.c.b16 %v6830, %v6822
    %v7807 = vpack.c.b16 %v6831, %v6823
    %v7808 = vpack.c.b16 %v6832, %v6824
    %v7809 = vpack.c.b16 %v6841, %v6833
    %v7810 = vpack.c.b16 %v6842, %v6834
    %v7811 = vpack.c.b16 %v6843, %v6835
    %v7812 = vpack.c.b16 %v6844, %v6836
    %v7813 = vpack.c.b16 %v6845, %v6837
    %v7814 = vpack.c.b16 %v6846, %v6838
    %v7815 = vpack.c.b16 %v6847, %v6839
    %v7816 = vpack.c.b16 %v6848, %v6840
    %v7817 = vpack.c.b16 %v6857, %v6849
    %v7818 = vpack.c.b16 %v6858, %v6850
    %v7819 = vpack.c.b16 %v6859, %v6851
    %v7820 = vpack.c.b16 %v6860, %v6852
    %v7821 = vpack.c.b16 %v6861, %v6853
    %v7822 = vpack.c.b16 %v6862, %v6854
    %v7823 = vpack.c.b16 %v6863, %v6855
    %v7824 = vpack.c.b16 %v6864, %v6856
    %v7825 = vpack.c.b16 %v6873, %v6865
    %v7826 = vpack.c.b16 %v6874, %v6866
    %v7827 = vpack.c.b16 %v6875, %v6867
    %v7828 = vpack.c.b16 %v6876, %v6868
    %v7829 = vpack.c.b16 %v6877, %v6869
    %v7830 = vpack.c.b16 %v6878, %v6870
    %v7831 = vpack.c.b16 %v6879, %v6871
    %v7832 = vpack.c.b16 %v6880, %v6872
    %v7833 = vpack.c.b16 %v6889, %v6881
    %v7834 = vpack.c.b16 %v6890, %v6882
    %v7835 = vpack.c.b16 %v6891, %v6883
    %v7836 = vpack.c.b16 %v6892, %v6884
    %v7837 = vpack.c.b16 %v6893, %v6885
    %v7838 = vpack.c.b16 %v6894, %v6886
    %v7839 = vpack.c.b16 %v6895, %v6887
    %v7840 = vpack.c.b16 %v6896, %v6888
    %v7841 = vpack.c.b16 %v6905, %v6897
    %v7842 = vpack.c.b16 %v6906, %v6898
    %v7843 = vpack.c.b16 %v6907, %v6899
    %v7844 = vpack.c.b16 %v6908, %v6900
    %v7845 = vpack.c.b16 %v6909, %v6901
    %v7846 = vpack.c.b16 %v6910, %v6902
    %v7847 = vpack.c.b16 %v6911, %v6903
    %v7848 = vpack.c.b16 %v6912, %v6904
    %v7849 = vpack.c.b16 %v6921, %v6913
    %v7850 = vpack.c.b16 %v6922, %v6914
    %v7851 = vpack.c.b16 %v6923, %v6915
    %v7852 = vpack.c.b16 %v6924, %v6916
    %v7853 = vpack.c.b16 %v6925, %v6917
    %v7854 = vpack.c.b16 %v6926, %v6918
    %v7855 = vpack.c.b16 %v6927, %v6919
    %v7856 = vpack.c.b16 %v6928, %v6920
    %v7857 = vpack.c.b16 %v6937, %v6929
    %v7858 = vpack.c.b16 %v6938, %v6930
    %v7859 = vpack.c.b16 %v6939, %v6931
    %v7860 = vpack.c.b16 %v6940, %v6932
    %v7861 = vpack.c.b16 %v6941, %v6933
    %v7862 = vpack.c.b16 %v6942, %v6934
    %v7863 = vpack.c.b16 %v6943, %v6935
    %v7864 = vpack.c.b16 %v6944, %v6936
    %v7865 = vpack.c.b16 %v6953, %v6945
    %v7866 = vpack.c.b16 %v6954, %v6946
    %v7867 = vpack.c.b16 %v6955, %v6947
    %v7868 = vpack.c.b16 %v6956, %v6948
    %v7869 = vpack.c.b16 %v6957, %v6949
    %v7870 = vpack.c.b16 %v6958, %v6950
    %v7871 = vpack.c.b16 %v6959, %v6951
    %v7872 = vpack.c.b16 %v6960, %v6952
    %v7873 = vpack.c.b16 %v6969, %v6961
    %v7874 = vpack.c.b16 %v6970, %v6962
    %v7875 = vpack.c.b16 %v6971, %v6963
    %v7876 = vpack.c.b16 %v6972, %v6964
    %v7877 = vpack.c.b16 %v6973, %v6965
    %v7878 = vpack.c.b16 %v6974, %v6966
    %v7879 = vpack.c.b16 %v6975, %v6967
    %v7880 = vpack.c.b16 %v6976, %v6968
    %v7881 = vpack.c.b16 %v6985, %v6977
    %v7882 = vpack.c.b16 %v6986, %v6978
    %v7883 = vpack.c.b16 %v6987, %v6979
    %v7884 = vpack.c.b16 %v6988, %v6980
    %v7885 = vpack.c.b16 %v6989, %v6981
    %v7886 = vpack.c.b16 %v6990, %v6982
    %v7887 = vpack.c.b16 %v6991, %v6983
    %v7888 = vpack.c.b16 %v6992, %v6984
    %v7889 = vpack.c.b16 %v7001, %v6993
    %v7890 = vpack.c.b16 %v7002, %v6994
    %v7891 = vpack.c.b16 %v7003, %v6995
    %v7892 = vpack.c.b16 %v7004, %v6996
    %v7893 = vpack.c.b16 %v7005, %v6997
    %v7894 = vpack.c.b16 %v7006, %v6998
    %v7895 = vpack.c.b16 %v7007, %v6999
    %v7896 = vpack.c.b16 %v7008, %v7000
    %v7897 = vpack.c.b16 %v7017, %v7009
    %v7898 = vpack.c.b16 %v7018, %v7010
    %v7899 = vpack.c.b16 %v7019, %v7011
    %v7900 = vpack.c.b16 %v7020, %v7012
    %v7901 = vpack.c.b16 %v7021, %v7013
    %v7902 = vpack.c.b16 %v7022, %v7014
    %v7903 = vpack.c.b16 %v7023, %v7015
    %v7904 = vpack.c.b16 %v7024, %v7016
    %v7905 = vpack.c.b16 %v7033, %v7025
    %v7906 = vpack.c.b16 %v7034, %v7026
    %v7907 = vpack.c.b16 %v7035, %v7027
    %v7908 = vpack.c.b16 %v7036, %v7028
    %v7909 = vpack.c.b16 %v7037, %v7029
    %v7910 = vpack.c.b16 %v7038, %v7030
    %v7911 = vpack.c.b16 %v7039, %v7031
    %v7912 = vpack.c.b16 %v7040, %v7032
    %v7913 = vpack.c.b16 %v7049, %v7041
    %v7914 = vpack.c.b16 %v7050, %v7042
    %v7915 = vpack.c.b16 %v7051, %v7043
    %v7916 = vpack.c.b16 %v7052, %v7044
    %v7917 = vpack.c.b16 %v7053, %v7045
    %v7918 = vpack.c.b16 %v7054, %v7046
    %v7919 = vpack.c.b16 %v7055, %v7047
    %v7920 = vpack.c.b16 %v7056, %v7048
    %v7921 = vpack.c.b16 %v7065, %v7057
    %v7922 = vpack.c.b16 %v7066, %v7058
    %v7923 = vpack.c.b16 %v7067, %v7059
    %v7924 = vpack.c.b16 %v7068, %v7060
    %v7925 = vpack.c.b16 %v7069, %v7061
    %v7926 = vpack.c.b16 %v7070, %v7062
    %v7927 = vpack.c.b16 %v7071, %v7063
    %v7928 = vpack.c.b16 %v7072, %v7064
    %v7929 = vpack.c.b16 %v7081, %v7073
    %v7930 = vpack.c.b16 %v7082, %v7074
    %v7931 = vpack.c.b16 %v7083, %v7075
    %v7932 = vpack.c.b16 %v7084, %v7076
    %v7933 = vpack.c.b16 %v7085, %v7077
    %v7934 = vpack.c.b16 %v7086, %v7078
    %v7935 = vpack.c.b16 %v7087, %v7079
    %v7936 = vpack.c.b16 %v7088, %v7080
    %v7937 = vpack.c.b16 %v7097, %v7089
    %v7938 = vpack.c.b16 %v7098, %v7090
    %v7939 = vpack.c.b16 %v7099, %v7091
    %v7940 = vpack.c.b16 %v7100, %v7092
    %v7941 = vpack.c.b16 %v7101, %v7093
    %v7942 = vpack.c.b16 %v7102, %v7094
    %v7943 = vpack.c.b16 %v7103, %v7095
    %v7944 = vpack.c.b16 %v7104, %v7096
    %v7945 = vpack.c.b16 %v7113, %v7105
    %v7946 = vpack.c.b16 %v7114, %v7106
    %v7947 = vpack.c.b16 %v7115, %v7107
    %v7948 = vpack.c.b16 %v7116, %v7108
    %v7949 = vpack.c.b16 %v7117, %v7109
    %v7950 = vpack.c.b16 %v7118, %v7110
    %v7951 = vpack.c.b16 %v7119, %v7111
    %v7952 = vpack.c.b16 %v7120, %v7112
    %v7953 = vpack.c.b16 %v7129, %v7121
    %v7954 = vpack.c.b16 %v7130, %v7122
    %v7955 = vpack.c.b16 %v7131, %v7123
    %v7956 = vpack.c.b16 %v7132, %v7124
    %v7957 = vpack.c.b16 %v7133, %v7125
    %v7958 = vpack.c.b16 %v7134, %v7126
    %v7959 = vpack.c.b16 %v7135, %v7127
    %v7960 = vpack.c.b16 %v7136, %v7128
    %v7961 = vpack.c.b16 %v7145, %v7137
    %v7962 = vpack.c.b16 %v7146, %v7138
    %v7963 = vpack.c.b16 %v7147, %v7139
    %v7964 = vpack.c.b16 %v7148, %v7140
    %v7965 = vpack.c.b16 %v7149, %v7141
    %v7966 = vpack.c.b16 %v7150, %v7142
    %v7967 = vpack.c.b16 %v7151, %v7143
    %v7968 = vpack.c.b16 %v7152, %v7144
    %v7969 = vpack.c.b16 %v7161, %v7153
    %v7970 = vpack.c.b16 %v7162, %v7154
    %v7971 = vpack.c.b16 %v7163, %v7155
    %v7972 = vpack.c.b16 %v7164, %v7156
    %v7973 = vpack.c.b16 %v7165, %v7157
    %v7974 = vpack.c.b16 %v7166, %v7158
    %v7975 = vpack.c.b16 %v7167, %v7159
    %v7976 = vpack.c.b16 %v7168, %v7160
    %v7977 = vpack.c.b16 %v7177, %v7169
    %v7978 = vpack.c.b16 %v7178, %v7170
    %v7979 = vpack.c.b16 %v7179, %v7171
    %v7980 = vpack.c.b16 %v7180, %v7172
    %v7981 = vpack.c.b16 %v7181, %v7173
    %v7982 = vpack.c.b16 %v7182, %v7174
    %v7983 = vpack.c.b16 %v7183, %v7175
    %v7984 = vpack.c.b16 %v7184, %v7176
    %v7985 = vpack.c.b16 %v7193, %v7185
    %v7986 = vpack.c.b16 %v7194, %v7186
    %v7987 = vpack.c.b16 %v7195, %v7187
    %v7988 = vpack.c.b16 %v7196, %v7188
    %v7989 = vpack.c.b16 %v7197, %v7189
    %v7990 = vpack.c.b16 %v7198, %v7190
    %v7991 = vpack.c.b16 %v7199, %v7191
    %v7992 = vpack.c.b16 %v7200, %v7192
    %v7993 = vpack.c.b16 %v7209, %v7201
    %v7994 = vpack.c.b16 %v7210, %v7202
    %v7995 = vpack.c.b16 %v7211, %v7203
    %v7996 = vpack.c.b16 %v7212, %v7204
    %v7997 = vpack.c.b16 %v7213, %v7205
    %v7998 = vpack.c.b16 %v7214, %v7206
    %v7999 = vpack.c.b16 %v7215, %v7207
    %v8000 = vpack.c.b16 %v7216, %v7208
    %v8001 = vpack.c.b16 %v7225, %v7217
    %v8002 = vpack.c.b16 %v7226, %v7218
    %v8003 = vpack.c.b16 %v7227, %v7219
    %v8004 = vpack.c.b16 %v7228, %v7220
    %v8005 = vpack.c.b16 %v7229, %v7221
    %v8006 = vpack.c.b16 %v7230, %v7222
    %v8007 = vpack.c.b16 %v7231, %v7223
    %v8008 = vpack.c.b16 %v7232, %v7224
    %v8009 = vpack.c.b16 %v7241, %v7233
    %v8010 = vpack.c.b16 %v7242, %v7234
    %v8011 = vpack.c.b16 %v7243, %v7235
    %v8012 = vpack.c.b16 %v7244, %v7236
    %v8013 = vpack.c.b16 %v7245, %v7237
    %v8014 = vpack.c.b16 %v7246, %v7238
    %v8015 = vpack.c.b16 %v7247, %v7239
    %v8016 = vpack.c.b16 %v7248, %v7240
    %v8017 = vpack.c.b16 %v7257, %v7249
    %v8018 = vpack.c.b16 %v7258, %v7250
    %v8019 = vpack.c.b16 %v7259, %v7251
    %v8020 = vpack.c.b16 %v7260, %v7252
    %v8021 = vpack.c.b16 %v7261, %v7253
    %v8022 = vpack.c.b16 %v7262, %v7254
    %v8023 = vpack.c.b16 %v7263, %v7255
    %v8024 = vpack.c.b16 %v7264, %v7256
    %v8025 = vpack.c.b16 %v7273, %v7265
    %v8026 = vpack.c.b16 %v7274, %v7266
    %v8027 = vpack.c.b16 %v7275, %v7267
    %v8028 = vpack.c.b16 %v7276, %v7268
    %v8029 = vpack.c.b16 %v7277, %v7269
    %v8030 = vpack.c.b16 %v7278, %v7270
    %v8031 = vpack.c.b16 %v7279, %v7271
    %v8032 = vpack.c.b16 %v7280, %v7272
    %v8033 = vpack.c.b16 %v7289, %v7281
    %v8034 = vpack.c.b16 %v7290, %v7282
    %v8035 = vpack.c.b16 %v7291, %v7283
    %v8036 = vpack.c.b16 %v7292, %v7284
    %v8037 = vpack.c.b16 %v7293, %v7285
    %v8038 = vpack.c.b16 %v7294, %v7286
    %v8039 = vpack.c.b16 %v7295, %v7287
    %v8040 = vpack.c.b16 %v7296, %v7288
    %v8041 = vpack.c.b16 %v7305, %v7297
    %v8042 = vpack.c.b16 %v7306, %v7298
    %v8043 = vpack.c.b16 %v7307, %v7299
    %v8044 = vpack.c.b16 %v7308, %v7300
    %v8045 = vpack.c.b16 %v7309, %v7301
    %v8046 = vpack.c.b16 %v7310, %v7302
    %v8047 = vpack.c.b16 %v7311, %v7303
    %v8048 = vpack.c.b16 %v7312, %v7304
    %v8049 = vpack.c.b16 %v7321, %v7313
    %v8050 = vpack.c.b16 %v7322, %v7314
    %v8051 = vpack.c.b16 %v7323, %v7315
    %v8052 = vpack.c.b16 %v7324, %v7316
    %v8053 = vpack.c.b16 %v7325, %v7317
    %v8054 = vpack.c.b16 %v7326, %v7318
    %v8055 = vpack.c.b16 %v7327, %v7319
    %v8056 = vpack.c.b16 %v7328, %v7320
    %v8057 = vpack.c.b16 %v7337, %v7329
    %v8058 = vpack.c.b16 %v7338, %v7330
    %v8059 = vpack.c.b16 %v7339, %v7331
    %v8060 = vpack.c.b16 %v7340, %v7332
    %v8061 = vpack.c.b16 %v7341, %v7333
    %v8062 = vpack.c.b16 %v7342, %v7334
    %v8063 = vpack.c.b16 %v7343, %v7335
    %v8064 = vpack.c.b16 %v7344, %v7336
    %v8065 = vpack.c.b16 %v7353, %v7345
    %v8066 = vpack.c.b16 %v7354, %v7346
    %v8067 = vpack.c.b16 %v7355, %v7347
    %v8068 = vpack.c.b16 %v7356, %v7348
    %v8069 = vpack.c.b16 %v7357, %v7349
    %v8070 = vpack.c.b16 %v7358, %v7350
    %v8071 = vpack.c.b16 %v7359, %v7351
    %v8072 = vpack.c.b16 %v7360, %v7352
    %v8073 = vpack.c.b16 %v7369, %v7361
    %v8074 = vpack.c.b16 %v7370, %v7362
    %v8075 = vpack.c.b16 %v7371, %v7363
    %v8076 = vpack.c.b16 %v7372, %v7364
    %v8077 = vpack.c.b16 %v7373, %v7365
    %v8078 = vpack.c.b16 %v7374, %v7366
    %v8079 = vpack.c.b16 %v7375, %v7367
    %v8080 = vpack.c.b16 %v7376, %v7368
    %v8081 = vpack.c.b16 %v7385, %v7377
    %v8082 = vpack.c.b16 %v7386, %v7378
    %v8083 = vpack.c.b16 %v7387, %v7379
    %v8084 = vpack.c.b16 %v7388, %v7380
    %v8085 = vpack.c.b16 %v7389, %v7381
    %v8086 = vpack.c.b16 %v7390, %v7382
    %v8087 = vpack.c.b16 %v7391, %v7383
    %v8088 = vpack.c.b16 %v7392, %v7384
    %v8089 = vpack.c.b16 %v7401, %v7393
    %v8090 = vpack.c.b16 %v7402, %v7394
    %v8091 = vpack.c.b16 %v7403, %v7395
    %v8092 = vpack.c.b16 %v7404, %v7396
    %v8093 = vpack.c.b16 %v7405, %v7397
    %v8094 = vpack.c.b16 %v7406, %v7398
    %v8095 = vpack.c.b16 %v7407, %v7399
    %v8096 = vpack.c.b16 %v7408, %v7400
    %v8097 = vpack.c.b16 %v7417, %v7409
    %v8098 = vpack.c.b16 %v7418, %v7410
    %v8099 = vpack.c.b16 %v7419, %v7411
    %v8100 = vpack.c.b16 %v7420, %v7412
    %v8101 = vpack.c.b16 %v7421, %v7413
    %v8102 = vpack.c.b16 %v7422, %v7414
    %v8103 = vpack.c.b16 %v7423, %v7415
    %v8104 = vpack.c.b16 %v7424, %v7416
    %v8105 = vpack.c.b16 %v7433, %v7425
    %v8106 = vpack.c.b16 %v7434, %v7426
    %v8107 = vpack.c.b16 %v7435, %v7427
    %v8108 = vpack.c.b16 %v7436, %v7428
    %v8109 = vpack.c.b16 %v7437, %v7429
    %v8110 = vpack.c.b16 %v7438, %v7430
    %v8111 = vpack.c.b16 %v7439, %v7431
    %v8112 = vpack.c.b16 %v7440, %v7432
    %v8113 = vpack.c.b16 %v7449, %v7441
    %v8114 = vpack.c.b16 %v7450, %v7442
    %v8115 = vpack.c.b16 %v7451, %v7443
    %v8116 = vpack.c.b16 %v7452, %v7444
    %v8117 = vpack.c.b16 %v7453, %v7445
    %v8118 = vpack.c.b16 %v7454, %v7446
    %v8119 = vpack.c.b16 %v7455, %v7447
    %v8120 = vpack.c.b16 %v7456, %v7448
    %v8121 = vpack.c.b16 %v7465, %v7457
    %v8122 = vpack.c.b16 %v7466, %v7458
    %v8123 = vpack.c.b16 %v7467, %v7459
    %v8124 = vpack.c.b16 %v7468, %v7460
    %v8125 = vpack.c.b16 %v7469, %v7461
    %v8126 = vpack.c.b16 %v7470, %v7462
    %v8127 = vpack.c.b16 %v7471, %v7463
    %v8128 = vpack.c.b16 %v7472, %v7464
    %v8129 = vpack.c.b16 %v7481, %v7473
    %v8130 = vpack.c.b16 %v7482, %v7474
    %v8131 = vpack.c.b16 %v7483, %v7475
    %v8132 = vpack.c.b16 %v7484, %v7476
    %v8133 = vpack.c.b16 %v7485, %v7477
    %v8134 = vpack.c.b16 %v7486, %v7478
    %v8135 = vpack.c.b16 %v7487, %v7479
    %v8136 = vpack.c.b16 %v7488, %v7480
    %v8137 = vpack.c.b16 %v7497, %v7489
    %v8138 = vpack.c.b16 %v7498, %v7490
    %v8139 = vpack.c.b16 %v7499, %v7491
    %v8140 = vpack.c.b16 %v7500, %v7492
    %v8141 = vpack.c.b16 %v7501, %v7493
    %v8142 = vpack.c.b16 %v7502, %v7494
    %v8143 = vpack.c.b16 %v7503, %v7495
    %v8144 = vpack.c.b16 %v7504, %v7496
    %v8145 = vpack.c.b16 %v7513, %v7505
    %v8146 = vpack.c.b16 %v7514, %v7506
    %v8147 = vpack.c.b16 %v7515, %v7507
    %v8148 = vpack.c.b16 %v7516, %v7508
    %v8149 = vpack.c.b16 %v7517, %v7509
    %v8150 = vpack.c.b16 %v7518, %v7510
    %v8151 = vpack.c.b16 %v7519, %v7511
    %v8152 = vpack.c.b16 %v7520, %v7512
    %v8153 = vpack.c.b16 %v7529, %v7521
    %v8154 = vpack.c.b16 %v7530, %v7522
    %v8155 = vpack.c.b16 %v7531, %v7523
    %v8156 = vpack.c.b16 %v7532, %v7524
    %v8157 = vpack.c.b16 %v7533, %v7525
    %v8158 = vpack.c.b16 %v7534, %v7526
    %v8159 = vpack.c.b16 %v7535, %v7527
    %v8160 = vpack.c.b16 %v7536, %v7528
    %v8161 = vpack.c.b16 %v7545, %v7537
    %v8162 = vpack.c.b16 %v7546, %v7538
    %v8163 = vpack.c.b16 %v7547, %v7539
    %v8164 = vpack.c.b16 %v7548, %v7540
    %v8165 = vpack.c.b16 %v7549, %v7541
    %v8166 = vpack.c.b16 %v7550, %v7542
    %v8167 = vpack.c.b16 %v7551, %v7543
    %v8168 = vpack.c.b16 %v7552, %v7544
    %v8169 = vpack.c.b16 %v7561, %v7553
    %v8170 = vpack.c.b16 %v7562, %v7554
    %v8171 = vpack.c.b16 %v7563, %v7555
    %v8172 = vpack.c.b16 %v7564, %v7556
    %v8173 = vpack.c.b16 %v7565, %v7557
    %v8174 = vpack.c.b16 %v7566, %v7558
    %v8175 = vpack.c.b16 %v7567, %v7559
    %v8176 = vpack.c.b16 %v7568, %v7560
    %v8177 = vpack.c.b16 %v7577, %v7569
    %v8178 = vpack.c.b16 %v7578, %v7570
    %v8179 = vpack.c.b16 %v7579, %v7571
    %v8180 = vpack.c.b16 %v7580, %v7572
    %v8181 = vpack.c.b16 %v7581, %v7573
    %v8182 = vpack.c.b16 %v7582, %v7574
    %v8183 = vpack.c.b16 %v7583, %v7575
    %v8184 = vpack.c.b16 %v7584, %v7576
    %v8185 = vpack.c.b16 %v7593, %v7585
    %v8186 = vpack.c.b16 %v7594, %v7586
    %v8187 = vpack.c.b16 %v7595, %v7587
    %v8188 = vpack.c.b16 %v7596, %v7588
    %v8189 = vpack.c.b16 %v7597, %v7589
    %v8190 = vpack.c.b16 %v7598, %v7590
    %v8191 = vpack.c.b16 %v7599, %v7591
    %v8192 = vpack.c.b16 %v7600, %v7592
    %v8193 = vpack.c.b16 %v7609, %v7601
    %v8194 = vpack.c.b16 %v7610, %v7602
    %v8195 = vpack.c.b16 %v7611, %v7603
    %v8196 = vpack.c.b16 %v7612, %v7604
    %v8197 = vpack.c.b16 %v7613, %v7605
    %v8198 = vpack.c.b16 %v7614, %v7606
    %v8199 = vpack.c.b16 %v7615, %v7607
    %v8200 = vpack.c.b16 %v7616, %v7608
    %v8201 = vpack.c.b16 %v7625, %v7617
    %v8202 = vpack.c.b16 %v7626, %v7618
    %v8203 = vpack.c.b16 %v7627, %v7619
    %v8204 = vpack.c.b16 %v7628, %v7620
    %v8205 = vpack.c.b16 %v7629, %v7621
    %v8206 = vpack.c.b16 %v7630, %v7622
    %v8207 = vpack.c.b16 %v7631, %v7623
    %v8208 = vpack.c.b16 %v7632, %v7624
    %v8209 = vpack.c.b16 %v7641, %v7633
    %v8210 = vpack.c.b16 %v7642, %v7634
    %v8211 = vpack.c.b16 %v7643, %v7635
    %v8212 = vpack.c.b16 %v7644, %v7636
    %v8213 = vpack.c.b16 %v7645, %v7637
    %v8214 = vpack.c.b16 %v7646, %v7638
    %v8215 = vpack.c.b16 %v7647, %v7639
    %v8216 = vpack.c.b16 %v7648, %v7640
    %v8217 = vpack.c.b16 %v7657, %v7649
    %v8218 = vpack.c.b16 %v7658, %v7650
    %v8219 = vpack.c.b16 %v7659, %v7651
    %v8220 = vpack.c.b16 %v7660, %v7652
    %v8221 = vpack.c.b16 %v7661, %v7653
    %v8222 = vpack.c.b16 %v7662, %v7654
    %v8223 = vpack.c.b16 %v7663, %v7655
    %v8224 = vpack.c.b16 %v7664, %v7656
    %v8225 = vpack.c.b16 %v7673, %v7665
    %v8226 = vpack.c.b16 %v7674, %v7666
    %v8227 = vpack.c.b16 %v7675, %v7667
    %v8228 = vpack.c.b16 %v7676, %v7668
    %v8229 = vpack.c.b16 %v7677, %v7669
    %v8230 = vpack.c.b16 %v7678, %v7670
    %v8231 = vpack.c.b16 %v7679, %v7671
    %v8232 = vpack.c.b16 %v7680, %v7672
    %v8233 = vpack.c.b16 %v7689, %v7681
    %v8234 = vpack.c.b16 %v7690, %v7682
    %v8235 = vpack.c.b16 %v7691, %v7683
    %v8236 = vpack.c.b16 %v7692, %v7684
    %v8237 = vpack.c.b16 %v7693, %v7685
    %v8238 = vpack.c.b16 %v7694, %v7686
    %v8239 = vpack.c.b16 %v7695, %v7687
    %v8240 = vpack.c.b16 %v7696, %v7688
    %v8241 = vpack.c.b16 %v7705, %v7697
    %v8242 = vpack.c.b16 %v7706, %v7698
    %v8243 = vpack.c.b16 %v7707, %v7699
    %v8244 = vpack.c.b16 %v7708, %v7700
    %v8245 = vpack.c.b16 %v7709, %v7701
    %v8246 = vpack.c.b16 %v7710, %v7702
    %v8247 = vpack.c.b16 %v7711, %v7703
    %v8248 = vpack.c.b16 %v7712, %v7704
    %v8249 = vpack.c.b16 %v7721, %v7713
    %v8250 = vpack.c.b16 %v7722, %v7714
    %v8251 = vpack.c.b16 %v7723, %v7715
    %v8252 = vpack.c.b16 %v7724, %v7716
    %v8253 = vpack.c.b16 %v7725, %v7717
    %v8254 = vpack.c.b16 %v7726, %v7718
    %v8255 = vpack.c.b16 %v7727, %v7719
    %v8256 = vpack.c.b16 %v7728, %v7720
    %v8257 = vpack.c.b16 %v7737, %v7729
    %v8258 = vpack.c.b16 %v7738, %v7730
    %v8259 = vpack.c.b16 %v7739, %v7731
    %v8260 = vpack.c.b16 %v7740, %v7732
    %v8261 = vpack.c.b16 %v7741, %v7733
    %v8262 = vpack.c.b16 %v7742, %v7734
    %v8263 = vpack.c.b16 %v7743, %v7735
    %v8264 = vpack.c.b16 %v7744, %v7736
    %v8265 = vpack.c.b16 %v7753, %v7745
    %v8266 = vpack.c.b16 %v7754, %v7746
    %v8267 = vpack.c.b16 %v7755, %v7747
    %v8268 = vpack.c.b16 %v7756, %v7748
    %v8269 = vpack.c.b16 %v7757, %v7749
    %v8270 = vpack.c.b16 %v7758, %v7750
    %v8271 = vpack.c.b16 %v7759, %v7751
    %v8272 = vpack.c.b16 %v7760, %v7752
    %8785 = vmatprep.subr.bf16.mxu0 %v7762
    %8786 = vmatpush1.bf16.msra.mxu0 %v7761
    %8787 = vmatprep.subr.bf16.mxu0 %v7770
    %8788 = vmatpush1.bf16.msra.mxu0 %v7769
    %8789 = vmatprep.subr.bf16.mxu0 %v7778
    %8790 = vmatpush1.bf16.msra.mxu0 %v7777
    %8791 = vmatprep.subr.bf16.mxu0 %v7786
    %8792 = vmatpush1.bf16.msra.mxu0 %v7785
    %8793 = vmatprep.subr.bf16.mxu0 %v7794
    %8794 = vmatpush1.bf16.msra.mxu0 %v7793
    %8795 = vmatprep.subr.bf16.mxu0 %v7802
    %8796 = vmatpush1.bf16.msra.mxu0 %v7801
    %8797 = vmatprep.subr.bf16.mxu0 %v7810
    %8798 = vmatpush1.bf16.msra.mxu0 %v7809
    %8799 = vmatprep.subr.bf16.mxu0 %v7818
    %8800 = vmatpush1.bf16.msra.mxu0 %v7817
    %8801 = vmatprep.subr.bf16.mxu0 %v7826
    %8802 = vmatpush1.bf16.msra.mxu0 %v7825
    %8803 = vmatprep.subr.bf16.mxu0 %v7834
    %8804 = vmatpush1.bf16.msra.mxu0 %v7833
    %8805 = vmatprep.subr.bf16.mxu0 %v7842
    %8806 = vmatpush1.bf16.msra.mxu0 %v7841
    %8807 = vmatprep.subr.bf16.mxu0 %v7850
    %8808 = vmatpush1.bf16.msra.mxu0 %v7849
    %8809 = vmatprep.subr.bf16.mxu0 %v7858
    %8810 = vmatpush1.bf16.msra.mxu0 %v7857
    %8811 = vmatprep.subr.bf16.mxu0 %v7866
    %8812 = vmatpush1.bf16.msra.mxu0 %v7865
    %8813 = vmatprep.subr.bf16.mxu0 %v7874
    %8814 = vmatpush1.bf16.msra.mxu0 %v7873
    %8815 = vmatprep.subr.bf16.mxu0 %v7882
    %8816 = vmatpush1.bf16.msra.mxu0 %v7881
    %8817 = vmatprep.mubr.bf16.mxu0 %v5656
    %8818 = vmatmul.mubr.bf16.gmra.mrb[0].mxu0 %v5655
    %v8819 = vpop.f32.mrb[0].mxu0
    %v8820 = vadd.f32 %v6188, %v8819
    %v8821 = vpop.f32.mrb[0].mxu0
    %v8822 = vadd.f32 %v6192, %v8821
    %v8823 = vpop.f32.mrb[0].mxu0
    %v8824 = vadd.f32 %v6188, %v8823
    %v8825 = vpop.f32.mrb[0].mxu0
    %v8826 = vadd.f32 %v6192, %v8825
    %8827 = vmatprep.mubr.bf16.mxu0 %v5664
    %8828 = vmatmul.mubr.bf16.gmra.mrb[0].mxu0 %v5663
    %v8829 = vpop.f32.mrb[0].mxu0
    %v8830 = vadd.f32 %v6188, %v8829
    %v8831 = vpop.f32.mrb[0].mxu0
    %v8832 = vadd.f32 %v6192, %v8831
    %v8833 = vpop.f32.mrb[0].mxu0
    %v8834 = vpop.f32.mrb[0].mxu0
    %8835 = vdwg.mxu0
    %8836 = vmatprep.subr.bf16.mxu0 %v7890
    %8837 = vmatpush1.bf16.msra.mxu0 %v7889
    %8838 = vmatprep.subr.bf16.mxu0 %v7898
    %8839 = vmatpush1.bf16.msra.mxu0 %v7897
    %8840 = vmatprep.subr.bf16.mxu0 %v7906
    %8841 = vmatpush1.bf16.msra.mxu0 %v7905
    %8842 = vmatprep.subr.bf16.mxu0 %v7914
    %8843 = vmatpush1.bf16.msra.mxu0 %v7913
    %8844 = vmatprep.subr.bf16.mxu0 %v7922
    %8845 = vmatpush1.bf16.msra.mxu0 %v7921
    %8846 = vmatprep.subr.bf16.mxu0 %v7930
    %8847 = vmatpush1.bf16.msra.mxu0 %v7929
    %8848 = vmatprep.subr.bf16.mxu0 %v7938
    %8849 = vmatpush1.bf16.msra.mxu0 %v7937
    %8850 = vmatprep.subr.bf16.mxu0 %v7946
    %8851 = vmatpush1.bf16.msra.mxu0 %v7945
    %8852 = vmatprep.subr.bf16.mxu0 %v7954
    %8853 = vmatpush1.bf16.msra.mxu0 %v7953
    %8854 = vmatprep.subr.bf16.mxu0 %v7962
    %8855 = vmatpush1.bf16.msra.mxu0 %v7961
    %8856 = vmatprep.subr.bf16.mxu0 %v7970
    %8857 = vmatpush1.bf16.msra.mxu0 %v7969
    %8858 = vmatprep.subr.bf16.mxu0 %v7978
    %8859 = vmatpush1.bf16.msra.mxu0 %v7977
    %8860 = vmatprep.subr.bf16.mxu0 %v7986
    %8861 = vmatpush1.bf16.msra.mxu0 %v7985
    %8862 = vmatprep.subr.bf16.mxu0 %v7994
    %8863 = vmatpush1.bf16.msra.mxu0 %v7993
    %8864 = vmatprep.subr.bf16.mxu0 %v8002
    %8865 = vmatpush1.bf16.msra.mxu0 %v8001
    %8866 = vmatprep.subr.bf16.mxu0 %v8010
    %8867 = vmatpush1.bf16.msra.mxu0 %v8009
    %8868 = vmatprep.mubr.bf16.mxu0 %v5658
    %8869 = vmatmul.mubr.bf16.gmra.mrb[0].mxu0 %v5657
    %v8870 = vpop.f32.mrb[0].mxu0
    %v8871 = vadd.f32 %v8820, %v8870
    %v8872 = vpop.f32.mrb[0].mxu0
    %v8873 = vadd.f32 %v8822, %v8872
    %v8874 = vpop.f32.mrb[0].mxu0
    %v8875 = vadd.f32 %v8824, %v8874
    %v8876 = vpop.f32.mrb[0].mxu0
    %v8877 = vadd.f32 %v8826, %v8876
    %8878 = vmatprep.mubr.bf16.mxu0 %v5666
    %8879 = vmatmul.mubr.bf16.gmra.mrb[0].mxu0 %v5665
    %v8880 = vpop.f32.mrb[0].mxu0
    %v8881 = vadd.f32 %v8830, %v8880
    %v8882 = vpop.f32.mrb[0].mxu0
    %v8883 = vadd.f32 %v8832, %v8882
    %v8884 = vpop.f32.mrb[0].mxu0
    %v8885 = vpop.f32.mrb[0].mxu0
    %8886 = vdwg.mxu0
    %8887 = vmatprep.subr.bf16.mxu0 %v8018
    %8888 = vmatpush1.bf16.msra.mxu0 %v8017
    %8889 = vmatprep.subr.bf16.mxu0 %v8026
    %8890 = vmatpush1.bf16.msra.mxu0 %v8025
    %8891 = vmatprep.subr.bf16.mxu0 %v8034
    %8892 = vmatpush1.bf16.msra.mxu0 %v8033
    %8893 = vmatprep.subr.bf16.mxu0 %v8042
    %8894 = vmatpush1.bf16.msra.mxu0 %v8041
    %8895 = vmatprep.subr.bf16.mxu0 %v8050
    %8896 = vmatpush1.bf16.msra.mxu0 %v8049
    %8897 = vmatprep.subr.bf16.mxu0 %v8058
    %8898 = vmatpush1.bf16.msra.mxu0 %v8057
    %8899 = vmatprep.subr.bf16.mxu0 %v8066
    %8900 = vmatpush1.bf16.msra.mxu0 %v8065
    %8901 = vmatprep.subr.bf16.mxu0 %v8074
    %8902 = vmatpush1.bf16.msra.mxu0 %v8073
    %8903 = vmatprep.subr.bf16.mxu0 %v8082
    %8904 = vmatpush1.bf16.msra.mxu0 %v8081
    %8905 = vmatprep.subr.bf16.mxu0 %v8090
    %8906 = vmatpush1.bf16.msra.mxu0 %v8089
    %8907 = vmatprep.subr.bf16.mxu0 %v8098
    %8908 = vmatpush1.bf16.msra.mxu0 %v8097
    %8909 = vmatprep.subr.bf16.mxu0 %v8106
    %8910 = vmatpush1.bf16.msra.mxu0 %v8105
    %8911 = vmatprep.subr.bf16.mxu0 %v8114
    %8912 = vmatpush1.bf16.msra.mxu0 %v8113
    %8913 = vmatprep.subr.bf16.mxu0 %v8122
    %8914 = vmatpush1.bf16.msra.mxu0 %v8121
    %8915 = vmatprep.subr.bf16.mxu0 %v8130
    %8916 = vmatpush1.bf16.msra.mxu0 %v8129
    %8917 = vmatprep.subr.bf16.mxu0 %v8138
    %8918 = vmatpush1.bf16.msra.mxu0 %v8137
    %8919 = vmatprep.mubr.bf16.mxu0 %v5660
    %8920 = vmatmul.mubr.bf16.gmra.mrb[0].mxu0 %v5659
    %v8921 = vpop.f32.mrb[0].mxu0
    %v8922 = vadd.f32 %v8871, %v8921
    %v8923 = vpop.f32.mrb[0].mxu0
    %v8924 = vadd.f32 %v8873, %v8923
    %v8925 = vpop.f32.mrb[0].mxu0
    %v8926 = vadd.f32 %v8875, %v8925
    %v8927 = vpop.f32.mrb[0].mxu0
    %v8928 = vadd.f32 %v8877, %v8927
    %8929 = vmatprep.mubr.bf16.mxu0 %v5668
    %8930 = vmatmul.mubr.bf16.gmra.mrb[0].mxu0 %v5667
    %v8931 = vpop.f32.mrb[0].mxu0
    %v8932 = vadd.f32 %v8881, %v8931
    %v8933 = vpop.f32.mrb[0].mxu0
    %v8934 = vadd.f32 %v8883, %v8933
    %v8935 = vpop.f32.mrb[0].mxu0
    %v8936 = vpop.f32.mrb[0].mxu0
    %8937 = vdwg.mxu0
    %8938 = vmatprep.subr.bf16.mxu0 %v8146
    %8939 = vmatpush1.bf16.msra.mxu0 %v8145
    %8940 = vmatprep.subr.bf16.mxu0 %v8154
    %8941 = vmatpush1.bf16.msra.mxu0 %v8153
    %8942 = vmatprep.subr.bf16.mxu0 %v8162
    %8943 = vmatpush1.bf16.msra.mxu0 %v8161
    %8944 = vmatprep.subr.bf16.mxu0 %v8170
    %8945 = vmatpush1.bf16.msra.mxu0 %v8169
    %8946 = vmatprep.subr.bf16.mxu0 %v8178
    %8947 = vmatpush1.bf16.msra.mxu0 %v8177
    %8948 = vmatprep.subr.bf16.mxu0 %v8186
    %8949 = vmatpush1.bf16.msra.mxu0 %v8185
    %8950 = vmatprep.subr.bf16.mxu0 %v8194
    %8951 = vmatpush1.bf16.msra.mxu0 %v8193
    %8952 = vmatprep.subr.bf16.mxu0 %v8202
    %8953 = vmatpush1.bf16.msra.mxu0 %v8201
    %8954 = vmatprep.subr.bf16.mxu0 %v8210
    %8955 = vmatpush1.bf16.msra.mxu0 %v8209
    %8956 = vmatprep.subr.bf16.mxu0 %v8218
    %8957 = vmatpush1.bf16.msra.mxu0 %v8217
    %8958 = vmatprep.subr.bf16.mxu0 %v8226
    %8959 = vmatpush1.bf16.msra.mxu0 %v8225
    %8960 = vmatprep.subr.bf16.mxu0 %v8234
    %8961 = vmatpush1.bf16.msra.mxu0 %v8233
    %8962 = vmatprep.subr.bf16.mxu0 %v8242
    %8963 = vmatpush1.bf16.msra.mxu0 %v8241
    %8964 = vmatprep.subr.bf16.mxu0 %v8250
    %8965 = vmatpush1.bf16.msra.mxu0 %v8249
    %8966 = vmatprep.subr.bf16.mxu0 %v8258
    %8967 = vmatpush1.bf16.msra.mxu0 %v8257
    %8968 = vmatprep.subr.bf16.mxu0 %v8266
    %8969 = vmatpush1.bf16.msra.mxu0 %v8265
    %8970 = vmatprep.mubr.bf16.mxu0 %v5662
    %8971 = vmatmul.mubr.bf16.gmra.mrb[0].mxu0 %v5661
    %v8972 = vpop.f32.mrb[0].mxu0
    %v8973 = vadd.f32 %v8922, %v8972
    %v8974 = vpop.f32.mrb[0].mxu0
    %v8975 = vadd.f32 %v8924, %v8974
    %v8976 = vpop.f32.mrb[0].mxu0
    %v8977 = vadd.f32 %v8926, %v8976
    %v8978 = vpop.f32.mrb[0].mxu0
    %v8979 = vadd.f32 %v8928, %v8978
    %8980 = vmatprep.mubr.bf16.mxu0 %v5670
    %8981 = vmatmul.mubr.bf16.gmra.mrb[0].mxu0 %v5669
    %v8982 = vpop.f32.mrb[0].mxu0
    %v8983 = vadd.f32 %v8932, %v8982
    %v8984 = vpop.f32.mrb[0].mxu0
    %v8985 = vadd.f32 %v8934, %v8984
    %v8986 = vpop.f32.mrb[0].mxu0
    %v8987 = vpop.f32.mrb[0].mxu0
    %8988 = vdwg.mxu0
    %8989 = vmatprep.subr.bf16.mxu0 %v7764
    %8990 = vmatpush1.bf16.msra.mxu0 %v7763
    %8991 = vmatprep.subr.bf16.mxu0 %v7772
    %8992 = vmatpush1.bf16.msra.mxu0 %v7771
    %8993 = vmatprep.subr.bf16.mxu0 %v7780
    %8994 = vmatpush1.bf16.msra.mxu0 %v7779
    %8995 = vmatprep.subr.bf16.mxu0 %v7788
    %8996 = vmatpush1.bf16.msra.mxu0 %v7787
    %8997 = vmatprep.subr.bf16.mxu0 %v7796
    %8998 = vmatpush1.bf16.msra.mxu0 %v7795
    %8999 = vmatprep.subr.bf16.mxu0 %v7804
    %9000 = vmatpush1.bf16.msra.mxu0 %v7803
    %9001 = vmatprep.subr.bf16.mxu0 %v7812
    %9002 = vmatpush1.bf16.msra.mxu0 %v7811
    %9003 = vmatprep.subr.bf16.mxu0 %v7820
    %9004 = vmatpush1.bf16.msra.mxu0 %v7819
    %9005 = vmatprep.subr.bf16.mxu0 %v7828
    %9006 = vmatpush1.bf16.msra.mxu0 %v7827
    %9007 = vmatprep.subr.bf16.mxu0 %v7836
    %9008 = vmatpush1.bf16.msra.mxu0 %v7835
    %9009 = vmatprep.subr.bf16.mxu0 %v7844
    %9010 = vmatpush1.bf16.msra.mxu0 %v7843
    %9011 = vmatprep.subr.bf16.mxu0 %v7852
    %9012 = vmatpush1.bf16.msra.mxu0 %v7851
    %9013 = vmatprep.subr.bf16.mxu0 %v7860
    %9014 = vmatpush1.bf16.msra.mxu0 %v7859
    %9015 = vmatprep.subr.bf16.mxu0 %v7868
    %9016 = vmatpush1.bf16.msra.mxu0 %v7867
    %9017 = vmatprep.subr.bf16.mxu0 %v7876
    %9018 = vmatpush1.bf16.msra.mxu0 %v7875
    %9019 = vmatprep.subr.bf16.mxu0 %v7884
    %9020 = vmatpush1.bf16.msra.mxu0 %v7883
    %9021 = vmatprep.mubr.bf16.mxu0 %v5656
    %9022 = vmatmul.mubr.bf16.gmra.mrb[0].mxu0 %v5655
    %v9023 = vpop.f32.mrb[0].mxu0
    %v9024 = vadd.f32 %v6196, %v9023
    %v9025 = vpop.f32.mrb[0].mxu0
    %v9026 = vadd.f32 %v6200, %v9025
    %v9027 = vpop.f32.mrb[0].mxu0
    %v9028 = vadd.f32 %v6196, %v9027
    %v9029 = vpop.f32.mrb[0].mxu0
    %v9030 = vadd.f32 %v6200, %v9029
    %9031 = vmatprep.mubr.bf16.mxu0 %v5664
    %9032 = vmatmul.mubr.bf16.gmra.mrb[0].mxu0 %v5663
    %v9033 = vpop.f32.mrb[0].mxu0
    %v9034 = vadd.f32 %v6196, %v9033
    %v9035 = vpop.f32.mrb[0].mxu0
    %v9036 = vadd.f32 %v6200, %v9035
    %v9037 = vpop.f32.mrb[0].mxu0
    %v9038 = vpop.f32.mrb[0].mxu0
    %9039 = vdwg.mxu0
    %9040 = vmatprep.subr.bf16.mxu0 %v7892
    %9041 = vmatpush1.bf16.msra.mxu0 %v7891
    %9042 = vmatprep.subr.bf16.mxu0 %v7900
    %9043 = vmatpush1.bf16.msra.mxu0 %v7899
    %9044 = vmatprep.subr.bf16.mxu0 %v7908
    %9045 = vmatpush1.bf16.msra.mxu0 %v7907
    %9046 = vmatprep.subr.bf16.mxu0 %v7916
    %9047 = vmatpush1.bf16.msra.mxu0 %v7915
    %9048 = vmatprep.subr.bf16.mxu0 %v7924
    %9049 = vmatpush1.bf16.msra.mxu0 %v7923
    %9050 = vmatprep.subr.bf16.mxu0 %v7932
    %9051 = vmatpush1.bf16.msra.mxu0 %v7931
    %9052 = vmatprep.subr.bf16.mxu0 %v7940
    %9053 = vmatpush1.bf16.msra.mxu0 %v7939
    %9054 = vmatprep.subr.bf16.mxu0 %v7948
    %9055 = vmatpush1.bf16.msra.mxu0 %v7947
    %9056 = vmatprep.subr.bf16.mxu0 %v7956
    %9057 = vmatpush1.bf16.msra.mxu0 %v7955
    %9058 = vmatprep.subr.bf16.mxu0 %v7964
    %9059 = vmatpush1.bf16.msra.mxu0 %v7963
    %9060 = vmatprep.subr.bf16.mxu0 %v7972
    %9061 = vmatpush1.bf16.msra.mxu0 %v7971
    %9062 = vmatprep.subr.bf16.mxu0 %v7980
    %9063 = vmatpush1.bf16.msra.mxu0 %v7979
    %9064 = vmatprep.subr.bf16.mxu0 %v7988
    %9065 = vmatpush1.bf16.msra.mxu0 %v7987
    %9066 = vmatprep.subr.bf16.mxu0 %v7996
    %9067 = vmatpush1.bf16.msra.mxu0 %v7995
    %9068 = vmatprep.subr.bf16.mxu0 %v8004
    %9069 = vmatpush1.bf16.msra.mxu0 %v8003
    %9070 = vmatprep.subr.bf16.mxu0 %v8012
    %9071 = vmatpush1.bf16.msra.mxu0 %v8011
    %9072 = vmatprep.mubr.bf16.mxu0 %v5658
    %9073 = vmatmul.mubr.bf16.gmra.mrb[0].mxu0 %v5657
    %v9074 = vpop.f32.mrb[0].mxu0
    %v9075 = vadd.f32 %v9024, %v9074
    %v9076 = vpop.f32.mrb[0].mxu0
    %v9077 = vadd.f32 %v9026, %v9076
    %v9078 = vpop.f32.mrb[0].mxu0
    %v9079 = vadd.f32 %v9028, %v9078
    %v9080 = vpop.f32.mrb[0].mxu0
    %v9081 = vadd.f32 %v9030, %v9080
    %9082 = vmatprep.mubr.bf16.mxu0 %v5666
    %9083 = vmatmul.mubr.bf16.gmra.mrb[0].mxu0 %v5665
    %v9084 = vpop.f32.mrb[0].mxu0
    %v9085 = vadd.f32 %v9034, %v9084
    %v9086 = vpop.f32.mrb[0].mxu0
    %v9087 = vadd.f32 %v9036, %v9086
    %v9088 = vpop.f32.mrb[0].mxu0
    %v9089 = vpop.f32.mrb[0].mxu0
    %9090 = vdwg.mxu0
    %9091 = vmatprep.subr.bf16.mxu0 %v8020
    %9092 = vmatpush1.bf16.msra.mxu0 %v8019
    %9093 = vmatprep.subr.bf16.mxu0 %v8028
    %9094 = vmatpush1.bf16.msra.mxu0 %v8027
    %9095 = vmatprep.subr.bf16.mxu0 %v8036
    %9096 = vmatpush1.bf16.msra.mxu0 %v8035
    %9097 = vmatprep.subr.bf16.mxu0 %v8044
    %9098 = vmatpush1.bf16.msra.mxu0 %v8043
    %9099 = vmatprep.subr.bf16.mxu0 %v8052
    %9100 = vmatpush1.bf16.msra.mxu0 %v8051
    %9101 = vmatprep.subr.bf16.mxu0 %v8060
    %9102 = vmatpush1.bf16.msra.mxu0 %v8059
    %9103 = vmatprep.subr.bf16.mxu0 %v8068
    %9104 = vmatpush1.bf16.msra.mxu0 %v8067
    %9105 = vmatprep.subr.bf16.mxu0 %v8076
    %9106 = vmatpush1.bf16.msra.mxu0 %v8075
    %9107 = vmatprep.subr.bf16.mxu0 %v8084
    %9108 = vmatpush1.bf16.msra.mxu0 %v8083
    %9109 = vmatprep.subr.bf16.mxu0 %v8092
    %9110 = vmatpush1.bf16.msra.mxu0 %v8091
    %9111 = vmatprep.subr.bf16.mxu0 %v8100
    %9112 = vmatpush1.bf16.msra.mxu0 %v8099
    %9113 = vmatprep.subr.bf16.mxu0 %v8108
    %9114 = vmatpush1.bf16.msra.mxu0 %v8107
    %9115 = vmatprep.subr.bf16.mxu0 %v8116
    %9116 = vmatpush1.bf16.msra.mxu0 %v8115
    %9117 = vmatprep.subr.bf16.mxu0 %v8124
    %9118 = vmatpush1.bf16.msra.mxu0 %v8123
    %9119 = vmatprep.subr.bf16.mxu0 %v8132
    %9120 = vmatpush1.bf16.msra.mxu0 %v8131
    %9121 = vmatprep.subr.bf16.mxu0 %v8140
    %9122 = vmatpush1.bf16.msra.mxu0 %v8139
    %9123 = vmatprep.mubr.bf16.mxu0 %v5660
    %9124 = vmatmul.mubr.bf16.gmra.mrb[0].mxu0 %v5659
    %v9125 = vpop.f32.mrb[0].mxu0
    %v9126 = vadd.f32 %v9075, %v9125
    %v9127 = vpop.f32.mrb[0].mxu0
    %v9128 = vadd.f32 %v9077, %v9127
    %v9129 = vpop.f32.mrb[0].mxu0
    %v9130 = vadd.f32 %v9079, %v9129
    %v9131 = vpop.f32.mrb[0].mxu0
    %v9132 = vadd.f32 %v9081, %v9131
    %9133 = vmatprep.mubr.bf16.mxu0 %v5668
    %9134 = vmatmul.mubr.bf16.gmra.mrb[0].mxu0 %v5667
    %v9135 = vpop.f32.mrb[0].mxu0
    %v9136 = vadd.f32 %v9085, %v9135
    %v9137 = vpop.f32.mrb[0].mxu0
    %v9138 = vadd.f32 %v9087, %v9137
    %v9139 = vpop.f32.mrb[0].mxu0
    %v9140 = vpop.f32.mrb[0].mxu0
    %9141 = vdwg.mxu0
    %9142 = vmatprep.subr.bf16.mxu0 %v8148
    %9143 = vmatpush1.bf16.msra.mxu0 %v8147
    %9144 = vmatprep.subr.bf16.mxu0 %v8156
    %9145 = vmatpush1.bf16.msra.mxu0 %v8155
    %9146 = vmatprep.subr.bf16.mxu0 %v8164
    %9147 = vmatpush1.bf16.msra.mxu0 %v8163
    %9148 = vmatprep.subr.bf16.mxu0 %v8172
    %9149 = vmatpush1.bf16.msra.mxu0 %v8171
    %9150 = vmatprep.subr.bf16.mxu0 %v8180
    %9151 = vmatpush1.bf16.msra.mxu0 %v8179
    %9152 = vmatprep.subr.bf16.mxu0 %v8188
    %9153 = vmatpush1.bf16.msra.mxu0 %v8187
    %9154 = vmatprep.subr.bf16.mxu0 %v8196
    %9155 = vmatpush1.bf16.msra.mxu0 %v8195
    %9156 = vmatprep.subr.bf16.mxu0 %v8204
    %9157 = vmatpush1.bf16.msra.mxu0 %v8203
    %9158 = vmatprep.subr.bf16.mxu0 %v8212
    %9159 = vmatpush1.bf16.msra.mxu0 %v8211
    %9160 = vmatprep.subr.bf16.mxu0 %v8220
    %9161 = vmatpush1.bf16.msra.mxu0 %v8219
    %9162 = vmatprep.subr.bf16.mxu0 %v8228
    %9163 = vmatpush1.bf16.msra.mxu0 %v8227
    %9164 = vmatprep.subr.bf16.mxu0 %v8236
    %9165 = vmatpush1.bf16.msra.mxu0 %v8235
    %9166 = vmatprep.subr.bf16.mxu0 %v8244
    %9167 = vmatpush1.bf16.msra.mxu0 %v8243
    %9168 = vmatprep.subr.bf16.mxu0 %v8252
    %9169 = vmatpush1.bf16.msra.mxu0 %v8251
    %9170 = vmatprep.subr.bf16.mxu0 %v8260
    %9171 = vmatpush1.bf16.msra.mxu0 %v8259
    %9172 = vmatprep.subr.bf16.mxu0 %v8268
    %9173 = vmatpush1.bf16.msra.mxu0 %v8267
    %9174 = vmatprep.mubr.bf16.mxu0 %v5662
    %9175 = vmatmul.mubr.bf16.gmra.mrb[0].mxu0 %v5661
    %v9176 = vpop.f32.mrb[0].mxu0
    %v9177 = vadd.f32 %v9126, %v9176
    %v9178 = vpop.f32.mrb[0].mxu0
    %v9179 = vadd.f32 %v9128, %v9178
    %v9180 = vpop.f32.mrb[0].mxu0
    %v9181 = vadd.f32 %v9130, %v9180
    %v9182 = vpop.f32.mrb[0].mxu0
    %v9183 = vadd.f32 %v9132, %v9182
    %9184 = vmatprep.mubr.bf16.mxu0 %v5670
    %9185 = vmatmul.mubr.bf16.gmra.mrb[0].mxu0 %v5669
    %v9186 = vpop.f32.mrb[0].mxu0
    %v9187 = vadd.f32 %v9136, %v9186
    %v9188 = vpop.f32.mrb[0].mxu0
    %v9189 = vadd.f32 %v9138, %v9188
    %v9190 = vpop.f32.mrb[0].mxu0
    %v9191 = vpop.f32.mrb[0].mxu0
    %9192 = vdwg.mxu0
    %9193 = vmatprep.subr.bf16.mxu0 %v7766
    %9194 = vmatpush1.bf16.msra.mxu0 %v7765
    %9195 = vmatprep.subr.bf16.mxu0 %v7774
    %9196 = vmatpush1.bf16.msra.mxu0 %v7773
    %9197 = vmatprep.subr.bf16.mxu0 %v7782
    %9198 = vmatpush1.bf16.msra.mxu0 %v7781
    %9199 = vmatprep.subr.bf16.mxu0 %v7790
    %9200 = vmatpush1.bf16.msra.mxu0 %v7789
    %9201 = vmatprep.subr.bf16.mxu0 %v7798
    %9202 = vmatpush1.bf16.msra.mxu0 %v7797
    %9203 = vmatprep.subr.bf16.mxu0 %v7806
    %9204 = vmatpush1.bf16.msra.mxu0 %v7805
    %9205 = vmatprep.subr.bf16.mxu0 %v7814
    %9206 = vmatpush1.bf16.msra.mxu0 %v7813
    %9207 = vmatprep.subr.bf16.mxu0 %v7822
    %9208 = vmatpush1.bf16.msra.mxu0 %v7821
    %9209 = vmatprep.subr.bf16.mxu0 %v7830
    %9210 = vmatpush1.bf16.msra.mxu0 %v7829
    %9211 = vmatprep.subr.bf16.mxu0 %v7838
    %9212 = vmatpush1.bf16.msra.mxu0 %v7837
    %9213 = vmatprep.subr.bf16.mxu0 %v7846
    %9214 = vmatpush1.bf16.msra.mxu0 %v7845
    %9215 = vmatprep.subr.bf16.mxu0 %v7854
    %9216 = vmatpush1.bf16.msra.mxu0 %v7853
    %9217 = vmatprep.subr.bf16.mxu0 %v7862
    %9218 = vmatpush1.bf16.msra.mxu0 %v7861
    %9219 = vmatprep.subr.bf16.mxu0 %v7870
    %9220 = vmatpush1.bf16.msra.mxu0 %v7869
    %9221 = vmatprep.subr.bf16.mxu0 %v7878
    %9222 = vmatpush1.bf16.msra.mxu0 %v7877
    %9223 = vmatprep.subr.bf16.mxu0 %v7886
    %9224 = vmatpush1.bf16.msra.mxu0 %v7885
    %9225 = vmatprep.mubr.bf16.mxu0 %v5656
    %9226 = vmatmul.mubr.bf16.gmra.mrb[0].mxu0 %v5655
    %v9227 = vpop.f32.mrb[0].mxu0
    %v9228 = vadd.f32 %v6204, %v9227
    %v9229 = vpop.f32.mrb[0].mxu0
    %v9230 = vadd.f32 %v6208, %v9229
    %v9231 = vpop.f32.mrb[0].mxu0
    %v9232 = vadd.f32 %v6204, %v9231
    %v9233 = vpop.f32.mrb[0].mxu0
    %v9234 = vadd.f32 %v6208, %v9233
    %9235 = vmatprep.mubr.bf16.mxu0 %v5664
    %9236 = vmatmul.mubr.bf16.gmra.mrb[0].mxu0 %v5663
    %v9237 = vpop.f32.mrb[0].mxu0
    %v9238 = vadd.f32 %v6204, %v9237
    %v9239 = vpop.f32.mrb[0].mxu0
    %v9240 = vadd.f32 %v6208, %v9239
    %v9241 = vpop.f32.mrb[0].mxu0
    %v9242 = vpop.f32.mrb[0].mxu0
    %9243 = vdwg.mxu0
    %9244 = vmatprep.subr.bf16.mxu0 %v7894
    %9245 = vmatpush1.bf16.msra.mxu0 %v7893
    %9246 = vmatprep.subr.bf16.mxu0 %v7902
    %9247 = vmatpush1.bf16.msra.mxu0 %v7901
    %9248 = vmatprep.subr.bf16.mxu0 %v7910
    %9249 = vmatpush1.bf16.msra.mxu0 %v7909
    %9250 = vmatprep.subr.bf16.mxu0 %v7918
    %9251 = vmatpush1.bf16.msra.mxu0 %v7917
    %9252 = vmatprep.subr.bf16.mxu0 %v7926
    %9253 = vmatpush1.bf16.msra.mxu0 %v7925
    %9254 = vmatprep.subr.bf16.mxu0 %v7934
    %9255 = vmatpush1.bf16.msra.mxu0 %v7933
    %9256 = vmatprep.subr.bf16.mxu0 %v7942
    %9257 = vmatpush1.bf16.msra.mxu0 %v7941
    %9258 = vmatprep.subr.bf16.mxu0 %v7950
    %9259 = vmatpush1.bf16.msra.mxu0 %v7949
    %9260 = vmatprep.subr.bf16.mxu0 %v7958
    %9261 = vmatpush1.bf16.msra.mxu0 %v7957
    %9262 = vmatprep.subr.bf16.mxu0 %v7966
    %9263 = vmatpush1.bf16.msra.mxu0 %v7965
    %9264 = vmatprep.subr.bf16.mxu0 %v7974
    %9265 = vmatpush1.bf16.msra.mxu0 %v7973
    %9266 = vmatprep.subr.bf16.mxu0 %v7982
    %9267 = vmatpush1.bf16.msra.mxu0 %v7981
    %9268 = vmatprep.subr.bf16.mxu0 %v7990
    %9269 = vmatpush1.bf16.msra.mxu0 %v7989
    %9270 = vmatprep.subr.bf16.mxu0 %v7998
    %9271 = vmatpush1.bf16.msra.mxu0 %v7997
    %9272 = vmatprep.subr.bf16.mxu0 %v8006
    %9273 = vmatpush1.bf16.msra.mxu0 %v8005
    %9274 = vmatprep.subr.bf16.mxu0 %v8014
    %9275 = vmatpush1.bf16.msra.mxu0 %v8013
    %9276 = vmatprep.mubr.bf16.mxu0 %v5658
    %9277 = vmatmul.mubr.bf16.gmra.mrb[0].mxu0 %v5657
    %v9278 = vpop.f32.mrb[0].mxu0
    %v9279 = vadd.f32 %v9228, %v9278
    %v9280 = vpop.f32.mrb[0].mxu0
    %v9281 = vadd.f32 %v9230, %v9280
    %v9282 = vpop.f32.mrb[0].mxu0
    %v9283 = vadd.f32 %v9232, %v9282
    %v9284 = vpop.f32.mrb[0].mxu0
    %v9285 = vadd.f32 %v9234, %v9284
    %9286 = vmatprep.mubr.bf16.mxu0 %v5666
    %9287 = vmatmul.mubr.bf16.gmra.mrb[0].mxu0 %v5665
    %v9288 = vpop.f32.mrb[0].mxu0
    %v9289 = vadd.f32 %v9238, %v9288
    %v9290 = vpop.f32.mrb[0].mxu0
    %v9291 = vadd.f32 %v9240, %v9290
    %v9292 = vpop.f32.mrb[0].mxu0
    %v9293 = vpop.f32.mrb[0].mxu0
    %9294 = vdwg.mxu0
    %9295 = vmatprep.subr.bf16.mxu0 %v8022
    %9296 = vmatpush1.bf16.msra.mxu0 %v8021
    %9297 = vmatprep.subr.bf16.mxu0 %v8030
    %9298 = vmatpush1.bf16.msra.mxu0 %v8029
    %9299 = vmatprep.subr.bf16.mxu0 %v8038
    %9300 = vmatpush1.bf16.msra.mxu0 %v8037
    %9301 = vmatprep.subr.bf16.mxu0 %v8046
    %9302 = vmatpush1.bf16.msra.mxu0 %v8045
    %9303 = vmatprep.subr.bf16.mxu0 %v8054
    %9304 = vmatpush1.bf16.msra.mxu0 %v8053
    %9305 = vmatprep.subr.bf16.mxu0 %v8062
    %9306 = vmatpush1.bf16.msra.mxu0 %v8061
    %9307 = vmatprep.subr.bf16.mxu0 %v8070
    %9308 = vmatpush1.bf16.msra.mxu0 %v8069
    %9309 = vmatprep.subr.bf16.mxu0 %v8078
    %9310 = vmatpush1.bf16.msra.mxu0 %v8077
    %9311 = vmatprep.subr.bf16.mxu0 %v8086
    %9312 = vmatpush1.bf16.msra.mxu0 %v8085
    %9313 = vmatprep.subr.bf16.mxu0 %v8094
    %9314 = vmatpush1.bf16.msra.mxu0 %v8093
    %9315 = vmatprep.subr.bf16.mxu0 %v8102
    %9316 = vmatpush1.bf16.msra.mxu0 %v8101
    %9317 = vmatprep.subr.bf16.mxu0 %v8110
    %9318 = vmatpush1.bf16.msra.mxu0 %v8109
    %9319 = vmatprep.subr.bf16.mxu0 %v8118
    %9320 = vmatpush1.bf16.msra.mxu0 %v8117
    %9321 = vmatprep.subr.bf16.mxu0 %v8126
    %9322 = vmatpush1.bf16.msra.mxu0 %v8125
    %9323 = vmatprep.subr.bf16.mxu0 %v8134
    %9324 = vmatpush1.bf16.msra.mxu0 %v8133
    %9325 = vmatprep.subr.bf16.mxu0 %v8142
    %9326 = vmatpush1.bf16.msra.mxu0 %v8141
    %9327 = vmatprep.mubr.bf16.mxu0 %v5660
    %9328 = vmatmul.mubr.bf16.gmra.mrb[0].mxu0 %v5659
    %v9329 = vpop.f32.mrb[0].mxu0
    %v9330 = vadd.f32 %v9279, %v9329
    %v9331 = vpop.f32.mrb[0].mxu0
    %v9332 = vadd.f32 %v9281, %v9331
    %v9333 = vpop.f32.mrb[0].mxu0
    %v9334 = vadd.f32 %v9283, %v9333
    %v9335 = vpop.f32.mrb[0].mxu0
    %v9336 = vadd.f32 %v9285, %v9335
    %9337 = vmatprep.mubr.bf16.mxu0 %v5668
    %9338 = vmatmul.mubr.bf16.gmra.mrb[0].mxu0 %v5667
    %v9339 = vpop.f32.mrb[0].mxu0
    %v9340 = vadd.f32 %v9289, %v9339
    %v9341 = vpop.f32.mrb[0].mxu0
    %v9342 = vadd.f32 %v9291, %v9341
    %v9343 = vpop.f32.mrb[0].mxu0
    %v9344 = vpop.f32.mrb[0].mxu0
    %9345 = vdwg.mxu0
    %9346 = vmatprep.subr.bf16.mxu0 %v8150
    %9347 = vmatpush1.bf16.msra.mxu0 %v8149
    %9348 = vmatprep.subr.bf16.mxu0 %v8158
    %9349 = vmatpush1.bf16.msra.mxu0 %v8157
    %9350 = vmatprep.subr.bf16.mxu0 %v8166
    %9351 = vmatpush1.bf16.msra.mxu0 %v8165
    %9352 = vmatprep.subr.bf16.mxu0 %v8174
    %9353 = vmatpush1.bf16.msra.mxu0 %v8173
    %9354 = vmatprep.subr.bf16.mxu0 %v8182
    %9355 = vmatpush1.bf16.msra.mxu0 %v8181
    %9356 = vmatprep.subr.bf16.mxu0 %v8190
    %9357 = vmatpush1.bf16.msra.mxu0 %v8189
    %9358 = vmatprep.subr.bf16.mxu0 %v8198
    %9359 = vmatpush1.bf16.msra.mxu0 %v8197
    %9360 = vmatprep.subr.bf16.mxu0 %v8206
    %9361 = vmatpush1.bf16.msra.mxu0 %v8205
    %9362 = vmatprep.subr.bf16.mxu0 %v8214
    %9363 = vmatpush1.bf16.msra.mxu0 %v8213
    %9364 = vmatprep.subr.bf16.mxu0 %v8222
    %9365 = vmatpush1.bf16.msra.mxu0 %v8221
    %9366 = vmatprep.subr.bf16.mxu0 %v8230
    %9367 = vmatpush1.bf16.msra.mxu0 %v8229
    %9368 = vmatprep.subr.bf16.mxu0 %v8238
    %9369 = vmatpush1.bf16.msra.mxu0 %v8237
    %9370 = vmatprep.subr.bf16.mxu0 %v8246
    %9371 = vmatpush1.bf16.msra.mxu0 %v8245
    %9372 = vmatprep.subr.bf16.mxu0 %v8254
    %9373 = vmatpush1.bf16.msra.mxu0 %v8253
    %9374 = vmatprep.subr.bf16.mxu0 %v8262
    %9375 = vmatpush1.bf16.msra.mxu0 %v8261
    %9376 = vmatprep.subr.bf16.mxu0 %v8270
    %9377 = vmatpush1.bf16.msra.mxu0 %v8269
    %9378 = vmatprep.mubr.bf16.mxu0 %v5662
    %9379 = vmatmul.mubr.bf16.gmra.mrb[0].mxu0 %v5661
    %v9380 = vpop.f32.mrb[0].mxu0
    %v9381 = vadd.f32 %v9330, %v9380
    %v9382 = vpop.f32.mrb[0].mxu0
    %v9383 = vadd.f32 %v9332, %v9382
    %v9384 = vpop.f32.mrb[0].mxu0
    %v9385 = vadd.f32 %v9334, %v9384
    %v9386 = vpop.f32.mrb[0].mxu0
    %v9387 = vadd.f32 %v9336, %v9386
    %9388 = vmatprep.mubr.bf16.mxu0 %v5670
    %9389 = vmatmul.mubr.bf16.gmra.mrb[0].mxu0 %v5669
    %v9390 = vpop.f32.mrb[0].mxu0
    %v9391 = vadd.f32 %v9340, %v9390
    %v9392 = vpop.f32.mrb[0].mxu0
    %v9393 = vadd.f32 %v9342, %v9392
    %v9394 = vpop.f32.mrb[0].mxu0
    %v9395 = vpop.f32.mrb[0].mxu0
    %9396 = vdwg.mxu0
    %9397 = vmatprep.subr.bf16.mxu0 %v7768
    %9398 = vmatpush1.bf16.msra.mxu0 %v7767
    %9399 = vmatprep.subr.bf16.mxu0 %v7776
    %9400 = vmatpush1.bf16.msra.mxu0 %v7775
    %9401 = vmatprep.subr.bf16.mxu0 %v7784
    %9402 = vmatpush1.bf16.msra.mxu0 %v7783
    %9403 = vmatprep.subr.bf16.mxu0 %v7792
    %9404 = vmatpush1.bf16.msra.mxu0 %v7791
    %9405 = vmatprep.subr.bf16.mxu0 %v7800
    %9406 = vmatpush1.bf16.msra.mxu0 %v7799
    %9407 = vmatprep.subr.bf16.mxu0 %v7808
    %9408 = vmatpush1.bf16.msra.mxu0 %v7807
    %9409 = vmatprep.subr.bf16.mxu0 %v7816
    %9410 = vmatpush1.bf16.msra.mxu0 %v7815
    %9411 = vmatprep.subr.bf16.mxu0 %v7824
    %9412 = vmatpush1.bf16.msra.mxu0 %v7823
    %9413 = vmatprep.subr.bf16.mxu0 %v7832
    %9414 = vmatpush1.bf16.msra.mxu0 %v7831
    %9415 = vmatprep.subr.bf16.mxu0 %v7840
    %9416 = vmatpush1.bf16.msra.mxu0 %v7839
    %9417 = vmatprep.subr.bf16.mxu0 %v7848
    %9418 = vmatpush1.bf16.msra.mxu0 %v7847
    %9419 = vmatprep.subr.bf16.mxu0 %v7856
    %9420 = vmatpush1.bf16.msra.mxu0 %v7855
    %9421 = vmatprep.subr.bf16.mxu0 %v7864
    %9422 = vmatpush1.bf16.msra.mxu0 %v7863
    %9423 = vmatprep.subr.bf16.mxu0 %v7872
    %9424 = vmatpush1.bf16.msra.mxu0 %v7871
    %9425 = vmatprep.subr.bf16.mxu0 %v7880
    %9426 = vmatpush1.bf16.msra.mxu0 %v7879
    %9427 = vmatprep.subr.bf16.mxu0 %v7888
    %9428 = vmatpush1.bf16.msra.mxu0 %v7887
    %9429 = vmatprep.mubr.bf16.mxu0 %v5656
    %9430 = vmatmul.mubr.bf16.gmra.mrb[0].mxu0 %v5655
    %v9431 = vpop.f32.mrb[0].mxu0
    %v9432 = vadd.f32 %v6212, %v9431
    %v9433 = vpop.f32.mrb[0].mxu0
    %v9434 = vadd.f32 %v6216, %v9433
    %v9435 = vpop.f32.mrb[0].mxu0
    %v9436 = vadd.f32 %v6212, %v9435
    %v9437 = vpop.f32.mrb[0].mxu0
    %v9438 = vadd.f32 %v6216, %v9437
    %9439 = vmatprep.mubr.bf16.mxu0 %v5664
    %9440 = vmatmul.mubr.bf16.gmra.mrb[0].mxu0 %v5663
    %v9441 = vpop.f32.mrb[0].mxu0
    %v9442 = vadd.f32 %v6212, %v9441
    %v9443 = vpop.f32.mrb[0].mxu0
    %v9444 = vadd.f32 %v6216, %v9443
    %v9445 = vpop.f32.mrb[0].mxu0
    %v9446 = vpop.f32.mrb[0].mxu0
    %9447 = vdwg.mxu0
    %9448 = vmatprep.subr.bf16.mxu0 %v7896
    %9449 = vmatpush1.bf16.msra.mxu0 %v7895
    %9450 = vmatprep.subr.bf16.mxu0 %v7904
    %9451 = vmatpush1.bf16.msra.mxu0 %v7903
    %9452 = vmatprep.subr.bf16.mxu0 %v7912
    %9453 = vmatpush1.bf16.msra.mxu0 %v7911
    %9454 = vmatprep.subr.bf16.mxu0 %v7920
    %9455 = vmatpush1.bf16.msra.mxu0 %v7919
    %9456 = vmatprep.subr.bf16.mxu0 %v7928
    %9457 = vmatpush1.bf16.msra.mxu0 %v7927
    %9458 = vmatprep.subr.bf16.mxu0 %v7936
    %9459 = vmatpush1.bf16.msra.mxu0 %v7935
    %9460 = vmatprep.subr.bf16.mxu0 %v7944
    %9461 = vmatpush1.bf16.msra.mxu0 %v7943
    %9462 = vmatprep.subr.bf16.mxu0 %v7952
    %9463 = vmatpush1.bf16.msra.mxu0 %v7951
    %9464 = vmatprep.subr.bf16.mxu0 %v7960
    %9465 = vmatpush1.bf16.msra.mxu0 %v7959
    %9466 = vmatprep.subr.bf16.mxu0 %v7968
    %9467 = vmatpush1.bf16.msra.mxu0 %v7967
    %9468 = vmatprep.subr.bf16.mxu0 %v7976
    %9469 = vmatpush1.bf16.msra.mxu0 %v7975
    %9470 = vmatprep.subr.bf16.mxu0 %v7984
    %9471 = vmatpush1.bf16.msra.mxu0 %v7983
    %9472 = vmatprep.subr.bf16.mxu0 %v7992
    %9473 = vmatpush1.bf16.msra.mxu0 %v7991
    %9474 = vmatprep.subr.bf16.mxu0 %v8000
    %9475 = vmatpush1.bf16.msra.mxu0 %v7999
    %9476 = vmatprep.subr.bf16.mxu0 %v8008
    %9477 = vmatpush1.bf16.msra.mxu0 %v8007
    %9478 = vmatprep.subr.bf16.mxu0 %v8016
    %9479 = vmatpush1.bf16.msra.mxu0 %v8015
    %9480 = vmatprep.mubr.bf16.mxu0 %v5658
    %9481 = vmatmul.mubr.bf16.gmra.mrb[0].mxu0 %v5657
    %v9482 = vpop.f32.mrb[0].mxu0
    %v9483 = vadd.f32 %v9432, %v9482
    %v9484 = vpop.f32.mrb[0].mxu0
    %v9485 = vadd.f32 %v9434, %v9484
    %v9486 = vpop.f32.mrb[0].mxu0
    %v9487 = vadd.f32 %v9436, %v9486
    %v9488 = vpop.f32.mrb[0].mxu0
    %v9489 = vadd.f32 %v9438, %v9488
    %9490 = vmatprep.mubr.bf16.mxu0 %v5666
    %9491 = vmatmul.mubr.bf16.gmra.mrb[0].mxu0 %v5665
    %v9492 = vpop.f32.mrb[0].mxu0
    %v9493 = vadd.f32 %v9442, %v9492
    %v9494 = vpop.f32.mrb[0].mxu0
    %v9495 = vadd.f32 %v9444, %v9494
    %v9496 = vpop.f32.mrb[0].mxu0
    %v9497 = vpop.f32.mrb[0].mxu0
    %9498 = vdwg.mxu0
    %9499 = vmatprep.subr.bf16.mxu0 %v8024
    %9500 = vmatpush1.bf16.msra.mxu0 %v8023
    %9501 = vmatprep.subr.bf16.mxu0 %v8032
    %9502 = vmatpush1.bf16.msra.mxu0 %v8031
    %9503 = vmatprep.subr.bf16.mxu0 %v8040
    %9504 = vmatpush1.bf16.msra.mxu0 %v8039
    %9505 = vmatprep.subr.bf16.mxu0 %v8048
    %9506 = vmatpush1.bf16.msra.mxu0 %v8047
    %9507 = vmatprep.subr.bf16.mxu0 %v8056
    %9508 = vmatpush1.bf16.msra.mxu0 %v8055
    %9509 = vmatprep.subr.bf16.mxu0 %v8064
    %9510 = vmatpush1.bf16.msra.mxu0 %v8063
    %9511 = vmatprep.subr.bf16.mxu0 %v8072
    %9512 = vmatpush1.bf16.msra.mxu0 %v8071
    %9513 = vmatprep.subr.bf16.mxu0 %v8080
    %9514 = vmatpush1.bf16.msra.mxu0 %v8079
    %9515 = vmatprep.subr.bf16.mxu0 %v8088
    %9516 = vmatpush1.bf16.msra.mxu0 %v8087
    %9517 = vmatprep.subr.bf16.mxu0 %v8096
    %9518 = vmatpush1.bf16.msra.mxu0 %v8095
    %9519 = vmatprep.subr.bf16.mxu0 %v8104
    %9520 = vmatpush1.bf16.msra.mxu0 %v8103
    %9521 = vmatprep.subr.bf16.mxu0 %v8112
    %9522 = vmatpush1.bf16.msra.mxu0 %v8111
    %9523 = vmatprep.subr.bf16.mxu0 %v8120
    %9524 = vmatpush1.bf16.msra.mxu0 %v8119
    %9525 = vmatprep.subr.bf16.mxu0 %v8128
    %9526 = vmatpush1.bf16.msra.mxu0 %v8127
    %9527 = vmatprep.subr.bf16.mxu0 %v8136
    %9528 = vmatpush1.bf16.msra.mxu0 %v8135
    %9529 = vmatprep.subr.bf16.mxu0 %v8144
    %9530 = vmatpush1.bf16.msra.mxu0 %v8143
    %9531 = vmatprep.mubr.bf16.mxu0 %v5660
    %9532 = vmatmul.mubr.bf16.gmra.mrb[0].mxu0 %v5659
    %v9533 = vpop.f32.mrb[0].mxu0
    %v9534 = vadd.f32 %v9483, %v9533
    %v9535 = vpop.f32.mrb[0].mxu0
    %v9536 = vadd.f32 %v9485, %v9535
    %v9537 = vpop.f32.mrb[0].mxu0
    %v9538 = vadd.f32 %v9487, %v9537
    %v9539 = vpop.f32.mrb[0].mxu0
    %v9540 = vadd.f32 %v9489, %v9539
    %9541 = vmatprep.mubr.bf16.mxu0 %v5668
    %9542 = vmatmul.mubr.bf16.gmra.mrb[0].mxu0 %v5667
    %v9543 = vpop.f32.mrb[0].mxu0
    %v9544 = vadd.f32 %v9493, %v9543
    %v9545 = vpop.f32.mrb[0].mxu0
    %v9546 = vadd.f32 %v9495, %v9545
    %v9547 = vpop.f32.mrb[0].mxu0
    %v9548 = vpop.f32.mrb[0].mxu0
    %9549 = vdwg.mxu0
    %9550 = vmatprep.subr.bf16.mxu0 %v8152
    %9551 = vmatpush1.bf16.msra.mxu0 %v8151
    %9552 = vmatprep.subr.bf16.mxu0 %v8160
    %9553 = vmatpush1.bf16.msra.mxu0 %v8159
    %9554 = vmatprep.subr.bf16.mxu0 %v8168
    %9555 = vmatpush1.bf16.msra.mxu0 %v8167
    %9556 = vmatprep.subr.bf16.mxu0 %v8176
    %9557 = vmatpush1.bf16.msra.mxu0 %v8175
    %9558 = vmatprep.subr.bf16.mxu0 %v8184
    %9559 = vmatpush1.bf16.msra.mxu0 %v8183
    %9560 = vmatprep.subr.bf16.mxu0 %v8192
    %9561 = vmatpush1.bf16.msra.mxu0 %v8191
    %9562 = vmatprep.subr.bf16.mxu0 %v8200
    %9563 = vmatpush1.bf16.msra.mxu0 %v8199
    %9564 = vmatprep.subr.bf16.mxu0 %v8208
    %9565 = vmatpush1.bf16.msra.mxu0 %v8207
    %9566 = vmatprep.subr.bf16.mxu0 %v8216
    %9567 = vmatpush1.bf16.msra.mxu0 %v8215
    %9568 = vmatprep.subr.bf16.mxu0 %v8224
    %9569 = vmatpush1.bf16.msra.mxu0 %v8223
    %9570 = vmatprep.subr.bf16.mxu0 %v8232
    %9571 = vmatpush1.bf16.msra.mxu0 %v8231
    %9572 = vmatprep.subr.bf16.mxu0 %v8240
    %9573 = vmatpush1.bf16.msra.mxu0 %v8239
    %9574 = vmatprep.subr.bf16.mxu0 %v8248
    %9575 = vmatpush1.bf16.msra.mxu0 %v8247
    %9576 = vmatprep.subr.bf16.mxu0 %v8256
    %9577 = vmatpush1.bf16.msra.mxu0 %v8255
    %9578 = vmatprep.subr.bf16.mxu0 %v8264
    %9579 = vmatpush1.bf16.msra.mxu0 %v8263
    %9580 = vmatprep.subr.bf16.mxu0 %v8272
    %9581 = vmatpush1.bf16.msra.mxu0 %v8271
    %9582 = vmatprep.mubr.bf16.mxu0 %v5662
    %9583 = vmatmul.mubr.bf16.gmra.mrb[0].mxu0 %v5661
    %v9584 = vpop.f32.mrb[0].mxu0
    %v9585 = vadd.f32 %v9534, %v9584
    %v9586 = vpop.f32.mrb[0].mxu0
    %v9587 = vadd.f32 %v9536, %v9586
    %v9588 = vpop.f32.mrb[0].mxu0
    %v9589 = vadd.f32 %v9538, %v9588
    %v9590 = vpop.f32.mrb[0].mxu0
    %v9591 = vadd.f32 %v9540, %v9590
    %9592 = vmatprep.mubr.bf16.mxu0 %v5670
    %9593 = vmatmul.mubr.bf16.gmra.mrb[0].mxu0 %v5669
    %v9594 = vpop.f32.mrb[0].mxu0
    %v9595 = vadd.f32 %v9544, %v9594
    %v9596 = vpop.f32.mrb[0].mxu0
    %v9597 = vadd.f32 %v9546, %v9596
    %v9598 = vpop.f32.mrb[0].mxu0
    %v9599 = vpop.f32.mrb[0].mxu0
    %9600 = vdwg.mxu0
    %v9601 = vmax.f32 %v8973, 0.0
    %v9602 = vmax.f32 %v8975, 0.0
    %v9603 = vmax.f32 %v9177, 0.0
    %v9604 = vmax.f32 %v9179, 0.0
    %v9605 = vmax.f32 %v9381, 0.0
    %v9606 = vmax.f32 %v9383, 0.0
    %v9607 = vmax.f32 %v9585, 0.0
    %v9608 = vmax.f32 %v9587, 0.0
    %v9609 = vmax.f32 %v8977, 0.0
    %v9610 = vmax.f32 %v8979, 0.0
    %v9611 = vmax.f32 %v9181, 0.0
    %v9612 = vmax.f32 %v9183, 0.0
    %v9613 = vmax.f32 %v9385, 0.0
    %v9614 = vmax.f32 %v9387, 0.0
    %v9615 = vmax.f32 %v9589, 0.0
    %v9616 = vmax.f32 %v9591, 0.0
    %v9617 = vmax.f32 %v8983, 0.0
    %v9618 = vmax.f32 %v8985, 0.0
    %v9619 = vmax.f32 %v9187, 0.0
    %v9620 = vmax.f32 %v9189, 0.0
    %v9621 = vmax.f32 %v9391, 0.0
    %v9622 = vmax.f32 %v9393, 0.0
    %v9623 = vmax.f32 %v9595, 0.0
    %v9624 = vmax.f32 %v9597, 0.0
    %v9625 = vpack.c.bf16 %v9609, %v9601
    %v9626 = vpack.c.bf16 %v9610, %v9602
    %v9627 = vpack.c.bf16 %v9611, %v9603
    %v9628 = vpack.c.bf16 %v9612, %v9604
    %v9629 = vpack.c.bf16 %v9613, %v9605
    %v9630 = vpack.c.bf16 %v9614, %v9606
    %v9631 = vpack.c.bf16 %v9615, %v9607
    %v9632 = vpack.c.bf16 %v9616, %v9608
    %v9633 = vpack.c.bf16 %v9617, %v9617
    %v9634 = vpack.c.bf16 %v9618, %v9618
    %v9635 = vpack.c.bf16 %v9619, %v9619
    %v9636 = vpack.c.bf16 %v9620, %v9620
    %v9637 = vpack.c.bf16 %v9621, %v9621
    %v9638 = vpack.c.bf16 %v9622, %v9622
    %v9639 = vpack.c.bf16 %v9623, %v9623
    %v9640 = vpack.c.bf16 %v9624, %v9624
    %v9641 = vld [vmem:[#allocation12] sm:$0xf]
    %v9642 = vld [vmem:[#allocation12 + $0x4] sm:$0xf]
    %v9643 = vld [vmem:[#allocation12 + $0x8] sm:$0xf]
    %v9644 = vld [vmem:[#allocation12 + $0xc] sm:$0xf]
    %v9645 = vld [vmem:[#allocation12 + $0x10] sm:$0xf]
    %v9646 = vld [vmem:[#allocation12 + $0x14] sm:$0xf]
    %v9647 = vld [vmem:[#allocation12 + $0x18] sm:$0xf]
    %v9648 = vld [vmem:[#allocation12 + $0x1c] sm:$0xf]
    %v9649 = vld [vmem:[#allocation12 + $0x20] sm:$0xf]
    %v9650 = vld [vmem:[#allocation12 + $0x24] sm:$0xf]
    %v9651 = vld [vmem:[#allocation12 + $0x28] sm:$0xf]
    %v9652 = vld [vmem:[#allocation12 + $0x2c] sm:$0xf]
    %v9653 = vld [vmem:[#allocation12 + $0x30] sm:$0xf]
    %v9654 = vld [vmem:[#allocation12 + $0x34] sm:$0xf]
    %v9655 = vld [vmem:[#allocation12 + $0x38] sm:$0xf]
    %v9656 = vld [vmem:[#allocation12 + $0x3c] sm:$0xf]
    %v9657 = vld [vmem:[#allocation12 + $0x40] sm:$0xf]
    %v9658 = vld [vmem:[#allocation12 + $0x44] sm:$0xf]
    %v9659 = vld [vmem:[#allocation12 + $0x48] sm:$0xf]
    %v9660 = vld [vmem:[#allocation12 + $0x4c] sm:$0xf]
    %v9661 = vld [vmem:[#allocation12 + $0x50] sm:$0xf]
    %v9662 = vld [vmem:[#allocation12 + $0x54] sm:$0xf]
    %v9663 = vld [vmem:[#allocation12 + $0x58] sm:$0xf]
    %v9664 = vld [vmem:[#allocation12 + $0x5c] sm:$0xf]
    %v9665 = vld [vmem:[#allocation12 + $0x60] sm:$0xf]
    %v9666 = vld [vmem:[#allocation12 + $0x64] sm:$0xf]
    %v9667 = vld [vmem:[#allocation12 + $0x68] sm:$0xf]
    %v9668 = vld [vmem:[#allocation12 + $0x6c] sm:$0xf]
    %v9669 = vld [vmem:[#allocation12 + $0x70] sm:$0xf]
    %v9670 = vld [vmem:[#allocation12 + $0x74] sm:$0xf]
    %v9671 = vld [vmem:[#allocation12 + $0x78] sm:$0xf]
    %v9672 = vld [vmem:[#allocation12 + $0x7c] sm:$0xf]
    %v9673 = vld [vmem:[#allocation12 + $0x80] sm:$0xf]
    %v9674 = vld [vmem:[#allocation12 + $0x84] sm:$0xf]
    %v9675 = vld [vmem:[#allocation12 + $0x88] sm:$0xf]
    %v9676 = vld [vmem:[#allocation12 + $0x8c] sm:$0xf]
    %v9677 = vld [vmem:[#allocation12 + $0x90] sm:$0xf]
    %v9678 = vld [vmem:[#allocation12 + $0x94] sm:$0xf]
    %v9679 = vld [vmem:[#allocation12 + $0x98] sm:$0xf]
    %v9680 = vld [vmem:[#allocation12 + $0x9c] sm:$0xf]
    %v9681 = vld [vmem:[#allocation12 + $0xa0] sm:$0xf]
    %v9682 = vld [vmem:[#allocation12 + $0xa4] sm:$0xf]
    %v9683 = vld [vmem:[#allocation12 + $0xa8] sm:$0xf]
    %v9684 = vld [vmem:[#allocation12 + $0xac] sm:$0xf]
    %v9685 = vld [vmem:[#allocation12 + $0xb0] sm:$0xf]
    %v9686 = vld [vmem:[#allocation12 + $0xb4] sm:$0xf]
    %v9687 = vld [vmem:[#allocation12 + $0xb8] sm:$0xf]
    %v9688 = vld [vmem:[#allocation12 + $0xbc] sm:$0xf]
    %v9689 = vld [vmem:[#allocation12 + $0xc0] sm:$0xf]
    %v9690 = vld [vmem:[#allocation12 + $0xc4] sm:$0xf]
    %v9691 = vld [vmem:[#allocation12 + $0xc8] sm:$0xf]
    %v9692 = vld [vmem:[#allocation12 + $0xcc] sm:$0xf]
    %v9693 = vld [vmem:[#allocation12 + $0xd0] sm:$0xf]
    %v9694 = vld [vmem:[#allocation12 + $0xd4] sm:$0xf]
    %v9695 = vld [vmem:[#allocation12 + $0xd8] sm:$0xf]
    %v9696 = vld [vmem:[#allocation12 + $0xdc] sm:$0xf]
    %v9697 = vld [vmem:[#allocation12 + $0xe0] sm:$0xf]
    %v9698 = vld [vmem:[#allocation12 + $0xe4] sm:$0xf]
    %v9699 = vld [vmem:[#allocation12 + $0xe8] sm:$0xf]
    %v9700 = vld [vmem:[#allocation12 + $0xec] sm:$0xf]
    %v9701 = vld [vmem:[#allocation12 + $0xf0] sm:$0xf]
    %v9702 = vld [vmem:[#allocation12 + $0xf4] sm:$0xf]
    %v9703 = vld [vmem:[#allocation12 + $0xf8] sm:$0xf]
    %v9704 = vld [vmem:[#allocation12 + $0xfc] sm:$0xf]
    %v9705 = vld [vmem:[#allocation12 + $0x100] sm:$0xf]
    %v9706 = vld [vmem:[#allocation12 + $0x104] sm:$0xf]
    %v9707 = vld [vmem:[#allocation12 + $0x108] sm:$0xf]
    %v9708 = vld [vmem:[#allocation12 + $0x10c] sm:$0xf]
    %v9709 = vld [vmem:[#allocation12 + $0x110] sm:$0xf]
    %v9710 = vld [vmem:[#allocation12 + $0x114] sm:$0xf]
    %v9711 = vld [vmem:[#allocation12 + $0x118] sm:$0xf]
    %v9712 = vld [vmem:[#allocation12 + $0x11c] sm:$0xf]
    %v9713 = vld [vmem:[#allocation12 + $0x120] sm:$0xf]
    %v9714 = vld [vmem:[#allocation12 + $0x124] sm:$0xf]
    %v9715 = vld [vmem:[#allocation12 + $0x128] sm:$0xf]
    %v9716 = vld [vmem:[#allocation12 + $0x12c] sm:$0xf]
    %v9717 = vld [vmem:[#allocation12 + $0x130] sm:$0xf]
    %v9718 = vld [vmem:[#allocation12 + $0x134] sm:$0xf]
    %v9719 = vld [vmem:[#allocation12 + $0x138] sm:$0xf]
    %v9720 = vld [vmem:[#allocation12 + $0x13c] sm:$0xf]
    %v9721 = vld [vmem:[#allocation12 + $0x140] sm:$0xf]
    %v9722 = vld [vmem:[#allocation12 + $0x144] sm:$0xf]
    %v9723 = vld [vmem:[#allocation12 + $0x148] sm:$0xf]
    %v9724 = vld [vmem:[#allocation12 + $0x14c] sm:$0xf]
    %v9725 = vld [vmem:[#allocation12 + $0x150] sm:$0xf]
    %v9726 = vld [vmem:[#allocation12 + $0x154] sm:$0xf]
    %v9727 = vld [vmem:[#allocation12 + $0x158] sm:$0xf]
    %v9728 = vld [vmem:[#allocation12 + $0x15c] sm:$0xf]
    %v9729 = vld [vmem:[#allocation12 + $0x160] sm:$0xf]
    %v9730 = vld [vmem:[#allocation12 + $0x164] sm:$0xf]
    %v9731 = vld [vmem:[#allocation12 + $0x168] sm:$0xf]
    %v9732 = vld [vmem:[#allocation12 + $0x16c] sm:$0xf]
    %v9733 = vld [vmem:[#allocation12 + $0x170] sm:$0xf]
    %v9734 = vld [vmem:[#allocation12 + $0x174] sm:$0xf]
    %v9735 = vld [vmem:[#allocation12 + $0x178] sm:$0xf]
    %v9736 = vld [vmem:[#allocation12 + $0x17c] sm:$0xf]
    %v9737 = vld [vmem:[#allocation12 + $0x180] sm:$0xf]
    %v9738 = vld [vmem:[#allocation12 + $0x184] sm:$0xf]
    %v9739 = vld [vmem:[#allocation12 + $0x188] sm:$0xf]
    %v9740 = vld [vmem:[#allocation12 + $0x18c] sm:$0xf]
    %v9741 = vld [vmem:[#allocation12 + $0x190] sm:$0xf]
    %v9742 = vld [vmem:[#allocation12 + $0x194] sm:$0xf]
    %v9743 = vld [vmem:[#allocation12 + $0x198] sm:$0xf]
    %v9744 = vld [vmem:[#allocation12 + $0x19c] sm:$0xf]
    %v9745 = vld [vmem:[#allocation12 + $0x1a0] sm:$0xf]
    %v9746 = vld [vmem:[#allocation12 + $0x1a4] sm:$0xf]
    %v9747 = vld [vmem:[#allocation12 + $0x1a8] sm:$0xf]
    %v9748 = vld [vmem:[#allocation12 + $0x1ac] sm:$0xf]
    %v9749 = vld [vmem:[#allocation12 + $0x1b0] sm:$0xf]
    %v9750 = vld [vmem:[#allocation12 + $0x1b4] sm:$0xf]
    %v9751 = vld [vmem:[#allocation12 + $0x1b8] sm:$0xf]
    %v9752 = vld [vmem:[#allocation12 + $0x1bc] sm:$0xf]
    %v9753 = vld [vmem:[#allocation12 + $0x1c0] sm:$0xf]
    %v9754 = vld [vmem:[#allocation12 + $0x1c4] sm:$0xf]
    %v9755 = vld [vmem:[#allocation12 + $0x1c8] sm:$0xf]
    %v9756 = vld [vmem:[#allocation12 + $0x1cc] sm:$0xf]
    %v9757 = vld [vmem:[#allocation12 + $0x1d0] sm:$0xf]
    %v9758 = vld [vmem:[#allocation12 + $0x1d4] sm:$0xf]
    %v9759 = vld [vmem:[#allocation12 + $0x1d8] sm:$0xf]
    %v9760 = vld [vmem:[#allocation12 + $0x1dc] sm:$0xf]
    %v9761 = vld [vmem:[#allocation12 + $0x1e0] sm:$0xf]
    %v9762 = vld [vmem:[#allocation12 + $0x1e4] sm:$0xf]
    %v9763 = vld [vmem:[#allocation12 + $0x1e8] sm:$0xf]
    %v9764 = vld [vmem:[#allocation12 + $0x1ec] sm:$0xf]
    %v9765 = vld [vmem:[#allocation12 + $0x1f0] sm:$0xf]
    %v9766 = vld [vmem:[#allocation12 + $0x1f4] sm:$0xf]
    %v9767 = vld [vmem:[#allocation12 + $0x1f8] sm:$0xf]
    %v9768 = vld [vmem:[#allocation12 + $0x1fc] sm:$0xf]
    %v9769 = vpack.c.bf16 %v5631, %v5615
    %v9770 = vpack.c.bf16 %v5632, %v5616
    %v9771 = vpack.c.bf16 %v5633, %v5617
    %v9772 = vpack.c.bf16 %v5634, %v5618
    %v9773 = vpack.c.bf16 %v5635, %v5619
    %v9774 = vpack.c.bf16 %v5636, %v5620
    %v9775 = vpack.c.bf16 %v5637, %v5621
    %v9776 = vpack.c.bf16 %v5638, %v5622
    %v9777 = vpack.c.bf16 %v5647, %v5647
    %v9778 = vpack.c.bf16 %v5648, %v5648
    %v9779 = vpack.c.bf16 %v5649, %v5649
    %v9780 = vpack.c.bf16 %v5650, %v5650
    %v9781 = vpack.c.bf16 %v5651, %v5651
    %v9782 = vpack.c.bf16 %v5652, %v5652
    %v9783 = vpack.c.bf16 %v5653, %v5653
    %v9784 = vpack.c.bf16 %v5654, %v5654
    %v9785 = vld [vmem:[#allocation13] sm:$0xf]
    %v9786 = vld [vmem:[#allocation13 + $0x4] sm:$0xf]
    %v9787 = vld [vmem:[#allocation13 + $0x8] sm:$0xf]
    %v9788 = vld [vmem:[#allocation13 + $0xc] sm:$0xf]
    %v9789 = vld [vmem:[#allocation13 + $0x10] sm:$0xf]
    %v9790 = vld [vmem:[#allocation13 + $0x14] sm:$0xf]
    %v9791 = vld [vmem:[#allocation13 + $0x18] sm:$0xf]
    %v9792 = vld [vmem:[#allocation13 + $0x1c] sm:$0xf]
    %v9793 = vld [vmem:[#allocation13 + $0x20] sm:$0xf]
    %v9794 = vld [vmem:[#allocation13 + $0x24] sm:$0xf]
    %v9795 = vld [vmem:[#allocation13 + $0x28] sm:$0xf]
    %v9796 = vld [vmem:[#allocation13 + $0x2c] sm:$0xf]
    %v9797 = vld [vmem:[#allocation13 + $0x30] sm:$0xf]
    %v9798 = vld [vmem:[#allocation13 + $0x34] sm:$0xf]
    %v9799 = vld [vmem:[#allocation13 + $0x38] sm:$0xf]
    %v9800 = vld [vmem:[#allocation13 + $0x3c] sm:$0xf]
    %v9801 = vld [vmem:[#allocation13 + $0x40] sm:$0xf]
    %v9802 = vld [vmem:[#allocation13 + $0x44] sm:$0xf]
    %v9803 = vld [vmem:[#allocation13 + $0x48] sm:$0xf]
    %v9804 = vld [vmem:[#allocation13 + $0x4c] sm:$0xf]
    %v9805 = vld [vmem:[#allocation13 + $0x50] sm:$0xf]
    %v9806 = vld [vmem:[#allocation13 + $0x54] sm:$0xf]
    %v9807 = vld [vmem:[#allocation13 + $0x58] sm:$0xf]
    %v9808 = vld [vmem:[#allocation13 + $0x5c] sm:$0xf]
    %v9809 = vld [vmem:[#allocation13 + $0x60] sm:$0xf]
    %v9810 = vld [vmem:[#allocation13 + $0x64] sm:$0xf]
    %v9811 = vld [vmem:[#allocation13 + $0x68] sm:$0xf]
    %v9812 = vld [vmem:[#allocation13 + $0x6c] sm:$0xf]
    %v9813 = vld [vmem:[#allocation13 + $0x70] sm:$0xf]
    %v9814 = vld [vmem:[#allocation13 + $0x74] sm:$0xf]
    %v9815 = vld [vmem:[#allocation13 + $0x78] sm:$0xf]
    %v9816 = vld [vmem:[#allocation13 + $0x7c] sm:$0xf]
    %v9817 = vld [vmem:[#allocation13 + $0x80] sm:$0xf]
    %v9818 = vld [vmem:[#allocation13 + $0x84] sm:$0xf]
    %v9819 = vld [vmem:[#allocation13 + $0x88] sm:$0xf]
    %v9820 = vld [vmem:[#allocation13 + $0x8c] sm:$0xf]
    %v9821 = vld [vmem:[#allocation13 + $0x90] sm:$0xf]
    %v9822 = vld [vmem:[#allocation13 + $0x94] sm:$0xf]
    %v9823 = vld [vmem:[#allocation13 + $0x98] sm:$0xf]
    %v9824 = vld [vmem:[#allocation13 + $0x9c] sm:$0xf]
    %v9825 = vld [vmem:[#allocation13 + $0xa0] sm:$0xf]
    %v9826 = vld [vmem:[#allocation13 + $0xa4] sm:$0xf]
    %v9827 = vld [vmem:[#allocation13 + $0xa8] sm:$0xf]
    %v9828 = vld [vmem:[#allocation13 + $0xac] sm:$0xf]
    %v9829 = vld [vmem:[#allocation13 + $0xb0] sm:$0xf]
    %v9830 = vld [vmem:[#allocation13 + $0xb4] sm:$0xf]
    %v9831 = vld [vmem:[#allocation13 + $0xb8] sm:$0xf]
    %v9832 = vld [vmem:[#allocation13 + $0xbc] sm:$0xf]
    %v9833 = vld [vmem:[#allocation13 + $0xc0] sm:$0xf]
    %v9834 = vld [vmem:[#allocation13 + $0xc4] sm:$0xf]
    %v9835 = vld [vmem:[#allocation13 + $0xc8] sm:$0xf]
    %v9836 = vld [vmem:[#allocation13 + $0xcc] sm:$0xf]
    %v9837 = vld [vmem:[#allocation13 + $0xd0] sm:$0xf]
    %v9838 = vld [vmem:[#allocation13 + $0xd4] sm:$0xf]
    %v9839 = vld [vmem:[#allocation13 + $0xd8] sm:$0xf]
    %v9840 = vld [vmem:[#allocation13 + $0xdc] sm:$0xf]
    %v9841 = vld [vmem:[#allocation13 + $0xe0] sm:$0xf]
    %v9842 = vld [vmem:[#allocation13 + $0xe4] sm:$0xf]
    %v9843 = vld [vmem:[#allocation13 + $0xe8] sm:$0xf]
    %v9844 = vld [vmem:[#allocation13 + $0xec] sm:$0xf]
    %v9845 = vld [vmem:[#allocation13 + $0xf0] sm:$0xf]
    %v9846 = vld [vmem:[#allocation13 + $0xf4] sm:$0xf]
    %v9847 = vld [vmem:[#allocation13 + $0xf8] sm:$0xf]
    %v9848 = vld [vmem:[#allocation13 + $0xfc] sm:$0xf]
    %v9849 = vld [vmem:[#allocation13 + $0x100] sm:$0xf]
    %v9850 = vld [vmem:[#allocation13 + $0x104] sm:$0xf]
    %v9851 = vld [vmem:[#allocation13 + $0x108] sm:$0xf]
    %v9852 = vld [vmem:[#allocation13 + $0x10c] sm:$0xf]
    %v9853 = vld [vmem:[#allocation13 + $0x110] sm:$0xf]
    %v9854 = vld [vmem:[#allocation13 + $0x114] sm:$0xf]
    %v9855 = vld [vmem:[#allocation13 + $0x118] sm:$0xf]
    %v9856 = vld [vmem:[#allocation13 + $0x11c] sm:$0xf]
    %v9857 = vld [vmem:[#allocation13 + $0x120] sm:$0xf]
    %v9858 = vld [vmem:[#allocation13 + $0x124] sm:$0xf]
    %v9859 = vld [vmem:[#allocation13 + $0x128] sm:$0xf]
    %v9860 = vld [vmem:[#allocation13 + $0x12c] sm:$0xf]
    %v9861 = vld [vmem:[#allocation13 + $0x130] sm:$0xf]
    %v9862 = vld [vmem:[#allocation13 + $0x134] sm:$0xf]
    %v9863 = vld [vmem:[#allocation13 + $0x138] sm:$0xf]
    %v9864 = vld [vmem:[#allocation13 + $0x13c] sm:$0xf]
    %v9865 = vld [vmem:[#allocation13 + $0x140] sm:$0xf]
    %v9866 = vld [vmem:[#allocation13 + $0x144] sm:$0xf]
    %v9867 = vld [vmem:[#allocation13 + $0x148] sm:$0xf]
    %v9868 = vld [vmem:[#allocation13 + $0x14c] sm:$0xf]
    %v9869 = vld [vmem:[#allocation13 + $0x150] sm:$0xf]
    %v9870 = vld [vmem:[#allocation13 + $0x154] sm:$0xf]
    %v9871 = vld [vmem:[#allocation13 + $0x158] sm:$0xf]
    %v9872 = vld [vmem:[#allocation13 + $0x15c] sm:$0xf]
    %v9873 = vld [vmem:[#allocation13 + $0x160] sm:$0xf]
    %v9874 = vld [vmem:[#allocation13 + $0x164] sm:$0xf]
    %v9875 = vld [vmem:[#allocation13 + $0x168] sm:$0xf]
    %v9876 = vld [vmem:[#allocation13 + $0x16c] sm:$0xf]
    %v9877 = vld [vmem:[#allocation13 + $0x170] sm:$0xf]
    %v9878 = vld [vmem:[#allocation13 + $0x174] sm:$0xf]
    %v9879 = vld [vmem:[#allocation13 + $0x178] sm:$0xf]
    %v9880 = vld [vmem:[#allocation13 + $0x17c] sm:$0xf]
    %v9881 = vld [vmem:[#allocation13 + $0x180] sm:$0xf]
    %v9882 = vld [vmem:[#allocation13 + $0x184] sm:$0xf]
    %v9883 = vld [vmem:[#allocation13 + $0x188] sm:$0xf]
    %v9884 = vld [vmem:[#allocation13 + $0x18c] sm:$0xf]
    %v9885 = vld [vmem:[#allocation13 + $0x190] sm:$0xf]
    %v9886 = vld [vmem:[#allocation13 + $0x194] sm:$0xf]
    %v9887 = vld [vmem:[#allocation13 + $0x198] sm:$0xf]
    %v9888 = vld [vmem:[#allocation13 + $0x19c] sm:$0xf]
    %v9889 = vld [vmem:[#allocation13 + $0x1a0] sm:$0xf]
    %v9890 = vld [vmem:[#allocation13 + $0x1a4] sm:$0xf]
    %v9891 = vld [vmem:[#allocation13 + $0x1a8] sm:$0xf]
    %v9892 = vld [vmem:[#allocation13 + $0x1ac] sm:$0xf]
    %v9893 = vld [vmem:[#allocation13 + $0x1b0] sm:$0xf]
    %v9894 = vld [vmem:[#allocation13 + $0x1b4] sm:$0xf]
    %v9895 = vld [vmem:[#allocation13 + $0x1b8] sm:$0xf]
    %v9896 = vld [vmem:[#allocation13 + $0x1bc] sm:$0xf]
    %v9897 = vld [vmem:[#allocation13 + $0x1c0] sm:$0xf]
    %v9898 = vld [vmem:[#allocation13 + $0x1c4] sm:$0xf]
    %v9899 = vld [vmem:[#allocation13 + $0x1c8] sm:$0xf]
    %v9900 = vld [vmem:[#allocation13 + $0x1cc] sm:$0xf]
    %v9901 = vld [vmem:[#allocation13 + $0x1d0] sm:$0xf]
    %v9902 = vld [vmem:[#allocation13 + $0x1d4] sm:$0xf]
    %v9903 = vld [vmem:[#allocation13 + $0x1d8] sm:$0xf]
    %v9904 = vld [vmem:[#allocation13 + $0x1dc] sm:$0xf]
    %v9905 = vld [vmem:[#allocation13 + $0x1e0] sm:$0xf]
    %v9906 = vld [vmem:[#allocation13 + $0x1e4] sm:$0xf]
    %v9907 = vld [vmem:[#allocation13 + $0x1e8] sm:$0xf]
    %v9908 = vld [vmem:[#allocation13 + $0x1ec] sm:$0xf]
    %v9909 = vld [vmem:[#allocation13 + $0x1f0] sm:$0xf]
    %v9910 = vld [vmem:[#allocation13 + $0x1f4] sm:$0xf]
    %v9911 = vld [vmem:[#allocation13 + $0x1f8] sm:$0xf]
    %v9912 = vld [vmem:[#allocation13 + $0x1fc] sm:$0xf]
    %v10041 = vunpack.c.l.b16 %v9785
    %v10042 = vunpack.c.l.b16 %v9786
    %v10043 = vunpack.c.l.b16 %v9787
    %v10044 = vunpack.c.l.b16 %v9788
    %v10045 = vunpack.c.l.b16 %v9789
    %v10046 = vunpack.c.l.b16 %v9790
    %v10047 = vunpack.c.l.b16 %v9791
    %v10048 = vunpack.c.l.b16 %v9792
    %v10049 = vunpack.c.l.b16 %v9793
    %v10050 = vunpack.c.l.b16 %v9794
    %v10051 = vunpack.c.l.b16 %v9795
    %v10052 = vunpack.c.l.b16 %v9796
    %v10053 = vunpack.c.l.b16 %v9797
    %v10054 = vunpack.c.l.b16 %v9798
    %v10055 = vunpack.c.l.b16 %v9799
    %v10056 = vunpack.c.l.b16 %v9800
    %v10057 = vunpack.c.l.b16 %v9801
    %v10058 = vunpack.c.l.b16 %v9802
    %v10059 = vunpack.c.l.b16 %v9803
    %v10060 = vunpack.c.l.b16 %v9804
    %v10061 = vunpack.c.l.b16 %v9805
    %v10062 = vunpack.c.l.b16 %v9806
    %v10063 = vunpack.c.l.b16 %v9807
    %v10064 = vunpack.c.l.b16 %v9808
    %v10065 = vunpack.c.l.b16 %v9809
    %v10066 = vunpack.c.l.b16 %v9810
    %v10067 = vunpack.c.l.b16 %v9811
    %v10068 = vunpack.c.l.b16 %v9812
    %v10069 = vunpack.c.l.b16 %v9813
    %v10070 = vunpack.c.l.b16 %v9814
    %v10071 = vunpack.c.l.b16 %v9815
    %v10072 = vunpack.c.l.b16 %v9816
    %v10073 = vunpack.c.l.b16 %v9817
    %v10074 = vunpack.c.l.b16 %v9818
    %v10075 = vunpack.c.l.b16 %v9819
    %v10076 = vunpack.c.l.b16 %v9820
    %v10077 = vunpack.c.l.b16 %v9821
    %v10078 = vunpack.c.l.b16 %v9822
    %v10079 = vunpack.c.l.b16 %v9823
    %v10080 = vunpack.c.l.b16 %v9824
    %v10081 = vunpack.c.l.b16 %v9825
    %v10082 = vunpack.c.l.b16 %v9826
    %v10083 = vunpack.c.l.b16 %v9827
    %v10084 = vunpack.c.l.b16 %v9828
    %v10085 = vunpack.c.l.b16 %v9829
    %v10086 = vunpack.c.l.b16 %v9830
    %v10087 = vunpack.c.l.b16 %v9831
    %v10088 = vunpack.c.l.b16 %v9832
    %v10089 = vunpack.c.l.b16 %v9833
    %v10090 = vunpack.c.l.b16 %v9834
    %v10091 = vunpack.c.l.b16 %v9835
    %v10092 = vunpack.c.l.b16 %v9836
    %v10093 = vunpack.c.l.b16 %v9837
    %v10094 = vunpack.c.l.b16 %v9838
    %v10095 = vunpack.c.l.b16 %v9839
    %v10096 = vunpack.c.l.b16 %v9840
    %v10097 = vunpack.c.l.b16 %v9841
    %v10098 = vunpack.c.l.b16 %v9842
    %v10099 = vunpack.c.l.b16 %v9843
    %v10100 = vunpack.c.l.b16 %v9844
    %v10101 = vunpack.c.l.b16 %v9845
    %v10102 = vunpack.c.l.b16 %v9846
    %v10103 = vunpack.c.l.b16 %v9847
    %v10104 = vunpack.c.l.b16 %v9848
    %v10105 = vunpack.c.l.b16 %v9849
    %v10106 = vunpack.c.l.b16 %v9850
    %v10107 = vunpack.c.l.b16 %v9851
    %v10108 = vunpack.c.l.b16 %v9852
    %v10109 = vunpack.c.l.b16 %v9853
    %v10110 = vunpack.c.l.b16 %v9854
    %v10111 = vunpack.c.l.b16 %v9855
    %v10112 = vunpack.c.l.b16 %v9856
    %v10113 = vunpack.c.l.b16 %v9857
    %v10114 = vunpack.c.l.b16 %v9858
    %v10115 = vunpack.c.l.b16 %v9859
    %v10116 = vunpack.c.l.b16 %v9860
    %v10117 = vunpack.c.l.b16 %v9861
    %v10118 = vunpack.c.l.b16 %v9862
    %v10119 = vunpack.c.l.b16 %v9863
    %v10120 = vunpack.c.l.b16 %v9864
    %v10121 = vunpack.c.l.b16 %v9865
    %v10122 = vunpack.c.l.b16 %v9866
    %v10123 = vunpack.c.l.b16 %v9867
    %v10124 = vunpack.c.l.b16 %v9868
    %v10125 = vunpack.c.l.b16 %v9869
    %v10126 = vunpack.c.l.b16 %v9870
    %v10127 = vunpack.c.l.b16 %v9871
    %v10128 = vunpack.c.l.b16 %v9872
    %v10129 = vunpack.c.l.b16 %v9873
    %v10130 = vunpack.c.l.b16 %v9874
    %v10131 = vunpack.c.l.b16 %v9875
    %v10132 = vunpack.c.l.b16 %v9876
    %v10133 = vunpack.c.l.b16 %v9877
    %v10134 = vunpack.c.l.b16 %v9878
    %v10135 = vunpack.c.l.b16 %v9879
    %v10136 = vunpack.c.l.b16 %v9880
    %v10137 = vunpack.c.l.b16 %v9881
    %v10138 = vunpack.c.l.b16 %v9882
    %v10139 = vunpack.c.l.b16 %v9883
    %v10140 = vunpack.c.l.b16 %v9884
    %v10141 = vunpack.c.l.b16 %v9885
    %v10142 = vunpack.c.l.b16 %v9886
    %v10143 = vunpack.c.l.b16 %v9887
    %v10144 = vunpack.c.l.b16 %v9888
    %v10145 = vunpack.c.l.b16 %v9889
    %v10146 = vunpack.c.l.b16 %v9890
    %v10147 = vunpack.c.l.b16 %v9891
    %v10148 = vunpack.c.l.b16 %v9892
    %v10149 = vunpack.c.l.b16 %v9893
    %v10150 = vunpack.c.l.b16 %v9894
    %v10151 = vunpack.c.l.b16 %v9895
    %v10152 = vunpack.c.l.b16 %v9896
    %v10153 = vunpack.c.l.b16 %v9897
    %v10154 = vunpack.c.l.b16 %v9898
    %v10155 = vunpack.c.l.b16 %v9899
    %v10156 = vunpack.c.l.b16 %v9900
    %v10157 = vunpack.c.l.b16 %v9901
    %v10158 = vunpack.c.l.b16 %v9902
    %v10159 = vunpack.c.l.b16 %v9903
    %v10160 = vunpack.c.l.b16 %v9904
    %v10161 = vunpack.c.l.b16 %v9905
    %v10162 = vunpack.c.l.b16 %v9906
    %v10163 = vunpack.c.l.b16 %v9907
    %v10164 = vunpack.c.l.b16 %v9908
    %v10165 = vunpack.c.l.b16 %v9909
    %v10166 = vunpack.c.l.b16 %v9910
    %v10167 = vunpack.c.l.b16 %v9911
    %v10168 = vunpack.c.l.b16 %v9912
    %v10169 = vpack.c.b16 %v10042, %v10041
    %v10170 = vpack.c.b16 %v10044, %v10043
    %v10171 = vpack.c.b16 %v10046, %v10045
    %v10172 = vpack.c.b16 %v10048, %v10047
    %v10173 = vpack.c.b16 %v10050, %v10049
    %v10174 = vpack.c.b16 %v10052, %v10051
    %v10175 = vpack.c.b16 %v10054, %v10053
    %v10176 = vpack.c.b16 %v10056, %v10055
    %v10177 = vpack.c.b16 %v10058, %v10057
    %v10178 = vpack.c.b16 %v10060, %v10059
    %v10179 = vpack.c.b16 %v10062, %v10061
    %v10180 = vpack.c.b16 %v10064, %v10063
    %v10181 = vpack.c.b16 %v10066, %v10065
    %v10182 = vpack.c.b16 %v10068, %v10067
    %v10183 = vpack.c.b16 %v10070, %v10069
    %v10184 = vpack.c.b16 %v10072, %v10071
    %v10185 = vpack.c.b16 %v10074, %v10073
    %v10186 = vpack.c.b16 %v10076, %v10075
    %v10187 = vpack.c.b16 %v10078, %v10077
    %v10188 = vpack.c.b16 %v10080, %v10079
    %v10189 = vpack.c.b16 %v10082, %v10081
    %v10190 = vpack.c.b16 %v10084, %v10083
    %v10191 = vpack.c.b16 %v10086, %v10085
    %v10192 = vpack.c.b16 %v10088, %v10087
    %v10193 = vpack.c.b16 %v10090, %v10089
    %v10194 = vpack.c.b16 %v10092, %v10091
    %v10195 = vpack.c.b16 %v10094, %v10093
    %v10196 = vpack.c.b16 %v10096, %v10095
    %v10197 = vpack.c.b16 %v10098, %v10097
    %v10198 = vpack.c.b16 %v10100, %v10099
    %v10199 = vpack.c.b16 %v10102, %v10101
    %v10200 = vpack.c.b16 %v10104, %v10103
    %v10201 = vpack.c.b16 %v10106, %v10105
    %v10202 = vpack.c.b16 %v10108, %v10107
    %v10203 = vpack.c.b16 %v10110, %v10109
    %v10204 = vpack.c.b16 %v10112, %v10111
    %v10205 = vpack.c.b16 %v10114, %v10113
    %v10206 = vpack.c.b16 %v10116, %v10115
    %v10207 = vpack.c.b16 %v10118, %v10117
    %v10208 = vpack.c.b16 %v10120, %v10119
    %v10209 = vpack.c.b16 %v10122, %v10121
    %v10210 = vpack.c.b16 %v10124, %v10123
    %v10211 = vpack.c.b16 %v10126, %v10125
    %v10212 = vpack.c.b16 %v10128, %v10127
    %v10213 = vpack.c.b16 %v10130, %v10129
    %v10214 = vpack.c.b16 %v10132, %v10131
    %v10215 = vpack.c.b16 %v10134, %v10133
    %v10216 = vpack.c.b16 %v10136, %v10135
    %v10217 = vpack.c.b16 %v10138, %v10137
    %v10218 = vpack.c.b16 %v10140, %v10139
    %v10219 = vpack.c.b16 %v10142, %v10141
    %v10220 = vpack.c.b16 %v10144, %v10143
    %v10221 = vpack.c.b16 %v10146, %v10145
    %v10222 = vpack.c.b16 %v10148, %v10147
    %v10223 = vpack.c.b16 %v10150, %v10149
    %v10224 = vpack.c.b16 %v10152, %v10151
    %v10225 = vpack.c.b16 %v10154, %v10153
    %v10226 = vpack.c.b16 %v10156, %v10155
    %v10227 = vpack.c.b16 %v10158, %v10157
    %v10228 = vpack.c.b16 %v10160, %v10159
    %v10229 = vpack.c.b16 %v10162, %v10161
    %v10230 = vpack.c.b16 %v10164, %v10163
    %v10231 = vpack.c.b16 %v10166, %v10165
    %v10232 = vpack.c.b16 %v10168, %v10167
    %10297 = vmatprep.subr.bf16.mxu0 0
    %10298 = vmatpush1.bf16.msra.mxu0 %v10169
    %10299 = vmatprep.subr.bf16.mxu0 0
    %10300 = vmatpush1.bf16.msra.mxu0 %v10170
    %10301 = vmatprep.subr.bf16.mxu0 0
    %10302 = vmatpush1.bf16.msra.mxu0 %v10171
    %10303 = vmatprep.subr.bf16.mxu0 0
    %10304 = vmatpush1.bf16.msra.mxu0 %v10172
    %10305 = vmatprep.subr.bf16.mxu0 0
    %10306 = vmatpush1.bf16.msra.mxu0 %v10173
    %10307 = vmatprep.subr.bf16.mxu0 0
    %10308 = vmatpush1.bf16.msra.mxu0 %v10174
    %10309 = vmatprep.subr.bf16.mxu0 0
    %10310 = vmatpush1.bf16.msra.mxu0 %v10175
    %10311 = vmatprep.subr.bf16.mxu0 0
    %10312 = vmatpush1.bf16.msra.mxu0 %v10176
    %10313 = vmatprep.subr.bf16.mxu0 0
    %10314 = vmatpush1.bf16.msra.mxu0 %v10177
    %10315 = vmatprep.subr.bf16.mxu0 0
    %10316 = vmatpush1.bf16.msra.mxu0 %v10178
    %10317 = vmatprep.subr.bf16.mxu0 0
    %10318 = vmatpush1.bf16.msra.mxu0 %v10179
    %10319 = vmatprep.subr.bf16.mxu0 0
    %10320 = vmatpush1.bf16.msra.mxu0 %v10180
    %10321 = vmatprep.subr.bf16.mxu0 0
    %10322 = vmatpush1.bf16.msra.mxu0 %v10181
    %10323 = vmatprep.subr.bf16.mxu0 0
    %10324 = vmatpush1.bf16.msra.mxu0 %v10182
    %10325 = vmatprep.subr.bf16.mxu0 0
    %10326 = vmatpush1.bf16.msra.mxu0 %v10183
    %10327 = vmatprep.subr.bf16.mxu0 0
    %10328 = vmatpush1.bf16.msra.mxu0 %v10184
    %10329 = vmatprep.mubr.bf16.mxu0 %v9770
    %10330 = vmatmul.mubr.bf16.gmra.mrb[0].mxu0 %v9769
    %v10331 = vpop.f32.mrb[0].mxu0
    %v10332 = vadd.f32 0.0, %v10331
    %v10333 = vpop.f32.mrb[0].mxu0
    %v10334 = vpop.f32.mrb[0].mxu0
    %v10335 = vadd.f32 0.0, %v10334
    %v10336 = vpop.f32.mrb[0].mxu0
    %10337 = vmatprep.mubr.bf16.mxu0 %v9778
    %10338 = vmatmul.mubr.bf16.gmra.mrb[0].mxu0 %v9777
    %v10339 = vpop.f32.mrb[0].mxu0
    %v10340 = vadd.f32 0.0, %v10339
    %v10341 = vpop.f32.mrb[0].mxu0
    %v10342 = vpop.f32.mrb[0].mxu0
    %v10343 = vpop.f32.mrb[0].mxu0
    %10344 = vdwg.mxu0
    %10345 = vmatprep.subr.bf16.mxu0 0
    %10346 = vmatpush1.bf16.msra.mxu0 %v10185
    %10347 = vmatprep.subr.bf16.mxu0 0
    %10348 = vmatpush1.bf16.msra.mxu0 %v10186
    %10349 = vmatprep.subr.bf16.mxu0 0
    %10350 = vmatpush1.bf16.msra.mxu0 %v10187
    %10351 = vmatprep.subr.bf16.mxu0 0
    %10352 = vmatpush1.bf16.msra.mxu0 %v10188
    %10353 = vmatprep.subr.bf16.mxu0 0
    %10354 = vmatpush1.bf16.msra.mxu0 %v10189
    %10355 = vmatprep.subr.bf16.mxu0 0
    %10356 = vmatpush1.bf16.msra.mxu0 %v10190
    %10357 = vmatprep.subr.bf16.mxu0 0
    %10358 = vmatpush1.bf16.msra.mxu0 %v10191
    %10359 = vmatprep.subr.bf16.mxu0 0
    %10360 = vmatpush1.bf16.msra.mxu0 %v10192
    %10361 = vmatprep.subr.bf16.mxu0 0
    %10362 = vmatpush1.bf16.msra.mxu0 %v10193
    %10363 = vmatprep.subr.bf16.mxu0 0
    %10364 = vmatpush1.bf16.msra.mxu0 %v10194
    %10365 = vmatprep.subr.bf16.mxu0 0
    %10366 = vmatpush1.bf16.msra.mxu0 %v10195
    %10367 = vmatprep.subr.bf16.mxu0 0
    %10368 = vmatpush1.bf16.msra.mxu0 %v10196
    %10369 = vmatprep.subr.bf16.mxu0 0
    %10370 = vmatpush1.bf16.msra.mxu0 %v10197
    %10371 = vmatprep.subr.bf16.mxu0 0
    %10372 = vmatpush1.bf16.msra.mxu0 %v10198
    %10373 = vmatprep.subr.bf16.mxu0 0
    %10374 = vmatpush1.bf16.msra.mxu0 %v10199
    %10375 = vmatprep.subr.bf16.mxu0 0
    %10376 = vmatpush1.bf16.msra.mxu0 %v10200
    %10377 = vmatprep.mubr.bf16.mxu0 %v9772
    %10378 = vmatmul.mubr.bf16.gmra.mrb[0].mxu0 %v9771
    %v10379 = vpop.f32.mrb[0].mxu0
    %v10380 = vadd.f32 %v10332, %v10379
    %v10381 = vpop.f32.mrb[0].mxu0
    %v10382 = vpop.f32.mrb[0].mxu0
    %v10383 = vadd.f32 %v10335, %v10382
    %v10384 = vpop.f32.mrb[0].mxu0
    %10385 = vmatprep.mubr.bf16.mxu0 %v9780
    %10386 = vmatmul.mubr.bf16.gmra.mrb[0].mxu0 %v9779
    %v10387 = vpop.f32.mrb[0].mxu0
    %v10388 = vadd.f32 %v10340, %v10387
    %v10389 = vpop.f32.mrb[0].mxu0
    %v10390 = vpop.f32.mrb[0].mxu0
    %v10391 = vpop.f32.mrb[0].mxu0
    %10392 = vdwg.mxu0
    %10393 = vmatprep.subr.bf16.mxu0 0
    %10394 = vmatpush1.bf16.msra.mxu0 %v10201
    %10395 = vmatprep.subr.bf16.mxu0 0
    %10396 = vmatpush1.bf16.msra.mxu0 %v10202
    %10397 = vmatprep.subr.bf16.mxu0 0
    %10398 = vmatpush1.bf16.msra.mxu0 %v10203
    %10399 = vmatprep.subr.bf16.mxu0 0
    %10400 = vmatpush1.bf16.msra.mxu0 %v10204
    %10401 = vmatprep.subr.bf16.mxu0 0
    %10402 = vmatpush1.bf16.msra.mxu0 %v10205
    %10403 = vmatprep.subr.bf16.mxu0 0
    %10404 = vmatpush1.bf16.msra.mxu0 %v10206
    %10405 = vmatprep.subr.bf16.mxu0 0
    %10406 = vmatpush1.bf16.msra.mxu0 %v10207
    %10407 = vmatprep.subr.bf16.mxu0 0
    %10408 = vmatpush1.bf16.msra.mxu0 %v10208
    %10409 = vmatprep.subr.bf16.mxu0 0
    %10410 = vmatpush1.bf16.msra.mxu0 %v10209
    %10411 = vmatprep.subr.bf16.mxu0 0
    %10412 = vmatpush1.bf16.msra.mxu0 %v10210
    %10413 = vmatprep.subr.bf16.mxu0 0
    %10414 = vmatpush1.bf16.msra.mxu0 %v10211
    %10415 = vmatprep.subr.bf16.mxu0 0
    %10416 = vmatpush1.bf16.msra.mxu0 %v10212
    %10417 = vmatprep.subr.bf16.mxu0 0
    %10418 = vmatpush1.bf16.msra.mxu0 %v10213
    %10419 = vmatprep.subr.bf16.mxu0 0
    %10420 = vmatpush1.bf16.msra.mxu0 %v10214
    %10421 = vmatprep.subr.bf16.mxu0 0
    %10422 = vmatpush1.bf16.msra.mxu0 %v10215
    %10423 = vmatprep.subr.bf16.mxu0 0
    %10424 = vmatpush1.bf16.msra.mxu0 %v10216
    %10425 = vmatprep.mubr.bf16.mxu0 %v9774
    %10426 = vmatmul.mubr.bf16.gmra.mrb[0].mxu0 %v9773
    %v10427 = vpop.f32.mrb[0].mxu0
    %v10428 = vadd.f32 %v10380, %v10427
    %v10429 = vpop.f32.mrb[0].mxu0
    %v10430 = vpop.f32.mrb[0].mxu0
    %v10431 = vadd.f32 %v10383, %v10430
    %v10432 = vpop.f32.mrb[0].mxu0
    %10433 = vmatprep.mubr.bf16.mxu0 %v9782
    %10434 = vmatmul.mubr.bf16.gmra.mrb[0].mxu0 %v9781
    %v10435 = vpop.f32.mrb[0].mxu0
    %v10436 = vadd.f32 %v10388, %v10435
    %v10437 = vpop.f32.mrb[0].mxu0
    %v10438 = vpop.f32.mrb[0].mxu0
    %v10439 = vpop.f32.mrb[0].mxu0
    %10440 = vdwg.mxu0
    %10441 = vmatprep.subr.bf16.mxu0 0
    %10442 = vmatpush1.bf16.msra.mxu0 %v10217
    %10443 = vmatprep.subr.bf16.mxu0 0
    %10444 = vmatpush1.bf16.msra.mxu0 %v10218
    %10445 = vmatprep.subr.bf16.mxu0 0
    %10446 = vmatpush1.bf16.msra.mxu0 %v10219
    %10447 = vmatprep.subr.bf16.mxu0 0
    %10448 = vmatpush1.bf16.msra.mxu0 %v10220
    %10449 = vmatprep.subr.bf16.mxu0 0
    %10450 = vmatpush1.bf16.msra.mxu0 %v10221
    %10451 = vmatprep.subr.bf16.mxu0 0
    %10452 = vmatpush1.bf16.msra.mxu0 %v10222
    %10453 = vmatprep.subr.bf16.mxu0 0
    %10454 = vmatpush1.bf16.msra.mxu0 %v10223
    %10455 = vmatprep.subr.bf16.mxu0 0
    %10456 = vmatpush1.bf16.msra.mxu0 %v10224
    %10457 = vmatprep.subr.bf16.mxu0 0
    %10458 = vmatpush1.bf16.msra.mxu0 %v10225
    %10459 = vmatprep.subr.bf16.mxu0 0
    %10460 = vmatpush1.bf16.msra.mxu0 %v10226
    %10461 = vmatprep.subr.bf16.mxu0 0
    %10462 = vmatpush1.bf16.msra.mxu0 %v10227
    %10463 = vmatprep.subr.bf16.mxu0 0
    %10464 = vmatpush1.bf16.msra.mxu0 %v10228
    %10465 = vmatprep.subr.bf16.mxu0 0
    %10466 = vmatpush1.bf16.msra.mxu0 %v10229
    %10467 = vmatprep.subr.bf16.mxu0 0
    %10468 = vmatpush1.bf16.msra.mxu0 %v10230
    %10469 = vmatprep.subr.bf16.mxu0 0
    %10470 = vmatpush1.bf16.msra.mxu0 %v10231
    %10471 = vmatprep.subr.bf16.mxu0 0
    %10472 = vmatpush1.bf16.msra.mxu0 %v10232
    %10473 = vmatprep.mubr.bf16.mxu0 %v9776
    %10474 = vmatmul.mubr.bf16.gmra.mrb[0].mxu0 %v9775
    %v10475 = vpop.f32.mrb[0].mxu0
    %v10476 = vadd.f32 %v10428, %v10475
    %v10477 = vpop.f32.mrb[0].mxu0
    %v10478 = vpop.f32.mrb[0].mxu0
    %v10479 = vadd.f32 %v10431, %v10478
    %v10480 = vpop.f32.mrb[0].mxu0
    %10481 = vmatprep.mubr.bf16.mxu0 %v9784
    %10482 = vmatmul.mubr.bf16.gmra.mrb[0].mxu0 %v9783
    %v10483 = vpop.f32.mrb[0].mxu0
    %v10484 = vadd.f32 %v10436, %v10483
    %v10485 = vpop.f32.mrb[0].mxu0
    %v10486 = vpop.f32.mrb[0].mxu0
    %v10487 = vpop.f32.mrb[0].mxu0
    %10488 = vdwg.mxu0
    %v10617 = vunpack.c.l.b16 %v9641
    %v10618 = vunpack.c.l.b16 %v9642
    %v10619 = vunpack.c.l.b16 %v9643
    %v10620 = vunpack.c.l.b16 %v9644
    %v10621 = vunpack.c.l.b16 %v9645
    %v10622 = vunpack.c.l.b16 %v9646
    %v10623 = vunpack.c.l.b16 %v9647
    %v10624 = vunpack.c.l.b16 %v9648
    %v10625 = vunpack.c.l.b16 %v9649
    %v10626 = vunpack.c.l.b16 %v9650
    %v10627 = vunpack.c.l.b16 %v9651
    %v10628 = vunpack.c.l.b16 %v9652
    %v10629 = vunpack.c.l.b16 %v9653
    %v10630 = vunpack.c.l.b16 %v9654
    %v10631 = vunpack.c.l.b16 %v9655
    %v10632 = vunpack.c.l.b16 %v9656
    %v10633 = vunpack.c.l.b16 %v9657
    %v10634 = vunpack.c.l.b16 %v9658
    %v10635 = vunpack.c.l.b16 %v9659
    %v10636 = vunpack.c.l.b16 %v9660
    %v10637 = vunpack.c.l.b16 %v9661
    %v10638 = vunpack.c.l.b16 %v9662
    %v10639 = vunpack.c.l.b16 %v9663
    %v10640 = vunpack.c.l.b16 %v9664
    %v10641 = vunpack.c.l.b16 %v9665
    %v10642 = vunpack.c.l.b16 %v9666
    %v10643 = vunpack.c.l.b16 %v9667
    %v10644 = vunpack.c.l.b16 %v9668
    %v10645 = vunpack.c.l.b16 %v9669
    %v10646 = vunpack.c.l.b16 %v9670
    %v10647 = vunpack.c.l.b16 %v9671
    %v10648 = vunpack.c.l.b16 %v9672
    %v10649 = vunpack.c.l.b16 %v9673
    %v10650 = vunpack.c.l.b16 %v9674
    %v10651 = vunpack.c.l.b16 %v9675
    %v10652 = vunpack.c.l.b16 %v9676
    %v10653 = vunpack.c.l.b16 %v9677
    %v10654 = vunpack.c.l.b16 %v9678
    %v10655 = vunpack.c.l.b16 %v9679
    %v10656 = vunpack.c.l.b16 %v9680
    %v10657 = vunpack.c.l.b16 %v9681
    %v10658 = vunpack.c.l.b16 %v9682
    %v10659 = vunpack.c.l.b16 %v9683
    %v10660 = vunpack.c.l.b16 %v9684
    %v10661 = vunpack.c.l.b16 %v9685
    %v10662 = vunpack.c.l.b16 %v9686
    %v10663 = vunpack.c.l.b16 %v9687
    %v10664 = vunpack.c.l.b16 %v9688
    %v10665 = vunpack.c.l.b16 %v9689
    %v10666 = vunpack.c.l.b16 %v9690
    %v10667 = vunpack.c.l.b16 %v9691
    %v10668 = vunpack.c.l.b16 %v9692
    %v10669 = vunpack.c.l.b16 %v9693
    %v10670 = vunpack.c.l.b16 %v9694
    %v10671 = vunpack.c.l.b16 %v9695
    %v10672 = vunpack.c.l.b16 %v9696
    %v10673 = vunpack.c.l.b16 %v9697
    %v10674 = vunpack.c.l.b16 %v9698
    %v10675 = vunpack.c.l.b16 %v9699
    %v10676 = vunpack.c.l.b16 %v9700
    %v10677 = vunpack.c.l.b16 %v9701
    %v10678 = vunpack.c.l.b16 %v9702
    %v10679 = vunpack.c.l.b16 %v9703
    %v10680 = vunpack.c.l.b16 %v9704
    %v10681 = vunpack.c.l.b16 %v9705
    %v10682 = vunpack.c.l.b16 %v9706
    %v10683 = vunpack.c.l.b16 %v9707
    %v10684 = vunpack.c.l.b16 %v9708
    %v10685 = vunpack.c.l.b16 %v9709
    %v10686 = vunpack.c.l.b16 %v9710
    %v10687 = vunpack.c.l.b16 %v9711
    %v10688 = vunpack.c.l.b16 %v9712
    %v10689 = vunpack.c.l.b16 %v9713
    %v10690 = vunpack.c.l.b16 %v9714
    %v10691 = vunpack.c.l.b16 %v9715
    %v10692 = vunpack.c.l.b16 %v9716
    %v10693 = vunpack.c.l.b16 %v9717
    %v10694 = vunpack.c.l.b16 %v9718
    %v10695 = vunpack.c.l.b16 %v9719
    %v10696 = vunpack.c.l.b16 %v9720
    %v10697 = vunpack.c.l.b16 %v9721
    %v10698 = vunpack.c.l.b16 %v9722
    %v10699 = vunpack.c.l.b16 %v9723
    %v10700 = vunpack.c.l.b16 %v9724
    %v10701 = vunpack.c.l.b16 %v9725
    %v10702 = vunpack.c.l.b16 %v9726
    %v10703 = vunpack.c.l.b16 %v9727
    %v10704 = vunpack.c.l.b16 %v9728
    %v10705 = vunpack.c.l.b16 %v9729
    %v10706 = vunpack.c.l.b16 %v9730
    %v10707 = vunpack.c.l.b16 %v9731
    %v10708 = vunpack.c.l.b16 %v9732
    %v10709 = vunpack.c.l.b16 %v9733
    %v10710 = vunpack.c.l.b16 %v9734
    %v10711 = vunpack.c.l.b16 %v9735
    %v10712 = vunpack.c.l.b16 %v9736
    %v10713 = vunpack.c.l.b16 %v9737
    %v10714 = vunpack.c.l.b16 %v9738
    %v10715 = vunpack.c.l.b16 %v9739
    %v10716 = vunpack.c.l.b16 %v9740
    %v10717 = vunpack.c.l.b16 %v9741
    %v10718 = vunpack.c.l.b16 %v9742
    %v10719 = vunpack.c.l.b16 %v9743
    %v10720 = vunpack.c.l.b16 %v9744
    %v10721 = vunpack.c.l.b16 %v9745
    %v10722 = vunpack.c.l.b16 %v9746
    %v10723 = vunpack.c.l.b16 %v9747
    %v10724 = vunpack.c.l.b16 %v9748
    %v10725 = vunpack.c.l.b16 %v9749
    %v10726 = vunpack.c.l.b16 %v9750
    %v10727 = vunpack.c.l.b16 %v9751
    %v10728 = vunpack.c.l.b16 %v9752
    %v10729 = vunpack.c.l.b16 %v9753
    %v10730 = vunpack.c.l.b16 %v9754
    %v10731 = vunpack.c.l.b16 %v9755
    %v10732 = vunpack.c.l.b16 %v9756
    %v10733 = vunpack.c.l.b16 %v9757
    %v10734 = vunpack.c.l.b16 %v9758
    %v10735 = vunpack.c.l.b16 %v9759
    %v10736 = vunpack.c.l.b16 %v9760
    %v10737 = vunpack.c.l.b16 %v9761
    %v10738 = vunpack.c.l.b16 %v9762
    %v10739 = vunpack.c.l.b16 %v9763
    %v10740 = vunpack.c.l.b16 %v9764
    %v10741 = vunpack.c.l.b16 %v9765
    %v10742 = vunpack.c.l.b16 %v9766
    %v10743 = vunpack.c.l.b16 %v9767
    %v10744 = vunpack.c.l.b16 %v9768
    %v10745 = vpack.c.b16 %v10618, %v10617
    %v10746 = vpack.c.b16 %v10620, %v10619
    %v10747 = vpack.c.b16 %v10622, %v10621
    %v10748 = vpack.c.b16 %v10624, %v10623
    %v10749 = vpack.c.b16 %v10626, %v10625
    %v10750 = vpack.c.b16 %v10628, %v10627
    %v10751 = vpack.c.b16 %v10630, %v10629
    %v10752 = vpack.c.b16 %v10632, %v10631
    %v10753 = vpack.c.b16 %v10634, %v10633
    %v10754 = vpack.c.b16 %v10636, %v10635
    %v10755 = vpack.c.b16 %v10638, %v10637
    %v10756 = vpack.c.b16 %v10640, %v10639
    %v10757 = vpack.c.b16 %v10642, %v10641
    %v10758 = vpack.c.b16 %v10644, %v10643
    %v10759 = vpack.c.b16 %v10646, %v10645
    %v10760 = vpack.c.b16 %v10648, %v10647
    %v10761 = vpack.c.b16 %v10650, %v10649
    %v10762 = vpack.c.b16 %v10652, %v10651
    %v10763 = vpack.c.b16 %v10654, %v10653
    %v10764 = vpack.c.b16 %v10656, %v10655
    %v10765 = vpack.c.b16 %v10658, %v10657
    %v10766 = vpack.c.b16 %v10660, %v10659
    %v10767 = vpack.c.b16 %v10662, %v10661
    %v10768 = vpack.c.b16 %v10664, %v10663
    %v10769 = vpack.c.b16 %v10666, %v10665
    %v10770 = vpack.c.b16 %v10668, %v10667
    %v10771 = vpack.c.b16 %v10670, %v10669
    %v10772 = vpack.c.b16 %v10672, %v10671
    %v10773 = vpack.c.b16 %v10674, %v10673
    %v10774 = vpack.c.b16 %v10676, %v10675
    %v10775 = vpack.c.b16 %v10678, %v10677
    %v10776 = vpack.c.b16 %v10680, %v10679
    %v10777 = vpack.c.b16 %v10682, %v10681
    %v10778 = vpack.c.b16 %v10684, %v10683
    %v10779 = vpack.c.b16 %v10686, %v10685
    %v10780 = vpack.c.b16 %v10688, %v10687
    %v10781 = vpack.c.b16 %v10690, %v10689
    %v10782 = vpack.c.b16 %v10692, %v10691
    %v10783 = vpack.c.b16 %v10694, %v10693
    %v10784 = vpack.c.b16 %v10696, %v10695
    %v10785 = vpack.c.b16 %v10698, %v10697
    %v10786 = vpack.c.b16 %v10700, %v10699
    %v10787 = vpack.c.b16 %v10702, %v10701
    %v10788 = vpack.c.b16 %v10704, %v10703
    %v10789 = vpack.c.b16 %v10706, %v10705
    %v10790 = vpack.c.b16 %v10708, %v10707
    %v10791 = vpack.c.b16 %v10710, %v10709
    %v10792 = vpack.c.b16 %v10712, %v10711
    %v10793 = vpack.c.b16 %v10714, %v10713
    %v10794 = vpack.c.b16 %v10716, %v10715
    %v10795 = vpack.c.b16 %v10718, %v10717
    %v10796 = vpack.c.b16 %v10720, %v10719
    %v10797 = vpack.c.b16 %v10722, %v10721
    %v10798 = vpack.c.b16 %v10724, %v10723
    %v10799 = vpack.c.b16 %v10726, %v10725
    %v10800 = vpack.c.b16 %v10728, %v10727
    %v10801 = vpack.c.b16 %v10730, %v10729
    %v10802 = vpack.c.b16 %v10732, %v10731
    %v10803 = vpack.c.b16 %v10734, %v10733
    %v10804 = vpack.c.b16 %v10736, %v10735
    %v10805 = vpack.c.b16 %v10738, %v10737
    %v10806 = vpack.c.b16 %v10740, %v10739
    %v10807 = vpack.c.b16 %v10742, %v10741
    %v10808 = vpack.c.b16 %v10744, %v10743
    %10873 = vmatprep.subr.bf16.mxu0 0
    %10874 = vmatpush1.bf16.msra.mxu0 %v10745
    %10875 = vmatprep.subr.bf16.mxu0 0
    %10876 = vmatpush1.bf16.msra.mxu0 %v10746
    %10877 = vmatprep.subr.bf16.mxu0 0
    %10878 = vmatpush1.bf16.msra.mxu0 %v10747
    %10879 = vmatprep.subr.bf16.mxu0 0
    %10880 = vmatpush1.bf16.msra.mxu0 %v10748
    %10881 = vmatprep.subr.bf16.mxu0 0
    %10882 = vmatpush1.bf16.msra.mxu0 %v10749
    %10883 = vmatprep.subr.bf16.mxu0 0
    %10884 = vmatpush1.bf16.msra.mxu0 %v10750
    %10885 = vmatprep.subr.bf16.mxu0 0
    %10886 = vmatpush1.bf16.msra.mxu0 %v10751
    %10887 = vmatprep.subr.bf16.mxu0 0
    %10888 = vmatpush1.bf16.msra.mxu0 %v10752
    %10889 = vmatprep.subr.bf16.mxu0 0
    %10890 = vmatpush1.bf16.msra.mxu0 %v10753
    %10891 = vmatprep.subr.bf16.mxu0 0
    %10892 = vmatpush1.bf16.msra.mxu0 %v10754
    %10893 = vmatprep.subr.bf16.mxu0 0
    %10894 = vmatpush1.bf16.msra.mxu0 %v10755
    %10895 = vmatprep.subr.bf16.mxu0 0
    %10896 = vmatpush1.bf16.msra.mxu0 %v10756
    %10897 = vmatprep.subr.bf16.mxu0 0
    %10898 = vmatpush1.bf16.msra.mxu0 %v10757
    %10899 = vmatprep.subr.bf16.mxu0 0
    %10900 = vmatpush1.bf16.msra.mxu0 %v10758
    %10901 = vmatprep.subr.bf16.mxu0 0
    %10902 = vmatpush1.bf16.msra.mxu0 %v10759
    %10903 = vmatprep.subr.bf16.mxu0 0
    %10904 = vmatpush1.bf16.msra.mxu0 %v10760
    %10905 = vmatprep.mubr.bf16.mxu0 %v9626
    %10906 = vmatmul.mubr.bf16.gmra.mrb[0].mxu0 %v9625
    %v10907 = vpop.f32.mrb[0].mxu0
    %v10908 = vadd.f32 %v10476, %v10907
    %v10909 = vpop.f32.mrb[0].mxu0
    %v10910 = vpop.f32.mrb[0].mxu0
    %v10911 = vadd.f32 %v10479, %v10910
    %v10912 = vpop.f32.mrb[0].mxu0
    %10913 = vmatprep.mubr.bf16.mxu0 %v9634
    %10914 = vmatmul.mubr.bf16.gmra.mrb[0].mxu0 %v9633
    %v10915 = vpop.f32.mrb[0].mxu0
    %v10916 = vadd.f32 %v10484, %v10915
    %v10917 = vpop.f32.mrb[0].mxu0
    %v10918 = vpop.f32.mrb[0].mxu0
    %v10919 = vpop.f32.mrb[0].mxu0
    %10920 = vdwg.mxu0
    %10921 = vmatprep.subr.bf16.mxu0 0
    %10922 = vmatpush1.bf16.msra.mxu0 %v10761
    %10923 = vmatprep.subr.bf16.mxu0 0
    %10924 = vmatpush1.bf16.msra.mxu0 %v10762
    %10925 = vmatprep.subr.bf16.mxu0 0
    %10926 = vmatpush1.bf16.msra.mxu0 %v10763
    %10927 = vmatprep.subr.bf16.mxu0 0
    %10928 = vmatpush1.bf16.msra.mxu0 %v10764
    %10929 = vmatprep.subr.bf16.mxu0 0
    %10930 = vmatpush1.bf16.msra.mxu0 %v10765
    %10931 = vmatprep.subr.bf16.mxu0 0
    %10932 = vmatpush1.bf16.msra.mxu0 %v10766
    %10933 = vmatprep.subr.bf16.mxu0 0
    %10934 = vmatpush1.bf16.msra.mxu0 %v10767
    %10935 = vmatprep.subr.bf16.mxu0 0
    %10936 = vmatpush1.bf16.msra.mxu0 %v10768
    %10937 = vmatprep.subr.bf16.mxu0 0
    %10938 = vmatpush1.bf16.msra.mxu0 %v10769
    %10939 = vmatprep.subr.bf16.mxu0 0
    %10940 = vmatpush1.bf16.msra.mxu0 %v10770
    %10941 = vmatprep.subr.bf16.mxu0 0
    %10942 = vmatpush1.bf16.msra.mxu0 %v10771
    %10943 = vmatprep.subr.bf16.mxu0 0
    %10944 = vmatpush1.bf16.msra.mxu0 %v10772
    %10945 = vmatprep.subr.bf16.mxu0 0
    %10946 = vmatpush1.bf16.msra.mxu0 %v10773
    %10947 = vmatprep.subr.bf16.mxu0 0
    %10948 = vmatpush1.bf16.msra.mxu0 %v10774
    %10949 = vmatprep.subr.bf16.mxu0 0
    %10950 = vmatpush1.bf16.msra.mxu0 %v10775
    %10951 = vmatprep.subr.bf16.mxu0 0
    %10952 = vmatpush1.bf16.msra.mxu0 %v10776
    %10953 = vmatprep.mubr.bf16.mxu0 %v9628
    %10954 = vmatmul.mubr.bf16.gmra.mrb[0].mxu0 %v9627
    %v10955 = vpop.f32.mrb[0].mxu0
    %v10956 = vadd.f32 %v10908, %v10955
    %v10957 = vpop.f32.mrb[0].mxu0
    %v10958 = vpop.f32.mrb[0].mxu0
    %v10959 = vadd.f32 %v10911, %v10958
    %v10960 = vpop.f32.mrb[0].mxu0
    %10961 = vmatprep.mubr.bf16.mxu0 %v9636
    %10962 = vmatmul.mubr.bf16.gmra.mrb[0].mxu0 %v9635
    %v10963 = vpop.f32.mrb[0].mxu0
    %v10964 = vadd.f32 %v10916, %v10963
    %v10965 = vpop.f32.mrb[0].mxu0
    %v10966 = vpop.f32.mrb[0].mxu0
    %v10967 = vpop.f32.mrb[0].mxu0
    %10968 = vdwg.mxu0
    %10969 = vmatprep.subr.bf16.mxu0 0
    %10970 = vmatpush1.bf16.msra.mxu0 %v10777
    %10971 = vmatprep.subr.bf16.mxu0 0
    %10972 = vmatpush1.bf16.msra.mxu0 %v10778
    %10973 = vmatprep.subr.bf16.mxu0 0
    %10974 = vmatpush1.bf16.msra.mxu0 %v10779
    %10975 = vmatprep.subr.bf16.mxu0 0
    %10976 = vmatpush1.bf16.msra.mxu0 %v10780
    %10977 = vmatprep.subr.bf16.mxu0 0
    %10978 = vmatpush1.bf16.msra.mxu0 %v10781
    %10979 = vmatprep.subr.bf16.mxu0 0
    %10980 = vmatpush1.bf16.msra.mxu0 %v10782
    %10981 = vmatprep.subr.bf16.mxu0 0
    %10982 = vmatpush1.bf16.msra.mxu0 %v10783
    %10983 = vmatprep.subr.bf16.mxu0 0
    %10984 = vmatpush1.bf16.msra.mxu0 %v10784
    %10985 = vmatprep.subr.bf16.mxu0 0
    %10986 = vmatpush1.bf16.msra.mxu0 %v10785
    %10987 = vmatprep.subr.bf16.mxu0 0
    %10988 = vmatpush1.bf16.msra.mxu0 %v10786
    %10989 = vmatprep.subr.bf16.mxu0 0
    %10990 = vmatpush1.bf16.msra.mxu0 %v10787
    %10991 = vmatprep.subr.bf16.mxu0 0
    %10992 = vmatpush1.bf16.msra.mxu0 %v10788
    %10993 = vmatprep.subr.bf16.mxu0 0
    %10994 = vmatpush1.bf16.msra.mxu0 %v10789
    %10995 = vmatprep.subr.bf16.mxu0 0
    %10996 = vmatpush1.bf16.msra.mxu0 %v10790
    %10997 = vmatprep.subr.bf16.mxu0 0
    %10998 = vmatpush1.bf16.msra.mxu0 %v10791
    %10999 = vmatprep.subr.bf16.mxu0 0
    %11000 = vmatpush1.bf16.msra.mxu0 %v10792
    %11001 = vmatprep.mubr.bf16.mxu0 %v9630
    %11002 = vmatmul.mubr.bf16.gmra.mrb[0].mxu0 %v9629
    %v11003 = vpop.f32.mrb[0].mxu0
    %v11004 = vadd.f32 %v10956, %v11003
    %v11005 = vpop.f32.mrb[0].mxu0
    %v11006 = vpop.f32.mrb[0].mxu0
    %v11007 = vadd.f32 %v10959, %v11006
    %v11008 = vpop.f32.mrb[0].mxu0
    %11009 = vmatprep.mubr.bf16.mxu0 %v9638
    %11010 = vmatmul.mubr.bf16.gmra.mrb[0].mxu0 %v9637
    %v11011 = vpop.f32.mrb[0].mxu0
    %v11012 = vadd.f32 %v10964, %v11011
    %v11013 = vpop.f32.mrb[0].mxu0
    %v11014 = vpop.f32.mrb[0].mxu0
    %v11015 = vpop.f32.mrb[0].mxu0
    %11016 = vdwg.mxu0
    %11017 = vmatprep.subr.bf16.mxu0 0
    %11018 = vmatpush1.bf16.msra.mxu0 %v10793
    %11019 = vmatprep.subr.bf16.mxu0 0
    %11020 = vmatpush1.bf16.msra.mxu0 %v10794
    %11021 = vmatprep.subr.bf16.mxu0 0
    %11022 = vmatpush1.bf16.msra.mxu0 %v10795
    %11023 = vmatprep.subr.bf16.mxu0 0
    %11024 = vmatpush1.bf16.msra.mxu0 %v10796
    %11025 = vmatprep.subr.bf16.mxu0 0
    %11026 = vmatpush1.bf16.msra.mxu0 %v10797
    %11027 = vmatprep.subr.bf16.mxu0 0
    %11028 = vmatpush1.bf16.msra.mxu0 %v10798
    %11029 = vmatprep.subr.bf16.mxu0 0
    %11030 = vmatpush1.bf16.msra.mxu0 %v10799
    %11031 = vmatprep.subr.bf16.mxu0 0
    %11032 = vmatpush1.bf16.msra.mxu0 %v10800
    %11033 = vmatprep.subr.bf16.mxu0 0
    %11034 = vmatpush1.bf16.msra.mxu0 %v10801
    %11035 = vmatprep.subr.bf16.mxu0 0
    %11036 = vmatpush1.bf16.msra.mxu0 %v10802
    %11037 = vmatprep.subr.bf16.mxu0 0
    %11038 = vmatpush1.bf16.msra.mxu0 %v10803
    %11039 = vmatprep.subr.bf16.mxu0 0
    %11040 = vmatpush1.bf16.msra.mxu0 %v10804
    %11041 = vmatprep.subr.bf16.mxu0 0
    %11042 = vmatpush1.bf16.msra.mxu0 %v10805
    %11043 = vmatprep.subr.bf16.mxu0 0
    %11044 = vmatpush1.bf16.msra.mxu0 %v10806
    %11045 = vmatprep.subr.bf16.mxu0 0
    %11046 = vmatpush1.bf16.msra.mxu0 %v10807
    %11047 = vmatprep.subr.bf16.mxu0 0
    %11048 = vmatpush1.bf16.msra.mxu0 %v10808
    %11049 = vmatprep.mubr.bf16.mxu0 %v9632
    %11050 = vmatmul.mubr.bf16.gmra.mrb[0].mxu0 %v9631
    %v11051 = vpop.f32.mrb[0].mxu0
    %v11052 = vadd.f32 %v11004, %v11051
    %v11053 = vpop.f32.mrb[0].mxu0
    %v11054 = vpop.f32.mrb[0].mxu0
    %v11055 = vadd.f32 %v11007, %v11054
    %v11056 = vpop.f32.mrb[0].mxu0
    %11057 = vmatprep.mubr.bf16.mxu0 %v9640
    %11058 = vmatmul.mubr.bf16.gmra.mrb[0].mxu0 %v9639
    %v11059 = vpop.f32.mrb[0].mxu0
    %v11060 = vadd.f32 %v11012, %v11059
    %v11061 = vpop.f32.mrb[0].mxu0
    %v11062 = vpop.f32.mrb[0].mxu0
    %v11063 = vpop.f32.mrb[0].mxu0
    %11064 = vdwg.mxu0
    %v11065 = vld [vmem:[#allocation15] sm:$0x1]
    %v11067 = vlaneseq
    %v11068 = vshrl.u32 %v11067, 7
    %v11069 = vsub.s32 0, %v11068
    %v11070 = vrot.slane %v11065, %v11069
    %v11072 = vadd.f32 %v11052, %v11070
    %v11073 = vadd.f32 %v11055, %v11070
    %v11074 = vadd.f32 %v11060, %v11070
    %v11075 = vlaneseq
    %v11076 = vand.u32 %v11075, 127
    %vm11077 = vcmp.lt.s32.totalorder %v11076, 4
    %v11078 = vxor.u32 %v11072, 2147483648
    %v11079 = vxor.u32 %v11073, 2147483648
    %v11080 = vxor.u32 %v11074, 2147483648
    %v11081 = vmul.f32 %v11078, 1.442695
    %v11082 = vpow.pop %v11081
    %v11083 = vmul.f32 %v11079, 1.442695
    %v11084 = vpow.pop %v11083
    %v11085 = vmul.f32 %v11080, 1.442695
    %v11086 = vpow.pop %v11085
    %v11087 = vadd.f32 %v11082, 1.0
    %v11088 = vadd.f32 %v11084, 1.0
    %v11089 = vadd.f32 %v11086, 1.0
    %v11090 = vrcp.pop %v11087
    %v11091 = vmul.f32 1.0, %v11090
    %v11092 = vrcp.pop %v11088
    %v11093 = vmul.f32 1.0, %v11092
    %v11094 = vrcp.pop %v11089
    %v11095 = vmul.f32 1.0, %v11094
    %v11096 = vsel %vm11077, %v11091, %v11072
    %v11097 = vsel %vm11077, %v11093, %v11073
    %v11098 = vsel %vm11077, %v11095, %v11074
    %11099 = vst [vmem:[%s11] sm:$0xff] %v11096
    %11100 = vst [vmem:[%s11 + $0x8] sm:$0xff] %v11097
    %11101 = vst [vmem:[%s11 + $0x10] sm:$0xff] %v11098
    // Predicated region
    $region82: #{coformer_forward.1} parent=1 // pred_check
      _
    $region83: #{coformer_forward.1} parent=1 // pred_check_branch
      %11103 = sbr.rel (0) target = $region85
    $region84: #{coformer_forward.1} parent=1 // pred_region
      _
    $region85: #{coformer_forward.1} parent=1 // pred_fallthru
      _
    // Predicated region
    $region86: #{coformer_forward.1} parent=1 // pred_check
      _
    $region87: #{coformer_forward.1} parent=1 // pred_check_branch
      %11105 = sbr.rel (0) target = $region89
    $region88: #{coformer_forward.1} parent=1 // pred_region
      _
    $region89: #{coformer_forward.1} parent=1 // pred_fallthru
      _
    %11106 = vsyncpa [#allocation3], 1
    %11107 = vsyncpa [#allocation5], 1
    %11108 = vsyncpa [#allocation8], 1
    %11109 = vsyncpa [#allocation11], 1
    %11110 = vsyncpa [#allocation14], 1

</llo_original>
